<compile_context>
chip_gen: v7x
topology: tpu7x:2x2x1
jax: 0.10.0
libtpu: 0.0.40
codegen_flags: <defaults>
</compile_context>

<pallas_src>
import functools

import jax
import jax.numpy as jnp
from jax.experimental import pallas as pl
from jax.experimental.pallas import tpu as pltpu


_VMEM_LIMIT = 32 * 1024 * 1024   # explicit scoped-VMEM budget (peak use < 6 MB)


# ----------------------------------------------------------------------------
# Pallas kernels
# ----------------------------------------------------------------------------
def _convt_bn_tanh_kernel(w_ref, col_ref, b_ref, g_ref, beta_ref, o_ref, *, eps):
    """Fused (ConvT-as-matmul) + bias + BatchNorm2d(train) + Tanh.

    w_ref:    (Cout, K)   flipped, flattened ConvTranspose2d weight (transposed)
    col_ref:  (K, M)      im2col of the dilated+padded input, M = B*Ho*Wo
    b_ref/g_ref/beta_ref: (Cout, 1)
    o_ref:    (Cout, M)   lane-dense output (M on the lane axis)
    """
    acc = jnp.dot(w_ref[...], col_ref[...], preferred_element_type=jnp.float32)
    acc = acc + b_ref[...]
    # BatchNorm2d training-mode statistics: per channel over all M = B*H*W.
    mean = jnp.mean(acc, axis=1, keepdims=True)
    d = acc - mean
    var = jnp.mean(d * d, axis=1, keepdims=True)          # biased variance
    y = d * jax.lax.rsqrt(var + eps)
    y = y * g_ref[...] + beta_ref[...]
    o_ref[...] = jnp.tanh(y).astype(o_ref.dtype)


def convt_bn_tanh(wT, colT, bias, gamma, beta, eps=1e-5):
    """wT: (Cout, K); colT: (K, M); bias/gamma/beta: (Cout,) -> (Cout, M)."""
    Cout, K = wT.shape
    _, M = colT.shape
    cost = pl.CostEstimate(
        flops=int(2 * Cout * K * M + 8 * Cout * M),
        transcendentals=int(Cout * M + Cout),
        bytes_accessed=int(4 * (Cout * K + K * M + 3 * Cout + Cout * M)),
    )
    vmem_spec = pl.BlockSpec(memory_space=pltpu.MemorySpace.VMEM)
    return pl.pallas_call(
        functools.partial(_convt_bn_tanh_kernel, eps=eps),
        out_shape=jax.ShapeDtypeStruct((Cout, M), jnp.float32),
        in_specs=[vmem_spec] * 5,
        out_specs=vmem_spec,
        compiler_params=pltpu.CompilerParams(vmem_limit_bytes=_VMEM_LIMIT),
        cost_estimate=cost,
    )(wT, colT,
      bias.reshape(Cout, 1), gamma.reshape(Cout, 1), beta.reshape(Cout, 1))


def _convt_sigmoid_kernel(w_ref, col_ref, b_ref, o_ref):
    """Final ConvTranspose2d (Cout=1) + Sigmoid as a VPU reduction.

    w_ref: (K, 1); col_ref: (K, TM); b_ref: (1, 1); o_ref: (1, TM) lane-dense.
    """
    acc = jnp.sum(col_ref[...] * w_ref[...], axis=0, keepdims=True) + b_ref[...]
    o_ref[...] = jax.nn.sigmoid(acc).astype(o_ref.dtype)


def convt_sigmoid(w_flat, colT, bias, *, tile_m=4096):
    """w_flat: (K, 1); colT: (K, M); bias: (1,) -> (1, M)."""
    K, Cout = w_flat.shape
    _, M = colT.shape
    if M % tile_m != 0:
        tile_m = M
    grid_m = M // tile_m
    cost = pl.CostEstimate(
        flops=int(2 * K * M),
        transcendentals=int(M),
        bytes_accessed=int(4 * (K * M + K + 1 + M)),
    )
    return pl.pallas_call(
        _convt_sigmoid_kernel,
        out_shape=jax.ShapeDtypeStruct((Cout, M), jnp.float32),
        grid=(grid_m,),
        in_specs=[
            pl.BlockSpec((K, Cout), lambda i: (0, 0)),
            pl.BlockSpec((K, tile_m), lambda i: (0, i)),
            pl.BlockSpec((1, 1), lambda i: (0, 0)),
        ],
        out_specs=pl.BlockSpec((Cout, tile_m), lambda i: (0, i)),
        compiler_params=pltpu.CompilerParams(
            dimension_semantics=("parallel",),      # both v7x TCs get a tile
            vmem_limit_bytes=_VMEM_LIMIT,
        ),
        cost_estimate=cost,
    )(w_flat, colT, bias.reshape(1, 1))


# ----------------------------------------------------------------------------
# ConvTranspose2d layout glue (plain JAX): zero-dilate + pad + im2col, all in
# the transposed channel-major layout so the Pallas outputs stay lane-dense.
# ----------------------------------------------------------------------------
def _convt_im2col_T(x, stride, padding, k=4):
    """x: (C, B, H, W) -> colT (k*k*C, B*Ho*Wo), Ho, Wo.

    ConvTranspose2d == stride-1 conv of the zero-dilated, (k-1-p)-padded input
    with the spatially-flipped kernel; colT rows are ordered (kh, kw, cin) to
    match _flatten_convt_weight.
    """
    C, B, H, W = x.shape
    if stride > 1:
        Hd, Wd = (H - 1) * stride + 1, (W - 1) * stride + 1
        xd = jnp.zeros((C, B, Hd, Wd), x.dtype).at[:, :, ::stride, ::stride].set(x)
    else:
        xd = x
    p = k - 1 - padding
    xp = jnp.pad(xd, ((0, 0), (0, 0), (p, p), (p, p)))
    Ho = (H - 1) * stride - 2 * padding + k
    Wo = (W - 1) * stride - 2 * padding + k
    taps = [xp[:, :, kh:kh + Ho, kw:kw + Wo] for kh in range(k) for kw in range(k)]
    colT = jnp.stack(taps, axis=0).reshape(k * k * C, B * Ho * Wo)
    return colT, Ho, Wo


def _flatten_convt_weight(w, k=4):
    """w: (Cin, Cout, k, k) PyTorch ConvTranspose2d layout -> (k*k*Cin, Cout)."""
    wf = jnp.flip(w, axis=(2, 3))              # flip kernel for equivalent conv
    wf = jnp.transpose(wf, (2, 3, 0, 1))       # (k, k, Cin, Cout)
    return wf.reshape(k * k * w.shape[0], w.shape[1])


# ----------------------------------------------------------------------------
# Inversion.forward
# ----------------------------------------------------------------------------
def inversion_forward(x, params, *, nz, truncation, c):
    B = x.shape[0]
    # topk / log / clamp / scatter preprocessing (tiny, data-dependent) in JAX.
    vals, idx = jax.lax.top_k(x, truncation)
    vals = jnp.maximum(jnp.log(vals), -1000.0) + c
    vmin = jnp.min(vals, axis=1, keepdims=True)
    vals = vals + jnp.maximum(-vmin, 0.0)                  # + relu(-min)
    z = jnp.zeros((B, nz), jnp.float32).at[jnp.arange(B)[:, None], idx].set(vals)

    # Channel-major (C, B, H, W) activation layout throughout the decoder.
    h = z.T.reshape(nz, B, 1, 1)

    cfg = [(1, 0), (2, 1), (2, 1), (2, 1)]                 # (stride, padding)
    for li, (stride, pad) in enumerate(cfg):
        colT, Ho, Wo = _convt_im2col_T(h, stride, pad)
        wT = _flatten_convt_weight(params[f"w{li}"]).T     # (Cout, k*k*Cin)
        outT = convt_bn_tanh(wT, colT, params[f"b{li}"],
                             params[f"gamma{li}"], params[f"beta{li}"])
        h = outT.reshape(wT.shape[0], B, Ho, Wo)

    # Final ConvTranspose2d(ngf -> nc=1) + Sigmoid.
    colT, Ho, Wo = _convt_im2col_T(h, 2, 1)
    w_flat = _flatten_convt_weight(params["w4"])           # (k*k*ngf, 1)
    outT = convt_sigmoid(w_flat, colT, params["b4"])       # (1, B*64*64)

    out = outT.reshape(1, B, Ho, Wo)                       # (nc, B, 64, 64)
    # channel-major -> NCHW, then .view(-1, 1, 64, 64)
    return jnp.transpose(out, (1, 0, 2, 3)).reshape(-1, 1, 64, 64)


def init_params(key, nc, ngf, nz):
    chans = [nz, ngf * 8, ngf * 4, ngf * 2, ngf, nc]
    params = {}
    keys = jax.random.split(key, 10)
    for i in range(5):
        cin, cout = chans[i], chans[i + 1]
        params[f"w{i}"] = 0.02 * jax.random.normal(keys[2 * i], (cin, cout, 4, 4),
                                                   jnp.float32)
        params[f"b{i}"] = 0.01 * jax.random.normal(keys[2 * i + 1], (cout,),
                                                   jnp.float32)
        if i < 4:
            params[f"gamma{i}"] = jnp.ones((cout,), jnp.float32)
            params[f"beta{i}"] = jnp.zeros((cout,), jnp.float32)
    return params


if __name__ == "__main__":
    nc, ngf, nz, truncation, c = 1, 8, 32, 3, 50.0
    B = 2

    key = jax.random.PRNGKey(0)
    kx, kp = jax.random.split(key)
    # classifier prediction vector (probabilities), as in the model-inversion setup
    x = jax.nn.softmax(jax.random.normal(kx, (B, nz), jnp.float32), axis=-1)
    params = init_params(kp, nc, ngf, nz)

    fwd = jax.jit(functools.partial(inversion_forward, nz=nz,
                                    truncation=truncation, c=c))
    out = jax.block_until_ready(fwd(x, params))

    assert out.shape == (B, 1, 64, 64), out.shape
    assert bool(jnp.all(jnp.isfinite(out)))
    print("KERNEL_OK")
</pallas_src>

<mosaic_0001>
module attributes {stable_mosaic.version = 11 : i64} {
  func.func @_convt_bn_tanh_kernel(%arg0: memref<64x512xf32, #tpu.memory_space<vmem>>, %arg1: memref<512x32xf32, #tpu.memory_space<vmem>>, %arg2: memref<64x1xf32, #tpu.memory_space<vmem>>, %arg3: memref<64x1xf32, #tpu.memory_space<vmem>>, %arg4: memref<64x1xf32, #tpu.memory_space<vmem>>, %arg5: memref<64x32xf32, #tpu.memory_space<vmem>>) attributes {dimension_semantics = [], scalar_prefetch = 0 : i64, scratch_operands = 0 : i64, tpu.core_type = #tpu.core_type<tc>} {
    %c0 = arith.constant 0 : index
    %c0_0 = arith.constant 0 : index
    %0 = vector.load %arg0[%c0, %c0_0] : memref<64x512xf32, #tpu.memory_space<vmem>>, vector<64x512xf32>
    %c0_1 = arith.constant 0 : index
    %c0_2 = arith.constant 0 : index
    %1 = vector.load %arg1[%c0_1, %c0_2] : memref<512x32xf32, #tpu.memory_space<vmem>>, vector<512x32xf32>
    %cst = arith.constant dense<0.000000e+00> : vector<64x32xf32>
    %2 = tpu.matmul %0, %1, %cst {dimension_numbers = #tpu.dot_dimension_numbers<[1], [0], [0], [1], [0, 0, 1, 1], [], []>} : vector<64x512xf32>, vector<512x32xf32>, vector<64x32xf32> -> vector<64x32xf32>
    %c0_3 = arith.constant 0 : index
    %c0_4 = arith.constant 0 : index
    %3 = vector.load %arg2[%c0_3, %c0_4] : memref<64x1xf32, #tpu.memory_space<vmem>>, vector<64x1xf32>
    %4 = vector.broadcast %3 : vector<64x1xf32> to vector<64x32xf32>
    %5 = arith.addf %2, %4 : vector<64x32xf32>
    %cst_5 = arith.constant dense<0.000000e+00> : vector<64xf32>
    %6 = vector.multi_reduction <add>, %5, %cst_5 [1] : vector<64x32xf32> to vector<64xf32>
    %7 = vector.shape_cast %6 : vector<64xf32> to vector<64x1xf32>
    %cst_6 = arith.constant 3.200000e+01 : f32
    %8 = vector.broadcast %cst_6 : f32 to vector<64x1xf32>
    %9 = arith.divf %7, %8 : vector<64x1xf32>
    %10 = vector.broadcast %9 : vector<64x1xf32> to vector<64x32xf32>
    %11 = arith.subf %5, %10 : vector<64x32xf32>
    %12 = arith.mulf %11, %11 : vector<64x32xf32>
    %cst_7 = arith.constant dense<0.000000e+00> : vector<64xf32>
    %13 = vector.multi_reduction <add>, %12, %cst_7 [1] : vector<64x32xf32> to vector<64xf32>
    %14 = vector.shape_cast %13 : vector<64xf32> to vector<64x1xf32>
    %cst_8 = arith.constant 3.200000e+01 : f32
    %15 = vector.broadcast %cst_8 : f32 to vector<64x1xf32>
    %16 = arith.divf %14, %15 : vector<64x1xf32>
    %cst_9 = arith.constant 9.99999974E-6 : f32
    %17 = vector.broadcast %cst_9 : f32 to vector<64x1xf32>
    %18 = arith.addf %16, %17 : vector<64x1xf32>
    %19 = math.rsqrt %18 : vector<64x1xf32>
    %20 = vector.broadcast %19 : vector<64x1xf32> to vector<64x32xf32>
    %21 = arith.mulf %11, %20 : vector<64x32xf32>
    %c0_10 = arith.constant 0 : index
    %c0_11 = arith.constant 0 : index
    %22 = vector.load %arg3[%c0_10, %c0_11] : memref<64x1xf32, #tpu.memory_space<vmem>>, vector<64x1xf32>
    %23 = vector.broadcast %22 : vector<64x1xf32> to vector<64x32xf32>
    %24 = arith.mulf %21, %23 : vector<64x32xf32>
    %c0_12 = arith.constant 0 : index
    %c0_13 = arith.constant 0 : index
    %25 = vector.load %arg4[%c0_12, %c0_13] : memref<64x1xf32, #tpu.memory_space<vmem>>, vector<64x1xf32>
    %26 = vector.broadcast %25 : vector<64x1xf32> to vector<64x32xf32>
    %27 = arith.addf %24, %26 : vector<64x32xf32>
    %28 = math.tanh %27 : vector<64x32xf32>
    %c0_14 = arith.constant 0 : index
    %c0_15 = arith.constant 0 : index
    %29 = vector.load %arg5[%c0_14, %c0_15] : memref<64x32xf32, #tpu.memory_space<vmem>>, vector<64x32xf32>
    tpu.vector_store %arg5[%c0_14, %c0_15], %28 {strides = array<i32>} : memref<64x32xf32, #tpu.memory_space<vmem>>, vector<64x32xf32>,
    return
  }
}

module attributes {stable_mosaic.version = 11 : i64} {
  func.func @_convt_bn_tanh_kernel(%arg0: memref<32x1024xf32, #tpu.memory_space<vmem>>, %arg1: memref<1024x128xf32, #tpu.memory_space<vmem>>, %arg2: memref<32x1xf32, #tpu.memory_space<vmem>>, %arg3: memref<32x1xf32, #tpu.memory_space<vmem>>, %arg4: memref<32x1xf32, #tpu.memory_space<vmem>>, %arg5: memref<32x128xf32, #tpu.memory_space<vmem>>) attributes {dimension_semantics = [], scalar_prefetch = 0 : i64, scratch_operands = 0 : i64, tpu.core_type = #tpu.core_type<tc>} {
    %c0 = arith.constant 0 : index
    %c0_0 = arith.constant 0 : index
    %0 = vector.load %arg0[%c0, %c0_0] : memref<32x1024xf32, #tpu.memory_space<vmem>>, vector<32x1024xf32>
    %c0_1 = arith.constant 0 : index
    %c0_2 = arith.constant 0 : index
    %1 = vector.load %arg1[%c0_1, %c0_2] : memref<1024x128xf32, #tpu.memory_space<vmem>>, vector<1024x128xf32>
    %cst = arith.constant dense<0.000000e+00> : vector<32x128xf32>
    %2 = tpu.matmul %0, %1, %cst {dimension_numbers = #tpu.dot_dimension_numbers<[1], [0], [0], [1], [0, 0, 1, 1], [], []>} : vector<32x1024xf32>, vector<1024x128xf32>, vector<32x128xf32> -> vector<32x128xf32>
    %c0_3 = arith.constant 0 : index
    %c0_4 = arith.constant 0 : index
    %3 = vector.load %arg2[%c0_3, %c0_4] : memref<32x1xf32, #tpu.memory_space<vmem>>, vector<32x1xf32>
    %4 = vector.broadcast %3 : vector<32x1xf32> to vector<32x128xf32>
    %5 = arith.addf %2, %4 : vector<32x128xf32>
    %cst_5 = arith.constant dense<0.000000e+00> : vector<32xf32>
    %6 = vector.multi_reduction <add>, %5, %cst_5 [1] : vector<32x128xf32> to vector<32xf32>
    %7 = vector.shape_cast %6 : vector<32xf32> to vector<32x1xf32>
    %cst_6 = arith.constant 1.280000e+02 : f32
    %8 = vector.broadcast %cst_6 : f32 to vector<32x1xf32>
    %9 = arith.divf %7, %8 : vector<32x1xf32>
    %10 = vector.broadcast %9 : vector<32x1xf32> to vector<32x128xf32>
    %11 = arith.subf %5, %10 : vector<32x128xf32>
    %12 = arith.mulf %11, %11 : vector<32x128xf32>
    %cst_7 = arith.constant dense<0.000000e+00> : vector<32xf32>
    %13 = vector.multi_reduction <add>, %12, %cst_7 [1] : vector<32x128xf32> to vector<32xf32>
    %14 = vector.shape_cast %13 : vector<32xf32> to vector<32x1xf32>
    %cst_8 = arith.constant 1.280000e+02 : f32
    %15 = vector.broadcast %cst_8 : f32 to vector<32x1xf32>
    %16 = arith.divf %14, %15 : vector<32x1xf32>
    %cst_9 = arith.constant 9.99999974E-6 : f32
    %17 = vector.broadcast %cst_9 : f32 to vector<32x1xf32>
    %18 = arith.addf %16, %17 : vector<32x1xf32>
    %19 = math.rsqrt %18 : vector<32x1xf32>
    %20 = vector.broadcast %19 : vector<32x1xf32> to vector<32x128xf32>
    %21 = arith.mulf %11, %20 : vector<32x128xf32>
    %c0_10 = arith.constant 0 : index
    %c0_11 = arith.constant 0 : index
    %22 = vector.load %arg3[%c0_10, %c0_11] : memref<32x1xf32, #tpu.memory_space<vmem>>, vector<32x1xf32>
    %23 = vector.broadcast %22 : vector<32x1xf32> to vector<32x128xf32>
    %24 = arith.mulf %21, %23 : vector<32x128xf32>
    %c0_12 = arith.constant 0 : index
    %c0_13 = arith.constant 0 : index
    %25 = vector.load %arg4[%c0_12, %c0_13] : memref<32x1xf32, #tpu.memory_space<vmem>>, vector<32x1xf32>
    %26 = vector.broadcast %25 : vector<32x1xf32> to vector<32x128xf32>
    %27 = arith.addf %24, %26 : vector<32x128xf32>
    %28 = math.tanh %27 : vector<32x128xf32>
    %c0_14 = arith.constant 0 : index
    %c0_15 = arith.constant 0 : index
    %29 = vector.load %arg5[%c0_14, %c0_15] : memref<32x128xf32, #tpu.memory_space<vmem>>, vector<32x128xf32>
    tpu.vector_store %arg5[%c0_14, %c0_15], %28 {strides = array<i32>} : memref<32x128xf32, #tpu.memory_space<vmem>>, vector<32x128xf32>,
    return
  }
}

module attributes {stable_mosaic.version = 11 : i64} {
  func.func @_convt_bn_tanh_kernel(%arg0: memref<16x512xf32, #tpu.memory_space<vmem>>, %arg1: memref<512x512xf32, #tpu.memory_space<vmem>>, %arg2: memref<16x1xf32, #tpu.memory_space<vmem>>, %arg3: memref<16x1xf32, #tpu.memory_space<vmem>>, %arg4: memref<16x1xf32, #tpu.memory_space<vmem>>, %arg5: memref<16x512xf32, #tpu.memory_space<vmem>>) attributes {dimension_semantics = [], scalar_prefetch = 0 : i64, scratch_operands = 0 : i64, tpu.core_type = #tpu.core_type<tc>} {
    %c0 = arith.constant 0 : index
    %c0_0 = arith.constant 0 : index
    %0 = vector.load %arg0[%c0, %c0_0] : memref<16x512xf32, #tpu.memory_space<vmem>>, vector<16x512xf32>
    %c0_1 = arith.constant 0 : index
    %c0_2 = arith.constant 0 : index
    %1 = vector.load %arg1[%c0_1, %c0_2] : memref<512x512xf32, #tpu.memory_space<vmem>>, vector<512x512xf32>
    %cst = arith.constant dense<0.000000e+00> : vector<16x512xf32>
    %2 = tpu.matmul %0, %1, %cst {dimension_numbers = #tpu.dot_dimension_numbers<[1], [0], [0], [1], [0, 0, 1, 1], [], []>} : vector<16x512xf32>, vector<512x512xf32>, vector<16x512xf32> -> vector<16x512xf32>
    %c0_3 = arith.constant 0 : index
    %c0_4 = arith.constant 0 : index
    %3 = vector.load %arg2[%c0_3, %c0_4] : memref<16x1xf32, #tpu.memory_space<vmem>>, vector<16x1xf32>
    %4 = vector.broadcast %3 : vector<16x1xf32> to vector<16x512xf32>
    %5 = arith.addf %2, %4 : vector<16x512xf32>
    %cst_5 = arith.constant dense<0.000000e+00> : vector<16xf32>
    %6 = vector.multi_reduction <add>, %5, %cst_5 [1] : vector<16x512xf32> to vector<16xf32>
    %7 = vector.shape_cast %6 : vector<16xf32> to vector<16x1xf32>
    %cst_6 = arith.constant 5.120000e+02 : f32
    %8 = vector.broadcast %cst_6 : f32 to vector<16x1xf32>
    %9 = arith.divf %7, %8 : vector<16x1xf32>
    %10 = vector.broadcast %9 : vector<16x1xf32> to vector<16x512xf32>
    %11 = arith.subf %5, %10 : vector<16x512xf32>
    %12 = arith.mulf %11, %11 : vector<16x512xf32>
    %cst_7 = arith.constant dense<0.000000e+00> : vector<16xf32>
    %13 = vector.multi_reduction <add>, %12, %cst_7 [1] : vector<16x512xf32> to vector<16xf32>
    %14 = vector.shape_cast %13 : vector<16xf32> to vector<16x1xf32>
    %cst_8 = arith.constant 5.120000e+02 : f32
    %15 = vector.broadcast %cst_8 : f32 to vector<16x1xf32>
    %16 = arith.divf %14, %15 : vector<16x1xf32>
    %cst_9 = arith.constant 9.99999974E-6 : f32
    %17 = vector.broadcast %cst_9 : f32 to vector<16x1xf32>
    %18 = arith.addf %16, %17 : vector<16x1xf32>
    %19 = math.rsqrt %18 : vector<16x1xf32>
    %20 = vector.broadcast %19 : vector<16x1xf32> to vector<16x512xf32>
    %21 = arith.mulf %11, %20 : vector<16x512xf32>
    %c0_10 = arith.constant 0 : index
    %c0_11 = arith.constant 0 : index
    %22 = vector.load %arg3[%c0_10, %c0_11] : memref<16x1xf32, #tpu.memory_space<vmem>>, vector<16x1xf32>
    %23 = vector.broadcast %22 : vector<16x1xf32> to vector<16x512xf32>
    %24 = arith.mulf %21, %23 : vector<16x512xf32>
    %c0_12 = arith.constant 0 : index
    %c0_13 = arith.constant 0 : index
    %25 = vector.load %arg4[%c0_12, %c0_13] : memref<16x1xf32, #tpu.memory_space<vmem>>, vector<16x1xf32>
    %26 = vector.broadcast %25 : vector<16x1xf32> to vector<16x512xf32>
    %27 = arith.addf %24, %26 : vector<16x512xf32>
    %28 = math.tanh %27 : vector<16x512xf32>
    %c0_14 = arith.constant 0 : index
    %c0_15 = arith.constant 0 : index
    %29 = vector.load %arg5[%c0_14, %c0_15] : memref<16x512xf32, #tpu.memory_space<vmem>>, vector<16x512xf32>
    tpu.vector_store %arg5[%c0_14, %c0_15], %28 {strides = array<i32>} : memref<16x512xf32, #tpu.memory_space<vmem>>, vector<16x512xf32>,
    return
  }
}

module attributes {stable_mosaic.version = 11 : i64} {
  func.func @_convt_bn_tanh_kernel(%arg0: memref<8x256xf32, #tpu.memory_space<vmem>>, %arg1: memref<256x2048xf32, #tpu.memory_space<vmem>>, %arg2: memref<8x1xf32, #tpu.memory_space<vmem>>, %arg3: memref<8x1xf32, #tpu.memory_space<vmem>>, %arg4: memref<8x1xf32, #tpu.memory_space<vmem>>, %arg5: memref<8x2048xf32, #tpu.memory_space<vmem>>) attributes {dimension_semantics = [], scalar_prefetch = 0 : i64, scratch_operands = 0 : i64, tpu.core_type = #tpu.core_type<tc>} {
    %c0 = arith.constant 0 : index
    %c0_0 = arith.constant 0 : index
    %0 = vector.load %arg0[%c0, %c0_0] : memref<8x256xf32, #tpu.memory_space<vmem>>, vector<8x256xf32>
    %c0_1 = arith.constant 0 : index
    %c0_2 = arith.constant 0 : index
    %1 = vector.load %arg1[%c0_1, %c0_2] : memref<256x2048xf32, #tpu.memory_space<vmem>>, vector<256x2048xf32>
    %cst = arith.constant dense<0.000000e+00> : vector<8x2048xf32>
    %2 = tpu.matmul %0, %1, %cst {dimension_numbers = #tpu.dot_dimension_numbers<[1], [0], [0], [1], [0, 0, 1, 1], [], []>} : vector<8x256xf32>, vector<256x2048xf32>, vector<8x2048xf32> -> vector<8x2048xf32>
    %c0_3 = arith.constant 0 : index
    %c0_4 = arith.constant 0 : index
    %3 = vector.load %arg2[%c0_3, %c0_4] : memref<8x1xf32, #tpu.memory_space<vmem>>, vector<8x1xf32>
    %4 = vector.broadcast %3 : vector<8x1xf32> to vector<8x2048xf32>
    %5 = arith.addf %2, %4 : vector<8x2048xf32>
    %cst_5 = arith.constant dense<0.000000e+00> : vector<8xf32>
    %6 = vector.multi_reduction <add>, %5, %cst_5 [1] : vector<8x2048xf32> to vector<8xf32>
    %7 = vector.shape_cast %6 : vector<8xf32> to vector<8x1xf32>
    %cst_6 = arith.constant 2.048000e+03 : f32
    %8 = vector.broadcast %cst_6 : f32 to vector<8x1xf32>
    %9 = arith.divf %7, %8 : vector<8x1xf32>
    %10 = vector.broadcast %9 : vector<8x1xf32> to vector<8x2048xf32>
    %11 = arith.subf %5, %10 : vector<8x2048xf32>
    %12 = arith.mulf %11, %11 : vector<8x2048xf32>
    %cst_7 = arith.constant dense<0.000000e+00> : vector<8xf32>
    %13 = vector.multi_reduction <add>, %12, %cst_7 [1] : vector<8x2048xf32> to vector<8xf32>
    %14 = vector.shape_cast %13 : vector<8xf32> to vector<8x1xf32>
    %cst_8 = arith.constant 2.048000e+03 : f32
    %15 = vector.broadcast %cst_8 : f32 to vector<8x1xf32>
    %16 = arith.divf %14, %15 : vector<8x1xf32>
    %cst_9 = arith.constant 9.99999974E-6 : f32
    %17 = vector.broadcast %cst_9 : f32 to vector<8x1xf32>
    %18 = arith.addf %16, %17 : vector<8x1xf32>
    %19 = math.rsqrt %18 : vector<8x1xf32>
    %20 = vector.broadcast %19 : vector<8x1xf32> to vector<8x2048xf32>
    %21 = arith.mulf %11, %20 : vector<8x2048xf32>
    %c0_10 = arith.constant 0 : index
    %c0_11 = arith.constant 0 : index
    %22 = vector.load %arg3[%c0_10, %c0_11] : memref<8x1xf32, #tpu.memory_space<vmem>>, vector<8x1xf32>
    %23 = vector.broadcast %22 : vector<8x1xf32> to vector<8x2048xf32>
    %24 = arith.mulf %21, %23 : vector<8x2048xf32>
    %c0_12 = arith.constant 0 : index
    %c0_13 = arith.constant 0 : index
    %25 = vector.load %arg4[%c0_12, %c0_13] : memref<8x1xf32, #tpu.memory_space<vmem>>, vector<8x1xf32>
    %26 = vector.broadcast %25 : vector<8x1xf32> to vector<8x2048xf32>
    %27 = arith.addf %24, %26 : vector<8x2048xf32>
    %28 = math.tanh %27 : vector<8x2048xf32>
    %c0_14 = arith.constant 0 : index
    %c0_15 = arith.constant 0 : index
    %29 = vector.load %arg5[%c0_14, %c0_15] : memref<8x2048xf32, #tpu.memory_space<vmem>>, vector<8x2048xf32>
    tpu.vector_store %arg5[%c0_14, %c0_15], %28 {strides = array<i32>} : memref<8x2048xf32, #tpu.memory_space<vmem>>, vector<8x2048xf32>,
    return
  }
}

module attributes {stable_mosaic.version = 11 : i64} {
  func.func @_convt_sigmoid_kernel(%arg0: i32, %arg1: memref<128x1xf32, #tpu.memory_space<vmem>>, %arg2: memref<128x4096xf32, #tpu.memory_space<vmem>>, %arg3: memref<1x1xf32, #tpu.memory_space<vmem>>, %arg4: memref<1x4096xf32, #tpu.memory_space<vmem>>) attributes {dimension_semantics = [#tpu.dimension_semantics<parallel>], iteration_bounds = array<i64: 2>, scalar_prefetch = 0 : i64, scratch_operands = 0 : i64, tpu.core_type = #tpu.core_type<tc>, window_params = [{pipeline_mode = #tpu.pipeline_mode<synchronous>, transform_indices = @transform_0, window_bounds = array<i64: 128, 1>}, {transform_indices = @transform_1, window_bounds = array<i64: 128, 4096>}, {pipeline_mode = #tpu.pipeline_mode<synchronous>, transform_indices = @transform_2, window_bounds = array<i64: 1, 1>}, {transform_indices = @transform_3, window_bounds = array<i64: 1, 4096>}]} {
    %c0 = arith.constant 0 : index
    %c0_0 = arith.constant 0 : index
    %0 = vector.load %arg2[%c0, %c0_0] : memref<128x4096xf32, #tpu.memory_space<vmem>>, vector<128x4096xf32>
    %c0_1 = arith.constant 0 : index
    %c0_2 = arith.constant 0 : index
    %1 = vector.load %arg1[%c0_1, %c0_2] : memref<128x1xf32, #tpu.memory_space<vmem>>, vector<128x1xf32>
    %2 = vector.broadcast %1 : vector<128x1xf32> to vector<128x4096xf32>
    %3 = arith.mulf %0, %2 : vector<128x4096xf32>
    %cst = arith.constant dense<0.000000e+00> : vector<4096xf32>
    %4 = vector.multi_reduction <add>, %3, %cst [0] : vector<128x4096xf32> to vector<4096xf32>
    %5 = vector.shape_cast %4 : vector<4096xf32> to vector<1x4096xf32>
    %c0_3 = arith.constant 0 : index
    %c0_4 = arith.constant 0 : index
    %6 = vector.load %arg3[%c0_3, %c0_4] : memref<1x1xf32, #tpu.memory_space<vmem>>, vector<1x1xf32>
    %7 = vector.broadcast %6 : vector<1x1xf32> to vector<1x4096xf32>
    %8 = arith.addf %5, %7 : vector<1x4096xf32>
    %9 = arith.negf %8 : vector<1x4096xf32>
    %10 = math.exp %9 : vector<1x4096xf32>
    %cst_5 = arith.constant 1.000000e+00 : f32
    %11 = vector.broadcast %cst_5 : f32 to vector<1x4096xf32>
    %12 = arith.addf %11, %10 : vector<1x4096xf32>
    %13 = arith.divf %11, %12 : vector<1x4096xf32>
    %c0_6 = arith.constant 0 : index
    %c0_7 = arith.constant 0 : index
    %14 = vector.load %arg4[%c0_6, %c0_7] : memref<1x4096xf32, #tpu.memory_space<vmem>>, vector<1x4096xf32>
    tpu.vector_store %arg4[%c0_6, %c0_7], %13 {strides = array<i32>} : memref<1x4096xf32, #tpu.memory_space<vmem>>, vector<1x4096xf32>,
    return
  }
  func.func @transform_0(%arg0: i32) -> (i32, i32) {
    %c0_i32 = arith.constant 0 : i32
    %c0_i32_0 = arith.constant 0 : i32
    %c0_i32_1 = arith.constant 0 : i32
    return %c0_i32, %c0_i32_0 : i32, i32
  }
  func.func @transform_1(%arg0: i32) -> (i32, i32) {
    %c0_i32 = arith.constant 0 : i32
    %c0_i32_0 = arith.constant 0 : i32
    return %c0_i32, %arg0 : i32, i32
  }
  func.func @transform_2(%arg0: i32) -> (i32, i32) {
    %c0_i32 = arith.constant 0 : i32
    %c0_i32_0 = arith.constant 0 : i32
    %c0_i32_1 = arith.constant 0 : i32
    return %c0_i32, %c0_i32_0 : i32, i32
  }
  func.func @transform_3(%arg0: i32) -> (i32, i32) {
    %c0_i32 = arith.constant 0 : i32
    %c0_i32_0 = arith.constant 0 : i32
    return %c0_i32, %arg0 : i32, i32
  }
}

</mosaic_0001>

<llo_original>
// kernel: inversion_forward.5
$region0: #{inversion_forward.5}
  #allocation0 [shape = 'u32[]', space=smem, size = 0x4, offset = 0x4, fixed_abs, tag = 'smem constant byte address 0x4 - core index']
  #allocation1 [shape = 'u32[144,128]{1,0:T(1,128)}', space=vmem, size = 0x12000, scoped, tag = 'internal scratch']
  %s0 = inlined_call_operand.vmem [shape: f32[64,512], index: 0, kind: input, shape index: {}]
  %s1 = inlined_call_operand.vmem [shape: f32[512,32], index: 1, kind: input, shape index: {}]
  %s2 = inlined_call_operand.vmem [shape: f32[64,1], index: 2, kind: input, shape index: {}]
  %s3 = inlined_call_operand.vmem [shape: f32[64,1], index: 3, kind: input, shape index: {}]
  %s4 = inlined_call_operand.vmem [shape: f32[64,1], index: 4, kind: input, shape index: {}]
  %s5 = inlined_call_operand.vmem [shape: f32[64,32], index: 5, kind: output, shape index: {}]
  %s6 = sld [smem:[#allocation0]]
  $region30: #{inversion_forward.5} parent=0
    _
  %s8 = ssub.s32 1, %s6
  %s9 = scalar_select 0, %s8, %s6
  // Predicated region
  $region2: #{inversion_forward.5} parent=0 // pred_check
    _
  $region3: #{inversion_forward.5} parent=0 // pred_check_branch
    %11 = sbr.rel (0) target = $region5
  $region4: #{inversion_forward.5} parent=0 // pred_region
    _
  $region5: #{inversion_forward.5} parent=0 // pred_fallthru
    _
  // Predicated region
  $region6: #{inversion_forward.5} parent=0 // pred_check
    _
  $region7: #{inversion_forward.5} parent=0 // pred_check_branch
    %13 = sbr.rel (0) target = $region9
  $region8: #{inversion_forward.5} parent=0 // pred_region
    _
  $region9: #{inversion_forward.5} parent=0 // pred_fallthru
    _
  // Predicated region
  $region10: #{inversion_forward.5} parent=0 // pred_check
    _
  $region11: #{inversion_forward.5} parent=0 // pred_check_branch
    %15 = sbr.rel (0) target = $region13
  $region12: #{inversion_forward.5} parent=0 // pred_region
    _
  $region13: #{inversion_forward.5} parent=0 // pred_fallthru
    _
  // Predicated region
  $region14: #{inversion_forward.5} parent=0 // pred_check
    _
  $region15: #{inversion_forward.5} parent=0 // pred_check_branch
    %17 = sbr.rel (0) target = $region17
  $region16: #{inversion_forward.5} parent=0 // pred_region
    _
  $region17: #{inversion_forward.5} parent=0 // pred_fallthru
    _
  // Predicated region
  $region18: #{inversion_forward.5} parent=0 // pred_check
    _
  $region19: #{inversion_forward.5} parent=0 // pred_check_branch
    %19 = sbr.rel (0) target = $region21
  $region20: #{inversion_forward.5} parent=0 // pred_region
    _
  $region21: #{inversion_forward.5} parent=0 // pred_fallthru
    _
  %v20 = vld [vmem:[%s0] sm:$0xff]
  %v21 = vld [vmem:[%s0 + $0x8] sm:$0xff]
  %v22 = vld [vmem:[%s0 + $0x10] sm:$0xff]
  %v23 = vld [vmem:[%s0 + $0x18] sm:$0xff]
  %v24 = vld [vmem:[%s0 + $0x20] sm:$0xff]
  %v25 = vld [vmem:[%s0 + $0x28] sm:$0xff]
  %v26 = vld [vmem:[%s0 + $0x30] sm:$0xff]
  %v27 = vld [vmem:[%s0 + $0x38] sm:$0xff]
  %v28 = vld [vmem:[%s0 + $0x40] sm:$0xff]
  %v29 = vld [vmem:[%s0 + $0x48] sm:$0xff]
  %v30 = vld [vmem:[%s0 + $0x50] sm:$0xff]
  %v31 = vld [vmem:[%s0 + $0x58] sm:$0xff]
  %v32 = vld [vmem:[%s0 + $0x60] sm:$0xff]
  %v33 = vld [vmem:[%s0 + $0x68] sm:$0xff]
  %v34 = vld [vmem:[%s0 + $0x70] sm:$0xff]
  %v35 = vld [vmem:[%s0 + $0x78] sm:$0xff]
  %v36 = vld [vmem:[%s0 + $0x80] sm:$0xff]
  %v37 = vld [vmem:[%s0 + $0x88] sm:$0xff]
  %v38 = vld [vmem:[%s0 + $0x90] sm:$0xff]
  %v39 = vld [vmem:[%s0 + $0x98] sm:$0xff]
  %v40 = vld [vmem:[%s0 + $0xa0] sm:$0xff]
  %v41 = vld [vmem:[%s0 + $0xa8] sm:$0xff]
  %v42 = vld [vmem:[%s0 + $0xb0] sm:$0xff]
  %v43 = vld [vmem:[%s0 + $0xb8] sm:$0xff]
  %v44 = vld [vmem:[%s0 + $0xc0] sm:$0xff]
  %v45 = vld [vmem:[%s0 + $0xc8] sm:$0xff]
  %v46 = vld [vmem:[%s0 + $0xd0] sm:$0xff]
  %v47 = vld [vmem:[%s0 + $0xd8] sm:$0xff]
  %v48 = vld [vmem:[%s0 + $0xe0] sm:$0xff]
  %v49 = vld [vmem:[%s0 + $0xe8] sm:$0xff]
  %v50 = vld [vmem:[%s0 + $0xf0] sm:$0xff]
  %v51 = vld [vmem:[%s0 + $0xf8] sm:$0xff]
  %v52 = vld [vmem:[%s1] sm:$0xff]
  %v53 = vld [vmem:[%s1 + $0x8] sm:$0xff]
  %v54 = vld [vmem:[%s1 + $0x10] sm:$0xff]
  %v55 = vld [vmem:[%s1 + $0x18] sm:$0xff]
  %v56 = vld [vmem:[%s1 + $0x20] sm:$0xff]
  %v57 = vld [vmem:[%s1 + $0x28] sm:$0xff]
  %v58 = vld [vmem:[%s1 + $0x30] sm:$0xff]
  %v59 = vld [vmem:[%s1 + $0x38] sm:$0xff]
  %v60 = vld [vmem:[%s1 + $0x40] sm:$0xff]
  %v61 = vld [vmem:[%s1 + $0x48] sm:$0xff]
  %v62 = vld [vmem:[%s1 + $0x50] sm:$0xff]
  %v63 = vld [vmem:[%s1 + $0x58] sm:$0xff]
  %v64 = vld [vmem:[%s1 + $0x60] sm:$0xff]
  %v65 = vld [vmem:[%s1 + $0x68] sm:$0xff]
  %v66 = vld [vmem:[%s1 + $0x70] sm:$0xff]
  %v67 = vld [vmem:[%s1 + $0x78] sm:$0xff]
  %v68 = vld [vmem:[%s1 + $0x80] sm:$0xff]
  %v69 = vld [vmem:[%s1 + $0x88] sm:$0xff]
  %v70 = vld [vmem:[%s1 + $0x90] sm:$0xff]
  %v71 = vld [vmem:[%s1 + $0x98] sm:$0xff]
  %v72 = vld [vmem:[%s1 + $0xa0] sm:$0xff]
  %v73 = vld [vmem:[%s1 + $0xa8] sm:$0xff]
  %v74 = vld [vmem:[%s1 + $0xb0] sm:$0xff]
  %v75 = vld [vmem:[%s1 + $0xb8] sm:$0xff]
  %v76 = vld [vmem:[%s1 + $0xc0] sm:$0xff]
  %v77 = vld [vmem:[%s1 + $0xc8] sm:$0xff]
  %v78 = vld [vmem:[%s1 + $0xd0] sm:$0xff]
  %v79 = vld [vmem:[%s1 + $0xd8] sm:$0xff]
  %v80 = vld [vmem:[%s1 + $0xe0] sm:$0xff]
  %v81 = vld [vmem:[%s1 + $0xe8] sm:$0xff]
  %v82 = vld [vmem:[%s1 + $0xf0] sm:$0xff]
  %v83 = vld [vmem:[%s1 + $0xf8] sm:$0xff]
  %v84 = vld [vmem:[%s1 + $0x100] sm:$0xff]
  %v85 = vld [vmem:[%s1 + $0x108] sm:$0xff]
  %v86 = vld [vmem:[%s1 + $0x110] sm:$0xff]
  %v87 = vld [vmem:[%s1 + $0x118] sm:$0xff]
  %v88 = vld [vmem:[%s1 + $0x120] sm:$0xff]
  %v89 = vld [vmem:[%s1 + $0x128] sm:$0xff]
  %v90 = vld [vmem:[%s1 + $0x130] sm:$0xff]
  %v91 = vld [vmem:[%s1 + $0x138] sm:$0xff]
  %v92 = vld [vmem:[%s1 + $0x140] sm:$0xff]
  %v93 = vld [vmem:[%s1 + $0x148] sm:$0xff]
  %v94 = vld [vmem:[%s1 + $0x150] sm:$0xff]
  %v95 = vld [vmem:[%s1 + $0x158] sm:$0xff]
  %v96 = vld [vmem:[%s1 + $0x160] sm:$0xff]
  %v97 = vld [vmem:[%s1 + $0x168] sm:$0xff]
  %v98 = vld [vmem:[%s1 + $0x170] sm:$0xff]
  %v99 = vld [vmem:[%s1 + $0x178] sm:$0xff]
  %v100 = vld [vmem:[%s1 + $0x180] sm:$0xff]
  %v101 = vld [vmem:[%s1 + $0x188] sm:$0xff]
  %v102 = vld [vmem:[%s1 + $0x190] sm:$0xff]
  %v103 = vld [vmem:[%s1 + $0x198] sm:$0xff]
  %v104 = vld [vmem:[%s1 + $0x1a0] sm:$0xff]
  %v105 = vld [vmem:[%s1 + $0x1a8] sm:$0xff]
  %v106 = vld [vmem:[%s1 + $0x1b0] sm:$0xff]
  %v107 = vld [vmem:[%s1 + $0x1b8] sm:$0xff]
  %v108 = vld [vmem:[%s1 + $0x1c0] sm:$0xff]
  %v109 = vld [vmem:[%s1 + $0x1c8] sm:$0xff]
  %v110 = vld [vmem:[%s1 + $0x1d0] sm:$0xff]
  %v111 = vld [vmem:[%s1 + $0x1d8] sm:$0xff]
  %v112 = vld [vmem:[%s1 + $0x1e0] sm:$0xff]
  %v113 = vld [vmem:[%s1 + $0x1e8] sm:$0xff]
  %v114 = vld [vmem:[%s1 + $0x1f0] sm:$0xff]
  %v115 = vld [vmem:[%s1 + $0x1f8] sm:$0xff]
  %v116 = vld [vmem:[%s2] sm:$0xff]
  %v117 = vld [vmem:[%s2 + $0x8] sm:$0xff]
  %v118 = vld [vmem:[%s2 + $0x10] sm:$0xff]
  %v119 = vld [vmem:[%s2 + $0x18] sm:$0xff]
  %v120 = vld [vmem:[%s2 + $0x20] sm:$0xff]
  %v121 = vld [vmem:[%s2 + $0x28] sm:$0xff]
  %v122 = vld [vmem:[%s2 + $0x30] sm:$0xff]
  %v123 = vld [vmem:[%s2 + $0x38] sm:$0xff]
  %125 = vset.pattern.permute.xlu0 0
  %126 = vperm.xlu0 %125, %v116
  %v127 = vpop.permute.xlu0 %126
  %130 = vset.pattern.permute.xlu0 0
  %131 = vperm.xlu0 %130, %v117
  %v132 = vpop.permute.xlu0 %131
  %135 = vset.pattern.permute.xlu0 0
  %136 = vperm.xlu0 %135, %v118
  %v137 = vpop.permute.xlu0 %136
  %140 = vset.pattern.permute.xlu0 0
  %141 = vperm.xlu0 %140, %v119
  %v142 = vpop.permute.xlu0 %141
  %145 = vset.pattern.permute.xlu0 0
  %146 = vperm.xlu0 %145, %v120
  %v147 = vpop.permute.xlu0 %146
  %150 = vset.pattern.permute.xlu0 0
  %151 = vperm.xlu0 %150, %v121
  %v152 = vpop.permute.xlu0 %151
  %155 = vset.pattern.permute.xlu0 0
  %156 = vperm.xlu0 %155, %v122
  %v157 = vpop.permute.xlu0 %156
  %160 = vset.pattern.permute.xlu0 0
  %161 = vperm.xlu0 %160, %v123
  %v162 = vpop.permute.xlu0 %161
  %164 = vmatprep.subr.mxu0 0.0
  %165 = vmatpush1.msra.mxu0 %v52
  %166 = vmatprep.subr.mxu0 0.0
  %167 = vmatpush1.msra.mxu0 %v53
  %168 = vmatprep.subr.mxu0 0.0
  %169 = vmatpush1.msra.mxu0 %v54
  %170 = vmatprep.subr.mxu0 0.0
  %171 = vmatpush1.msra.mxu0 %v55
  %172 = vmatprep.subr.mxu0 0.0
  %173 = vmatpush1.msra.mxu0 %v56
  %174 = vmatprep.subr.mxu0 0.0
  %175 = vmatpush1.msra.mxu0 %v57
  %176 = vmatprep.subr.mxu0 0.0
  %177 = vmatpush1.msra.mxu0 %v58
  %178 = vmatprep.subr.mxu0 0.0
  %179 = vmatpush1.msra.mxu0 %v59
  %180 = vmatprep.subr.mxu0 0.0
  %181 = vmatpush1.msra.mxu0 %v60
  %182 = vmatprep.subr.mxu0 0.0
  %183 = vmatpush1.msra.mxu0 %v61
  %184 = vmatprep.subr.mxu0 0.0
  %185 = vmatpush1.msra.mxu0 %v62
  %186 = vmatprep.subr.mxu0 0.0
  %187 = vmatpush1.msra.mxu0 %v63
  %188 = vmatprep.subr.mxu0 0.0
  %189 = vmatpush1.msra.mxu0 %v64
  %190 = vmatprep.subr.mxu0 0.0
  %191 = vmatpush1.msra.mxu0 %v65
  %192 = vmatprep.subr.mxu0 0.0
  %193 = vmatpush1.msra.mxu0 %v66
  %194 = vmatprep.subr.mxu0 0.0
  %195 = vmatpush1.msra.mxu0 %v67
  %196 = vmatprep.subr.mxu0 0.0
  %197 = vmatpush1.msra.mxu0 %v68
  %198 = vmatprep.subr.mxu0 0.0
  %199 = vmatpush1.msra.mxu0 %v69
  %200 = vmatprep.subr.mxu0 0.0
  %201 = vmatpush1.msra.mxu0 %v70
  %202 = vmatprep.subr.mxu0 0.0
  %203 = vmatpush1.msra.mxu0 %v71
  %204 = vmatprep.subr.mxu0 0.0
  %205 = vmatpush1.msra.mxu0 %v72
  %206 = vmatprep.subr.mxu0 0.0
  %207 = vmatpush1.msra.mxu0 %v73
  %208 = vmatprep.subr.mxu0 0.0
  %209 = vmatpush1.msra.mxu0 %v74
  %210 = vmatprep.subr.mxu0 0.0
  %211 = vmatpush1.msra.mxu0 %v75
  %212 = vmatprep.subr.mxu0 0.0
  %213 = vmatpush1.msra.mxu0 %v76
  %214 = vmatprep.subr.mxu0 0.0
  %215 = vmatpush1.msra.mxu0 %v77
  %216 = vmatprep.subr.mxu0 0.0
  %217 = vmatpush1.msra.mxu0 %v78
  %218 = vmatprep.subr.mxu0 0.0
  %219 = vmatpush1.msra.mxu0 %v79
  %220 = vmatprep.subr.mxu0 0.0
  %221 = vmatpush1.msra.mxu0 %v80
  %222 = vmatprep.subr.mxu0 0.0
  %223 = vmatpush1.msra.mxu0 %v81
  %224 = vmatprep.subr.mxu0 0.0
  %225 = vmatpush1.msra.mxu0 %v82
  %226 = vmatprep.subr.mxu0 0.0
  %227 = vmatpush1.msra.mxu0 %v83
  %228 = vmatprep.mubr.f32.mxu0 %v21
  %229 = vmatmul.mubr.f32.gmra.mrb[0].mxu0 %v20
  %v230 = vpop.f32.mrb[0].mxu0
  %v231 = vadd.f32 %v127, %v230
  %v232 = vpop.f32.mrb[0].mxu0
  %233 = vmatprep.mubr.f32.mxu0 %v25
  %234 = vmatmul.mubr.f32.gmra.mrb[0].mxu0 %v24
  %v235 = vpop.f32.mrb[0].mxu0
  %v236 = vadd.f32 %v132, %v235
  %v237 = vpop.f32.mrb[0].mxu0
  %238 = vmatprep.mubr.f32.mxu0 %v29
  %239 = vmatmul.mubr.f32.gmra.mrb[0].mxu0 %v28
  %v240 = vpop.f32.mrb[0].mxu0
  %v241 = vadd.f32 %v137, %v240
  %v242 = vpop.f32.mrb[0].mxu0
  %243 = vmatprep.mubr.f32.mxu0 %v33
  %244 = vmatmul.mubr.f32.gmra.mrb[0].mxu0 %v32
  %v245 = vpop.f32.mrb[0].mxu0
  %v246 = vadd.f32 %v142, %v245
  %v247 = vpop.f32.mrb[0].mxu0
  %248 = vmatprep.mubr.f32.mxu0 %v37
  %249 = vmatmul.mubr.f32.gmra.mrb[0].mxu0 %v36
  %v250 = vpop.f32.mrb[0].mxu0
  %v251 = vadd.f32 %v147, %v250
  %v252 = vpop.f32.mrb[0].mxu0
  %253 = vmatprep.mubr.f32.mxu0 %v41
  %254 = vmatmul.mubr.f32.gmra.mrb[0].mxu0 %v40
  %v255 = vpop.f32.mrb[0].mxu0
  %v256 = vadd.f32 %v152, %v255
  %v257 = vpop.f32.mrb[0].mxu0
  %258 = vmatprep.mubr.f32.mxu0 %v45
  %259 = vmatmul.mubr.f32.gmra.mrb[0].mxu0 %v44
  %v260 = vpop.f32.mrb[0].mxu0
  %v261 = vadd.f32 %v157, %v260
  %v262 = vpop.f32.mrb[0].mxu0
  %263 = vmatprep.mubr.f32.mxu0 %v49
  %264 = vmatmul.mubr.f32.gmra.mrb[0].mxu0 %v48
  %v265 = vpop.f32.mrb[0].mxu0
  %v266 = vadd.f32 %v162, %v265
  %v267 = vpop.f32.mrb[0].mxu0
  %268 = vdwg.mxu0
  %269 = vmatprep.subr.mxu0 0.0
  %270 = vmatpush1.msra.mxu0 %v84
  %271 = vmatprep.subr.mxu0 0.0
  %272 = vmatpush1.msra.mxu0 %v85
  %273 = vmatprep.subr.mxu0 0.0
  %274 = vmatpush1.msra.mxu0 %v86
  %275 = vmatprep.subr.mxu0 0.0
  %276 = vmatpush1.msra.mxu0 %v87
  %277 = vmatprep.subr.mxu0 0.0
  %278 = vmatpush1.msra.mxu0 %v88
  %279 = vmatprep.subr.mxu0 0.0
  %280 = vmatpush1.msra.mxu0 %v89
  %281 = vmatprep.subr.mxu0 0.0
  %282 = vmatpush1.msra.mxu0 %v90
  %283 = vmatprep.subr.mxu0 0.0
  %284 = vmatpush1.msra.mxu0 %v91
  %285 = vmatprep.subr.mxu0 0.0
  %286 = vmatpush1.msra.mxu0 %v92
  %287 = vmatprep.subr.mxu0 0.0
  %288 = vmatpush1.msra.mxu0 %v93
  %289 = vmatprep.subr.mxu0 0.0
  %290 = vmatpush1.msra.mxu0 %v94
  %291 = vmatprep.subr.mxu0 0.0
  %292 = vmatpush1.msra.mxu0 %v95
  %293 = vmatprep.subr.mxu0 0.0
  %294 = vmatpush1.msra.mxu0 %v96
  %295 = vmatprep.subr.mxu0 0.0
  %296 = vmatpush1.msra.mxu0 %v97
  %297 = vmatprep.subr.mxu0 0.0
  %298 = vmatpush1.msra.mxu0 %v98
  %299 = vmatprep.subr.mxu0 0.0
  %300 = vmatpush1.msra.mxu0 %v99
  %301 = vmatprep.subr.mxu0 0.0
  %302 = vmatpush1.msra.mxu0 %v100
  %303 = vmatprep.subr.mxu0 0.0
  %304 = vmatpush1.msra.mxu0 %v101
  %305 = vmatprep.subr.mxu0 0.0
  %306 = vmatpush1.msra.mxu0 %v102
  %307 = vmatprep.subr.mxu0 0.0
  %308 = vmatpush1.msra.mxu0 %v103
  %309 = vmatprep.subr.mxu0 0.0
  %310 = vmatpush1.msra.mxu0 %v104
  %311 = vmatprep.subr.mxu0 0.0
  %312 = vmatpush1.msra.mxu0 %v105
  %313 = vmatprep.subr.mxu0 0.0
  %314 = vmatpush1.msra.mxu0 %v106
  %315 = vmatprep.subr.mxu0 0.0
  %316 = vmatpush1.msra.mxu0 %v107
  %317 = vmatprep.subr.mxu0 0.0
  %318 = vmatpush1.msra.mxu0 %v108
  %319 = vmatprep.subr.mxu0 0.0
  %320 = vmatpush1.msra.mxu0 %v109
  %321 = vmatprep.subr.mxu0 0.0
  %322 = vmatpush1.msra.mxu0 %v110
  %323 = vmatprep.subr.mxu0 0.0
  %324 = vmatpush1.msra.mxu0 %v111
  %325 = vmatprep.subr.mxu0 0.0
  %326 = vmatpush1.msra.mxu0 %v112
  %327 = vmatprep.subr.mxu0 0.0
  %328 = vmatpush1.msra.mxu0 %v113
  %329 = vmatprep.subr.mxu0 0.0
  %330 = vmatpush1.msra.mxu0 %v114
  %331 = vmatprep.subr.mxu0 0.0
  %332 = vmatpush1.msra.mxu0 %v115
  %333 = vmatprep.mubr.f32.mxu0 %v23
  %334 = vmatmul.mubr.f32.gmra.mrb[0].mxu0 %v22
  %v335 = vpop.f32.mrb[0].mxu0
  %v336 = vadd.f32 %v231, %v335
  %v337 = vpop.f32.mrb[0].mxu0
  %338 = vmatprep.mubr.f32.mxu0 %v27
  %339 = vmatmul.mubr.f32.gmra.mrb[0].mxu0 %v26
  %v340 = vpop.f32.mrb[0].mxu0
  %v341 = vadd.f32 %v236, %v340
  %v342 = vpop.f32.mrb[0].mxu0
  %343 = vmatprep.mubr.f32.mxu0 %v31
  %344 = vmatmul.mubr.f32.gmra.mrb[0].mxu0 %v30
  %v345 = vpop.f32.mrb[0].mxu0
  %v346 = vadd.f32 %v241, %v345
  %v347 = vpop.f32.mrb[0].mxu0
  %348 = vmatprep.mubr.f32.mxu0 %v35
  %349 = vmatmul.mubr.f32.gmra.mrb[0].mxu0 %v34
  %v350 = vpop.f32.mrb[0].mxu0
  %v351 = vadd.f32 %v246, %v350
  %v352 = vpop.f32.mrb[0].mxu0
  %353 = vmatprep.mubr.f32.mxu0 %v39
  %354 = vmatmul.mubr.f32.gmra.mrb[0].mxu0 %v38
  %v355 = vpop.f32.mrb[0].mxu0
  %v356 = vadd.f32 %v251, %v355
  %v357 = vpop.f32.mrb[0].mxu0
  %358 = vmatprep.mubr.f32.mxu0 %v43
  %359 = vmatmul.mubr.f32.gmra.mrb[0].mxu0 %v42
  %v360 = vpop.f32.mrb[0].mxu0
  %v361 = vadd.f32 %v256, %v360
  %v362 = vpop.f32.mrb[0].mxu0
  %363 = vmatprep.mubr.f32.mxu0 %v47
  %364 = vmatmul.mubr.f32.gmra.mrb[0].mxu0 %v46
  %v365 = vpop.f32.mrb[0].mxu0
  %v366 = vadd.f32 %v261, %v365
  %v367 = vpop.f32.mrb[0].mxu0
  %368 = vmatprep.mubr.f32.mxu0 %v51
  %369 = vmatmul.mubr.f32.gmra.mrb[0].mxu0 %v50
  %v370 = vpop.f32.mrb[0].mxu0
  %v371 = vadd.f32 %v266, %v370
  %v372 = vpop.f32.mrb[0].mxu0
  %373 = vdwg.mxu0
  %vm374 = vcmask 261120
  %v375 = vsel %vm374, %v336, 0.0
  %376 = vadd.xlane.f32.xlu0 %v375
  %v377 = vpop.xlane.xlu0 %376
  %v378 = vsel %vm374, %v341, 0.0
  %379 = vadd.xlane.f32.xlu0 %v378
  %v380 = vpop.xlane.xlu0 %379
  %v381 = vsel %vm374, %v346, 0.0
  %382 = vadd.xlane.f32.xlu0 %v381
  %v383 = vpop.xlane.xlu0 %382
  %v384 = vsel %vm374, %v351, 0.0
  %385 = vadd.xlane.f32.xlu0 %v384
  %v386 = vpop.xlane.xlu0 %385
  %v387 = vsel %vm374, %v356, 0.0
  %388 = vadd.xlane.f32.xlu0 %v387
  %v389 = vpop.xlane.xlu0 %388
  %v390 = vsel %vm374, %v361, 0.0
  %391 = vadd.xlane.f32.xlu0 %v390
  %v392 = vpop.xlane.xlu0 %391
  %v393 = vsel %vm374, %v366, 0.0
  %394 = vadd.xlane.f32.xlu0 %v393
  %v395 = vpop.xlane.xlu0 %394
  %v396 = vsel %vm374, %v371, 0.0
  %397 = vadd.xlane.f32.xlu0 %v396
  %v398 = vpop.xlane.xlu0 %397
  %v399 = vrcp.pop 32.0
  %v400 = vmul.f32 %v377, %v399
  %v401 = vmul.f32 %v380, %v399
  %v402 = vmul.f32 %v383, %v399
  %v403 = vmul.f32 %v386, %v399
  %v404 = vmul.f32 %v389, %v399
  %v405 = vmul.f32 %v392, %v399
  %v406 = vmul.f32 %v395, %v399
  %v407 = vmul.f32 %v398, %v399
  %v408 = vsub.f32 %v336, %v400
  %v409 = vsub.f32 %v341, %v401
  %v410 = vsub.f32 %v346, %v402
  %v411 = vsub.f32 %v351, %v403
  %v412 = vsub.f32 %v356, %v404
  %v413 = vsub.f32 %v361, %v405
  %v414 = vsub.f32 %v366, %v406
  %v415 = vsub.f32 %v371, %v407
  %v416 = vmul.f32 %v408, %v408
  %v417 = vmul.f32 %v409, %v409
  %v418 = vmul.f32 %v410, %v410
  %v419 = vmul.f32 %v411, %v411
  %v420 = vmul.f32 %v412, %v412
  %v421 = vmul.f32 %v413, %v413
  %v422 = vmul.f32 %v414, %v414
  %v423 = vmul.f32 %v415, %v415
  %v424 = vsel %vm374, %v416, 0.0
  %425 = vadd.xlane.f32.xlu0 %v424
  %v426 = vpop.xlane.xlu0 %425
  %v427 = vsel %vm374, %v417, 0.0
  %428 = vadd.xlane.f32.xlu0 %v427
  %v429 = vpop.xlane.xlu0 %428
  %v430 = vsel %vm374, %v418, 0.0
  %431 = vadd.xlane.f32.xlu0 %v430
  %v432 = vpop.xlane.xlu0 %431
  %v433 = vsel %vm374, %v419, 0.0
  %434 = vadd.xlane.f32.xlu0 %v433
  %v435 = vpop.xlane.xlu0 %434
  %v436 = vsel %vm374, %v420, 0.0
  %437 = vadd.xlane.f32.xlu0 %v436
  %v438 = vpop.xlane.xlu0 %437
  %v439 = vsel %vm374, %v421, 0.0
  %440 = vadd.xlane.f32.xlu0 %v439
  %v441 = vpop.xlane.xlu0 %440
  %v442 = vsel %vm374, %v422, 0.0
  %443 = vadd.xlane.f32.xlu0 %v442
  %v444 = vpop.xlane.xlu0 %443
  %v445 = vsel %vm374, %v423, 0.0
  %446 = vadd.xlane.f32.xlu0 %v445
  %v447 = vpop.xlane.xlu0 %446
  %v448 = vmul.f32 %v426, %v399
  %v449 = vmul.f32 %v429, %v399
  %v450 = vmul.f32 %v432, %v399
  %v451 = vmul.f32 %v435, %v399
  %v452 = vmul.f32 %v438, %v399
  %v453 = vmul.f32 %v441, %v399
  %v454 = vmul.f32 %v444, %v399
  %v455 = vmul.f32 %v447, %v399
  %v456 = vadd.f32 %v448, 1e-05
  %v457 = vadd.f32 %v449, 1e-05
  %v458 = vadd.f32 %v450, 1e-05
  %v459 = vadd.f32 %v451, 1e-05
  %v460 = vadd.f32 %v452, 1e-05
  %v461 = vadd.f32 %v453, 1e-05
  %v462 = vadd.f32 %v454, 1e-05
  %v463 = vadd.f32 %v455, 1e-05
  %v464 = vrsqrt.pop %v456
  %v465 = vrsqrt.pop %v457
  %v466 = vrsqrt.pop %v458
  %v467 = vrsqrt.pop %v459
  %v468 = vrsqrt.pop %v460
  %v469 = vrsqrt.pop %v461
  %v470 = vrsqrt.pop %v462
  %v471 = vrsqrt.pop %v463
  %v472 = vmul.f32 %v408, %v464
  %v473 = vmul.f32 %v409, %v465
  %v474 = vmul.f32 %v410, %v466
  %v475 = vmul.f32 %v411, %v467
  %v476 = vmul.f32 %v412, %v468
  %v477 = vmul.f32 %v413, %v469
  %v478 = vmul.f32 %v414, %v470
  %v479 = vmul.f32 %v415, %v471
  %v480 = vld [vmem:[%s3] sm:$0xff]
  %v481 = vld [vmem:[%s3 + $0x8] sm:$0xff]
  %v482 = vld [vmem:[%s3 + $0x10] sm:$0xff]
  %v483 = vld [vmem:[%s3 + $0x18] sm:$0xff]
  %v484 = vld [vmem:[%s3 + $0x20] sm:$0xff]
  %v485 = vld [vmem:[%s3 + $0x28] sm:$0xff]
  %v486 = vld [vmem:[%s3 + $0x30] sm:$0xff]
  %v487 = vld [vmem:[%s3 + $0x38] sm:$0xff]
  %489 = vset.pattern.permute.xlu0 0
  %490 = vperm.xlu0 %489, %v480
  %v491 = vpop.permute.xlu0 %490
  %494 = vset.pattern.permute.xlu0 0
  %495 = vperm.xlu0 %494, %v481
  %v496 = vpop.permute.xlu0 %495
  %499 = vset.pattern.permute.xlu0 0
  %500 = vperm.xlu0 %499, %v482
  %v501 = vpop.permute.xlu0 %500
  %504 = vset.pattern.permute.xlu0 0
  %505 = vperm.xlu0 %504, %v483
  %v506 = vpop.permute.xlu0 %505
  %509 = vset.pattern.permute.xlu0 0
  %510 = vperm.xlu0 %509, %v484
  %v511 = vpop.permute.xlu0 %510
  %514 = vset.pattern.permute.xlu0 0
  %515 = vperm.xlu0 %514, %v485
  %v516 = vpop.permute.xlu0 %515
  %519 = vset.pattern.permute.xlu0 0
  %520 = vperm.xlu0 %519, %v486
  %v521 = vpop.permute.xlu0 %520
  %524 = vset.pattern.permute.xlu0 0
  %525 = vperm.xlu0 %524, %v487
  %v526 = vpop.permute.xlu0 %525
  %v528 = vmul.f32 %v472, %v491
  %v529 = vmul.f32 %v473, %v496
  %v530 = vmul.f32 %v474, %v501
  %v531 = vmul.f32 %v475, %v506
  %v532 = vmul.f32 %v476, %v511
  %v533 = vmul.f32 %v477, %v516
  %v534 = vmul.f32 %v478, %v521
  %v535 = vmul.f32 %v479, %v526
  %v536 = vld [vmem:[%s4] sm:$0xff]
  %v537 = vld [vmem:[%s4 + $0x8] sm:$0xff]
  %v538 = vld [vmem:[%s4 + $0x10] sm:$0xff]
  %v539 = vld [vmem:[%s4 + $0x18] sm:$0xff]
  %v540 = vld [vmem:[%s4 + $0x20] sm:$0xff]
  %v541 = vld [vmem:[%s4 + $0x28] sm:$0xff]
  %v542 = vld [vmem:[%s4 + $0x30] sm:$0xff]
  %v543 = vld [vmem:[%s4 + $0x38] sm:$0xff]
  %545 = vset.pattern.permute.xlu0 0
  %546 = vperm.xlu0 %545, %v536
  %v547 = vpop.permute.xlu0 %546
  %550 = vset.pattern.permute.xlu0 0
  %551 = vperm.xlu0 %550, %v537
  %v552 = vpop.permute.xlu0 %551
  %555 = vset.pattern.permute.xlu0 0
  %556 = vperm.xlu0 %555, %v538
  %v557 = vpop.permute.xlu0 %556
  %560 = vset.pattern.permute.xlu0 0
  %561 = vperm.xlu0 %560, %v539
  %v562 = vpop.permute.xlu0 %561
  %565 = vset.pattern.permute.xlu0 0
  %566 = vperm.xlu0 %565, %v540
  %v567 = vpop.permute.xlu0 %566
  %570 = vset.pattern.permute.xlu0 0
  %571 = vperm.xlu0 %570, %v541
  %v572 = vpop.permute.xlu0 %571
  %575 = vset.pattern.permute.xlu0 0
  %576 = vperm.xlu0 %575, %v542
  %v577 = vpop.permute.xlu0 %576
  %580 = vset.pattern.permute.xlu0 0
  %581 = vperm.xlu0 %580, %v543
  %v582 = vpop.permute.xlu0 %581
  %v584 = vadd.f32 %v528, %v547
  %v585 = vadd.f32 %v529, %v552
  %v586 = vadd.f32 %v530, %v557
  %v587 = vadd.f32 %v531, %v562
  %v588 = vadd.f32 %v532, %v567
  %v589 = vadd.f32 %v533, %v572
  %v590 = vadd.f32 %v534, %v577
  %v591 = vadd.f32 %v535, %v582
  %v592 = vtanh.pop %v584
  %v593 = vtanh.pop %v585
  %v594 = vtanh.pop %v586
  %v595 = vtanh.pop %v587
  %v596 = vtanh.pop %v588
  %v597 = vtanh.pop %v589
  %v598 = vtanh.pop %v590
  %v599 = vtanh.pop %v591
  %600 = vst.msk [vmem:[%s5] sm:$0xff] %vm374, %v592
  %601 = vst.msk [vmem:[%s5 + $0x8] sm:$0xff] %vm374, %v593
  %602 = vst.msk [vmem:[%s5 + $0x10] sm:$0xff] %vm374, %v594
  %603 = vst.msk [vmem:[%s5 + $0x18] sm:$0xff] %vm374, %v595
  %604 = vst.msk [vmem:[%s5 + $0x20] sm:$0xff] %vm374, %v596
  %605 = vst.msk [vmem:[%s5 + $0x28] sm:$0xff] %vm374, %v597
  %606 = vst.msk [vmem:[%s5 + $0x30] sm:$0xff] %vm374, %v598
  %607 = vst.msk [vmem:[%s5 + $0x38] sm:$0xff] %vm374, %v599
  // Predicated region
  $region22: #{inversion_forward.5} parent=0 // pred_check
    _
  $region23: #{inversion_forward.5} parent=0 // pred_check_branch
    %609 = sbr.rel (0) target = $region25
  $region24: #{inversion_forward.5} parent=0 // pred_region
    _
  $region25: #{inversion_forward.5} parent=0 // pred_fallthru
    _
  // Predicated region
  $region26: #{inversion_forward.5} parent=0 // pred_check
    _
  $region27: #{inversion_forward.5} parent=0 // pred_check_branch
    %611 = sbr.rel (0) target = $region29
  $region28: #{inversion_forward.5} parent=0 // pred_region
    _
  $region29: #{inversion_forward.5} parent=0 // pred_fallthru
    _

// kernel: inversion_forward.6
$region0: #{inversion_forward.6}
  #allocation0 [shape = 'u32[]', space=smem, size = 0x4, offset = 0x4, fixed_abs, tag = 'smem constant byte address 0x4 - core index']
  #allocation1 [shape = 'u32[144,128]{1,0:T(1,128)}', space=vmem, size = 0x12000, scoped, tag = 'internal scratch']
  %s0 = inlined_call_operand.vmem [shape: f32[32,1024], index: 0, kind: input, shape index: {}]
  %s1 = inlined_call_operand.vmem [shape: f32[1024,128], index: 1, kind: input, shape index: {}]
  %s2 = inlined_call_operand.vmem [shape: f32[32,1], index: 2, kind: input, shape index: {}]
  %s3 = inlined_call_operand.vmem [shape: f32[32,1], index: 3, kind: input, shape index: {}]
  %s4 = inlined_call_operand.vmem [shape: f32[32,1], index: 4, kind: input, shape index: {}]
  %s5 = inlined_call_operand.vmem [shape: f32[32,128], index: 5, kind: output, shape index: {}]
  %s6 = sld [smem:[#allocation0]]
  $region30: #{inversion_forward.6} parent=0
    _
  %s8 = ssub.s32 1, %s6
  %s9 = scalar_select 0, %s8, %s6
  // Predicated region
  $region2: #{inversion_forward.6} parent=0 // pred_check
    _
  $region3: #{inversion_forward.6} parent=0 // pred_check_branch
    %11 = sbr.rel (0) target = $region5
  $region4: #{inversion_forward.6} parent=0 // pred_region
    _
  $region5: #{inversion_forward.6} parent=0 // pred_fallthru
    _
  // Predicated region
  $region6: #{inversion_forward.6} parent=0 // pred_check
    _
  $region7: #{inversion_forward.6} parent=0 // pred_check_branch
    %13 = sbr.rel (0) target = $region9
  $region8: #{inversion_forward.6} parent=0 // pred_region
    _
  $region9: #{inversion_forward.6} parent=0 // pred_fallthru
    _
  // Predicated region
  $region10: #{inversion_forward.6} parent=0 // pred_check
    _
  $region11: #{inversion_forward.6} parent=0 // pred_check_branch
    %15 = sbr.rel (0) target = $region13
  $region12: #{inversion_forward.6} parent=0 // pred_region
    _
  $region13: #{inversion_forward.6} parent=0 // pred_fallthru
    _
  // Predicated region
  $region14: #{inversion_forward.6} parent=0 // pred_check
    _
  $region15: #{inversion_forward.6} parent=0 // pred_check_branch
    %17 = sbr.rel (0) target = $region17
  $region16: #{inversion_forward.6} parent=0 // pred_region
    _
  $region17: #{inversion_forward.6} parent=0 // pred_fallthru
    _
  // Predicated region
  $region18: #{inversion_forward.6} parent=0 // pred_check
    _
  $region19: #{inversion_forward.6} parent=0 // pred_check_branch
    %19 = sbr.rel (0) target = $region21
  $region20: #{inversion_forward.6} parent=0 // pred_region
    _
  $region21: #{inversion_forward.6} parent=0 // pred_fallthru
    _
  %v20 = vld [vmem:[%s0] sm:$0xff]
  %v21 = vld [vmem:[%s0 + $0x8] sm:$0xff]
  %v22 = vld [vmem:[%s0 + $0x10] sm:$0xff]
  %v23 = vld [vmem:[%s0 + $0x18] sm:$0xff]
  %v24 = vld [vmem:[%s0 + $0x20] sm:$0xff]
  %v25 = vld [vmem:[%s0 + $0x28] sm:$0xff]
  %v26 = vld [vmem:[%s0 + $0x30] sm:$0xff]
  %v27 = vld [vmem:[%s0 + $0x38] sm:$0xff]
  %v28 = vld [vmem:[%s0 + $0x40] sm:$0xff]
  %v29 = vld [vmem:[%s0 + $0x48] sm:$0xff]
  %v30 = vld [vmem:[%s0 + $0x50] sm:$0xff]
  %v31 = vld [vmem:[%s0 + $0x58] sm:$0xff]
  %v32 = vld [vmem:[%s0 + $0x60] sm:$0xff]
  %v33 = vld [vmem:[%s0 + $0x68] sm:$0xff]
  %v34 = vld [vmem:[%s0 + $0x70] sm:$0xff]
  %v35 = vld [vmem:[%s0 + $0x78] sm:$0xff]
  %v36 = vld [vmem:[%s0 + $0x80] sm:$0xff]
  %v37 = vld [vmem:[%s0 + $0x88] sm:$0xff]
  %v38 = vld [vmem:[%s0 + $0x90] sm:$0xff]
  %v39 = vld [vmem:[%s0 + $0x98] sm:$0xff]
  %v40 = vld [vmem:[%s0 + $0xa0] sm:$0xff]
  %v41 = vld [vmem:[%s0 + $0xa8] sm:$0xff]
  %v42 = vld [vmem:[%s0 + $0xb0] sm:$0xff]
  %v43 = vld [vmem:[%s0 + $0xb8] sm:$0xff]
  %v44 = vld [vmem:[%s0 + $0xc0] sm:$0xff]
  %v45 = vld [vmem:[%s0 + $0xc8] sm:$0xff]
  %v46 = vld [vmem:[%s0 + $0xd0] sm:$0xff]
  %v47 = vld [vmem:[%s0 + $0xd8] sm:$0xff]
  %v48 = vld [vmem:[%s0 + $0xe0] sm:$0xff]
  %v49 = vld [vmem:[%s0 + $0xe8] sm:$0xff]
  %v50 = vld [vmem:[%s0 + $0xf0] sm:$0xff]
  %v51 = vld [vmem:[%s0 + $0xf8] sm:$0xff]
  %v52 = vld [vmem:[%s1] sm:$0xff]
  %v53 = vld [vmem:[%s1 + $0x8] sm:$0xff]
  %v54 = vld [vmem:[%s1 + $0x10] sm:$0xff]
  %v55 = vld [vmem:[%s1 + $0x18] sm:$0xff]
  %v56 = vld [vmem:[%s1 + $0x20] sm:$0xff]
  %v57 = vld [vmem:[%s1 + $0x28] sm:$0xff]
  %v58 = vld [vmem:[%s1 + $0x30] sm:$0xff]
  %v59 = vld [vmem:[%s1 + $0x38] sm:$0xff]
  %v60 = vld [vmem:[%s1 + $0x40] sm:$0xff]
  %v61 = vld [vmem:[%s1 + $0x48] sm:$0xff]
  %v62 = vld [vmem:[%s1 + $0x50] sm:$0xff]
  %v63 = vld [vmem:[%s1 + $0x58] sm:$0xff]
  %v64 = vld [vmem:[%s1 + $0x60] sm:$0xff]
  %v65 = vld [vmem:[%s1 + $0x68] sm:$0xff]
  %v66 = vld [vmem:[%s1 + $0x70] sm:$0xff]
  %v67 = vld [vmem:[%s1 + $0x78] sm:$0xff]
  %v68 = vld [vmem:[%s1 + $0x80] sm:$0xff]
  %v69 = vld [vmem:[%s1 + $0x88] sm:$0xff]
  %v70 = vld [vmem:[%s1 + $0x90] sm:$0xff]
  %v71 = vld [vmem:[%s1 + $0x98] sm:$0xff]
  %v72 = vld [vmem:[%s1 + $0xa0] sm:$0xff]
  %v73 = vld [vmem:[%s1 + $0xa8] sm:$0xff]
  %v74 = vld [vmem:[%s1 + $0xb0] sm:$0xff]
  %v75 = vld [vmem:[%s1 + $0xb8] sm:$0xff]
  %v76 = vld [vmem:[%s1 + $0xc0] sm:$0xff]
  %v77 = vld [vmem:[%s1 + $0xc8] sm:$0xff]
  %v78 = vld [vmem:[%s1 + $0xd0] sm:$0xff]
  %v79 = vld [vmem:[%s1 + $0xd8] sm:$0xff]
  %v80 = vld [vmem:[%s1 + $0xe0] sm:$0xff]
  %v81 = vld [vmem:[%s1 + $0xe8] sm:$0xff]
  %v82 = vld [vmem:[%s1 + $0xf0] sm:$0xff]
  %v83 = vld [vmem:[%s1 + $0xf8] sm:$0xff]
  %v84 = vld [vmem:[%s1 + $0x100] sm:$0xff]
  %v85 = vld [vmem:[%s1 + $0x108] sm:$0xff]
  %v86 = vld [vmem:[%s1 + $0x110] sm:$0xff]
  %v87 = vld [vmem:[%s1 + $0x118] sm:$0xff]
  %v88 = vld [vmem:[%s1 + $0x120] sm:$0xff]
  %v89 = vld [vmem:[%s1 + $0x128] sm:$0xff]
  %v90 = vld [vmem:[%s1 + $0x130] sm:$0xff]
  %v91 = vld [vmem:[%s1 + $0x138] sm:$0xff]
  %v92 = vld [vmem:[%s1 + $0x140] sm:$0xff]
  %v93 = vld [vmem:[%s1 + $0x148] sm:$0xff]
  %v94 = vld [vmem:[%s1 + $0x150] sm:$0xff]
  %v95 = vld [vmem:[%s1 + $0x158] sm:$0xff]
  %v96 = vld [vmem:[%s1 + $0x160] sm:$0xff]
  %v97 = vld [vmem:[%s1 + $0x168] sm:$0xff]
  %v98 = vld [vmem:[%s1 + $0x170] sm:$0xff]
  %v99 = vld [vmem:[%s1 + $0x178] sm:$0xff]
  %v100 = vld [vmem:[%s1 + $0x180] sm:$0xff]
  %v101 = vld [vmem:[%s1 + $0x188] sm:$0xff]
  %v102 = vld [vmem:[%s1 + $0x190] sm:$0xff]
  %v103 = vld [vmem:[%s1 + $0x198] sm:$0xff]
  %v104 = vld [vmem:[%s1 + $0x1a0] sm:$0xff]
  %v105 = vld [vmem:[%s1 + $0x1a8] sm:$0xff]
  %v106 = vld [vmem:[%s1 + $0x1b0] sm:$0xff]
  %v107 = vld [vmem:[%s1 + $0x1b8] sm:$0xff]
  %v108 = vld [vmem:[%s1 + $0x1c0] sm:$0xff]
  %v109 = vld [vmem:[%s1 + $0x1c8] sm:$0xff]
  %v110 = vld [vmem:[%s1 + $0x1d0] sm:$0xff]
  %v111 = vld [vmem:[%s1 + $0x1d8] sm:$0xff]
  %v112 = vld [vmem:[%s1 + $0x1e0] sm:$0xff]
  %v113 = vld [vmem:[%s1 + $0x1e8] sm:$0xff]
  %v114 = vld [vmem:[%s1 + $0x1f0] sm:$0xff]
  %v115 = vld [vmem:[%s1 + $0x1f8] sm:$0xff]
  %v116 = vld [vmem:[%s1 + $0x200] sm:$0xff]
  %v117 = vld [vmem:[%s1 + $0x208] sm:$0xff]
  %v118 = vld [vmem:[%s1 + $0x210] sm:$0xff]
  %v119 = vld [vmem:[%s1 + $0x218] sm:$0xff]
  %v120 = vld [vmem:[%s1 + $0x220] sm:$0xff]
  %v121 = vld [vmem:[%s1 + $0x228] sm:$0xff]
  %v122 = vld [vmem:[%s1 + $0x230] sm:$0xff]
  %v123 = vld [vmem:[%s1 + $0x238] sm:$0xff]
  %v124 = vld [vmem:[%s1 + $0x240] sm:$0xff]
  %v125 = vld [vmem:[%s1 + $0x248] sm:$0xff]
  %v126 = vld [vmem:[%s1 + $0x250] sm:$0xff]
  %v127 = vld [vmem:[%s1 + $0x258] sm:$0xff]
  %v128 = vld [vmem:[%s1 + $0x260] sm:$0xff]
  %v129 = vld [vmem:[%s1 + $0x268] sm:$0xff]
  %v130 = vld [vmem:[%s1 + $0x270] sm:$0xff]
  %v131 = vld [vmem:[%s1 + $0x278] sm:$0xff]
  %v132 = vld [vmem:[%s1 + $0x280] sm:$0xff]
  %v133 = vld [vmem:[%s1 + $0x288] sm:$0xff]
  %v134 = vld [vmem:[%s1 + $0x290] sm:$0xff]
  %v135 = vld [vmem:[%s1 + $0x298] sm:$0xff]
  %v136 = vld [vmem:[%s1 + $0x2a0] sm:$0xff]
  %v137 = vld [vmem:[%s1 + $0x2a8] sm:$0xff]
  %v138 = vld [vmem:[%s1 + $0x2b0] sm:$0xff]
  %v139 = vld [vmem:[%s1 + $0x2b8] sm:$0xff]
  %v140 = vld [vmem:[%s1 + $0x2c0] sm:$0xff]
  %v141 = vld [vmem:[%s1 + $0x2c8] sm:$0xff]
  %v142 = vld [vmem:[%s1 + $0x2d0] sm:$0xff]
  %v143 = vld [vmem:[%s1 + $0x2d8] sm:$0xff]
  %v144 = vld [vmem:[%s1 + $0x2e0] sm:$0xff]
  %v145 = vld [vmem:[%s1 + $0x2e8] sm:$0xff]
  %v146 = vld [vmem:[%s1 + $0x2f0] sm:$0xff]
  %v147 = vld [vmem:[%s1 + $0x2f8] sm:$0xff]
  %v148 = vld [vmem:[%s1 + $0x300] sm:$0xff]
  %v149 = vld [vmem:[%s1 + $0x308] sm:$0xff]
  %v150 = vld [vmem:[%s1 + $0x310] sm:$0xff]
  %v151 = vld [vmem:[%s1 + $0x318] sm:$0xff]
  %v152 = vld [vmem:[%s1 + $0x320] sm:$0xff]
  %v153 = vld [vmem:[%s1 + $0x328] sm:$0xff]
  %v154 = vld [vmem:[%s1 + $0x330] sm:$0xff]
  %v155 = vld [vmem:[%s1 + $0x338] sm:$0xff]
  %v156 = vld [vmem:[%s1 + $0x340] sm:$0xff]
  %v157 = vld [vmem:[%s1 + $0x348] sm:$0xff]
  %v158 = vld [vmem:[%s1 + $0x350] sm:$0xff]
  %v159 = vld [vmem:[%s1 + $0x358] sm:$0xff]
  %v160 = vld [vmem:[%s1 + $0x360] sm:$0xff]
  %v161 = vld [vmem:[%s1 + $0x368] sm:$0xff]
  %v162 = vld [vmem:[%s1 + $0x370] sm:$0xff]
  %v163 = vld [vmem:[%s1 + $0x378] sm:$0xff]
  %v164 = vld [vmem:[%s1 + $0x380] sm:$0xff]
  %v165 = vld [vmem:[%s1 + $0x388] sm:$0xff]
  %v166 = vld [vmem:[%s1 + $0x390] sm:$0xff]
  %v167 = vld [vmem:[%s1 + $0x398] sm:$0xff]
  %v168 = vld [vmem:[%s1 + $0x3a0] sm:$0xff]
  %v169 = vld [vmem:[%s1 + $0x3a8] sm:$0xff]
  %v170 = vld [vmem:[%s1 + $0x3b0] sm:$0xff]
  %v171 = vld [vmem:[%s1 + $0x3b8] sm:$0xff]
  %v172 = vld [vmem:[%s1 + $0x3c0] sm:$0xff]
  %v173 = vld [vmem:[%s1 + $0x3c8] sm:$0xff]
  %v174 = vld [vmem:[%s1 + $0x3d0] sm:$0xff]
  %v175 = vld [vmem:[%s1 + $0x3d8] sm:$0xff]
  %v176 = vld [vmem:[%s1 + $0x3e0] sm:$0xff]
  %v177 = vld [vmem:[%s1 + $0x3e8] sm:$0xff]
  %v178 = vld [vmem:[%s1 + $0x3f0] sm:$0xff]
  %v179 = vld [vmem:[%s1 + $0x3f8] sm:$0xff]
  %v180 = vld [vmem:[%s2] sm:$0xff]
  %v181 = vld [vmem:[%s2 + $0x8] sm:$0xff]
  %v182 = vld [vmem:[%s2 + $0x10] sm:$0xff]
  %v183 = vld [vmem:[%s2 + $0x18] sm:$0xff]
  %185 = vset.pattern.permute.xlu0 0
  %186 = vperm.xlu0 %185, %v180
  %v187 = vpop.permute.xlu0 %186
  %190 = vset.pattern.permute.xlu0 0
  %191 = vperm.xlu0 %190, %v181
  %v192 = vpop.permute.xlu0 %191
  %195 = vset.pattern.permute.xlu0 0
  %196 = vperm.xlu0 %195, %v182
  %v197 = vpop.permute.xlu0 %196
  %200 = vset.pattern.permute.xlu0 0
  %201 = vperm.xlu0 %200, %v183
  %v202 = vpop.permute.xlu0 %201
  %204 = vmatprep.subr.mxu0 0.0
  %205 = vmatpush1.msra.mxu0 %v52
  %206 = vmatprep.subr.mxu0 0.0
  %207 = vmatpush1.msra.mxu0 %v53
  %208 = vmatprep.subr.mxu0 0.0
  %209 = vmatpush1.msra.mxu0 %v54
  %210 = vmatprep.subr.mxu0 0.0
  %211 = vmatpush1.msra.mxu0 %v55
  %212 = vmatprep.subr.mxu0 0.0
  %213 = vmatpush1.msra.mxu0 %v56
  %214 = vmatprep.subr.mxu0 0.0
  %215 = vmatpush1.msra.mxu0 %v57
  %216 = vmatprep.subr.mxu0 0.0
  %217 = vmatpush1.msra.mxu0 %v58
  %218 = vmatprep.subr.mxu0 0.0
  %219 = vmatpush1.msra.mxu0 %v59
  %220 = vmatprep.subr.mxu0 0.0
  %221 = vmatpush1.msra.mxu0 %v60
  %222 = vmatprep.subr.mxu0 0.0
  %223 = vmatpush1.msra.mxu0 %v61
  %224 = vmatprep.subr.mxu0 0.0
  %225 = vmatpush1.msra.mxu0 %v62
  %226 = vmatprep.subr.mxu0 0.0
  %227 = vmatpush1.msra.mxu0 %v63
  %228 = vmatprep.subr.mxu0 0.0
  %229 = vmatpush1.msra.mxu0 %v64
  %230 = vmatprep.subr.mxu0 0.0
  %231 = vmatpush1.msra.mxu0 %v65
  %232 = vmatprep.subr.mxu0 0.0
  %233 = vmatpush1.msra.mxu0 %v66
  %234 = vmatprep.subr.mxu0 0.0
  %235 = vmatpush1.msra.mxu0 %v67
  %236 = vmatprep.subr.mxu0 0.0
  %237 = vmatpush1.msra.mxu0 %v68
  %238 = vmatprep.subr.mxu0 0.0
  %239 = vmatpush1.msra.mxu0 %v69
  %240 = vmatprep.subr.mxu0 0.0
  %241 = vmatpush1.msra.mxu0 %v70
  %242 = vmatprep.subr.mxu0 0.0
  %243 = vmatpush1.msra.mxu0 %v71
  %244 = vmatprep.subr.mxu0 0.0
  %245 = vmatpush1.msra.mxu0 %v72
  %246 = vmatprep.subr.mxu0 0.0
  %247 = vmatpush1.msra.mxu0 %v73
  %248 = vmatprep.subr.mxu0 0.0
  %249 = vmatpush1.msra.mxu0 %v74
  %250 = vmatprep.subr.mxu0 0.0
  %251 = vmatpush1.msra.mxu0 %v75
  %252 = vmatprep.subr.mxu0 0.0
  %253 = vmatpush1.msra.mxu0 %v76
  %254 = vmatprep.subr.mxu0 0.0
  %255 = vmatpush1.msra.mxu0 %v77
  %256 = vmatprep.subr.mxu0 0.0
  %257 = vmatpush1.msra.mxu0 %v78
  %258 = vmatprep.subr.mxu0 0.0
  %259 = vmatpush1.msra.mxu0 %v79
  %260 = vmatprep.subr.mxu0 0.0
  %261 = vmatpush1.msra.mxu0 %v80
  %262 = vmatprep.subr.mxu0 0.0
  %263 = vmatpush1.msra.mxu0 %v81
  %264 = vmatprep.subr.mxu0 0.0
  %265 = vmatpush1.msra.mxu0 %v82
  %266 = vmatprep.subr.mxu0 0.0
  %267 = vmatpush1.msra.mxu0 %v83
  %268 = vmatprep.mubr.f32.mxu0 %v21
  %269 = vmatmul.mubr.f32.gmra.mrb[0].mxu0 %v20
  %v270 = vpop.f32.mrb[0].mxu0
  %v271 = vadd.f32 %v187, %v270
  %v272 = vpop.f32.mrb[0].mxu0
  %273 = vmatprep.mubr.f32.mxu0 %v29
  %274 = vmatmul.mubr.f32.gmra.mrb[0].mxu0 %v28
  %v275 = vpop.f32.mrb[0].mxu0
  %v276 = vadd.f32 %v192, %v275
  %v277 = vpop.f32.mrb[0].mxu0
  %278 = vmatprep.mubr.f32.mxu0 %v37
  %279 = vmatmul.mubr.f32.gmra.mrb[0].mxu0 %v36
  %v280 = vpop.f32.mrb[0].mxu0
  %v281 = vadd.f32 %v197, %v280
  %v282 = vpop.f32.mrb[0].mxu0
  %283 = vmatprep.mubr.f32.mxu0 %v45
  %284 = vmatmul.mubr.f32.gmra.mrb[0].mxu0 %v44
  %v285 = vpop.f32.mrb[0].mxu0
  %v286 = vadd.f32 %v202, %v285
  %v287 = vpop.f32.mrb[0].mxu0
  %288 = vdwg.mxu0
  %289 = vmatprep.subr.mxu0 0.0
  %290 = vmatpush1.msra.mxu0 %v84
  %291 = vmatprep.subr.mxu0 0.0
  %292 = vmatpush1.msra.mxu0 %v85
  %293 = vmatprep.subr.mxu0 0.0
  %294 = vmatpush1.msra.mxu0 %v86
  %295 = vmatprep.subr.mxu0 0.0
  %296 = vmatpush1.msra.mxu0 %v87
  %297 = vmatprep.subr.mxu0 0.0
  %298 = vmatpush1.msra.mxu0 %v88
  %299 = vmatprep.subr.mxu0 0.0
  %300 = vmatpush1.msra.mxu0 %v89
  %301 = vmatprep.subr.mxu0 0.0
  %302 = vmatpush1.msra.mxu0 %v90
  %303 = vmatprep.subr.mxu0 0.0
  %304 = vmatpush1.msra.mxu0 %v91
  %305 = vmatprep.subr.mxu0 0.0
  %306 = vmatpush1.msra.mxu0 %v92
  %307 = vmatprep.subr.mxu0 0.0
  %308 = vmatpush1.msra.mxu0 %v93
  %309 = vmatprep.subr.mxu0 0.0
  %310 = vmatpush1.msra.mxu0 %v94
  %311 = vmatprep.subr.mxu0 0.0
  %312 = vmatpush1.msra.mxu0 %v95
  %313 = vmatprep.subr.mxu0 0.0
  %314 = vmatpush1.msra.mxu0 %v96
  %315 = vmatprep.subr.mxu0 0.0
  %316 = vmatpush1.msra.mxu0 %v97
  %317 = vmatprep.subr.mxu0 0.0
  %318 = vmatpush1.msra.mxu0 %v98
  %319 = vmatprep.subr.mxu0 0.0
  %320 = vmatpush1.msra.mxu0 %v99
  %321 = vmatprep.subr.mxu0 0.0
  %322 = vmatpush1.msra.mxu0 %v100
  %323 = vmatprep.subr.mxu0 0.0
  %324 = vmatpush1.msra.mxu0 %v101
  %325 = vmatprep.subr.mxu0 0.0
  %326 = vmatpush1.msra.mxu0 %v102
  %327 = vmatprep.subr.mxu0 0.0
  %328 = vmatpush1.msra.mxu0 %v103
  %329 = vmatprep.subr.mxu0 0.0
  %330 = vmatpush1.msra.mxu0 %v104
  %331 = vmatprep.subr.mxu0 0.0
  %332 = vmatpush1.msra.mxu0 %v105
  %333 = vmatprep.subr.mxu0 0.0
  %334 = vmatpush1.msra.mxu0 %v106
  %335 = vmatprep.subr.mxu0 0.0
  %336 = vmatpush1.msra.mxu0 %v107
  %337 = vmatprep.subr.mxu0 0.0
  %338 = vmatpush1.msra.mxu0 %v108
  %339 = vmatprep.subr.mxu0 0.0
  %340 = vmatpush1.msra.mxu0 %v109
  %341 = vmatprep.subr.mxu0 0.0
  %342 = vmatpush1.msra.mxu0 %v110
  %343 = vmatprep.subr.mxu0 0.0
  %344 = vmatpush1.msra.mxu0 %v111
  %345 = vmatprep.subr.mxu0 0.0
  %346 = vmatpush1.msra.mxu0 %v112
  %347 = vmatprep.subr.mxu0 0.0
  %348 = vmatpush1.msra.mxu0 %v113
  %349 = vmatprep.subr.mxu0 0.0
  %350 = vmatpush1.msra.mxu0 %v114
  %351 = vmatprep.subr.mxu0 0.0
  %352 = vmatpush1.msra.mxu0 %v115
  %353 = vmatprep.mubr.f32.mxu0 %v23
  %354 = vmatmul.mubr.f32.gmra.mrb[0].mxu0 %v22
  %v355 = vpop.f32.mrb[0].mxu0
  %v356 = vadd.f32 %v271, %v355
  %v357 = vpop.f32.mrb[0].mxu0
  %358 = vmatprep.mubr.f32.mxu0 %v31
  %359 = vmatmul.mubr.f32.gmra.mrb[0].mxu0 %v30
  %v360 = vpop.f32.mrb[0].mxu0
  %v361 = vadd.f32 %v276, %v360
  %v362 = vpop.f32.mrb[0].mxu0
  %363 = vmatprep.mubr.f32.mxu0 %v39
  %364 = vmatmul.mubr.f32.gmra.mrb[0].mxu0 %v38
  %v365 = vpop.f32.mrb[0].mxu0
  %v366 = vadd.f32 %v281, %v365
  %v367 = vpop.f32.mrb[0].mxu0
  %368 = vmatprep.mubr.f32.mxu0 %v47
  %369 = vmatmul.mubr.f32.gmra.mrb[0].mxu0 %v46
  %v370 = vpop.f32.mrb[0].mxu0
  %v371 = vadd.f32 %v286, %v370
  %v372 = vpop.f32.mrb[0].mxu0
  %373 = vdwg.mxu0
  %374 = vmatprep.subr.mxu0 0.0
  %375 = vmatpush1.msra.mxu0 %v116
  %376 = vmatprep.subr.mxu0 0.0
  %377 = vmatpush1.msra.mxu0 %v117
  %378 = vmatprep.subr.mxu0 0.0
  %379 = vmatpush1.msra.mxu0 %v118
  %380 = vmatprep.subr.mxu0 0.0
  %381 = vmatpush1.msra.mxu0 %v119
  %382 = vmatprep.subr.mxu0 0.0
  %383 = vmatpush1.msra.mxu0 %v120
  %384 = vmatprep.subr.mxu0 0.0
  %385 = vmatpush1.msra.mxu0 %v121
  %386 = vmatprep.subr.mxu0 0.0
  %387 = vmatpush1.msra.mxu0 %v122
  %388 = vmatprep.subr.mxu0 0.0
  %389 = vmatpush1.msra.mxu0 %v123
  %390 = vmatprep.subr.mxu0 0.0
  %391 = vmatpush1.msra.mxu0 %v124
  %392 = vmatprep.subr.mxu0 0.0
  %393 = vmatpush1.msra.mxu0 %v125
  %394 = vmatprep.subr.mxu0 0.0
  %395 = vmatpush1.msra.mxu0 %v126
  %396 = vmatprep.subr.mxu0 0.0
  %397 = vmatpush1.msra.mxu0 %v127
  %398 = vmatprep.subr.mxu0 0.0
  %399 = vmatpush1.msra.mxu0 %v128
  %400 = vmatprep.subr.mxu0 0.0
  %401 = vmatpush1.msra.mxu0 %v129
  %402 = vmatprep.subr.mxu0 0.0
  %403 = vmatpush1.msra.mxu0 %v130
  %404 = vmatprep.subr.mxu0 0.0
  %405 = vmatpush1.msra.mxu0 %v131
  %406 = vmatprep.subr.mxu0 0.0
  %407 = vmatpush1.msra.mxu0 %v132
  %408 = vmatprep.subr.mxu0 0.0
  %409 = vmatpush1.msra.mxu0 %v133
  %410 = vmatprep.subr.mxu0 0.0
  %411 = vmatpush1.msra.mxu0 %v134
  %412 = vmatprep.subr.mxu0 0.0
  %413 = vmatpush1.msra.mxu0 %v135
  %414 = vmatprep.subr.mxu0 0.0
  %415 = vmatpush1.msra.mxu0 %v136
  %416 = vmatprep.subr.mxu0 0.0
  %417 = vmatpush1.msra.mxu0 %v137
  %418 = vmatprep.subr.mxu0 0.0
  %419 = vmatpush1.msra.mxu0 %v138
  %420 = vmatprep.subr.mxu0 0.0
  %421 = vmatpush1.msra.mxu0 %v139
  %422 = vmatprep.subr.mxu0 0.0
  %423 = vmatpush1.msra.mxu0 %v140
  %424 = vmatprep.subr.mxu0 0.0
  %425 = vmatpush1.msra.mxu0 %v141
  %426 = vmatprep.subr.mxu0 0.0
  %427 = vmatpush1.msra.mxu0 %v142
  %428 = vmatprep.subr.mxu0 0.0
  %429 = vmatpush1.msra.mxu0 %v143
  %430 = vmatprep.subr.mxu0 0.0
  %431 = vmatpush1.msra.mxu0 %v144
  %432 = vmatprep.subr.mxu0 0.0
  %433 = vmatpush1.msra.mxu0 %v145
  %434 = vmatprep.subr.mxu0 0.0
  %435 = vmatpush1.msra.mxu0 %v146
  %436 = vmatprep.subr.mxu0 0.0
  %437 = vmatpush1.msra.mxu0 %v147
  %438 = vmatprep.mubr.f32.mxu0 %v25
  %439 = vmatmul.mubr.f32.gmra.mrb[0].mxu0 %v24
  %v440 = vpop.f32.mrb[0].mxu0
  %v441 = vadd.f32 %v356, %v440
  %v442 = vpop.f32.mrb[0].mxu0
  %443 = vmatprep.mubr.f32.mxu0 %v33
  %444 = vmatmul.mubr.f32.gmra.mrb[0].mxu0 %v32
  %v445 = vpop.f32.mrb[0].mxu0
  %v446 = vadd.f32 %v361, %v445
  %v447 = vpop.f32.mrb[0].mxu0
  %448 = vmatprep.mubr.f32.mxu0 %v41
  %449 = vmatmul.mubr.f32.gmra.mrb[0].mxu0 %v40
  %v450 = vpop.f32.mrb[0].mxu0
  %v451 = vadd.f32 %v366, %v450
  %v452 = vpop.f32.mrb[0].mxu0
  %453 = vmatprep.mubr.f32.mxu0 %v49
  %454 = vmatmul.mubr.f32.gmra.mrb[0].mxu0 %v48
  %v455 = vpop.f32.mrb[0].mxu0
  %v456 = vadd.f32 %v371, %v455
  %v457 = vpop.f32.mrb[0].mxu0
  %458 = vdwg.mxu0
  %459 = vmatprep.subr.mxu0 0.0
  %460 = vmatpush1.msra.mxu0 %v148
  %461 = vmatprep.subr.mxu0 0.0
  %462 = vmatpush1.msra.mxu0 %v149
  %463 = vmatprep.subr.mxu0 0.0
  %464 = vmatpush1.msra.mxu0 %v150
  %465 = vmatprep.subr.mxu0 0.0
  %466 = vmatpush1.msra.mxu0 %v151
  %467 = vmatprep.subr.mxu0 0.0
  %468 = vmatpush1.msra.mxu0 %v152
  %469 = vmatprep.subr.mxu0 0.0
  %470 = vmatpush1.msra.mxu0 %v153
  %471 = vmatprep.subr.mxu0 0.0
  %472 = vmatpush1.msra.mxu0 %v154
  %473 = vmatprep.subr.mxu0 0.0
  %474 = vmatpush1.msra.mxu0 %v155
  %475 = vmatprep.subr.mxu0 0.0
  %476 = vmatpush1.msra.mxu0 %v156
  %477 = vmatprep.subr.mxu0 0.0
  %478 = vmatpush1.msra.mxu0 %v157
  %479 = vmatprep.subr.mxu0 0.0
  %480 = vmatpush1.msra.mxu0 %v158
  %481 = vmatprep.subr.mxu0 0.0
  %482 = vmatpush1.msra.mxu0 %v159
  %483 = vmatprep.subr.mxu0 0.0
  %484 = vmatpush1.msra.mxu0 %v160
  %485 = vmatprep.subr.mxu0 0.0
  %486 = vmatpush1.msra.mxu0 %v161
  %487 = vmatprep.subr.mxu0 0.0
  %488 = vmatpush1.msra.mxu0 %v162
  %489 = vmatprep.subr.mxu0 0.0
  %490 = vmatpush1.msra.mxu0 %v163
  %491 = vmatprep.subr.mxu0 0.0
  %492 = vmatpush1.msra.mxu0 %v164
  %493 = vmatprep.subr.mxu0 0.0
  %494 = vmatpush1.msra.mxu0 %v165
  %495 = vmatprep.subr.mxu0 0.0
  %496 = vmatpush1.msra.mxu0 %v166
  %497 = vmatprep.subr.mxu0 0.0
  %498 = vmatpush1.msra.mxu0 %v167
  %499 = vmatprep.subr.mxu0 0.0
  %500 = vmatpush1.msra.mxu0 %v168
  %501 = vmatprep.subr.mxu0 0.0
  %502 = vmatpush1.msra.mxu0 %v169
  %503 = vmatprep.subr.mxu0 0.0
  %504 = vmatpush1.msra.mxu0 %v170
  %505 = vmatprep.subr.mxu0 0.0
  %506 = vmatpush1.msra.mxu0 %v171
  %507 = vmatprep.subr.mxu0 0.0
  %508 = vmatpush1.msra.mxu0 %v172
  %509 = vmatprep.subr.mxu0 0.0
  %510 = vmatpush1.msra.mxu0 %v173
  %511 = vmatprep.subr.mxu0 0.0
  %512 = vmatpush1.msra.mxu0 %v174
  %513 = vmatprep.subr.mxu0 0.0
  %514 = vmatpush1.msra.mxu0 %v175
  %515 = vmatprep.subr.mxu0 0.0
  %516 = vmatpush1.msra.mxu0 %v176
  %517 = vmatprep.subr.mxu0 0.0
  %518 = vmatpush1.msra.mxu0 %v177
  %519 = vmatprep.subr.mxu0 0.0
  %520 = vmatpush1.msra.mxu0 %v178
  %521 = vmatprep.subr.mxu0 0.0
  %522 = vmatpush1.msra.mxu0 %v179
  %523 = vmatprep.mubr.f32.mxu0 %v27
  %524 = vmatmul.mubr.f32.gmra.mrb[0].mxu0 %v26
  %v525 = vpop.f32.mrb[0].mxu0
  %v526 = vadd.f32 %v441, %v525
  %v527 = vpop.f32.mrb[0].mxu0
  %528 = vmatprep.mubr.f32.mxu0 %v35
  %529 = vmatmul.mubr.f32.gmra.mrb[0].mxu0 %v34
  %v530 = vpop.f32.mrb[0].mxu0
  %v531 = vadd.f32 %v446, %v530
  %v532 = vpop.f32.mrb[0].mxu0
  %533 = vmatprep.mubr.f32.mxu0 %v43
  %534 = vmatmul.mubr.f32.gmra.mrb[0].mxu0 %v42
  %v535 = vpop.f32.mrb[0].mxu0
  %v536 = vadd.f32 %v451, %v535
  %v537 = vpop.f32.mrb[0].mxu0
  %538 = vmatprep.mubr.f32.mxu0 %v51
  %539 = vmatmul.mubr.f32.gmra.mrb[0].mxu0 %v50
  %v540 = vpop.f32.mrb[0].mxu0
  %v541 = vadd.f32 %v456, %v540
  %v542 = vpop.f32.mrb[0].mxu0
  %543 = vdwg.mxu0
  %544 = vadd.xlane.f32.xlu0 %v526
  %v545 = vpop.xlane.xlu0 %544
  %546 = vadd.xlane.f32.xlu0 %v531
  %v547 = vpop.xlane.xlu0 %546
  %548 = vadd.xlane.f32.xlu0 %v536
  %v549 = vpop.xlane.xlu0 %548
  %550 = vadd.xlane.f32.xlu0 %v541
  %v551 = vpop.xlane.xlu0 %550
  %v552 = vrcp.pop 128.0
  %v553 = vmul.f32 %v545, %v552
  %v554 = vmul.f32 %v547, %v552
  %v555 = vmul.f32 %v549, %v552
  %v556 = vmul.f32 %v551, %v552
  %v557 = vsub.f32 %v526, %v553
  %v558 = vsub.f32 %v531, %v554
  %v559 = vsub.f32 %v536, %v555
  %v560 = vsub.f32 %v541, %v556
  %v561 = vmul.f32 %v557, %v557
  %v562 = vmul.f32 %v558, %v558
  %v563 = vmul.f32 %v559, %v559
  %v564 = vmul.f32 %v560, %v560
  %565 = vadd.xlane.f32.xlu0 %v561
  %v566 = vpop.xlane.xlu0 %565
  %567 = vadd.xlane.f32.xlu0 %v562
  %v568 = vpop.xlane.xlu0 %567
  %569 = vadd.xlane.f32.xlu0 %v563
  %v570 = vpop.xlane.xlu0 %569
  %571 = vadd.xlane.f32.xlu0 %v564
  %v572 = vpop.xlane.xlu0 %571
  %v573 = vmul.f32 %v566, %v552
  %v574 = vmul.f32 %v568, %v552
  %v575 = vmul.f32 %v570, %v552
  %v576 = vmul.f32 %v572, %v552
  %v577 = vadd.f32 %v573, 1e-05
  %v578 = vadd.f32 %v574, 1e-05
  %v579 = vadd.f32 %v575, 1e-05
  %v580 = vadd.f32 %v576, 1e-05
  %v581 = vrsqrt.pop %v577
  %v582 = vrsqrt.pop %v578
  %v583 = vrsqrt.pop %v579
  %v584 = vrsqrt.pop %v580
  %v585 = vmul.f32 %v557, %v581
  %v586 = vmul.f32 %v558, %v582
  %v587 = vmul.f32 %v559, %v583
  %v588 = vmul.f32 %v560, %v584
  %v589 = vld [vmem:[%s3] sm:$0xff]
  %v590 = vld [vmem:[%s3 + $0x8] sm:$0xff]
  %v591 = vld [vmem:[%s3 + $0x10] sm:$0xff]
  %v592 = vld [vmem:[%s3 + $0x18] sm:$0xff]
  %594 = vset.pattern.permute.xlu0 0
  %595 = vperm.xlu0 %594, %v589
  %v596 = vpop.permute.xlu0 %595
  %599 = vset.pattern.permute.xlu0 0
  %600 = vperm.xlu0 %599, %v590
  %v601 = vpop.permute.xlu0 %600
  %604 = vset.pattern.permute.xlu0 0
  %605 = vperm.xlu0 %604, %v591
  %v606 = vpop.permute.xlu0 %605
  %609 = vset.pattern.permute.xlu0 0
  %610 = vperm.xlu0 %609, %v592
  %v611 = vpop.permute.xlu0 %610
  %v613 = vmul.f32 %v585, %v596
  %v614 = vmul.f32 %v586, %v601
  %v615 = vmul.f32 %v587, %v606
  %v616 = vmul.f32 %v588, %v611
  %v617 = vld [vmem:[%s4] sm:$0xff]
  %v618 = vld [vmem:[%s4 + $0x8] sm:$0xff]
  %v619 = vld [vmem:[%s4 + $0x10] sm:$0xff]
  %v620 = vld [vmem:[%s4 + $0x18] sm:$0xff]
  %622 = vset.pattern.permute.xlu0 0
  %623 = vperm.xlu0 %622, %v617
  %v624 = vpop.permute.xlu0 %623
  %627 = vset.pattern.permute.xlu0 0
  %628 = vperm.xlu0 %627, %v618
  %v629 = vpop.permute.xlu0 %628
  %632 = vset.pattern.permute.xlu0 0
  %633 = vperm.xlu0 %632, %v619
  %v634 = vpop.permute.xlu0 %633
  %637 = vset.pattern.permute.xlu0 0
  %638 = vperm.xlu0 %637, %v620
  %v639 = vpop.permute.xlu0 %638
  %v641 = vadd.f32 %v613, %v624
  %v642 = vadd.f32 %v614, %v629
  %v643 = vadd.f32 %v615, %v634
  %v644 = vadd.f32 %v616, %v639
  %v645 = vtanh.pop %v641
  %v646 = vtanh.pop %v642
  %v647 = vtanh.pop %v643
  %v648 = vtanh.pop %v644
  %649 = vst [vmem:[%s5] sm:$0xff] %v645
  %650 = vst [vmem:[%s5 + $0x8] sm:$0xff] %v646
  %651 = vst [vmem:[%s5 + $0x10] sm:$0xff] %v647
  %652 = vst [vmem:[%s5 + $0x18] sm:$0xff] %v648
  // Predicated region
  $region22: #{inversion_forward.6} parent=0 // pred_check
    _
  $region23: #{inversion_forward.6} parent=0 // pred_check_branch
    %654 = sbr.rel (0) target = $region25
  $region24: #{inversion_forward.6} parent=0 // pred_region
    _
  $region25: #{inversion_forward.6} parent=0 // pred_fallthru
    _
  // Predicated region
  $region26: #{inversion_forward.6} parent=0 // pred_check
    _
  $region27: #{inversion_forward.6} parent=0 // pred_check_branch
    %656 = sbr.rel (0) target = $region29
  $region28: #{inversion_forward.6} parent=0 // pred_region
    _
  $region29: #{inversion_forward.6} parent=0 // pred_fallthru
    _

// kernel: inversion_forward.7
$region0: #{inversion_forward.7}
  #allocation0 [shape = 'u32[]', space=smem, size = 0x4, offset = 0x4, fixed_abs, tag = 'smem constant byte address 0x4 - core index']
  #allocation1 [shape = 'u32[144,128]{1,0:T(1,128)}', space=vmem, size = 0x12000, scoped, tag = 'internal scratch']
  %s0 = inlined_call_operand.vmem [shape: f32[16,512], index: 0, kind: input, shape index: {}]
  %s1 = inlined_call_operand.vmem [shape: f32[512,512], index: 1, kind: input, shape index: {}]
  %s2 = inlined_call_operand.vmem [shape: f32[16,1], index: 2, kind: input, shape index: {}]
  %s3 = inlined_call_operand.vmem [shape: f32[16,1], index: 3, kind: input, shape index: {}]
  %s4 = inlined_call_operand.vmem [shape: f32[16,1], index: 4, kind: input, shape index: {}]
  %s5 = inlined_call_operand.vmem [shape: f32[16,512], index: 5, kind: output, shape index: {}]
  %s6 = sld [smem:[#allocation0]]
  $region30: #{inversion_forward.7} parent=0
    _
  %s8 = ssub.s32 1, %s6
  %s9 = scalar_select 0, %s8, %s6
  // Predicated region
  $region2: #{inversion_forward.7} parent=0 // pred_check
    _
  $region3: #{inversion_forward.7} parent=0 // pred_check_branch
    %11 = sbr.rel (0) target = $region5
  $region4: #{inversion_forward.7} parent=0 // pred_region
    _
  $region5: #{inversion_forward.7} parent=0 // pred_fallthru
    _
  // Predicated region
  $region6: #{inversion_forward.7} parent=0 // pred_check
    _
  $region7: #{inversion_forward.7} parent=0 // pred_check_branch
    %13 = sbr.rel (0) target = $region9
  $region8: #{inversion_forward.7} parent=0 // pred_region
    _
  $region9: #{inversion_forward.7} parent=0 // pred_fallthru
    _
  // Predicated region
  $region10: #{inversion_forward.7} parent=0 // pred_check
    _
  $region11: #{inversion_forward.7} parent=0 // pred_check_branch
    %15 = sbr.rel (0) target = $region13
  $region12: #{inversion_forward.7} parent=0 // pred_region
    _
  $region13: #{inversion_forward.7} parent=0 // pred_fallthru
    _
  // Predicated region
  $region14: #{inversion_forward.7} parent=0 // pred_check
    _
  $region15: #{inversion_forward.7} parent=0 // pred_check_branch
    %17 = sbr.rel (0) target = $region17
  $region16: #{inversion_forward.7} parent=0 // pred_region
    _
  $region17: #{inversion_forward.7} parent=0 // pred_fallthru
    _
  // Predicated region
  $region18: #{inversion_forward.7} parent=0 // pred_check
    _
  $region19: #{inversion_forward.7} parent=0 // pred_check_branch
    %19 = sbr.rel (0) target = $region21
  $region20: #{inversion_forward.7} parent=0 // pred_region
    _
  $region21: #{inversion_forward.7} parent=0 // pred_fallthru
    _
  %v20 = vld [vmem:[%s0] sm:$0xff]
  %v21 = vld [vmem:[%s0 + $0x8] sm:$0xff]
  %v22 = vld [vmem:[%s0 + $0x10] sm:$0xff]
  %v23 = vld [vmem:[%s0 + $0x18] sm:$0xff]
  %v24 = vld [vmem:[%s0 + $0x20] sm:$0xff]
  %v25 = vld [vmem:[%s0 + $0x28] sm:$0xff]
  %v26 = vld [vmem:[%s0 + $0x30] sm:$0xff]
  %v27 = vld [vmem:[%s0 + $0x38] sm:$0xff]
  %v28 = vld [vmem:[%s1] sm:$0xff]
  %v29 = vld [vmem:[%s1 + $0x8] sm:$0xff]
  %v30 = vld [vmem:[%s1 + $0x10] sm:$0xff]
  %v31 = vld [vmem:[%s1 + $0x18] sm:$0xff]
  %v32 = vld [vmem:[%s1 + $0x20] sm:$0xff]
  %v33 = vld [vmem:[%s1 + $0x28] sm:$0xff]
  %v34 = vld [vmem:[%s1 + $0x30] sm:$0xff]
  %v35 = vld [vmem:[%s1 + $0x38] sm:$0xff]
  %v36 = vld [vmem:[%s1 + $0x40] sm:$0xff]
  %v37 = vld [vmem:[%s1 + $0x48] sm:$0xff]
  %v38 = vld [vmem:[%s1 + $0x50] sm:$0xff]
  %v39 = vld [vmem:[%s1 + $0x58] sm:$0xff]
  %v40 = vld [vmem:[%s1 + $0x60] sm:$0xff]
  %v41 = vld [vmem:[%s1 + $0x68] sm:$0xff]
  %v42 = vld [vmem:[%s1 + $0x70] sm:$0xff]
  %v43 = vld [vmem:[%s1 + $0x78] sm:$0xff]
  %v44 = vld [vmem:[%s1 + $0x80] sm:$0xff]
  %v45 = vld [vmem:[%s1 + $0x88] sm:$0xff]
  %v46 = vld [vmem:[%s1 + $0x90] sm:$0xff]
  %v47 = vld [vmem:[%s1 + $0x98] sm:$0xff]
  %v48 = vld [vmem:[%s1 + $0xa0] sm:$0xff]
  %v49 = vld [vmem:[%s1 + $0xa8] sm:$0xff]
  %v50 = vld [vmem:[%s1 + $0xb0] sm:$0xff]
  %v51 = vld [vmem:[%s1 + $0xb8] sm:$0xff]
  %v52 = vld [vmem:[%s1 + $0xc0] sm:$0xff]
  %v53 = vld [vmem:[%s1 + $0xc8] sm:$0xff]
  %v54 = vld [vmem:[%s1 + $0xd0] sm:$0xff]
  %v55 = vld [vmem:[%s1 + $0xd8] sm:$0xff]
  %v56 = vld [vmem:[%s1 + $0xe0] sm:$0xff]
  %v57 = vld [vmem:[%s1 + $0xe8] sm:$0xff]
  %v58 = vld [vmem:[%s1 + $0xf0] sm:$0xff]
  %v59 = vld [vmem:[%s1 + $0xf8] sm:$0xff]
  %v60 = vld [vmem:[%s1 + $0x100] sm:$0xff]
  %v61 = vld [vmem:[%s1 + $0x108] sm:$0xff]
  %v62 = vld [vmem:[%s1 + $0x110] sm:$0xff]
  %v63 = vld [vmem:[%s1 + $0x118] sm:$0xff]
  %v64 = vld [vmem:[%s1 + $0x120] sm:$0xff]
  %v65 = vld [vmem:[%s1 + $0x128] sm:$0xff]
  %v66 = vld [vmem:[%s1 + $0x130] sm:$0xff]
  %v67 = vld [vmem:[%s1 + $0x138] sm:$0xff]
  %v68 = vld [vmem:[%s1 + $0x140] sm:$0xff]
  %v69 = vld [vmem:[%s1 + $0x148] sm:$0xff]
  %v70 = vld [vmem:[%s1 + $0x150] sm:$0xff]
  %v71 = vld [vmem:[%s1 + $0x158] sm:$0xff]
  %v72 = vld [vmem:[%s1 + $0x160] sm:$0xff]
  %v73 = vld [vmem:[%s1 + $0x168] sm:$0xff]
  %v74 = vld [vmem:[%s1 + $0x170] sm:$0xff]
  %v75 = vld [vmem:[%s1 + $0x178] sm:$0xff]
  %v76 = vld [vmem:[%s1 + $0x180] sm:$0xff]
  %v77 = vld [vmem:[%s1 + $0x188] sm:$0xff]
  %v78 = vld [vmem:[%s1 + $0x190] sm:$0xff]
  %v79 = vld [vmem:[%s1 + $0x198] sm:$0xff]
  %v80 = vld [vmem:[%s1 + $0x1a0] sm:$0xff]
  %v81 = vld [vmem:[%s1 + $0x1a8] sm:$0xff]
  %v82 = vld [vmem:[%s1 + $0x1b0] sm:$0xff]
  %v83 = vld [vmem:[%s1 + $0x1b8] sm:$0xff]
  %v84 = vld [vmem:[%s1 + $0x1c0] sm:$0xff]
  %v85 = vld [vmem:[%s1 + $0x1c8] sm:$0xff]
  %v86 = vld [vmem:[%s1 + $0x1d0] sm:$0xff]
  %v87 = vld [vmem:[%s1 + $0x1d8] sm:$0xff]
  %v88 = vld [vmem:[%s1 + $0x1e0] sm:$0xff]
  %v89 = vld [vmem:[%s1 + $0x1e8] sm:$0xff]
  %v90 = vld [vmem:[%s1 + $0x1f0] sm:$0xff]
  %v91 = vld [vmem:[%s1 + $0x1f8] sm:$0xff]
  %v92 = vld [vmem:[%s1 + $0x200] sm:$0xff]
  %v93 = vld [vmem:[%s1 + $0x208] sm:$0xff]
  %v94 = vld [vmem:[%s1 + $0x210] sm:$0xff]
  %v95 = vld [vmem:[%s1 + $0x218] sm:$0xff]
  %v96 = vld [vmem:[%s1 + $0x220] sm:$0xff]
  %v97 = vld [vmem:[%s1 + $0x228] sm:$0xff]
  %v98 = vld [vmem:[%s1 + $0x230] sm:$0xff]
  %v99 = vld [vmem:[%s1 + $0x238] sm:$0xff]
  %v100 = vld [vmem:[%s1 + $0x240] sm:$0xff]
  %v101 = vld [vmem:[%s1 + $0x248] sm:$0xff]
  %v102 = vld [vmem:[%s1 + $0x250] sm:$0xff]
  %v103 = vld [vmem:[%s1 + $0x258] sm:$0xff]
  %v104 = vld [vmem:[%s1 + $0x260] sm:$0xff]
  %v105 = vld [vmem:[%s1 + $0x268] sm:$0xff]
  %v106 = vld [vmem:[%s1 + $0x270] sm:$0xff]
  %v107 = vld [vmem:[%s1 + $0x278] sm:$0xff]
  %v108 = vld [vmem:[%s1 + $0x280] sm:$0xff]
  %v109 = vld [vmem:[%s1 + $0x288] sm:$0xff]
  %v110 = vld [vmem:[%s1 + $0x290] sm:$0xff]
  %v111 = vld [vmem:[%s1 + $0x298] sm:$0xff]
  %v112 = vld [vmem:[%s1 + $0x2a0] sm:$0xff]
  %v113 = vld [vmem:[%s1 + $0x2a8] sm:$0xff]
  %v114 = vld [vmem:[%s1 + $0x2b0] sm:$0xff]
  %v115 = vld [vmem:[%s1 + $0x2b8] sm:$0xff]
  %v116 = vld [vmem:[%s1 + $0x2c0] sm:$0xff]
  %v117 = vld [vmem:[%s1 + $0x2c8] sm:$0xff]
  %v118 = vld [vmem:[%s1 + $0x2d0] sm:$0xff]
  %v119 = vld [vmem:[%s1 + $0x2d8] sm:$0xff]
  %v120 = vld [vmem:[%s1 + $0x2e0] sm:$0xff]
  %v121 = vld [vmem:[%s1 + $0x2e8] sm:$0xff]
  %v122 = vld [vmem:[%s1 + $0x2f0] sm:$0xff]
  %v123 = vld [vmem:[%s1 + $0x2f8] sm:$0xff]
  %v124 = vld [vmem:[%s1 + $0x300] sm:$0xff]
  %v125 = vld [vmem:[%s1 + $0x308] sm:$0xff]
  %v126 = vld [vmem:[%s1 + $0x310] sm:$0xff]
  %v127 = vld [vmem:[%s1 + $0x318] sm:$0xff]
  %v128 = vld [vmem:[%s1 + $0x320] sm:$0xff]
  %v129 = vld [vmem:[%s1 + $0x328] sm:$0xff]
  %v130 = vld [vmem:[%s1 + $0x330] sm:$0xff]
  %v131 = vld [vmem:[%s1 + $0x338] sm:$0xff]
  %v132 = vld [vmem:[%s1 + $0x340] sm:$0xff]
  %v133 = vld [vmem:[%s1 + $0x348] sm:$0xff]
  %v134 = vld [vmem:[%s1 + $0x350] sm:$0xff]
  %v135 = vld [vmem:[%s1 + $0x358] sm:$0xff]
  %v136 = vld [vmem:[%s1 + $0x360] sm:$0xff]
  %v137 = vld [vmem:[%s1 + $0x368] sm:$0xff]
  %v138 = vld [vmem:[%s1 + $0x370] sm:$0xff]
  %v139 = vld [vmem:[%s1 + $0x378] sm:$0xff]
  %v140 = vld [vmem:[%s1 + $0x380] sm:$0xff]
  %v141 = vld [vmem:[%s1 + $0x388] sm:$0xff]
  %v142 = vld [vmem:[%s1 + $0x390] sm:$0xff]
  %v143 = vld [vmem:[%s1 + $0x398] sm:$0xff]
  %v144 = vld [vmem:[%s1 + $0x3a0] sm:$0xff]
  %v145 = vld [vmem:[%s1 + $0x3a8] sm:$0xff]
  %v146 = vld [vmem:[%s1 + $0x3b0] sm:$0xff]
  %v147 = vld [vmem:[%s1 + $0x3b8] sm:$0xff]
  %v148 = vld [vmem:[%s1 + $0x3c0] sm:$0xff]
  %v149 = vld [vmem:[%s1 + $0x3c8] sm:$0xff]
  %v150 = vld [vmem:[%s1 + $0x3d0] sm:$0xff]
  %v151 = vld [vmem:[%s1 + $0x3d8] sm:$0xff]
  %v152 = vld [vmem:[%s1 + $0x3e0] sm:$0xff]
  %v153 = vld [vmem:[%s1 + $0x3e8] sm:$0xff]
  %v154 = vld [vmem:[%s1 + $0x3f0] sm:$0xff]
  %v155 = vld [vmem:[%s1 + $0x3f8] sm:$0xff]
  %v156 = vld [vmem:[%s1 + $0x400] sm:$0xff]
  %v157 = vld [vmem:[%s1 + $0x408] sm:$0xff]
  %v158 = vld [vmem:[%s1 + $0x410] sm:$0xff]
  %v159 = vld [vmem:[%s1 + $0x418] sm:$0xff]
  %v160 = vld [vmem:[%s1 + $0x420] sm:$0xff]
  %v161 = vld [vmem:[%s1 + $0x428] sm:$0xff]
  %v162 = vld [vmem:[%s1 + $0x430] sm:$0xff]
  %v163 = vld [vmem:[%s1 + $0x438] sm:$0xff]
  %v164 = vld [vmem:[%s1 + $0x440] sm:$0xff]
  %v165 = vld [vmem:[%s1 + $0x448] sm:$0xff]
  %v166 = vld [vmem:[%s1 + $0x450] sm:$0xff]
  %v167 = vld [vmem:[%s1 + $0x458] sm:$0xff]
  %v168 = vld [vmem:[%s1 + $0x460] sm:$0xff]
  %v169 = vld [vmem:[%s1 + $0x468] sm:$0xff]
  %v170 = vld [vmem:[%s1 + $0x470] sm:$0xff]
  %v171 = vld [vmem:[%s1 + $0x478] sm:$0xff]
  %v172 = vld [vmem:[%s1 + $0x480] sm:$0xff]
  %v173 = vld [vmem:[%s1 + $0x488] sm:$0xff]
  %v174 = vld [vmem:[%s1 + $0x490] sm:$0xff]
  %v175 = vld [vmem:[%s1 + $0x498] sm:$0xff]
  %v176 = vld [vmem:[%s1 + $0x4a0] sm:$0xff]
  %v177 = vld [vmem:[%s1 + $0x4a8] sm:$0xff]
  %v178 = vld [vmem:[%s1 + $0x4b0] sm:$0xff]
  %v179 = vld [vmem:[%s1 + $0x4b8] sm:$0xff]
  %v180 = vld [vmem:[%s1 + $0x4c0] sm:$0xff]
  %v181 = vld [vmem:[%s1 + $0x4c8] sm:$0xff]
  %v182 = vld [vmem:[%s1 + $0x4d0] sm:$0xff]
  %v183 = vld [vmem:[%s1 + $0x4d8] sm:$0xff]
  %v184 = vld [vmem:[%s1 + $0x4e0] sm:$0xff]
  %v185 = vld [vmem:[%s1 + $0x4e8] sm:$0xff]
  %v186 = vld [vmem:[%s1 + $0x4f0] sm:$0xff]
  %v187 = vld [vmem:[%s1 + $0x4f8] sm:$0xff]
  %v188 = vld [vmem:[%s1 + $0x500] sm:$0xff]
  %v189 = vld [vmem:[%s1 + $0x508] sm:$0xff]
  %v190 = vld [vmem:[%s1 + $0x510] sm:$0xff]
  %v191 = vld [vmem:[%s1 + $0x518] sm:$0xff]
  %v192 = vld [vmem:[%s1 + $0x520] sm:$0xff]
  %v193 = vld [vmem:[%s1 + $0x528] sm:$0xff]
  %v194 = vld [vmem:[%s1 + $0x530] sm:$0xff]
  %v195 = vld [vmem:[%s1 + $0x538] sm:$0xff]
  %v196 = vld [vmem:[%s1 + $0x540] sm:$0xff]
  %v197 = vld [vmem:[%s1 + $0x548] sm:$0xff]
  %v198 = vld [vmem:[%s1 + $0x550] sm:$0xff]
  %v199 = vld [vmem:[%s1 + $0x558] sm:$0xff]
  %v200 = vld [vmem:[%s1 + $0x560] sm:$0xff]
  %v201 = vld [vmem:[%s1 + $0x568] sm:$0xff]
  %v202 = vld [vmem:[%s1 + $0x570] sm:$0xff]
  %v203 = vld [vmem:[%s1 + $0x578] sm:$0xff]
  %v204 = vld [vmem:[%s1 + $0x580] sm:$0xff]
  %v205 = vld [vmem:[%s1 + $0x588] sm:$0xff]
  %v206 = vld [vmem:[%s1 + $0x590] sm:$0xff]
  %v207 = vld [vmem:[%s1 + $0x598] sm:$0xff]
  %v208 = vld [vmem:[%s1 + $0x5a0] sm:$0xff]
  %v209 = vld [vmem:[%s1 + $0x5a8] sm:$0xff]
  %v210 = vld [vmem:[%s1 + $0x5b0] sm:$0xff]
  %v211 = vld [vmem:[%s1 + $0x5b8] sm:$0xff]
  %v212 = vld [vmem:[%s1 + $0x5c0] sm:$0xff]
  %v213 = vld [vmem:[%s1 + $0x5c8] sm:$0xff]
  %v214 = vld [vmem:[%s1 + $0x5d0] sm:$0xff]
  %v215 = vld [vmem:[%s1 + $0x5d8] sm:$0xff]
  %v216 = vld [vmem:[%s1 + $0x5e0] sm:$0xff]
  %v217 = vld [vmem:[%s1 + $0x5e8] sm:$0xff]
  %v218 = vld [vmem:[%s1 + $0x5f0] sm:$0xff]
  %v219 = vld [vmem:[%s1 + $0x5f8] sm:$0xff]
  %v220 = vld [vmem:[%s1 + $0x600] sm:$0xff]
  %v221 = vld [vmem:[%s1 + $0x608] sm:$0xff]
  %v222 = vld [vmem:[%s1 + $0x610] sm:$0xff]
  %v223 = vld [vmem:[%s1 + $0x618] sm:$0xff]
  %v224 = vld [vmem:[%s1 + $0x620] sm:$0xff]
  %v225 = vld [vmem:[%s1 + $0x628] sm:$0xff]
  %v226 = vld [vmem:[%s1 + $0x630] sm:$0xff]
  %v227 = vld [vmem:[%s1 + $0x638] sm:$0xff]
  %v228 = vld [vmem:[%s1 + $0x640] sm:$0xff]
  %v229 = vld [vmem:[%s1 + $0x648] sm:$0xff]
  %v230 = vld [vmem:[%s1 + $0x650] sm:$0xff]
  %v231 = vld [vmem:[%s1 + $0x658] sm:$0xff]
  %v232 = vld [vmem:[%s1 + $0x660] sm:$0xff]
  %v233 = vld [vmem:[%s1 + $0x668] sm:$0xff]
  %v234 = vld [vmem:[%s1 + $0x670] sm:$0xff]
  %v235 = vld [vmem:[%s1 + $0x678] sm:$0xff]
  %v236 = vld [vmem:[%s1 + $0x680] sm:$0xff]
  %v237 = vld [vmem:[%s1 + $0x688] sm:$0xff]
  %v238 = vld [vmem:[%s1 + $0x690] sm:$0xff]
  %v239 = vld [vmem:[%s1 + $0x698] sm:$0xff]
  %v240 = vld [vmem:[%s1 + $0x6a0] sm:$0xff]
  %v241 = vld [vmem:[%s1 + $0x6a8] sm:$0xff]
  %v242 = vld [vmem:[%s1 + $0x6b0] sm:$0xff]
  %v243 = vld [vmem:[%s1 + $0x6b8] sm:$0xff]
  %v244 = vld [vmem:[%s1 + $0x6c0] sm:$0xff]
  %v245 = vld [vmem:[%s1 + $0x6c8] sm:$0xff]
  %v246 = vld [vmem:[%s1 + $0x6d0] sm:$0xff]
  %v247 = vld [vmem:[%s1 + $0x6d8] sm:$0xff]
  %v248 = vld [vmem:[%s1 + $0x6e0] sm:$0xff]
  %v249 = vld [vmem:[%s1 + $0x6e8] sm:$0xff]
  %v250 = vld [vmem:[%s1 + $0x6f0] sm:$0xff]
  %v251 = vld [vmem:[%s1 + $0x6f8] sm:$0xff]
  %v252 = vld [vmem:[%s1 + $0x700] sm:$0xff]
  %v253 = vld [vmem:[%s1 + $0x708] sm:$0xff]
  %v254 = vld [vmem:[%s1 + $0x710] sm:$0xff]
  %v255 = vld [vmem:[%s1 + $0x718] sm:$0xff]
  %v256 = vld [vmem:[%s1 + $0x720] sm:$0xff]
  %v257 = vld [vmem:[%s1 + $0x728] sm:$0xff]
  %v258 = vld [vmem:[%s1 + $0x730] sm:$0xff]
  %v259 = vld [vmem:[%s1 + $0x738] sm:$0xff]
  %v260 = vld [vmem:[%s1 + $0x740] sm:$0xff]
  %v261 = vld [vmem:[%s1 + $0x748] sm:$0xff]
  %v262 = vld [vmem:[%s1 + $0x750] sm:$0xff]
  %v263 = vld [vmem:[%s1 + $0x758] sm:$0xff]
  %v264 = vld [vmem:[%s1 + $0x760] sm:$0xff]
  %v265 = vld [vmem:[%s1 + $0x768] sm:$0xff]
  %v266 = vld [vmem:[%s1 + $0x770] sm:$0xff]
  %v267 = vld [vmem:[%s1 + $0x778] sm:$0xff]
  %v268 = vld [vmem:[%s1 + $0x780] sm:$0xff]
  %v269 = vld [vmem:[%s1 + $0x788] sm:$0xff]
  %v270 = vld [vmem:[%s1 + $0x790] sm:$0xff]
  %v271 = vld [vmem:[%s1 + $0x798] sm:$0xff]
  %v272 = vld [vmem:[%s1 + $0x7a0] sm:$0xff]
  %v273 = vld [vmem:[%s1 + $0x7a8] sm:$0xff]
  %v274 = vld [vmem:[%s1 + $0x7b0] sm:$0xff]
  %v275 = vld [vmem:[%s1 + $0x7b8] sm:$0xff]
  %v276 = vld [vmem:[%s1 + $0x7c0] sm:$0xff]
  %v277 = vld [vmem:[%s1 + $0x7c8] sm:$0xff]
  %v278 = vld [vmem:[%s1 + $0x7d0] sm:$0xff]
  %v279 = vld [vmem:[%s1 + $0x7d8] sm:$0xff]
  %v280 = vld [vmem:[%s1 + $0x7e0] sm:$0xff]
  %v281 = vld [vmem:[%s1 + $0x7e8] sm:$0xff]
  %v282 = vld [vmem:[%s1 + $0x7f0] sm:$0xff]
  %v283 = vld [vmem:[%s1 + $0x7f8] sm:$0xff]
  %v284 = vld [vmem:[%s2] sm:$0xff]
  %v285 = vld [vmem:[%s2 + $0x8] sm:$0xff]
  %287 = vset.pattern.permute.xlu0 0
  %288 = vperm.xlu0 %287, %v284
  %v289 = vpop.permute.xlu0 %288
  %292 = vset.pattern.permute.xlu0 0
  %293 = vperm.xlu0 %292, %v285
  %v294 = vpop.permute.xlu0 %293
  %296 = vmatprep.subr.mxu0 %v29
  %297 = vmatpush1.msra.mxu0 %v28
  %298 = vmatprep.subr.mxu0 %v33
  %299 = vmatpush1.msra.mxu0 %v32
  %300 = vmatprep.subr.mxu0 %v37
  %301 = vmatpush1.msra.mxu0 %v36
  %302 = vmatprep.subr.mxu0 %v41
  %303 = vmatpush1.msra.mxu0 %v40
  %304 = vmatprep.subr.mxu0 %v45
  %305 = vmatpush1.msra.mxu0 %v44
  %306 = vmatprep.subr.mxu0 %v49
  %307 = vmatpush1.msra.mxu0 %v48
  %308 = vmatprep.subr.mxu0 %v53
  %309 = vmatpush1.msra.mxu0 %v52
  %310 = vmatprep.subr.mxu0 %v57
  %311 = vmatpush1.msra.mxu0 %v56
  %312 = vmatprep.subr.mxu0 %v61
  %313 = vmatpush1.msra.mxu0 %v60
  %314 = vmatprep.subr.mxu0 %v65
  %315 = vmatpush1.msra.mxu0 %v64
  %316 = vmatprep.subr.mxu0 %v69
  %317 = vmatpush1.msra.mxu0 %v68
  %318 = vmatprep.subr.mxu0 %v73
  %319 = vmatpush1.msra.mxu0 %v72
  %320 = vmatprep.subr.mxu0 %v77
  %321 = vmatpush1.msra.mxu0 %v76
  %322 = vmatprep.subr.mxu0 %v81
  %323 = vmatpush1.msra.mxu0 %v80
  %324 = vmatprep.subr.mxu0 %v85
  %325 = vmatpush1.msra.mxu0 %v84
  %326 = vmatprep.subr.mxu0 %v89
  %327 = vmatpush1.msra.mxu0 %v88
  %328 = vmatprep.subr.mxu0 %v93
  %329 = vmatpush1.msra.mxu0 %v92
  %330 = vmatprep.subr.mxu0 %v97
  %331 = vmatpush1.msra.mxu0 %v96
  %332 = vmatprep.subr.mxu0 %v101
  %333 = vmatpush1.msra.mxu0 %v100
  %334 = vmatprep.subr.mxu0 %v105
  %335 = vmatpush1.msra.mxu0 %v104
  %336 = vmatprep.subr.mxu0 %v109
  %337 = vmatpush1.msra.mxu0 %v108
  %338 = vmatprep.subr.mxu0 %v113
  %339 = vmatpush1.msra.mxu0 %v112
  %340 = vmatprep.subr.mxu0 %v117
  %341 = vmatpush1.msra.mxu0 %v116
  %342 = vmatprep.subr.mxu0 %v121
  %343 = vmatpush1.msra.mxu0 %v120
  %344 = vmatprep.subr.mxu0 %v125
  %345 = vmatpush1.msra.mxu0 %v124
  %346 = vmatprep.subr.mxu0 %v129
  %347 = vmatpush1.msra.mxu0 %v128
  %348 = vmatprep.subr.mxu0 %v133
  %349 = vmatpush1.msra.mxu0 %v132
  %350 = vmatprep.subr.mxu0 %v137
  %351 = vmatpush1.msra.mxu0 %v136
  %352 = vmatprep.subr.mxu0 %v141
  %353 = vmatpush1.msra.mxu0 %v140
  %354 = vmatprep.subr.mxu0 %v145
  %355 = vmatpush1.msra.mxu0 %v144
  %356 = vmatprep.subr.mxu0 %v149
  %357 = vmatpush1.msra.mxu0 %v148
  %358 = vmatprep.subr.mxu0 %v153
  %359 = vmatpush1.msra.mxu0 %v152
  %360 = vmatprep.mubr.f32.mxu0 %v21
  %361 = vmatmul.mubr.f32.gmra.mrb[0].mxu0 %v20
  %v362 = vpop.f32.mrb[0].mxu0
  %v363 = vadd.f32 %v289, %v362
  %v364 = vpop.f32.mrb[0].mxu0
  %v365 = vadd.f32 %v289, %v364
  %366 = vmatprep.mubr.f32.mxu0 %v25
  %367 = vmatmul.mubr.f32.gmra.mrb[0].mxu0 %v24
  %v368 = vpop.f32.mrb[0].mxu0
  %v369 = vadd.f32 %v294, %v368
  %v370 = vpop.f32.mrb[0].mxu0
  %v371 = vadd.f32 %v294, %v370
  %372 = vdwg.mxu0
  %373 = vmatprep.subr.mxu0 %v157
  %374 = vmatpush1.msra.mxu0 %v156
  %375 = vmatprep.subr.mxu0 %v161
  %376 = vmatpush1.msra.mxu0 %v160
  %377 = vmatprep.subr.mxu0 %v165
  %378 = vmatpush1.msra.mxu0 %v164
  %379 = vmatprep.subr.mxu0 %v169
  %380 = vmatpush1.msra.mxu0 %v168
  %381 = vmatprep.subr.mxu0 %v173
  %382 = vmatpush1.msra.mxu0 %v172
  %383 = vmatprep.subr.mxu0 %v177
  %384 = vmatpush1.msra.mxu0 %v176
  %385 = vmatprep.subr.mxu0 %v181
  %386 = vmatpush1.msra.mxu0 %v180
  %387 = vmatprep.subr.mxu0 %v185
  %388 = vmatpush1.msra.mxu0 %v184
  %389 = vmatprep.subr.mxu0 %v189
  %390 = vmatpush1.msra.mxu0 %v188
  %391 = vmatprep.subr.mxu0 %v193
  %392 = vmatpush1.msra.mxu0 %v192
  %393 = vmatprep.subr.mxu0 %v197
  %394 = vmatpush1.msra.mxu0 %v196
  %395 = vmatprep.subr.mxu0 %v201
  %396 = vmatpush1.msra.mxu0 %v200
  %397 = vmatprep.subr.mxu0 %v205
  %398 = vmatpush1.msra.mxu0 %v204
  %399 = vmatprep.subr.mxu0 %v209
  %400 = vmatpush1.msra.mxu0 %v208
  %401 = vmatprep.subr.mxu0 %v213
  %402 = vmatpush1.msra.mxu0 %v212
  %403 = vmatprep.subr.mxu0 %v217
  %404 = vmatpush1.msra.mxu0 %v216
  %405 = vmatprep.subr.mxu0 %v221
  %406 = vmatpush1.msra.mxu0 %v220
  %407 = vmatprep.subr.mxu0 %v225
  %408 = vmatpush1.msra.mxu0 %v224
  %409 = vmatprep.subr.mxu0 %v229
  %410 = vmatpush1.msra.mxu0 %v228
  %411 = vmatprep.subr.mxu0 %v233
  %412 = vmatpush1.msra.mxu0 %v232
  %413 = vmatprep.subr.mxu0 %v237
  %414 = vmatpush1.msra.mxu0 %v236
  %415 = vmatprep.subr.mxu0 %v241
  %416 = vmatpush1.msra.mxu0 %v240
  %417 = vmatprep.subr.mxu0 %v245
  %418 = vmatpush1.msra.mxu0 %v244
  %419 = vmatprep.subr.mxu0 %v249
  %420 = vmatpush1.msra.mxu0 %v248
  %421 = vmatprep.subr.mxu0 %v253
  %422 = vmatpush1.msra.mxu0 %v252
  %423 = vmatprep.subr.mxu0 %v257
  %424 = vmatpush1.msra.mxu0 %v256
  %425 = vmatprep.subr.mxu0 %v261
  %426 = vmatpush1.msra.mxu0 %v260
  %427 = vmatprep.subr.mxu0 %v265
  %428 = vmatpush1.msra.mxu0 %v264
  %429 = vmatprep.subr.mxu0 %v269
  %430 = vmatpush1.msra.mxu0 %v268
  %431 = vmatprep.subr.mxu0 %v273
  %432 = vmatpush1.msra.mxu0 %v272
  %433 = vmatprep.subr.mxu0 %v277
  %434 = vmatpush1.msra.mxu0 %v276
  %435 = vmatprep.subr.mxu0 %v281
  %436 = vmatpush1.msra.mxu0 %v280
  %437 = vmatprep.mubr.f32.mxu0 %v23
  %438 = vmatmul.mubr.f32.gmra.mrb[0].mxu0 %v22
  %v439 = vpop.f32.mrb[0].mxu0
  %v440 = vadd.f32 %v363, %v439
  %v441 = vpop.f32.mrb[0].mxu0
  %v442 = vadd.f32 %v365, %v441
  %443 = vmatprep.mubr.f32.mxu0 %v27
  %444 = vmatmul.mubr.f32.gmra.mrb[0].mxu0 %v26
  %v445 = vpop.f32.mrb[0].mxu0
  %v446 = vadd.f32 %v369, %v445
  %v447 = vpop.f32.mrb[0].mxu0
  %v448 = vadd.f32 %v371, %v447
  %449 = vdwg.mxu0
  %450 = vmatprep.subr.mxu0 %v31
  %451 = vmatpush1.msra.mxu0 %v30
  %452 = vmatprep.subr.mxu0 %v35
  %453 = vmatpush1.msra.mxu0 %v34
  %454 = vmatprep.subr.mxu0 %v39
  %455 = vmatpush1.msra.mxu0 %v38
  %456 = vmatprep.subr.mxu0 %v43
  %457 = vmatpush1.msra.mxu0 %v42
  %458 = vmatprep.subr.mxu0 %v47
  %459 = vmatpush1.msra.mxu0 %v46
  %460 = vmatprep.subr.mxu0 %v51
  %461 = vmatpush1.msra.mxu0 %v50
  %462 = vmatprep.subr.mxu0 %v55
  %463 = vmatpush1.msra.mxu0 %v54
  %464 = vmatprep.subr.mxu0 %v59
  %465 = vmatpush1.msra.mxu0 %v58
  %466 = vmatprep.subr.mxu0 %v63
  %467 = vmatpush1.msra.mxu0 %v62
  %468 = vmatprep.subr.mxu0 %v67
  %469 = vmatpush1.msra.mxu0 %v66
  %470 = vmatprep.subr.mxu0 %v71
  %471 = vmatpush1.msra.mxu0 %v70
  %472 = vmatprep.subr.mxu0 %v75
  %473 = vmatpush1.msra.mxu0 %v74
  %474 = vmatprep.subr.mxu0 %v79
  %475 = vmatpush1.msra.mxu0 %v78
  %476 = vmatprep.subr.mxu0 %v83
  %477 = vmatpush1.msra.mxu0 %v82
  %478 = vmatprep.subr.mxu0 %v87
  %479 = vmatpush1.msra.mxu0 %v86
  %480 = vmatprep.subr.mxu0 %v91
  %481 = vmatpush1.msra.mxu0 %v90
  %482 = vmatprep.subr.mxu0 %v95
  %483 = vmatpush1.msra.mxu0 %v94
  %484 = vmatprep.subr.mxu0 %v99
  %485 = vmatpush1.msra.mxu0 %v98
  %486 = vmatprep.subr.mxu0 %v103
  %487 = vmatpush1.msra.mxu0 %v102
  %488 = vmatprep.subr.mxu0 %v107
  %489 = vmatpush1.msra.mxu0 %v106
  %490 = vmatprep.subr.mxu0 %v111
  %491 = vmatpush1.msra.mxu0 %v110
  %492 = vmatprep.subr.mxu0 %v115
  %493 = vmatpush1.msra.mxu0 %v114
  %494 = vmatprep.subr.mxu0 %v119
  %495 = vmatpush1.msra.mxu0 %v118
  %496 = vmatprep.subr.mxu0 %v123
  %497 = vmatpush1.msra.mxu0 %v122
  %498 = vmatprep.subr.mxu0 %v127
  %499 = vmatpush1.msra.mxu0 %v126
  %500 = vmatprep.subr.mxu0 %v131
  %501 = vmatpush1.msra.mxu0 %v130
  %502 = vmatprep.subr.mxu0 %v135
  %503 = vmatpush1.msra.mxu0 %v134
  %504 = vmatprep.subr.mxu0 %v139
  %505 = vmatpush1.msra.mxu0 %v138
  %506 = vmatprep.subr.mxu0 %v143
  %507 = vmatpush1.msra.mxu0 %v142
  %508 = vmatprep.subr.mxu0 %v147
  %509 = vmatpush1.msra.mxu0 %v146
  %510 = vmatprep.subr.mxu0 %v151
  %511 = vmatpush1.msra.mxu0 %v150
  %512 = vmatprep.subr.mxu0 %v155
  %513 = vmatpush1.msra.mxu0 %v154
  %514 = vmatprep.mubr.f32.mxu0 %v21
  %515 = vmatmul.mubr.f32.gmra.mrb[0].mxu0 %v20
  %v516 = vpop.f32.mrb[0].mxu0
  %v517 = vadd.f32 %v289, %v516
  %v518 = vpop.f32.mrb[0].mxu0
  %v519 = vadd.f32 %v289, %v518
  %520 = vmatprep.mubr.f32.mxu0 %v25
  %521 = vmatmul.mubr.f32.gmra.mrb[0].mxu0 %v24
  %v522 = vpop.f32.mrb[0].mxu0
  %v523 = vadd.f32 %v294, %v522
  %v524 = vpop.f32.mrb[0].mxu0
  %v525 = vadd.f32 %v294, %v524
  %526 = vdwg.mxu0
  %527 = vmatprep.subr.mxu0 %v159
  %528 = vmatpush1.msra.mxu0 %v158
  %529 = vmatprep.subr.mxu0 %v163
  %530 = vmatpush1.msra.mxu0 %v162
  %531 = vmatprep.subr.mxu0 %v167
  %532 = vmatpush1.msra.mxu0 %v166
  %533 = vmatprep.subr.mxu0 %v171
  %534 = vmatpush1.msra.mxu0 %v170
  %535 = vmatprep.subr.mxu0 %v175
  %536 = vmatpush1.msra.mxu0 %v174
  %537 = vmatprep.subr.mxu0 %v179
  %538 = vmatpush1.msra.mxu0 %v178
  %539 = vmatprep.subr.mxu0 %v183
  %540 = vmatpush1.msra.mxu0 %v182
  %541 = vmatprep.subr.mxu0 %v187
  %542 = vmatpush1.msra.mxu0 %v186
  %543 = vmatprep.subr.mxu0 %v191
  %544 = vmatpush1.msra.mxu0 %v190
  %545 = vmatprep.subr.mxu0 %v195
  %546 = vmatpush1.msra.mxu0 %v194
  %547 = vmatprep.subr.mxu0 %v199
  %548 = vmatpush1.msra.mxu0 %v198
  %549 = vmatprep.subr.mxu0 %v203
  %550 = vmatpush1.msra.mxu0 %v202
  %551 = vmatprep.subr.mxu0 %v207
  %552 = vmatpush1.msra.mxu0 %v206
  %553 = vmatprep.subr.mxu0 %v211
  %554 = vmatpush1.msra.mxu0 %v210
  %555 = vmatprep.subr.mxu0 %v215
  %556 = vmatpush1.msra.mxu0 %v214
  %557 = vmatprep.subr.mxu0 %v219
  %558 = vmatpush1.msra.mxu0 %v218
  %559 = vmatprep.subr.mxu0 %v223
  %560 = vmatpush1.msra.mxu0 %v222
  %561 = vmatprep.subr.mxu0 %v227
  %562 = vmatpush1.msra.mxu0 %v226
  %563 = vmatprep.subr.mxu0 %v231
  %564 = vmatpush1.msra.mxu0 %v230
  %565 = vmatprep.subr.mxu0 %v235
  %566 = vmatpush1.msra.mxu0 %v234
  %567 = vmatprep.subr.mxu0 %v239
  %568 = vmatpush1.msra.mxu0 %v238
  %569 = vmatprep.subr.mxu0 %v243
  %570 = vmatpush1.msra.mxu0 %v242
  %571 = vmatprep.subr.mxu0 %v247
  %572 = vmatpush1.msra.mxu0 %v246
  %573 = vmatprep.subr.mxu0 %v251
  %574 = vmatpush1.msra.mxu0 %v250
  %575 = vmatprep.subr.mxu0 %v255
  %576 = vmatpush1.msra.mxu0 %v254
  %577 = vmatprep.subr.mxu0 %v259
  %578 = vmatpush1.msra.mxu0 %v258
  %579 = vmatprep.subr.mxu0 %v263
  %580 = vmatpush1.msra.mxu0 %v262
  %581 = vmatprep.subr.mxu0 %v267
  %582 = vmatpush1.msra.mxu0 %v266
  %583 = vmatprep.subr.mxu0 %v271
  %584 = vmatpush1.msra.mxu0 %v270
  %585 = vmatprep.subr.mxu0 %v275
  %586 = vmatpush1.msra.mxu0 %v274
  %587 = vmatprep.subr.mxu0 %v279
  %588 = vmatpush1.msra.mxu0 %v278
  %589 = vmatprep.subr.mxu0 %v283
  %590 = vmatpush1.msra.mxu0 %v282
  %591 = vmatprep.mubr.f32.mxu0 %v23
  %592 = vmatmul.mubr.f32.gmra.mrb[0].mxu0 %v22
  %v593 = vpop.f32.mrb[0].mxu0
  %v594 = vadd.f32 %v517, %v593
  %v595 = vpop.f32.mrb[0].mxu0
  %v596 = vadd.f32 %v519, %v595
  %597 = vmatprep.mubr.f32.mxu0 %v27
  %598 = vmatmul.mubr.f32.gmra.mrb[0].mxu0 %v26
  %v599 = vpop.f32.mrb[0].mxu0
  %v600 = vadd.f32 %v523, %v599
  %v601 = vpop.f32.mrb[0].mxu0
  %v602 = vadd.f32 %v525, %v601
  %603 = vdwg.mxu0
  %v604 = vadd.f32 %v440, %v442
  %v605 = vadd.f32 %v604, %v594
  %v606 = vadd.f32 %v605, %v596
  %607 = vadd.xlane.f32.xlu0 %v606
  %v608 = vpop.xlane.xlu0 %607
  %v609 = vadd.f32 %v446, %v448
  %v610 = vadd.f32 %v609, %v600
  %v611 = vadd.f32 %v610, %v602
  %612 = vadd.xlane.f32.xlu0 %v611
  %v613 = vpop.xlane.xlu0 %612
  %v614 = vrcp.pop 512.0
  %v615 = vmul.f32 %v608, %v614
  %v616 = vmul.f32 %v613, %v614
  %v617 = vsub.f32 %v440, %v615
  %v618 = vsub.f32 %v442, %v615
  %v619 = vsub.f32 %v594, %v615
  %v620 = vsub.f32 %v596, %v615
  %v621 = vsub.f32 %v446, %v616
  %v622 = vsub.f32 %v448, %v616
  %v623 = vsub.f32 %v600, %v616
  %v624 = vsub.f32 %v602, %v616
  %v625 = vmul.f32 %v617, %v617
  %v626 = vmul.f32 %v618, %v618
  %v627 = vmul.f32 %v619, %v619
  %v628 = vmul.f32 %v620, %v620
  %v629 = vmul.f32 %v621, %v621
  %v630 = vmul.f32 %v622, %v622
  %v631 = vmul.f32 %v623, %v623
  %v632 = vmul.f32 %v624, %v624
  %v633 = vadd.f32 %v625, %v626
  %v634 = vadd.f32 %v633, %v627
  %v635 = vadd.f32 %v634, %v628
  %636 = vadd.xlane.f32.xlu0 %v635
  %v637 = vpop.xlane.xlu0 %636
  %v638 = vadd.f32 %v629, %v630
  %v639 = vadd.f32 %v638, %v631
  %v640 = vadd.f32 %v639, %v632
  %641 = vadd.xlane.f32.xlu0 %v640
  %v642 = vpop.xlane.xlu0 %641
  %v643 = vmul.f32 %v637, %v614
  %v644 = vmul.f32 %v642, %v614
  %v645 = vadd.f32 %v643, 1e-05
  %v646 = vadd.f32 %v644, 1e-05
  %v647 = vrsqrt.pop %v645
  %v648 = vrsqrt.pop %v646
  %v649 = vmul.f32 %v617, %v647
  %v650 = vmul.f32 %v618, %v647
  %v651 = vmul.f32 %v619, %v647
  %v652 = vmul.f32 %v620, %v647
  %v653 = vmul.f32 %v621, %v648
  %v654 = vmul.f32 %v622, %v648
  %v655 = vmul.f32 %v623, %v648
  %v656 = vmul.f32 %v624, %v648
  %v657 = vld [vmem:[%s3] sm:$0xff]
  %v658 = vld [vmem:[%s3 + $0x8] sm:$0xff]
  %660 = vset.pattern.permute.xlu0 0
  %661 = vperm.xlu0 %660, %v657
  %v662 = vpop.permute.xlu0 %661
  %665 = vset.pattern.permute.xlu0 0
  %666 = vperm.xlu0 %665, %v658
  %v667 = vpop.permute.xlu0 %666
  %v669 = vmul.f32 %v649, %v662
  %v670 = vmul.f32 %v650, %v662
  %v671 = vmul.f32 %v651, %v662
  %v672 = vmul.f32 %v652, %v662
  %v673 = vmul.f32 %v653, %v667
  %v674 = vmul.f32 %v654, %v667
  %v675 = vmul.f32 %v655, %v667
  %v676 = vmul.f32 %v656, %v667
  %v677 = vld [vmem:[%s4] sm:$0xff]
  %v678 = vld [vmem:[%s4 + $0x8] sm:$0xff]
  %680 = vset.pattern.permute.xlu0 0
  %681 = vperm.xlu0 %680, %v677
  %v682 = vpop.permute.xlu0 %681
  %685 = vset.pattern.permute.xlu0 0
  %686 = vperm.xlu0 %685, %v678
  %v687 = vpop.permute.xlu0 %686
  %v689 = vadd.f32 %v669, %v682
  %v690 = vadd.f32 %v670, %v682
  %v691 = vadd.f32 %v671, %v682
  %v692 = vadd.f32 %v672, %v682
  %v693 = vadd.f32 %v673, %v687
  %v694 = vadd.f32 %v674, %v687
  %v695 = vadd.f32 %v675, %v687
  %v696 = vadd.f32 %v676, %v687
  %v697 = vtanh.pop %v689
  %v698 = vtanh.pop %v690
  %v699 = vtanh.pop %v691
  %v700 = vtanh.pop %v692
  %v701 = vtanh.pop %v693
  %v702 = vtanh.pop %v694
  %v703 = vtanh.pop %v695
  %v704 = vtanh.pop %v696
  %705 = vst [vmem:[%s5] sm:$0xff] %v697
  %706 = vst [vmem:[%s5 + $0x8] sm:$0xff] %v698
  %707 = vst [vmem:[%s5 + $0x10] sm:$0xff] %v699
  %708 = vst [vmem:[%s5 + $0x18] sm:$0xff] %v700
  %709 = vst [vmem:[%s5 + $0x20] sm:$0xff] %v701
  %710 = vst [vmem:[%s5 + $0x28] sm:$0xff] %v702
  %711 = vst [vmem:[%s5 + $0x30] sm:$0xff] %v703
  %712 = vst [vmem:[%s5 + $0x38] sm:$0xff] %v704
  // Predicated region
  $region22: #{inversion_forward.7} parent=0 // pred_check
    _
  $region23: #{inversion_forward.7} parent=0 // pred_check_branch
    %714 = sbr.rel (0) target = $region25
  $region24: #{inversion_forward.7} parent=0 // pred_region
    _
  $region25: #{inversion_forward.7} parent=0 // pred_fallthru
    _
  // Predicated region
  $region26: #{inversion_forward.7} parent=0 // pred_check
    _
  $region27: #{inversion_forward.7} parent=0 // pred_check_branch
    %716 = sbr.rel (0) target = $region29
  $region28: #{inversion_forward.7} parent=0 // pred_region
    _
  $region29: #{inversion_forward.7} parent=0 // pred_fallthru
    _

// kernel: inversion_forward.8
$region0: #{inversion_forward.8}
  #allocation0 [shape = 'u32[]', space=smem, size = 0x4, offset = 0x4, fixed_abs, tag = 'smem constant byte address 0x4 - core index']
  #allocation1 [shape = 'u32[144,128]{1,0:T(1,128)}', space=vmem, size = 0x12000, scoped, tag = 'internal scratch']
  %s0 = inlined_call_operand.vmem [shape: f32[8,256], index: 0, kind: input, shape index: {}]
  %s1 = inlined_call_operand.vmem [shape: f32[256,2048], index: 1, kind: input, shape index: {}]
  %s2 = inlined_call_operand.vmem [shape: f32[8,1], index: 2, kind: input, shape index: {}]
  %s3 = inlined_call_operand.vmem [shape: f32[8,1], index: 3, kind: input, shape index: {}]
  %s4 = inlined_call_operand.vmem [shape: f32[8,1], index: 4, kind: input, shape index: {}]
  %s5 = inlined_call_operand.vmem [shape: f32[8,2048], index: 5, kind: output, shape index: {}]
  %s6 = sld [smem:[#allocation0]]
  $region30: #{inversion_forward.8} parent=0
    _
  %s8 = ssub.s32 1, %s6
  %s9 = scalar_select 0, %s8, %s6
  // Predicated region
  $region2: #{inversion_forward.8} parent=0 // pred_check
    _
  $region3: #{inversion_forward.8} parent=0 // pred_check_branch
    %11 = sbr.rel (0) target = $region5
  $region4: #{inversion_forward.8} parent=0 // pred_region
    _
  $region5: #{inversion_forward.8} parent=0 // pred_fallthru
    _
  // Predicated region
  $region6: #{inversion_forward.8} parent=0 // pred_check
    _
  $region7: #{inversion_forward.8} parent=0 // pred_check_branch
    %13 = sbr.rel (0) target = $region9
  $region8: #{inversion_forward.8} parent=0 // pred_region
    _
  $region9: #{inversion_forward.8} parent=0 // pred_fallthru
    _
  // Predicated region
  $region10: #{inversion_forward.8} parent=0 // pred_check
    _
  $region11: #{inversion_forward.8} parent=0 // pred_check_branch
    %15 = sbr.rel (0) target = $region13
  $region12: #{inversion_forward.8} parent=0 // pred_region
    _
  $region13: #{inversion_forward.8} parent=0 // pred_fallthru
    _
  // Predicated region
  $region14: #{inversion_forward.8} parent=0 // pred_check
    _
  $region15: #{inversion_forward.8} parent=0 // pred_check_branch
    %17 = sbr.rel (0) target = $region17
  $region16: #{inversion_forward.8} parent=0 // pred_region
    _
  $region17: #{inversion_forward.8} parent=0 // pred_fallthru
    _
  // Predicated region
  $region18: #{inversion_forward.8} parent=0 // pred_check
    _
  $region19: #{inversion_forward.8} parent=0 // pred_check_branch
    %19 = sbr.rel (0) target = $region21
  $region20: #{inversion_forward.8} parent=0 // pred_region
    _
  $region21: #{inversion_forward.8} parent=0 // pred_fallthru
    _
  %v20 = vld [vmem:[%s0] sm:$0xff]
  %v21 = vld [vmem:[%s0 + $0x8] sm:$0xff]
  %v22 = vld [vmem:[%s1] sm:$0xff]
  %v23 = vld [vmem:[%s1 + $0x8] sm:$0xff]
  %v24 = vld [vmem:[%s1 + $0x10] sm:$0xff]
  %v25 = vld [vmem:[%s1 + $0x18] sm:$0xff]
  %v26 = vld [vmem:[%s1 + $0x20] sm:$0xff]
  %v27 = vld [vmem:[%s1 + $0x28] sm:$0xff]
  %v28 = vld [vmem:[%s1 + $0x30] sm:$0xff]
  %v29 = vld [vmem:[%s1 + $0x38] sm:$0xff]
  %v30 = vld [vmem:[%s1 + $0x40] sm:$0xff]
  %v31 = vld [vmem:[%s1 + $0x48] sm:$0xff]
  %v32 = vld [vmem:[%s1 + $0x50] sm:$0xff]
  %v33 = vld [vmem:[%s1 + $0x58] sm:$0xff]
  %v34 = vld [vmem:[%s1 + $0x60] sm:$0xff]
  %v35 = vld [vmem:[%s1 + $0x68] sm:$0xff]
  %v36 = vld [vmem:[%s1 + $0x70] sm:$0xff]
  %v37 = vld [vmem:[%s1 + $0x78] sm:$0xff]
  %v38 = vld [vmem:[%s1 + $0x80] sm:$0xff]
  %v39 = vld [vmem:[%s1 + $0x88] sm:$0xff]
  %v40 = vld [vmem:[%s1 + $0x90] sm:$0xff]
  %v41 = vld [vmem:[%s1 + $0x98] sm:$0xff]
  %v42 = vld [vmem:[%s1 + $0xa0] sm:$0xff]
  %v43 = vld [vmem:[%s1 + $0xa8] sm:$0xff]
  %v44 = vld [vmem:[%s1 + $0xb0] sm:$0xff]
  %v45 = vld [vmem:[%s1 + $0xb8] sm:$0xff]
  %v46 = vld [vmem:[%s1 + $0xc0] sm:$0xff]
  %v47 = vld [vmem:[%s1 + $0xc8] sm:$0xff]
  %v48 = vld [vmem:[%s1 + $0xd0] sm:$0xff]
  %v49 = vld [vmem:[%s1 + $0xd8] sm:$0xff]
  %v50 = vld [vmem:[%s1 + $0xe0] sm:$0xff]
  %v51 = vld [vmem:[%s1 + $0xe8] sm:$0xff]
  %v52 = vld [vmem:[%s1 + $0xf0] sm:$0xff]
  %v53 = vld [vmem:[%s1 + $0xf8] sm:$0xff]
  %v54 = vld [vmem:[%s1 + $0x100] sm:$0xff]
  %v55 = vld [vmem:[%s1 + $0x108] sm:$0xff]
  %v56 = vld [vmem:[%s1 + $0x110] sm:$0xff]
  %v57 = vld [vmem:[%s1 + $0x118] sm:$0xff]
  %v58 = vld [vmem:[%s1 + $0x120] sm:$0xff]
  %v59 = vld [vmem:[%s1 + $0x128] sm:$0xff]
  %v60 = vld [vmem:[%s1 + $0x130] sm:$0xff]
  %v61 = vld [vmem:[%s1 + $0x138] sm:$0xff]
  %v62 = vld [vmem:[%s1 + $0x140] sm:$0xff]
  %v63 = vld [vmem:[%s1 + $0x148] sm:$0xff]
  %v64 = vld [vmem:[%s1 + $0x150] sm:$0xff]
  %v65 = vld [vmem:[%s1 + $0x158] sm:$0xff]
  %v66 = vld [vmem:[%s1 + $0x160] sm:$0xff]
  %v67 = vld [vmem:[%s1 + $0x168] sm:$0xff]
  %v68 = vld [vmem:[%s1 + $0x170] sm:$0xff]
  %v69 = vld [vmem:[%s1 + $0x178] sm:$0xff]
  %v70 = vld [vmem:[%s1 + $0x180] sm:$0xff]
  %v71 = vld [vmem:[%s1 + $0x188] sm:$0xff]
  %v72 = vld [vmem:[%s1 + $0x190] sm:$0xff]
  %v73 = vld [vmem:[%s1 + $0x198] sm:$0xff]
  %v74 = vld [vmem:[%s1 + $0x1a0] sm:$0xff]
  %v75 = vld [vmem:[%s1 + $0x1a8] sm:$0xff]
  %v76 = vld [vmem:[%s1 + $0x1b0] sm:$0xff]
  %v77 = vld [vmem:[%s1 + $0x1b8] sm:$0xff]
  %v78 = vld [vmem:[%s1 + $0x1c0] sm:$0xff]
  %v79 = vld [vmem:[%s1 + $0x1c8] sm:$0xff]
  %v80 = vld [vmem:[%s1 + $0x1d0] sm:$0xff]
  %v81 = vld [vmem:[%s1 + $0x1d8] sm:$0xff]
  %v82 = vld [vmem:[%s1 + $0x1e0] sm:$0xff]
  %v83 = vld [vmem:[%s1 + $0x1e8] sm:$0xff]
  %v84 = vld [vmem:[%s1 + $0x1f0] sm:$0xff]
  %v85 = vld [vmem:[%s1 + $0x1f8] sm:$0xff]
  %v86 = vld [vmem:[%s1 + $0x200] sm:$0xff]
  %v87 = vld [vmem:[%s1 + $0x208] sm:$0xff]
  %v88 = vld [vmem:[%s1 + $0x210] sm:$0xff]
  %v89 = vld [vmem:[%s1 + $0x218] sm:$0xff]
  %v90 = vld [vmem:[%s1 + $0x220] sm:$0xff]
  %v91 = vld [vmem:[%s1 + $0x228] sm:$0xff]
  %v92 = vld [vmem:[%s1 + $0x230] sm:$0xff]
  %v93 = vld [vmem:[%s1 + $0x238] sm:$0xff]
  %v94 = vld [vmem:[%s1 + $0x240] sm:$0xff]
  %v95 = vld [vmem:[%s1 + $0x248] sm:$0xff]
  %v96 = vld [vmem:[%s1 + $0x250] sm:$0xff]
  %v97 = vld [vmem:[%s1 + $0x258] sm:$0xff]
  %v98 = vld [vmem:[%s1 + $0x260] sm:$0xff]
  %v99 = vld [vmem:[%s1 + $0x268] sm:$0xff]
  %v100 = vld [vmem:[%s1 + $0x270] sm:$0xff]
  %v101 = vld [vmem:[%s1 + $0x278] sm:$0xff]
  %v102 = vld [vmem:[%s1 + $0x280] sm:$0xff]
  %v103 = vld [vmem:[%s1 + $0x288] sm:$0xff]
  %v104 = vld [vmem:[%s1 + $0x290] sm:$0xff]
  %v105 = vld [vmem:[%s1 + $0x298] sm:$0xff]
  %v106 = vld [vmem:[%s1 + $0x2a0] sm:$0xff]
  %v107 = vld [vmem:[%s1 + $0x2a8] sm:$0xff]
  %v108 = vld [vmem:[%s1 + $0x2b0] sm:$0xff]
  %v109 = vld [vmem:[%s1 + $0x2b8] sm:$0xff]
  %v110 = vld [vmem:[%s1 + $0x2c0] sm:$0xff]
  %v111 = vld [vmem:[%s1 + $0x2c8] sm:$0xff]
  %v112 = vld [vmem:[%s1 + $0x2d0] sm:$0xff]
  %v113 = vld [vmem:[%s1 + $0x2d8] sm:$0xff]
  %v114 = vld [vmem:[%s1 + $0x2e0] sm:$0xff]
  %v115 = vld [vmem:[%s1 + $0x2e8] sm:$0xff]
  %v116 = vld [vmem:[%s1 + $0x2f0] sm:$0xff]
  %v117 = vld [vmem:[%s1 + $0x2f8] sm:$0xff]
  %v118 = vld [vmem:[%s1 + $0x300] sm:$0xff]
  %v119 = vld [vmem:[%s1 + $0x308] sm:$0xff]
  %v120 = vld [vmem:[%s1 + $0x310] sm:$0xff]
  %v121 = vld [vmem:[%s1 + $0x318] sm:$0xff]
  %v122 = vld [vmem:[%s1 + $0x320] sm:$0xff]
  %v123 = vld [vmem:[%s1 + $0x328] sm:$0xff]
  %v124 = vld [vmem:[%s1 + $0x330] sm:$0xff]
  %v125 = vld [vmem:[%s1 + $0x338] sm:$0xff]
  %v126 = vld [vmem:[%s1 + $0x340] sm:$0xff]
  %v127 = vld [vmem:[%s1 + $0x348] sm:$0xff]
  %v128 = vld [vmem:[%s1 + $0x350] sm:$0xff]
  %v129 = vld [vmem:[%s1 + $0x358] sm:$0xff]
  %v130 = vld [vmem:[%s1 + $0x360] sm:$0xff]
  %v131 = vld [vmem:[%s1 + $0x368] sm:$0xff]
  %v132 = vld [vmem:[%s1 + $0x370] sm:$0xff]
  %v133 = vld [vmem:[%s1 + $0x378] sm:$0xff]
  %v134 = vld [vmem:[%s1 + $0x380] sm:$0xff]
  %v135 = vld [vmem:[%s1 + $0x388] sm:$0xff]
  %v136 = vld [vmem:[%s1 + $0x390] sm:$0xff]
  %v137 = vld [vmem:[%s1 + $0x398] sm:$0xff]
  %v138 = vld [vmem:[%s1 + $0x3a0] sm:$0xff]
  %v139 = vld [vmem:[%s1 + $0x3a8] sm:$0xff]
  %v140 = vld [vmem:[%s1 + $0x3b0] sm:$0xff]
  %v141 = vld [vmem:[%s1 + $0x3b8] sm:$0xff]
  %v142 = vld [vmem:[%s1 + $0x3c0] sm:$0xff]
  %v143 = vld [vmem:[%s1 + $0x3c8] sm:$0xff]
  %v144 = vld [vmem:[%s1 + $0x3d0] sm:$0xff]
  %v145 = vld [vmem:[%s1 + $0x3d8] sm:$0xff]
  %v146 = vld [vmem:[%s1 + $0x3e0] sm:$0xff]
  %v147 = vld [vmem:[%s1 + $0x3e8] sm:$0xff]
  %v148 = vld [vmem:[%s1 + $0x3f0] sm:$0xff]
  %v149 = vld [vmem:[%s1 + $0x3f8] sm:$0xff]
  %v150 = vld [vmem:[%s1 + $0x400] sm:$0xff]
  %v151 = vld [vmem:[%s1 + $0x408] sm:$0xff]
  %v152 = vld [vmem:[%s1 + $0x410] sm:$0xff]
  %v153 = vld [vmem:[%s1 + $0x418] sm:$0xff]
  %v154 = vld [vmem:[%s1 + $0x420] sm:$0xff]
  %v155 = vld [vmem:[%s1 + $0x428] sm:$0xff]
  %v156 = vld [vmem:[%s1 + $0x430] sm:$0xff]
  %v157 = vld [vmem:[%s1 + $0x438] sm:$0xff]
  %v158 = vld [vmem:[%s1 + $0x440] sm:$0xff]
  %v159 = vld [vmem:[%s1 + $0x448] sm:$0xff]
  %v160 = vld [vmem:[%s1 + $0x450] sm:$0xff]
  %v161 = vld [vmem:[%s1 + $0x458] sm:$0xff]
  %v162 = vld [vmem:[%s1 + $0x460] sm:$0xff]
  %v163 = vld [vmem:[%s1 + $0x468] sm:$0xff]
  %v164 = vld [vmem:[%s1 + $0x470] sm:$0xff]
  %v165 = vld [vmem:[%s1 + $0x478] sm:$0xff]
  %v166 = vld [vmem:[%s1 + $0x480] sm:$0xff]
  %v167 = vld [vmem:[%s1 + $0x488] sm:$0xff]
  %v168 = vld [vmem:[%s1 + $0x490] sm:$0xff]
  %v169 = vld [vmem:[%s1 + $0x498] sm:$0xff]
  %v170 = vld [vmem:[%s1 + $0x4a0] sm:$0xff]
  %v171 = vld [vmem:[%s1 + $0x4a8] sm:$0xff]
  %v172 = vld [vmem:[%s1 + $0x4b0] sm:$0xff]
  %v173 = vld [vmem:[%s1 + $0x4b8] sm:$0xff]
  %v174 = vld [vmem:[%s1 + $0x4c0] sm:$0xff]
  %v175 = vld [vmem:[%s1 + $0x4c8] sm:$0xff]
  %v176 = vld [vmem:[%s1 + $0x4d0] sm:$0xff]
  %v177 = vld [vmem:[%s1 + $0x4d8] sm:$0xff]
  %v178 = vld [vmem:[%s1 + $0x4e0] sm:$0xff]
  %v179 = vld [vmem:[%s1 + $0x4e8] sm:$0xff]
  %v180 = vld [vmem:[%s1 + $0x4f0] sm:$0xff]
  %v181 = vld [vmem:[%s1 + $0x4f8] sm:$0xff]
  %v182 = vld [vmem:[%s1 + $0x500] sm:$0xff]
  %v183 = vld [vmem:[%s1 + $0x508] sm:$0xff]
  %v184 = vld [vmem:[%s1 + $0x510] sm:$0xff]
  %v185 = vld [vmem:[%s1 + $0x518] sm:$0xff]
  %v186 = vld [vmem:[%s1 + $0x520] sm:$0xff]
  %v187 = vld [vmem:[%s1 + $0x528] sm:$0xff]
  %v188 = vld [vmem:[%s1 + $0x530] sm:$0xff]
  %v189 = vld [vmem:[%s1 + $0x538] sm:$0xff]
  %v190 = vld [vmem:[%s1 + $0x540] sm:$0xff]
  %v191 = vld [vmem:[%s1 + $0x548] sm:$0xff]
  %v192 = vld [vmem:[%s1 + $0x550] sm:$0xff]
  %v193 = vld [vmem:[%s1 + $0x558] sm:$0xff]
  %v194 = vld [vmem:[%s1 + $0x560] sm:$0xff]
  %v195 = vld [vmem:[%s1 + $0x568] sm:$0xff]
  %v196 = vld [vmem:[%s1 + $0x570] sm:$0xff]
  %v197 = vld [vmem:[%s1 + $0x578] sm:$0xff]
  %v198 = vld [vmem:[%s1 + $0x580] sm:$0xff]
  %v199 = vld [vmem:[%s1 + $0x588] sm:$0xff]
  %v200 = vld [vmem:[%s1 + $0x590] sm:$0xff]
  %v201 = vld [vmem:[%s1 + $0x598] sm:$0xff]
  %v202 = vld [vmem:[%s1 + $0x5a0] sm:$0xff]
  %v203 = vld [vmem:[%s1 + $0x5a8] sm:$0xff]
  %v204 = vld [vmem:[%s1 + $0x5b0] sm:$0xff]
  %v205 = vld [vmem:[%s1 + $0x5b8] sm:$0xff]
  %v206 = vld [vmem:[%s1 + $0x5c0] sm:$0xff]
  %v207 = vld [vmem:[%s1 + $0x5c8] sm:$0xff]
  %v208 = vld [vmem:[%s1 + $0x5d0] sm:$0xff]
  %v209 = vld [vmem:[%s1 + $0x5d8] sm:$0xff]
  %v210 = vld [vmem:[%s1 + $0x5e0] sm:$0xff]
  %v211 = vld [vmem:[%s1 + $0x5e8] sm:$0xff]
  %v212 = vld [vmem:[%s1 + $0x5f0] sm:$0xff]
  %v213 = vld [vmem:[%s1 + $0x5f8] sm:$0xff]
  %v214 = vld [vmem:[%s1 + $0x600] sm:$0xff]
  %v215 = vld [vmem:[%s1 + $0x608] sm:$0xff]
  %v216 = vld [vmem:[%s1 + $0x610] sm:$0xff]
  %v217 = vld [vmem:[%s1 + $0x618] sm:$0xff]
  %v218 = vld [vmem:[%s1 + $0x620] sm:$0xff]
  %v219 = vld [vmem:[%s1 + $0x628] sm:$0xff]
  %v220 = vld [vmem:[%s1 + $0x630] sm:$0xff]
  %v221 = vld [vmem:[%s1 + $0x638] sm:$0xff]
  %v222 = vld [vmem:[%s1 + $0x640] sm:$0xff]
  %v223 = vld [vmem:[%s1 + $0x648] sm:$0xff]
  %v224 = vld [vmem:[%s1 + $0x650] sm:$0xff]
  %v225 = vld [vmem:[%s1 + $0x658] sm:$0xff]
  %v226 = vld [vmem:[%s1 + $0x660] sm:$0xff]
  %v227 = vld [vmem:[%s1 + $0x668] sm:$0xff]
  %v228 = vld [vmem:[%s1 + $0x670] sm:$0xff]
  %v229 = vld [vmem:[%s1 + $0x678] sm:$0xff]
  %v230 = vld [vmem:[%s1 + $0x680] sm:$0xff]
  %v231 = vld [vmem:[%s1 + $0x688] sm:$0xff]
  %v232 = vld [vmem:[%s1 + $0x690] sm:$0xff]
  %v233 = vld [vmem:[%s1 + $0x698] sm:$0xff]
  %v234 = vld [vmem:[%s1 + $0x6a0] sm:$0xff]
  %v235 = vld [vmem:[%s1 + $0x6a8] sm:$0xff]
  %v236 = vld [vmem:[%s1 + $0x6b0] sm:$0xff]
  %v237 = vld [vmem:[%s1 + $0x6b8] sm:$0xff]
  %v238 = vld [vmem:[%s1 + $0x6c0] sm:$0xff]
  %v239 = vld [vmem:[%s1 + $0x6c8] sm:$0xff]
  %v240 = vld [vmem:[%s1 + $0x6d0] sm:$0xff]
  %v241 = vld [vmem:[%s1 + $0x6d8] sm:$0xff]
  %v242 = vld [vmem:[%s1 + $0x6e0] sm:$0xff]
  %v243 = vld [vmem:[%s1 + $0x6e8] sm:$0xff]
  %v244 = vld [vmem:[%s1 + $0x6f0] sm:$0xff]
  %v245 = vld [vmem:[%s1 + $0x6f8] sm:$0xff]
  %v246 = vld [vmem:[%s1 + $0x700] sm:$0xff]
  %v247 = vld [vmem:[%s1 + $0x708] sm:$0xff]
  %v248 = vld [vmem:[%s1 + $0x710] sm:$0xff]
  %v249 = vld [vmem:[%s1 + $0x718] sm:$0xff]
  %v250 = vld [vmem:[%s1 + $0x720] sm:$0xff]
  %v251 = vld [vmem:[%s1 + $0x728] sm:$0xff]
  %v252 = vld [vmem:[%s1 + $0x730] sm:$0xff]
  %v253 = vld [vmem:[%s1 + $0x738] sm:$0xff]
  %v254 = vld [vmem:[%s1 + $0x740] sm:$0xff]
  %v255 = vld [vmem:[%s1 + $0x748] sm:$0xff]
  %v256 = vld [vmem:[%s1 + $0x750] sm:$0xff]
  %v257 = vld [vmem:[%s1 + $0x758] sm:$0xff]
  %v258 = vld [vmem:[%s1 + $0x760] sm:$0xff]
  %v259 = vld [vmem:[%s1 + $0x768] sm:$0xff]
  %v260 = vld [vmem:[%s1 + $0x770] sm:$0xff]
  %v261 = vld [vmem:[%s1 + $0x778] sm:$0xff]
  %v262 = vld [vmem:[%s1 + $0x780] sm:$0xff]
  %v263 = vld [vmem:[%s1 + $0x788] sm:$0xff]
  %v264 = vld [vmem:[%s1 + $0x790] sm:$0xff]
  %v265 = vld [vmem:[%s1 + $0x798] sm:$0xff]
  %v266 = vld [vmem:[%s1 + $0x7a0] sm:$0xff]
  %v267 = vld [vmem:[%s1 + $0x7a8] sm:$0xff]
  %v268 = vld [vmem:[%s1 + $0x7b0] sm:$0xff]
  %v269 = vld [vmem:[%s1 + $0x7b8] sm:$0xff]
  %v270 = vld [vmem:[%s1 + $0x7c0] sm:$0xff]
  %v271 = vld [vmem:[%s1 + $0x7c8] sm:$0xff]
  %v272 = vld [vmem:[%s1 + $0x7d0] sm:$0xff]
  %v273 = vld [vmem:[%s1 + $0x7d8] sm:$0xff]
  %v274 = vld [vmem:[%s1 + $0x7e0] sm:$0xff]
  %v275 = vld [vmem:[%s1 + $0x7e8] sm:$0xff]
  %v276 = vld [vmem:[%s1 + $0x7f0] sm:$0xff]
  %v277 = vld [vmem:[%s1 + $0x7f8] sm:$0xff]
  %v278 = vld [vmem:[%s1 + $0x800] sm:$0xff]
  %v279 = vld [vmem:[%s1 + $0x808] sm:$0xff]
  %v280 = vld [vmem:[%s1 + $0x810] sm:$0xff]
  %v281 = vld [vmem:[%s1 + $0x818] sm:$0xff]
  %v282 = vld [vmem:[%s1 + $0x820] sm:$0xff]
  %v283 = vld [vmem:[%s1 + $0x828] sm:$0xff]
  %v284 = vld [vmem:[%s1 + $0x830] sm:$0xff]
  %v285 = vld [vmem:[%s1 + $0x838] sm:$0xff]
  %v286 = vld [vmem:[%s1 + $0x840] sm:$0xff]
  %v287 = vld [vmem:[%s1 + $0x848] sm:$0xff]
  %v288 = vld [vmem:[%s1 + $0x850] sm:$0xff]
  %v289 = vld [vmem:[%s1 + $0x858] sm:$0xff]
  %v290 = vld [vmem:[%s1 + $0x860] sm:$0xff]
  %v291 = vld [vmem:[%s1 + $0x868] sm:$0xff]
  %v292 = vld [vmem:[%s1 + $0x870] sm:$0xff]
  %v293 = vld [vmem:[%s1 + $0x878] sm:$0xff]
  %v294 = vld [vmem:[%s1 + $0x880] sm:$0xff]
  %v295 = vld [vmem:[%s1 + $0x888] sm:$0xff]
  %v296 = vld [vmem:[%s1 + $0x890] sm:$0xff]
  %v297 = vld [vmem:[%s1 + $0x898] sm:$0xff]
  %v298 = vld [vmem:[%s1 + $0x8a0] sm:$0xff]
  %v299 = vld [vmem:[%s1 + $0x8a8] sm:$0xff]
  %v300 = vld [vmem:[%s1 + $0x8b0] sm:$0xff]
  %v301 = vld [vmem:[%s1 + $0x8b8] sm:$0xff]
  %v302 = vld [vmem:[%s1 + $0x8c0] sm:$0xff]
  %v303 = vld [vmem:[%s1 + $0x8c8] sm:$0xff]
  %v304 = vld [vmem:[%s1 + $0x8d0] sm:$0xff]
  %v305 = vld [vmem:[%s1 + $0x8d8] sm:$0xff]
  %v306 = vld [vmem:[%s1 + $0x8e0] sm:$0xff]
  %v307 = vld [vmem:[%s1 + $0x8e8] sm:$0xff]
  %v308 = vld [vmem:[%s1 + $0x8f0] sm:$0xff]
  %v309 = vld [vmem:[%s1 + $0x8f8] sm:$0xff]
  %v310 = vld [vmem:[%s1 + $0x900] sm:$0xff]
  %v311 = vld [vmem:[%s1 + $0x908] sm:$0xff]
  %v312 = vld [vmem:[%s1 + $0x910] sm:$0xff]
  %v313 = vld [vmem:[%s1 + $0x918] sm:$0xff]
  %v314 = vld [vmem:[%s1 + $0x920] sm:$0xff]
  %v315 = vld [vmem:[%s1 + $0x928] sm:$0xff]
  %v316 = vld [vmem:[%s1 + $0x930] sm:$0xff]
  %v317 = vld [vmem:[%s1 + $0x938] sm:$0xff]
  %v318 = vld [vmem:[%s1 + $0x940] sm:$0xff]
  %v319 = vld [vmem:[%s1 + $0x948] sm:$0xff]
  %v320 = vld [vmem:[%s1 + $0x950] sm:$0xff]
  %v321 = vld [vmem:[%s1 + $0x958] sm:$0xff]
  %v322 = vld [vmem:[%s1 + $0x960] sm:$0xff]
  %v323 = vld [vmem:[%s1 + $0x968] sm:$0xff]
  %v324 = vld [vmem:[%s1 + $0x970] sm:$0xff]
  %v325 = vld [vmem:[%s1 + $0x978] sm:$0xff]
  %v326 = vld [vmem:[%s1 + $0x980] sm:$0xff]
  %v327 = vld [vmem:[%s1 + $0x988] sm:$0xff]
  %v328 = vld [vmem:[%s1 + $0x990] sm:$0xff]
  %v329 = vld [vmem:[%s1 + $0x998] sm:$0xff]
  %v330 = vld [vmem:[%s1 + $0x9a0] sm:$0xff]
  %v331 = vld [vmem:[%s1 + $0x9a8] sm:$0xff]
  %v332 = vld [vmem:[%s1 + $0x9b0] sm:$0xff]
  %v333 = vld [vmem:[%s1 + $0x9b8] sm:$0xff]
  %v334 = vld [vmem:[%s1 + $0x9c0] sm:$0xff]
  %v335 = vld [vmem:[%s1 + $0x9c8] sm:$0xff]
  %v336 = vld [vmem:[%s1 + $0x9d0] sm:$0xff]
  %v337 = vld [vmem:[%s1 + $0x9d8] sm:$0xff]
  %v338 = vld [vmem:[%s1 + $0x9e0] sm:$0xff]
  %v339 = vld [vmem:[%s1 + $0x9e8] sm:$0xff]
  %v340 = vld [vmem:[%s1 + $0x9f0] sm:$0xff]
  %v341 = vld [vmem:[%s1 + $0x9f8] sm:$0xff]
  %v342 = vld [vmem:[%s1 + $0xa00] sm:$0xff]
  %v343 = vld [vmem:[%s1 + $0xa08] sm:$0xff]
  %v344 = vld [vmem:[%s1 + $0xa10] sm:$0xff]
  %v345 = vld [vmem:[%s1 + $0xa18] sm:$0xff]
  %v346 = vld [vmem:[%s1 + $0xa20] sm:$0xff]
  %v347 = vld [vmem:[%s1 + $0xa28] sm:$0xff]
  %v348 = vld [vmem:[%s1 + $0xa30] sm:$0xff]
  %v349 = vld [vmem:[%s1 + $0xa38] sm:$0xff]
  %v350 = vld [vmem:[%s1 + $0xa40] sm:$0xff]
  %v351 = vld [vmem:[%s1 + $0xa48] sm:$0xff]
  %v352 = vld [vmem:[%s1 + $0xa50] sm:$0xff]
  %v353 = vld [vmem:[%s1 + $0xa58] sm:$0xff]
  %v354 = vld [vmem:[%s1 + $0xa60] sm:$0xff]
  %v355 = vld [vmem:[%s1 + $0xa68] sm:$0xff]
  %v356 = vld [vmem:[%s1 + $0xa70] sm:$0xff]
  %v357 = vld [vmem:[%s1 + $0xa78] sm:$0xff]
  %v358 = vld [vmem:[%s1 + $0xa80] sm:$0xff]
  %v359 = vld [vmem:[%s1 + $0xa88] sm:$0xff]
  %v360 = vld [vmem:[%s1 + $0xa90] sm:$0xff]
  %v361 = vld [vmem:[%s1 + $0xa98] sm:$0xff]
  %v362 = vld [vmem:[%s1 + $0xaa0] sm:$0xff]
  %v363 = vld [vmem:[%s1 + $0xaa8] sm:$0xff]
  %v364 = vld [vmem:[%s1 + $0xab0] sm:$0xff]
  %v365 = vld [vmem:[%s1 + $0xab8] sm:$0xff]
  %v366 = vld [vmem:[%s1 + $0xac0] sm:$0xff]
  %v367 = vld [vmem:[%s1 + $0xac8] sm:$0xff]
  %v368 = vld [vmem:[%s1 + $0xad0] sm:$0xff]
  %v369 = vld [vmem:[%s1 + $0xad8] sm:$0xff]
  %v370 = vld [vmem:[%s1 + $0xae0] sm:$0xff]
  %v371 = vld [vmem:[%s1 + $0xae8] sm:$0xff]
  %v372 = vld [vmem:[%s1 + $0xaf0] sm:$0xff]
  %v373 = vld [vmem:[%s1 + $0xaf8] sm:$0xff]
  %v374 = vld [vmem:[%s1 + $0xb00] sm:$0xff]
  %v375 = vld [vmem:[%s1 + $0xb08] sm:$0xff]
  %v376 = vld [vmem:[%s1 + $0xb10] sm:$0xff]
  %v377 = vld [vmem:[%s1 + $0xb18] sm:$0xff]
  %v378 = vld [vmem:[%s1 + $0xb20] sm:$0xff]
  %v379 = vld [vmem:[%s1 + $0xb28] sm:$0xff]
  %v380 = vld [vmem:[%s1 + $0xb30] sm:$0xff]
  %v381 = vld [vmem:[%s1 + $0xb38] sm:$0xff]
  %v382 = vld [vmem:[%s1 + $0xb40] sm:$0xff]
  %v383 = vld [vmem:[%s1 + $0xb48] sm:$0xff]
  %v384 = vld [vmem:[%s1 + $0xb50] sm:$0xff]
  %v385 = vld [vmem:[%s1 + $0xb58] sm:$0xff]
  %v386 = vld [vmem:[%s1 + $0xb60] sm:$0xff]
  %v387 = vld [vmem:[%s1 + $0xb68] sm:$0xff]
  %v388 = vld [vmem:[%s1 + $0xb70] sm:$0xff]
  %v389 = vld [vmem:[%s1 + $0xb78] sm:$0xff]
  %v390 = vld [vmem:[%s1 + $0xb80] sm:$0xff]
  %v391 = vld [vmem:[%s1 + $0xb88] sm:$0xff]
  %v392 = vld [vmem:[%s1 + $0xb90] sm:$0xff]
  %v393 = vld [vmem:[%s1 + $0xb98] sm:$0xff]
  %v394 = vld [vmem:[%s1 + $0xba0] sm:$0xff]
  %v395 = vld [vmem:[%s1 + $0xba8] sm:$0xff]
  %v396 = vld [vmem:[%s1 + $0xbb0] sm:$0xff]
  %v397 = vld [vmem:[%s1 + $0xbb8] sm:$0xff]
  %v398 = vld [vmem:[%s1 + $0xbc0] sm:$0xff]
  %v399 = vld [vmem:[%s1 + $0xbc8] sm:$0xff]
  %v400 = vld [vmem:[%s1 + $0xbd0] sm:$0xff]
  %v401 = vld [vmem:[%s1 + $0xbd8] sm:$0xff]
  %v402 = vld [vmem:[%s1 + $0xbe0] sm:$0xff]
  %v403 = vld [vmem:[%s1 + $0xbe8] sm:$0xff]
  %v404 = vld [vmem:[%s1 + $0xbf0] sm:$0xff]
  %v405 = vld [vmem:[%s1 + $0xbf8] sm:$0xff]
  %v406 = vld [vmem:[%s1 + $0xc00] sm:$0xff]
  %v407 = vld [vmem:[%s1 + $0xc08] sm:$0xff]
  %v408 = vld [vmem:[%s1 + $0xc10] sm:$0xff]
  %v409 = vld [vmem:[%s1 + $0xc18] sm:$0xff]
  %v410 = vld [vmem:[%s1 + $0xc20] sm:$0xff]
  %v411 = vld [vmem:[%s1 + $0xc28] sm:$0xff]
  %v412 = vld [vmem:[%s1 + $0xc30] sm:$0xff]
  %v413 = vld [vmem:[%s1 + $0xc38] sm:$0xff]
  %v414 = vld [vmem:[%s1 + $0xc40] sm:$0xff]
  %v415 = vld [vmem:[%s1 + $0xc48] sm:$0xff]
  %v416 = vld [vmem:[%s1 + $0xc50] sm:$0xff]
  %v417 = vld [vmem:[%s1 + $0xc58] sm:$0xff]
  %v418 = vld [vmem:[%s1 + $0xc60] sm:$0xff]
  %v419 = vld [vmem:[%s1 + $0xc68] sm:$0xff]
  %v420 = vld [vmem:[%s1 + $0xc70] sm:$0xff]
  %v421 = vld [vmem:[%s1 + $0xc78] sm:$0xff]
  %v422 = vld [vmem:[%s1 + $0xc80] sm:$0xff]
  %v423 = vld [vmem:[%s1 + $0xc88] sm:$0xff]
  %v424 = vld [vmem:[%s1 + $0xc90] sm:$0xff]
  %v425 = vld [vmem:[%s1 + $0xc98] sm:$0xff]
  %v426 = vld [vmem:[%s1 + $0xca0] sm:$0xff]
  %v427 = vld [vmem:[%s1 + $0xca8] sm:$0xff]
  %v428 = vld [vmem:[%s1 + $0xcb0] sm:$0xff]
  %v429 = vld [vmem:[%s1 + $0xcb8] sm:$0xff]
  %v430 = vld [vmem:[%s1 + $0xcc0] sm:$0xff]
  %v431 = vld [vmem:[%s1 + $0xcc8] sm:$0xff]
  %v432 = vld [vmem:[%s1 + $0xcd0] sm:$0xff]
  %v433 = vld [vmem:[%s1 + $0xcd8] sm:$0xff]
  %v434 = vld [vmem:[%s1 + $0xce0] sm:$0xff]
  %v435 = vld [vmem:[%s1 + $0xce8] sm:$0xff]
  %v436 = vld [vmem:[%s1 + $0xcf0] sm:$0xff]
  %v437 = vld [vmem:[%s1 + $0xcf8] sm:$0xff]
  %v438 = vld [vmem:[%s1 + $0xd00] sm:$0xff]
  %v439 = vld [vmem:[%s1 + $0xd08] sm:$0xff]
  %v440 = vld [vmem:[%s1 + $0xd10] sm:$0xff]
  %v441 = vld [vmem:[%s1 + $0xd18] sm:$0xff]
  %v442 = vld [vmem:[%s1 + $0xd20] sm:$0xff]
  %v443 = vld [vmem:[%s1 + $0xd28] sm:$0xff]
  %v444 = vld [vmem:[%s1 + $0xd30] sm:$0xff]
  %v445 = vld [vmem:[%s1 + $0xd38] sm:$0xff]
  %v446 = vld [vmem:[%s1 + $0xd40] sm:$0xff]
  %v447 = vld [vmem:[%s1 + $0xd48] sm:$0xff]
  %v448 = vld [vmem:[%s1 + $0xd50] sm:$0xff]
  %v449 = vld [vmem:[%s1 + $0xd58] sm:$0xff]
  %v450 = vld [vmem:[%s1 + $0xd60] sm:$0xff]
  %v451 = vld [vmem:[%s1 + $0xd68] sm:$0xff]
  %v452 = vld [vmem:[%s1 + $0xd70] sm:$0xff]
  %v453 = vld [vmem:[%s1 + $0xd78] sm:$0xff]
  %v454 = vld [vmem:[%s1 + $0xd80] sm:$0xff]
  %v455 = vld [vmem:[%s1 + $0xd88] sm:$0xff]
  %v456 = vld [vmem:[%s1 + $0xd90] sm:$0xff]
  %v457 = vld [vmem:[%s1 + $0xd98] sm:$0xff]
  %v458 = vld [vmem:[%s1 + $0xda0] sm:$0xff]
  %v459 = vld [vmem:[%s1 + $0xda8] sm:$0xff]
  %v460 = vld [vmem:[%s1 + $0xdb0] sm:$0xff]
  %v461 = vld [vmem:[%s1 + $0xdb8] sm:$0xff]
  %v462 = vld [vmem:[%s1 + $0xdc0] sm:$0xff]
  %v463 = vld [vmem:[%s1 + $0xdc8] sm:$0xff]
  %v464 = vld [vmem:[%s1 + $0xdd0] sm:$0xff]
  %v465 = vld [vmem:[%s1 + $0xdd8] sm:$0xff]
  %v466 = vld [vmem:[%s1 + $0xde0] sm:$0xff]
  %v467 = vld [vmem:[%s1 + $0xde8] sm:$0xff]
  %v468 = vld [vmem:[%s1 + $0xdf0] sm:$0xff]
  %v469 = vld [vmem:[%s1 + $0xdf8] sm:$0xff]
  %v470 = vld [vmem:[%s1 + $0xe00] sm:$0xff]
  %v471 = vld [vmem:[%s1 + $0xe08] sm:$0xff]
  %v472 = vld [vmem:[%s1 + $0xe10] sm:$0xff]
  %v473 = vld [vmem:[%s1 + $0xe18] sm:$0xff]
  %v474 = vld [vmem:[%s1 + $0xe20] sm:$0xff]
  %v475 = vld [vmem:[%s1 + $0xe28] sm:$0xff]
  %v476 = vld [vmem:[%s1 + $0xe30] sm:$0xff]
  %v477 = vld [vmem:[%s1 + $0xe38] sm:$0xff]
  %v478 = vld [vmem:[%s1 + $0xe40] sm:$0xff]
  %v479 = vld [vmem:[%s1 + $0xe48] sm:$0xff]
  %v480 = vld [vmem:[%s1 + $0xe50] sm:$0xff]
  %v481 = vld [vmem:[%s1 + $0xe58] sm:$0xff]
  %v482 = vld [vmem:[%s1 + $0xe60] sm:$0xff]
  %v483 = vld [vmem:[%s1 + $0xe68] sm:$0xff]
  %v484 = vld [vmem:[%s1 + $0xe70] sm:$0xff]
  %v485 = vld [vmem:[%s1 + $0xe78] sm:$0xff]
  %v486 = vld [vmem:[%s1 + $0xe80] sm:$0xff]
  %v487 = vld [vmem:[%s1 + $0xe88] sm:$0xff]
  %v488 = vld [vmem:[%s1 + $0xe90] sm:$0xff]
  %v489 = vld [vmem:[%s1 + $0xe98] sm:$0xff]
  %v490 = vld [vmem:[%s1 + $0xea0] sm:$0xff]
  %v491 = vld [vmem:[%s1 + $0xea8] sm:$0xff]
  %v492 = vld [vmem:[%s1 + $0xeb0] sm:$0xff]
  %v493 = vld [vmem:[%s1 + $0xeb8] sm:$0xff]
  %v494 = vld [vmem:[%s1 + $0xec0] sm:$0xff]
  %v495 = vld [vmem:[%s1 + $0xec8] sm:$0xff]
  %v496 = vld [vmem:[%s1 + $0xed0] sm:$0xff]
  %v497 = vld [vmem:[%s1 + $0xed8] sm:$0xff]
  %v498 = vld [vmem:[%s1 + $0xee0] sm:$0xff]
  %v499 = vld [vmem:[%s1 + $0xee8] sm:$0xff]
  %v500 = vld [vmem:[%s1 + $0xef0] sm:$0xff]
  %v501 = vld [vmem:[%s1 + $0xef8] sm:$0xff]
  %v502 = vld [vmem:[%s1 + $0xf00] sm:$0xff]
  %v503 = vld [vmem:[%s1 + $0xf08] sm:$0xff]
  %v504 = vld [vmem:[%s1 + $0xf10] sm:$0xff]
  %v505 = vld [vmem:[%s1 + $0xf18] sm:$0xff]
  %v506 = vld [vmem:[%s1 + $0xf20] sm:$0xff]
  %v507 = vld [vmem:[%s1 + $0xf28] sm:$0xff]
  %v508 = vld [vmem:[%s1 + $0xf30] sm:$0xff]
  %v509 = vld [vmem:[%s1 + $0xf38] sm:$0xff]
  %v510 = vld [vmem:[%s1 + $0xf40] sm:$0xff]
  %v511 = vld [vmem:[%s1 + $0xf48] sm:$0xff]
  %v512 = vld [vmem:[%s1 + $0xf50] sm:$0xff]
  %v513 = vld [vmem:[%s1 + $0xf58] sm:$0xff]
  %v514 = vld [vmem:[%s1 + $0xf60] sm:$0xff]
  %v515 = vld [vmem:[%s1 + $0xf68] sm:$0xff]
  %v516 = vld [vmem:[%s1 + $0xf70] sm:$0xff]
  %v517 = vld [vmem:[%s1 + $0xf78] sm:$0xff]
  %v518 = vld [vmem:[%s1 + $0xf80] sm:$0xff]
  %v519 = vld [vmem:[%s1 + $0xf88] sm:$0xff]
  %v520 = vld [vmem:[%s1 + $0xf90] sm:$0xff]
  %v521 = vld [vmem:[%s1 + $0xf98] sm:$0xff]
  %v522 = vld [vmem:[%s1 + $0xfa0] sm:$0xff]
  %v523 = vld [vmem:[%s1 + $0xfa8] sm:$0xff]
  %v524 = vld [vmem:[%s1 + $0xfb0] sm:$0xff]
  %v525 = vld [vmem:[%s1 + $0xfb8] sm:$0xff]
  %v526 = vld [vmem:[%s1 + $0xfc0] sm:$0xff]
  %v527 = vld [vmem:[%s1 + $0xfc8] sm:$0xff]
  %v528 = vld [vmem:[%s1 + $0xfd0] sm:$0xff]
  %v529 = vld [vmem:[%s1 + $0xfd8] sm:$0xff]
  %v530 = vld [vmem:[%s1 + $0xfe0] sm:$0xff]
  %v531 = vld [vmem:[%s1 + $0xfe8] sm:$0xff]
  %v532 = vld [vmem:[%s1 + $0xff0] sm:$0xff]
  %v533 = vld [vmem:[%s1 + $0xff8] sm:$0xff]
  %v534 = vld [vmem:[%s2] sm:$0xff]
  %536 = vset.pattern.permute.xlu0 0
  %537 = vperm.xlu0 %536, %v534
  %v538 = vpop.permute.xlu0 %537
  %540 = vmatprep.subr.mxu0 %v23
  %541 = vmatpush1.msra.mxu0 %v22
  %542 = vmatprep.subr.mxu0 %v39
  %543 = vmatpush1.msra.mxu0 %v38
  %544 = vmatprep.subr.mxu0 %v55
  %545 = vmatpush1.msra.mxu0 %v54
  %546 = vmatprep.subr.mxu0 %v71
  %547 = vmatpush1.msra.mxu0 %v70
  %548 = vmatprep.subr.mxu0 %v87
  %549 = vmatpush1.msra.mxu0 %v86
  %550 = vmatprep.subr.mxu0 %v103
  %551 = vmatpush1.msra.mxu0 %v102
  %552 = vmatprep.subr.mxu0 %v119
  %553 = vmatpush1.msra.mxu0 %v118
  %554 = vmatprep.subr.mxu0 %v135
  %555 = vmatpush1.msra.mxu0 %v134
  %556 = vmatprep.subr.mxu0 %v151
  %557 = vmatpush1.msra.mxu0 %v150
  %558 = vmatprep.subr.mxu0 %v167
  %559 = vmatpush1.msra.mxu0 %v166
  %560 = vmatprep.subr.mxu0 %v183
  %561 = vmatpush1.msra.mxu0 %v182
  %562 = vmatprep.subr.mxu0 %v199
  %563 = vmatpush1.msra.mxu0 %v198
  %564 = vmatprep.subr.mxu0 %v215
  %565 = vmatpush1.msra.mxu0 %v214
  %566 = vmatprep.subr.mxu0 %v231
  %567 = vmatpush1.msra.mxu0 %v230
  %568 = vmatprep.subr.mxu0 %v247
  %569 = vmatpush1.msra.mxu0 %v246
  %570 = vmatprep.subr.mxu0 %v263
  %571 = vmatpush1.msra.mxu0 %v262
  %572 = vmatprep.subr.mxu0 %v279
  %573 = vmatpush1.msra.mxu0 %v278
  %574 = vmatprep.subr.mxu0 %v295
  %575 = vmatpush1.msra.mxu0 %v294
  %576 = vmatprep.subr.mxu0 %v311
  %577 = vmatpush1.msra.mxu0 %v310
  %578 = vmatprep.subr.mxu0 %v327
  %579 = vmatpush1.msra.mxu0 %v326
  %580 = vmatprep.subr.mxu0 %v343
  %581 = vmatpush1.msra.mxu0 %v342
  %582 = vmatprep.subr.mxu0 %v359
  %583 = vmatpush1.msra.mxu0 %v358
  %584 = vmatprep.subr.mxu0 %v375
  %585 = vmatpush1.msra.mxu0 %v374
  %586 = vmatprep.subr.mxu0 %v391
  %587 = vmatpush1.msra.mxu0 %v390
  %588 = vmatprep.subr.mxu0 %v407
  %589 = vmatpush1.msra.mxu0 %v406
  %590 = vmatprep.subr.mxu0 %v423
  %591 = vmatpush1.msra.mxu0 %v422
  %592 = vmatprep.subr.mxu0 %v439
  %593 = vmatpush1.msra.mxu0 %v438
  %594 = vmatprep.subr.mxu0 %v455
  %595 = vmatpush1.msra.mxu0 %v454
  %596 = vmatprep.subr.mxu0 %v471
  %597 = vmatpush1.msra.mxu0 %v470
  %598 = vmatprep.subr.mxu0 %v487
  %599 = vmatpush1.msra.mxu0 %v486
  %600 = vmatprep.subr.mxu0 %v503
  %601 = vmatpush1.msra.mxu0 %v502
  %602 = vmatprep.subr.mxu0 %v519
  %603 = vmatpush1.msra.mxu0 %v518
  %604 = vmatprep.mubr.f32.mxu0 %v21
  %605 = vmatmul.mubr.f32.gmra.mrb[0].mxu0 %v20
  %v606 = vpop.f32.mrb[0].mxu0
  %v607 = vadd.f32 %v538, %v606
  %v608 = vpop.f32.mrb[0].mxu0
  %v609 = vadd.f32 %v538, %v608
  %610 = vdwg.mxu0
  %611 = vmatprep.subr.mxu0 %v25
  %612 = vmatpush1.msra.mxu0 %v24
  %613 = vmatprep.subr.mxu0 %v41
  %614 = vmatpush1.msra.mxu0 %v40
  %615 = vmatprep.subr.mxu0 %v57
  %616 = vmatpush1.msra.mxu0 %v56
  %617 = vmatprep.subr.mxu0 %v73
  %618 = vmatpush1.msra.mxu0 %v72
  %619 = vmatprep.subr.mxu0 %v89
  %620 = vmatpush1.msra.mxu0 %v88
  %621 = vmatprep.subr.mxu0 %v105
  %622 = vmatpush1.msra.mxu0 %v104
  %623 = vmatprep.subr.mxu0 %v121
  %624 = vmatpush1.msra.mxu0 %v120
  %625 = vmatprep.subr.mxu0 %v137
  %626 = vmatpush1.msra.mxu0 %v136
  %627 = vmatprep.subr.mxu0 %v153
  %628 = vmatpush1.msra.mxu0 %v152
  %629 = vmatprep.subr.mxu0 %v169
  %630 = vmatpush1.msra.mxu0 %v168
  %631 = vmatprep.subr.mxu0 %v185
  %632 = vmatpush1.msra.mxu0 %v184
  %633 = vmatprep.subr.mxu0 %v201
  %634 = vmatpush1.msra.mxu0 %v200
  %635 = vmatprep.subr.mxu0 %v217
  %636 = vmatpush1.msra.mxu0 %v216
  %637 = vmatprep.subr.mxu0 %v233
  %638 = vmatpush1.msra.mxu0 %v232
  %639 = vmatprep.subr.mxu0 %v249
  %640 = vmatpush1.msra.mxu0 %v248
  %641 = vmatprep.subr.mxu0 %v265
  %642 = vmatpush1.msra.mxu0 %v264
  %643 = vmatprep.subr.mxu0 %v281
  %644 = vmatpush1.msra.mxu0 %v280
  %645 = vmatprep.subr.mxu0 %v297
  %646 = vmatpush1.msra.mxu0 %v296
  %647 = vmatprep.subr.mxu0 %v313
  %648 = vmatpush1.msra.mxu0 %v312
  %649 = vmatprep.subr.mxu0 %v329
  %650 = vmatpush1.msra.mxu0 %v328
  %651 = vmatprep.subr.mxu0 %v345
  %652 = vmatpush1.msra.mxu0 %v344
  %653 = vmatprep.subr.mxu0 %v361
  %654 = vmatpush1.msra.mxu0 %v360
  %655 = vmatprep.subr.mxu0 %v377
  %656 = vmatpush1.msra.mxu0 %v376
  %657 = vmatprep.subr.mxu0 %v393
  %658 = vmatpush1.msra.mxu0 %v392
  %659 = vmatprep.subr.mxu0 %v409
  %660 = vmatpush1.msra.mxu0 %v408
  %661 = vmatprep.subr.mxu0 %v425
  %662 = vmatpush1.msra.mxu0 %v424
  %663 = vmatprep.subr.mxu0 %v441
  %664 = vmatpush1.msra.mxu0 %v440
  %665 = vmatprep.subr.mxu0 %v457
  %666 = vmatpush1.msra.mxu0 %v456
  %667 = vmatprep.subr.mxu0 %v473
  %668 = vmatpush1.msra.mxu0 %v472
  %669 = vmatprep.subr.mxu0 %v489
  %670 = vmatpush1.msra.mxu0 %v488
  %671 = vmatprep.subr.mxu0 %v505
  %672 = vmatpush1.msra.mxu0 %v504
  %673 = vmatprep.subr.mxu0 %v521
  %674 = vmatpush1.msra.mxu0 %v520
  %675 = vmatprep.mubr.f32.mxu0 %v21
  %676 = vmatmul.mubr.f32.gmra.mrb[0].mxu0 %v20
  %v677 = vpop.f32.mrb[0].mxu0
  %v678 = vadd.f32 %v538, %v677
  %v679 = vpop.f32.mrb[0].mxu0
  %v680 = vadd.f32 %v538, %v679
  %681 = vdwg.mxu0
  %682 = vmatprep.subr.mxu0 %v27
  %683 = vmatpush1.msra.mxu0 %v26
  %684 = vmatprep.subr.mxu0 %v43
  %685 = vmatpush1.msra.mxu0 %v42
  %686 = vmatprep.subr.mxu0 %v59
  %687 = vmatpush1.msra.mxu0 %v58
  %688 = vmatprep.subr.mxu0 %v75
  %689 = vmatpush1.msra.mxu0 %v74
  %690 = vmatprep.subr.mxu0 %v91
  %691 = vmatpush1.msra.mxu0 %v90
  %692 = vmatprep.subr.mxu0 %v107
  %693 = vmatpush1.msra.mxu0 %v106
  %694 = vmatprep.subr.mxu0 %v123
  %695 = vmatpush1.msra.mxu0 %v122
  %696 = vmatprep.subr.mxu0 %v139
  %697 = vmatpush1.msra.mxu0 %v138
  %698 = vmatprep.subr.mxu0 %v155
  %699 = vmatpush1.msra.mxu0 %v154
  %700 = vmatprep.subr.mxu0 %v171
  %701 = vmatpush1.msra.mxu0 %v170
  %702 = vmatprep.subr.mxu0 %v187
  %703 = vmatpush1.msra.mxu0 %v186
  %704 = vmatprep.subr.mxu0 %v203
  %705 = vmatpush1.msra.mxu0 %v202
  %706 = vmatprep.subr.mxu0 %v219
  %707 = vmatpush1.msra.mxu0 %v218
  %708 = vmatprep.subr.mxu0 %v235
  %709 = vmatpush1.msra.mxu0 %v234
  %710 = vmatprep.subr.mxu0 %v251
  %711 = vmatpush1.msra.mxu0 %v250
  %712 = vmatprep.subr.mxu0 %v267
  %713 = vmatpush1.msra.mxu0 %v266
  %714 = vmatprep.subr.mxu0 %v283
  %715 = vmatpush1.msra.mxu0 %v282
  %716 = vmatprep.subr.mxu0 %v299
  %717 = vmatpush1.msra.mxu0 %v298
  %718 = vmatprep.subr.mxu0 %v315
  %719 = vmatpush1.msra.mxu0 %v314
  %720 = vmatprep.subr.mxu0 %v331
  %721 = vmatpush1.msra.mxu0 %v330
  %722 = vmatprep.subr.mxu0 %v347
  %723 = vmatpush1.msra.mxu0 %v346
  %724 = vmatprep.subr.mxu0 %v363
  %725 = vmatpush1.msra.mxu0 %v362
  %726 = vmatprep.subr.mxu0 %v379
  %727 = vmatpush1.msra.mxu0 %v378
  %728 = vmatprep.subr.mxu0 %v395
  %729 = vmatpush1.msra.mxu0 %v394
  %730 = vmatprep.subr.mxu0 %v411
  %731 = vmatpush1.msra.mxu0 %v410
  %732 = vmatprep.subr.mxu0 %v427
  %733 = vmatpush1.msra.mxu0 %v426
  %734 = vmatprep.subr.mxu0 %v443
  %735 = vmatpush1.msra.mxu0 %v442
  %736 = vmatprep.subr.mxu0 %v459
  %737 = vmatpush1.msra.mxu0 %v458
  %738 = vmatprep.subr.mxu0 %v475
  %739 = vmatpush1.msra.mxu0 %v474
  %740 = vmatprep.subr.mxu0 %v491
  %741 = vmatpush1.msra.mxu0 %v490
  %742 = vmatprep.subr.mxu0 %v507
  %743 = vmatpush1.msra.mxu0 %v506
  %744 = vmatprep.subr.mxu0 %v523
  %745 = vmatpush1.msra.mxu0 %v522
  %746 = vmatprep.mubr.f32.mxu0 %v21
  %747 = vmatmul.mubr.f32.gmra.mrb[0].mxu0 %v20
  %v748 = vpop.f32.mrb[0].mxu0
  %v749 = vadd.f32 %v538, %v748
  %v750 = vpop.f32.mrb[0].mxu0
  %v751 = vadd.f32 %v538, %v750
  %752 = vdwg.mxu0
  %753 = vmatprep.subr.mxu0 %v29
  %754 = vmatpush1.msra.mxu0 %v28
  %755 = vmatprep.subr.mxu0 %v45
  %756 = vmatpush1.msra.mxu0 %v44
  %757 = vmatprep.subr.mxu0 %v61
  %758 = vmatpush1.msra.mxu0 %v60
  %759 = vmatprep.subr.mxu0 %v77
  %760 = vmatpush1.msra.mxu0 %v76
  %761 = vmatprep.subr.mxu0 %v93
  %762 = vmatpush1.msra.mxu0 %v92
  %763 = vmatprep.subr.mxu0 %v109
  %764 = vmatpush1.msra.mxu0 %v108
  %765 = vmatprep.subr.mxu0 %v125
  %766 = vmatpush1.msra.mxu0 %v124
  %767 = vmatprep.subr.mxu0 %v141
  %768 = vmatpush1.msra.mxu0 %v140
  %769 = vmatprep.subr.mxu0 %v157
  %770 = vmatpush1.msra.mxu0 %v156
  %771 = vmatprep.subr.mxu0 %v173
  %772 = vmatpush1.msra.mxu0 %v172
  %773 = vmatprep.subr.mxu0 %v189
  %774 = vmatpush1.msra.mxu0 %v188
  %775 = vmatprep.subr.mxu0 %v205
  %776 = vmatpush1.msra.mxu0 %v204
  %777 = vmatprep.subr.mxu0 %v221
  %778 = vmatpush1.msra.mxu0 %v220
  %779 = vmatprep.subr.mxu0 %v237
  %780 = vmatpush1.msra.mxu0 %v236
  %781 = vmatprep.subr.mxu0 %v253
  %782 = vmatpush1.msra.mxu0 %v252
  %783 = vmatprep.subr.mxu0 %v269
  %784 = vmatpush1.msra.mxu0 %v268
  %785 = vmatprep.subr.mxu0 %v285
  %786 = vmatpush1.msra.mxu0 %v284
  %787 = vmatprep.subr.mxu0 %v301
  %788 = vmatpush1.msra.mxu0 %v300
  %789 = vmatprep.subr.mxu0 %v317
  %790 = vmatpush1.msra.mxu0 %v316
  %791 = vmatprep.subr.mxu0 %v333
  %792 = vmatpush1.msra.mxu0 %v332
  %793 = vmatprep.subr.mxu0 %v349
  %794 = vmatpush1.msra.mxu0 %v348
  %795 = vmatprep.subr.mxu0 %v365
  %796 = vmatpush1.msra.mxu0 %v364
  %797 = vmatprep.subr.mxu0 %v381
  %798 = vmatpush1.msra.mxu0 %v380
  %799 = vmatprep.subr.mxu0 %v397
  %800 = vmatpush1.msra.mxu0 %v396
  %801 = vmatprep.subr.mxu0 %v413
  %802 = vmatpush1.msra.mxu0 %v412
  %803 = vmatprep.subr.mxu0 %v429
  %804 = vmatpush1.msra.mxu0 %v428
  %805 = vmatprep.subr.mxu0 %v445
  %806 = vmatpush1.msra.mxu0 %v444
  %807 = vmatprep.subr.mxu0 %v461
  %808 = vmatpush1.msra.mxu0 %v460
  %809 = vmatprep.subr.mxu0 %v477
  %810 = vmatpush1.msra.mxu0 %v476
  %811 = vmatprep.subr.mxu0 %v493
  %812 = vmatpush1.msra.mxu0 %v492
  %813 = vmatprep.subr.mxu0 %v509
  %814 = vmatpush1.msra.mxu0 %v508
  %815 = vmatprep.subr.mxu0 %v525
  %816 = vmatpush1.msra.mxu0 %v524
  %817 = vmatprep.mubr.f32.mxu0 %v21
  %818 = vmatmul.mubr.f32.gmra.mrb[0].mxu0 %v20
  %v819 = vpop.f32.mrb[0].mxu0
  %v820 = vadd.f32 %v538, %v819
  %v821 = vpop.f32.mrb[0].mxu0
  %v822 = vadd.f32 %v538, %v821
  %823 = vdwg.mxu0
  %824 = vmatprep.subr.mxu0 %v31
  %825 = vmatpush1.msra.mxu0 %v30
  %826 = vmatprep.subr.mxu0 %v47
  %827 = vmatpush1.msra.mxu0 %v46
  %828 = vmatprep.subr.mxu0 %v63
  %829 = vmatpush1.msra.mxu0 %v62
  %830 = vmatprep.subr.mxu0 %v79
  %831 = vmatpush1.msra.mxu0 %v78
  %832 = vmatprep.subr.mxu0 %v95
  %833 = vmatpush1.msra.mxu0 %v94
  %834 = vmatprep.subr.mxu0 %v111
  %835 = vmatpush1.msra.mxu0 %v110
  %836 = vmatprep.subr.mxu0 %v127
  %837 = vmatpush1.msra.mxu0 %v126
  %838 = vmatprep.subr.mxu0 %v143
  %839 = vmatpush1.msra.mxu0 %v142
  %840 = vmatprep.subr.mxu0 %v159
  %841 = vmatpush1.msra.mxu0 %v158
  %842 = vmatprep.subr.mxu0 %v175
  %843 = vmatpush1.msra.mxu0 %v174
  %844 = vmatprep.subr.mxu0 %v191
  %845 = vmatpush1.msra.mxu0 %v190
  %846 = vmatprep.subr.mxu0 %v207
  %847 = vmatpush1.msra.mxu0 %v206
  %848 = vmatprep.subr.mxu0 %v223
  %849 = vmatpush1.msra.mxu0 %v222
  %850 = vmatprep.subr.mxu0 %v239
  %851 = vmatpush1.msra.mxu0 %v238
  %852 = vmatprep.subr.mxu0 %v255
  %853 = vmatpush1.msra.mxu0 %v254
  %854 = vmatprep.subr.mxu0 %v271
  %855 = vmatpush1.msra.mxu0 %v270
  %856 = vmatprep.subr.mxu0 %v287
  %857 = vmatpush1.msra.mxu0 %v286
  %858 = vmatprep.subr.mxu0 %v303
  %859 = vmatpush1.msra.mxu0 %v302
  %860 = vmatprep.subr.mxu0 %v319
  %861 = vmatpush1.msra.mxu0 %v318
  %862 = vmatprep.subr.mxu0 %v335
  %863 = vmatpush1.msra.mxu0 %v334
  %864 = vmatprep.subr.mxu0 %v351
  %865 = vmatpush1.msra.mxu0 %v350
  %866 = vmatprep.subr.mxu0 %v367
  %867 = vmatpush1.msra.mxu0 %v366
  %868 = vmatprep.subr.mxu0 %v383
  %869 = vmatpush1.msra.mxu0 %v382
  %870 = vmatprep.subr.mxu0 %v399
  %871 = vmatpush1.msra.mxu0 %v398
  %872 = vmatprep.subr.mxu0 %v415
  %873 = vmatpush1.msra.mxu0 %v414
  %874 = vmatprep.subr.mxu0 %v431
  %875 = vmatpush1.msra.mxu0 %v430
  %876 = vmatprep.subr.mxu0 %v447
  %877 = vmatpush1.msra.mxu0 %v446
  %878 = vmatprep.subr.mxu0 %v463
  %879 = vmatpush1.msra.mxu0 %v462
  %880 = vmatprep.subr.mxu0 %v479
  %881 = vmatpush1.msra.mxu0 %v478
  %882 = vmatprep.subr.mxu0 %v495
  %883 = vmatpush1.msra.mxu0 %v494
  %884 = vmatprep.subr.mxu0 %v511
  %885 = vmatpush1.msra.mxu0 %v510
  %886 = vmatprep.subr.mxu0 %v527
  %887 = vmatpush1.msra.mxu0 %v526
  %888 = vmatprep.mubr.f32.mxu0 %v21
  %889 = vmatmul.mubr.f32.gmra.mrb[0].mxu0 %v20
  %v890 = vpop.f32.mrb[0].mxu0
  %v891 = vadd.f32 %v538, %v890
  %v892 = vpop.f32.mrb[0].mxu0
  %v893 = vadd.f32 %v538, %v892
  %894 = vdwg.mxu0
  %895 = vmatprep.subr.mxu0 %v33
  %896 = vmatpush1.msra.mxu0 %v32
  %897 = vmatprep.subr.mxu0 %v49
  %898 = vmatpush1.msra.mxu0 %v48
  %899 = vmatprep.subr.mxu0 %v65
  %900 = vmatpush1.msra.mxu0 %v64
  %901 = vmatprep.subr.mxu0 %v81
  %902 = vmatpush1.msra.mxu0 %v80
  %903 = vmatprep.subr.mxu0 %v97
  %904 = vmatpush1.msra.mxu0 %v96
  %905 = vmatprep.subr.mxu0 %v113
  %906 = vmatpush1.msra.mxu0 %v112
  %907 = vmatprep.subr.mxu0 %v129
  %908 = vmatpush1.msra.mxu0 %v128
  %909 = vmatprep.subr.mxu0 %v145
  %910 = vmatpush1.msra.mxu0 %v144
  %911 = vmatprep.subr.mxu0 %v161
  %912 = vmatpush1.msra.mxu0 %v160
  %913 = vmatprep.subr.mxu0 %v177
  %914 = vmatpush1.msra.mxu0 %v176
  %915 = vmatprep.subr.mxu0 %v193
  %916 = vmatpush1.msra.mxu0 %v192
  %917 = vmatprep.subr.mxu0 %v209
  %918 = vmatpush1.msra.mxu0 %v208
  %919 = vmatprep.subr.mxu0 %v225
  %920 = vmatpush1.msra.mxu0 %v224
  %921 = vmatprep.subr.mxu0 %v241
  %922 = vmatpush1.msra.mxu0 %v240
  %923 = vmatprep.subr.mxu0 %v257
  %924 = vmatpush1.msra.mxu0 %v256
  %925 = vmatprep.subr.mxu0 %v273
  %926 = vmatpush1.msra.mxu0 %v272
  %927 = vmatprep.subr.mxu0 %v289
  %928 = vmatpush1.msra.mxu0 %v288
  %929 = vmatprep.subr.mxu0 %v305
  %930 = vmatpush1.msra.mxu0 %v304
  %931 = vmatprep.subr.mxu0 %v321
  %932 = vmatpush1.msra.mxu0 %v320
  %933 = vmatprep.subr.mxu0 %v337
  %934 = vmatpush1.msra.mxu0 %v336
  %935 = vmatprep.subr.mxu0 %v353
  %936 = vmatpush1.msra.mxu0 %v352
  %937 = vmatprep.subr.mxu0 %v369
  %938 = vmatpush1.msra.mxu0 %v368
  %939 = vmatprep.subr.mxu0 %v385
  %940 = vmatpush1.msra.mxu0 %v384
  %941 = vmatprep.subr.mxu0 %v401
  %942 = vmatpush1.msra.mxu0 %v400
  %943 = vmatprep.subr.mxu0 %v417
  %944 = vmatpush1.msra.mxu0 %v416
  %945 = vmatprep.subr.mxu0 %v433
  %946 = vmatpush1.msra.mxu0 %v432
  %947 = vmatprep.subr.mxu0 %v449
  %948 = vmatpush1.msra.mxu0 %v448
  %949 = vmatprep.subr.mxu0 %v465
  %950 = vmatpush1.msra.mxu0 %v464
  %951 = vmatprep.subr.mxu0 %v481
  %952 = vmatpush1.msra.mxu0 %v480
  %953 = vmatprep.subr.mxu0 %v497
  %954 = vmatpush1.msra.mxu0 %v496
  %955 = vmatprep.subr.mxu0 %v513
  %956 = vmatpush1.msra.mxu0 %v512
  %957 = vmatprep.subr.mxu0 %v529
  %958 = vmatpush1.msra.mxu0 %v528
  %959 = vmatprep.mubr.f32.mxu0 %v21
  %960 = vmatmul.mubr.f32.gmra.mrb[0].mxu0 %v20
  %v961 = vpop.f32.mrb[0].mxu0
  %v962 = vadd.f32 %v538, %v961
  %v963 = vpop.f32.mrb[0].mxu0
  %v964 = vadd.f32 %v538, %v963
  %965 = vdwg.mxu0
  %966 = vmatprep.subr.mxu0 %v35
  %967 = vmatpush1.msra.mxu0 %v34
  %968 = vmatprep.subr.mxu0 %v51
  %969 = vmatpush1.msra.mxu0 %v50
  %970 = vmatprep.subr.mxu0 %v67
  %971 = vmatpush1.msra.mxu0 %v66
  %972 = vmatprep.subr.mxu0 %v83
  %973 = vmatpush1.msra.mxu0 %v82
  %974 = vmatprep.subr.mxu0 %v99
  %975 = vmatpush1.msra.mxu0 %v98
  %976 = vmatprep.subr.mxu0 %v115
  %977 = vmatpush1.msra.mxu0 %v114
  %978 = vmatprep.subr.mxu0 %v131
  %979 = vmatpush1.msra.mxu0 %v130
  %980 = vmatprep.subr.mxu0 %v147
  %981 = vmatpush1.msra.mxu0 %v146
  %982 = vmatprep.subr.mxu0 %v163
  %983 = vmatpush1.msra.mxu0 %v162
  %984 = vmatprep.subr.mxu0 %v179
  %985 = vmatpush1.msra.mxu0 %v178
  %986 = vmatprep.subr.mxu0 %v195
  %987 = vmatpush1.msra.mxu0 %v194
  %988 = vmatprep.subr.mxu0 %v211
  %989 = vmatpush1.msra.mxu0 %v210
  %990 = vmatprep.subr.mxu0 %v227
  %991 = vmatpush1.msra.mxu0 %v226
  %992 = vmatprep.subr.mxu0 %v243
  %993 = vmatpush1.msra.mxu0 %v242
  %994 = vmatprep.subr.mxu0 %v259
  %995 = vmatpush1.msra.mxu0 %v258
  %996 = vmatprep.subr.mxu0 %v275
  %997 = vmatpush1.msra.mxu0 %v274
  %998 = vmatprep.subr.mxu0 %v291
  %999 = vmatpush1.msra.mxu0 %v290
  %1000 = vmatprep.subr.mxu0 %v307
  %1001 = vmatpush1.msra.mxu0 %v306
  %1002 = vmatprep.subr.mxu0 %v323
  %1003 = vmatpush1.msra.mxu0 %v322
  %1004 = vmatprep.subr.mxu0 %v339
  %1005 = vmatpush1.msra.mxu0 %v338
  %1006 = vmatprep.subr.mxu0 %v355
  %1007 = vmatpush1.msra.mxu0 %v354
  %1008 = vmatprep.subr.mxu0 %v371
  %1009 = vmatpush1.msra.mxu0 %v370
  %1010 = vmatprep.subr.mxu0 %v387
  %1011 = vmatpush1.msra.mxu0 %v386
  %1012 = vmatprep.subr.mxu0 %v403
  %1013 = vmatpush1.msra.mxu0 %v402
  %1014 = vmatprep.subr.mxu0 %v419
  %1015 = vmatpush1.msra.mxu0 %v418
  %1016 = vmatprep.subr.mxu0 %v435
  %1017 = vmatpush1.msra.mxu0 %v434
  %1018 = vmatprep.subr.mxu0 %v451
  %1019 = vmatpush1.msra.mxu0 %v450
  %1020 = vmatprep.subr.mxu0 %v467
  %1021 = vmatpush1.msra.mxu0 %v466
  %1022 = vmatprep.subr.mxu0 %v483
  %1023 = vmatpush1.msra.mxu0 %v482
  %1024 = vmatprep.subr.mxu0 %v499
  %1025 = vmatpush1.msra.mxu0 %v498
  %1026 = vmatprep.subr.mxu0 %v515
  %1027 = vmatpush1.msra.mxu0 %v514
  %1028 = vmatprep.subr.mxu0 %v531
  %1029 = vmatpush1.msra.mxu0 %v530
  %1030 = vmatprep.mubr.f32.mxu0 %v21
  %1031 = vmatmul.mubr.f32.gmra.mrb[0].mxu0 %v20
  %v1032 = vpop.f32.mrb[0].mxu0
  %v1033 = vadd.f32 %v538, %v1032
  %v1034 = vpop.f32.mrb[0].mxu0
  %v1035 = vadd.f32 %v538, %v1034
  %1036 = vdwg.mxu0
  %1037 = vmatprep.subr.mxu0 %v37
  %1038 = vmatpush1.msra.mxu0 %v36
  %1039 = vmatprep.subr.mxu0 %v53
  %1040 = vmatpush1.msra.mxu0 %v52
  %1041 = vmatprep.subr.mxu0 %v69
  %1042 = vmatpush1.msra.mxu0 %v68
  %1043 = vmatprep.subr.mxu0 %v85
  %1044 = vmatpush1.msra.mxu0 %v84
  %1045 = vmatprep.subr.mxu0 %v101
  %1046 = vmatpush1.msra.mxu0 %v100
  %1047 = vmatprep.subr.mxu0 %v117
  %1048 = vmatpush1.msra.mxu0 %v116
  %1049 = vmatprep.subr.mxu0 %v133
  %1050 = vmatpush1.msra.mxu0 %v132
  %1051 = vmatprep.subr.mxu0 %v149
  %1052 = vmatpush1.msra.mxu0 %v148
  %1053 = vmatprep.subr.mxu0 %v165
  %1054 = vmatpush1.msra.mxu0 %v164
  %1055 = vmatprep.subr.mxu0 %v181
  %1056 = vmatpush1.msra.mxu0 %v180
  %1057 = vmatprep.subr.mxu0 %v197
  %1058 = vmatpush1.msra.mxu0 %v196
  %1059 = vmatprep.subr.mxu0 %v213
  %1060 = vmatpush1.msra.mxu0 %v212
  %1061 = vmatprep.subr.mxu0 %v229
  %1062 = vmatpush1.msra.mxu0 %v228
  %1063 = vmatprep.subr.mxu0 %v245
  %1064 = vmatpush1.msra.mxu0 %v244
  %1065 = vmatprep.subr.mxu0 %v261
  %1066 = vmatpush1.msra.mxu0 %v260
  %1067 = vmatprep.subr.mxu0 %v277
  %1068 = vmatpush1.msra.mxu0 %v276
  %1069 = vmatprep.subr.mxu0 %v293
  %1070 = vmatpush1.msra.mxu0 %v292
  %1071 = vmatprep.subr.mxu0 %v309
  %1072 = vmatpush1.msra.mxu0 %v308
  %1073 = vmatprep.subr.mxu0 %v325
  %1074 = vmatpush1.msra.mxu0 %v324
  %1075 = vmatprep.subr.mxu0 %v341
  %1076 = vmatpush1.msra.mxu0 %v340
  %1077 = vmatprep.subr.mxu0 %v357
  %1078 = vmatpush1.msra.mxu0 %v356
  %1079 = vmatprep.subr.mxu0 %v373
  %1080 = vmatpush1.msra.mxu0 %v372
  %1081 = vmatprep.subr.mxu0 %v389
  %1082 = vmatpush1.msra.mxu0 %v388
  %1083 = vmatprep.subr.mxu0 %v405
  %1084 = vmatpush1.msra.mxu0 %v404
  %1085 = vmatprep.subr.mxu0 %v421
  %1086 = vmatpush1.msra.mxu0 %v420
  %1087 = vmatprep.subr.mxu0 %v437
  %1088 = vmatpush1.msra.mxu0 %v436
  %1089 = vmatprep.subr.mxu0 %v453
  %1090 = vmatpush1.msra.mxu0 %v452
  %1091 = vmatprep.subr.mxu0 %v469
  %1092 = vmatpush1.msra.mxu0 %v468
  %1093 = vmatprep.subr.mxu0 %v485
  %1094 = vmatpush1.msra.mxu0 %v484
  %1095 = vmatprep.subr.mxu0 %v501
  %1096 = vmatpush1.msra.mxu0 %v500
  %1097 = vmatprep.subr.mxu0 %v517
  %1098 = vmatpush1.msra.mxu0 %v516
  %1099 = vmatprep.subr.mxu0 %v533
  %1100 = vmatpush1.msra.mxu0 %v532
  %1101 = vmatprep.mubr.f32.mxu0 %v21
  %1102 = vmatmul.mubr.f32.gmra.mrb[0].mxu0 %v20
  %v1103 = vpop.f32.mrb[0].mxu0
  %v1104 = vadd.f32 %v538, %v1103
  %v1105 = vpop.f32.mrb[0].mxu0
  %v1106 = vadd.f32 %v538, %v1105
  %1107 = vdwg.mxu0
  %v1108 = vadd.f32 %v607, %v609
  %v1109 = vadd.f32 %v1108, %v678
  %v1110 = vadd.f32 %v1109, %v680
  %v1111 = vadd.f32 %v1110, %v749
  %v1112 = vadd.f32 %v1111, %v751
  %v1113 = vadd.f32 %v1112, %v820
  %v1114 = vadd.f32 %v1113, %v822
  %v1115 = vadd.f32 %v1114, %v891
  %v1116 = vadd.f32 %v1115, %v893
  %v1117 = vadd.f32 %v1116, %v962
  %v1118 = vadd.f32 %v1117, %v964
  %v1119 = vadd.f32 %v1118, %v1033
  %v1120 = vadd.f32 %v1119, %v1035
  %v1121 = vadd.f32 %v1120, %v1104
  %v1122 = vadd.f32 %v1121, %v1106
  %1123 = vadd.xlane.f32.xlu0 %v1122
  %v1124 = vpop.xlane.xlu0 %1123
  %v1125 = vrcp.pop 2048.0
  %v1126 = vmul.f32 %v1124, %v1125
  %v1127 = vsub.f32 %v607, %v1126
  %v1128 = vsub.f32 %v609, %v1126
  %v1129 = vsub.f32 %v678, %v1126
  %v1130 = vsub.f32 %v680, %v1126
  %v1131 = vsub.f32 %v749, %v1126
  %v1132 = vsub.f32 %v751, %v1126
  %v1133 = vsub.f32 %v820, %v1126
  %v1134 = vsub.f32 %v822, %v1126
  %v1135 = vsub.f32 %v891, %v1126
  %v1136 = vsub.f32 %v893, %v1126
  %v1137 = vsub.f32 %v962, %v1126
  %v1138 = vsub.f32 %v964, %v1126
  %v1139 = vsub.f32 %v1033, %v1126
  %v1140 = vsub.f32 %v1035, %v1126
  %v1141 = vsub.f32 %v1104, %v1126
  %v1142 = vsub.f32 %v1106, %v1126
  %v1143 = vmul.f32 %v1127, %v1127
  %v1144 = vmul.f32 %v1128, %v1128
  %v1145 = vmul.f32 %v1129, %v1129
  %v1146 = vmul.f32 %v1130, %v1130
  %v1147 = vmul.f32 %v1131, %v1131
  %v1148 = vmul.f32 %v1132, %v1132
  %v1149 = vmul.f32 %v1133, %v1133
  %v1150 = vmul.f32 %v1134, %v1134
  %v1151 = vmul.f32 %v1135, %v1135
  %v1152 = vmul.f32 %v1136, %v1136
  %v1153 = vmul.f32 %v1137, %v1137
  %v1154 = vmul.f32 %v1138, %v1138
  %v1155 = vmul.f32 %v1139, %v1139
  %v1156 = vmul.f32 %v1140, %v1140
  %v1157 = vmul.f32 %v1141, %v1141
  %v1158 = vmul.f32 %v1142, %v1142
  %v1159 = vadd.f32 %v1143, %v1144
  %v1160 = vadd.f32 %v1159, %v1145
  %v1161 = vadd.f32 %v1160, %v1146
  %v1162 = vadd.f32 %v1161, %v1147
  %v1163 = vadd.f32 %v1162, %v1148
  %v1164 = vadd.f32 %v1163, %v1149
  %v1165 = vadd.f32 %v1164, %v1150
  %v1166 = vadd.f32 %v1165, %v1151
  %v1167 = vadd.f32 %v1166, %v1152
  %v1168 = vadd.f32 %v1167, %v1153
  %v1169 = vadd.f32 %v1168, %v1154
  %v1170 = vadd.f32 %v1169, %v1155
  %v1171 = vadd.f32 %v1170, %v1156
  %v1172 = vadd.f32 %v1171, %v1157
  %v1173 = vadd.f32 %v1172, %v1158
  %1174 = vadd.xlane.f32.xlu0 %v1173
  %v1175 = vpop.xlane.xlu0 %1174
  %v1176 = vmul.f32 %v1175, %v1125
  %v1177 = vadd.f32 %v1176, 1e-05
  %v1178 = vrsqrt.pop %v1177
  %v1179 = vmul.f32 %v1127, %v1178
  %v1180 = vmul.f32 %v1128, %v1178
  %v1181 = vmul.f32 %v1129, %v1178
  %v1182 = vmul.f32 %v1130, %v1178
  %v1183 = vmul.f32 %v1131, %v1178
  %v1184 = vmul.f32 %v1132, %v1178
  %v1185 = vmul.f32 %v1133, %v1178
  %v1186 = vmul.f32 %v1134, %v1178
  %v1187 = vmul.f32 %v1135, %v1178
  %v1188 = vmul.f32 %v1136, %v1178
  %v1189 = vmul.f32 %v1137, %v1178
  %v1190 = vmul.f32 %v1138, %v1178
  %v1191 = vmul.f32 %v1139, %v1178
  %v1192 = vmul.f32 %v1140, %v1178
  %v1193 = vmul.f32 %v1141, %v1178
  %v1194 = vmul.f32 %v1142, %v1178
  %v1195 = vld [vmem:[%s3] sm:$0xff]
  %1197 = vset.pattern.permute.xlu0 0
  %1198 = vperm.xlu0 %1197, %v1195
  %v1199 = vpop.permute.xlu0 %1198
  %v1201 = vmul.f32 %v1179, %v1199
  %v1202 = vmul.f32 %v1180, %v1199
  %v1203 = vmul.f32 %v1181, %v1199
  %v1204 = vmul.f32 %v1182, %v1199
  %v1205 = vmul.f32 %v1183, %v1199
  %v1206 = vmul.f32 %v1184, %v1199
  %v1207 = vmul.f32 %v1185, %v1199
  %v1208 = vmul.f32 %v1186, %v1199
  %v1209 = vmul.f32 %v1187, %v1199
  %v1210 = vmul.f32 %v1188, %v1199
  %v1211 = vmul.f32 %v1189, %v1199
  %v1212 = vmul.f32 %v1190, %v1199
  %v1213 = vmul.f32 %v1191, %v1199
  %v1214 = vmul.f32 %v1192, %v1199
  %v1215 = vmul.f32 %v1193, %v1199
  %v1216 = vmul.f32 %v1194, %v1199
  %v1217 = vld [vmem:[%s4] sm:$0xff]
  %1219 = vset.pattern.permute.xlu0 0
  %1220 = vperm.xlu0 %1219, %v1217
  %v1221 = vpop.permute.xlu0 %1220
  %v1223 = vadd.f32 %v1201, %v1221
  %v1224 = vadd.f32 %v1202, %v1221
  %v1225 = vadd.f32 %v1203, %v1221
  %v1226 = vadd.f32 %v1204, %v1221
  %v1227 = vadd.f32 %v1205, %v1221
  %v1228 = vadd.f32 %v1206, %v1221
  %v1229 = vadd.f32 %v1207, %v1221
  %v1230 = vadd.f32 %v1208, %v1221
  %v1231 = vadd.f32 %v1209, %v1221
  %v1232 = vadd.f32 %v1210, %v1221
  %v1233 = vadd.f32 %v1211, %v1221
  %v1234 = vadd.f32 %v1212, %v1221
  %v1235 = vadd.f32 %v1213, %v1221
  %v1236 = vadd.f32 %v1214, %v1221
  %v1237 = vadd.f32 %v1215, %v1221
  %v1238 = vadd.f32 %v1216, %v1221
  %v1239 = vtanh.pop %v1223
  %v1240 = vtanh.pop %v1224
  %v1241 = vtanh.pop %v1225
  %v1242 = vtanh.pop %v1226
  %v1243 = vtanh.pop %v1227
  %v1244 = vtanh.pop %v1228
  %v1245 = vtanh.pop %v1229
  %v1246 = vtanh.pop %v1230
  %v1247 = vtanh.pop %v1231
  %v1248 = vtanh.pop %v1232
  %v1249 = vtanh.pop %v1233
  %v1250 = vtanh.pop %v1234
  %v1251 = vtanh.pop %v1235
  %v1252 = vtanh.pop %v1236
  %v1253 = vtanh.pop %v1237
  %v1254 = vtanh.pop %v1238
  %1255 = vst [vmem:[%s5] sm:$0xff] %v1239
  %1256 = vst [vmem:[%s5 + $0x8] sm:$0xff] %v1240
  %1257 = vst [vmem:[%s5 + $0x10] sm:$0xff] %v1241
  %1258 = vst [vmem:[%s5 + $0x18] sm:$0xff] %v1242
  %1259 = vst [vmem:[%s5 + $0x20] sm:$0xff] %v1243
  %1260 = vst [vmem:[%s5 + $0x28] sm:$0xff] %v1244
  %1261 = vst [vmem:[%s5 + $0x30] sm:$0xff] %v1245
  %1262 = vst [vmem:[%s5 + $0x38] sm:$0xff] %v1246
  %1263 = vst [vmem:[%s5 + $0x40] sm:$0xff] %v1247
  %1264 = vst [vmem:[%s5 + $0x48] sm:$0xff] %v1248
  %1265 = vst [vmem:[%s5 + $0x50] sm:$0xff] %v1249
  %1266 = vst [vmem:[%s5 + $0x58] sm:$0xff] %v1250
  %1267 = vst [vmem:[%s5 + $0x60] sm:$0xff] %v1251
  %1268 = vst [vmem:[%s5 + $0x68] sm:$0xff] %v1252
  %1269 = vst [vmem:[%s5 + $0x70] sm:$0xff] %v1253
  %1270 = vst [vmem:[%s5 + $0x78] sm:$0xff] %v1254
  // Predicated region
  $region22: #{inversion_forward.8} parent=0 // pred_check
    _
  $region23: #{inversion_forward.8} parent=0 // pred_check_branch
    %1272 = sbr.rel (0) target = $region25
  $region24: #{inversion_forward.8} parent=0 // pred_region
    _
  $region25: #{inversion_forward.8} parent=0 // pred_fallthru
    _
  // Predicated region
  $region26: #{inversion_forward.8} parent=0 // pred_check
    _
  $region27: #{inversion_forward.8} parent=0 // pred_check_branch
    %1274 = sbr.rel (0) target = $region29
  $region28: #{inversion_forward.8} parent=0 // pred_region
    _
  $region29: #{inversion_forward.8} parent=0 // pred_fallthru
    _

// kernel: inversion_forward.9
$region0: #{inversion_forward.9}
  #allocation0 [shape = 'u32[]', space=smem, size = 0x4, offset = 0x4, fixed_abs, tag = 'smem constant byte address 0x4 - core index']
  #allocation1 [shape = 'u32[144,128]{1,0:T(1,128)}', space=vmem, size = 0x12000, scoped, tag = 'internal scratch']
  #allocation2 [shape = 'f32[1,1]{1,0:T(1,128)S(1)}', space=vmem, size = 0x200, scoped, tag = 'scoped memory for inversion_forward.9']
  %s0 = inlined_call_operand.vmem [shape: f32[128,1], index: 0, kind: input, shape index: {}]
  %s1 = inlined_call_operand.vmem [shape: f32[128,8192], index: 1, kind: input, shape index: {}]
  %s2 = inlined_call_operand.<no memory space> [shape: f32[1,1], index: 2, kind: input, shape index: {}]
  %s3 = inlined_call_operand.vmem [shape: f32[1,8192], index: 3, kind: output, shape index: {}]
  %s4 = sld [smem:[#allocation0]]
  $region68: #{inversion_forward.9} parent=0
    _
  %s6 = ssub.s32 1, %s4
  %s7 = scalar_select 0, %s6, %s4
  %v8 = vstv %s2
  %9 = vst [vmem:[#allocation2] sm:$0x1] %v8
  $region1: #{inversion_forward.9} parent=0
    #allocation3 [shape = 'u8[4194304]{0}', space=vmem, size = 0x400000, scoped, tag = 'input window, operand 1']
    loop: start=0, step=1, limit=4
    $region2: #{inversion_forward.9} parent=1 // loop_pre_header
      _
    $region3: #{inversion_forward.9} parent=1 // loop_header
      %s11 = sphi 0, %s15
      %p12 = scmp.ge.s32.totalorder %s11, 4
      %s19 = sphi 0, %s19
      %s21 = sphi 0, %s19
      %s22 = sphi 0, %s21
      %s36 = sphi 0, %s22
      %s42 = sphi 0, %s44
      %s45 = sphi 0, %s42
      %s46 = sphi 0, %s45
      %s62 = sphi 0, %s46
      %s66 = sphi 0, %s66
      %s68 = sphi 0, %s66
      %s69 = sphi 0, %s68
      %s83 = sphi 0, %s69
      %s89 = sphi 0, %s91
      %s92 = sphi 0, %s89
      %s93 = sphi 0, %s92
      %s109 = sphi 0, %s93
    $region4: #{inversion_forward.9} parent=1 // loop_header_branch
      %14 = sbr.rel (%p12) target = $region8
    $region5: #{inversion_forward.9} parent=1 // loop_body
      %s16 = ssub.s32 %s11, 1
      %s17 = ssub.s32 %s11, 2
      %s18 = sadd.s32 %s11, 1
      %s20 = sadd.s32 %s19, 1
      %p23 = scmp.eq.s32.totalorder %s11, 1
      %p24 = scmp.ne.s32.totalorder %s19, %s21
      %p25 = scmp.eq.s32.totalorder %s11, 0
      %p26 = por %p24, %p25
      %p27 = scmp.ne.s32.totalorder %s19, %s21
      %p28 = scmp.eq.s32.totalorder %s16, 1
      %p29 = por %p27, %p28
      %p30 = scmp.ne.s32.totalorder %s21, %s22
      %p31 = scmp.eq.s32.totalorder %s16, 0
      %p32 = por %p30, %p31
      %p33 = scmp.ne.s32.totalorder %s21, %s22
      %p34 = scmp.eq.s32.totalorder %s17, 1
      %p35 = por %p33, %p34
      %p37 = scmp.ne.s32.totalorder %s22, %s36
      %p38 = scmp.eq.s32.totalorder %s17, 0
      %p39 = por %p37, %p38
      %s40 = ssub.s32 %s11, %s18
      %p41 = scmp.eq.s32.totalorder %s40, 0
      %s43 = sadd.s32 %s42, 1
      %s44 = scalar_select %p41, %s42, %s43
      %p47 = pneg %p41
      %p48 = scmp.eq.s32.totalorder %s11, 1
      %p49 = por %p47, %p48
      %p50 = scmp.ne.s32.totalorder %s42, %s45
      %p51 = scmp.eq.s32.totalorder %s11, 0
      %p52 = por %p50, %p51
      %p53 = scmp.ne.s32.totalorder %s42, %s45
      %p54 = scmp.eq.s32.totalorder %s16, 1
      %p55 = por %p53, %p54
      %p56 = scmp.ne.s32.totalorder %s45, %s46
      %p57 = scmp.eq.s32.totalorder %s16, 0
      %p58 = por %p56, %p57
      %p59 = scmp.ne.s32.totalorder %s45, %s46
      %p60 = scmp.eq.s32.totalorder %s17, 1
      %p61 = por %p59, %p60
      %p63 = scmp.ne.s32.totalorder %s46, %s62
      %p64 = scmp.eq.s32.totalorder %s17, 0
      %p65 = por %p63, %p64
      %s67 = sadd.s32 %s66, 1
      %p70 = scmp.eq.s32.totalorder %s11, 1
      %p71 = scmp.ne.s32.totalorder %s66, %s68
      %p72 = scmp.eq.s32.totalorder %s11, 0
      %p73 = por %p71, %p72
      %p74 = scmp.ne.s32.totalorder %s66, %s68
      %p75 = scmp.eq.s32.totalorder %s16, 1
      %p76 = por %p74, %p75
      %p77 = scmp.ne.s32.totalorder %s68, %s69
      %p78 = scmp.eq.s32.totalorder %s16, 0
      %p79 = por %p77, %p78
      %p80 = scmp.ne.s32.totalorder %s68, %s69
      %p81 = scmp.eq.s32.totalorder %s17, 1
      %p82 = por %p80, %p81
      %p84 = scmp.ne.s32.totalorder %s69, %s83
      %p85 = scmp.eq.s32.totalorder %s17, 0
      %p86 = por %p84, %p85
      %s87 = ssub.s32 %s11, %s18
      %p88 = scmp.eq.s32.totalorder %s87, 0
      %s90 = sadd.s32 %s89, 1
      %s91 = scalar_select %p88, %s89, %s90
      %p94 = pneg %p88
      %p95 = scmp.eq.s32.totalorder %s11, 1
      %p96 = por %p94, %p95
      %p97 = scmp.ne.s32.totalorder %s89, %s92
      %p98 = scmp.eq.s32.totalorder %s11, 0
      %p99 = por %p97, %p98
      %p100 = scmp.ne.s32.totalorder %s89, %s92
      %p101 = scmp.eq.s32.totalorder %s16, 1
      %p102 = por %p100, %p101
      %p103 = scmp.ne.s32.totalorder %s92, %s93
      %p104 = scmp.eq.s32.totalorder %s16, 0
      %p105 = por %p103, %p104
      %p106 = scmp.ne.s32.totalorder %s92, %s93
      %p107 = scmp.eq.s32.totalorder %s17, 1
      %p108 = por %p106, %p107
      %p110 = scmp.ne.s32.totalorder %s93, %s109
      %p111 = scmp.eq.s32.totalorder %s17, 0
      %p112 = por %p110, %p111
      %p113 = scmp.le.s32.totalorder 1, %s11
      %p114 = scmp.lt.s32.totalorder %s11, 3
      %p115 = pnand %p113, %p114
      %p116 = pneg %p115
      // Predicated region
      $region9: #{inversion_forward.9} parent=5 // pred_check
        _
      $region10: #{inversion_forward.9} parent=5 // pred_check_branch
        %118 = sbr.rel (%p115) target = $region12
      $region11: #{inversion_forward.9} parent=5 // pred_region
        %s119 = ssub.s32 %s11, 1
        // Predicated region
        $region13: #{inversion_forward.9} parent=11 // pred_check
          %p120 = pneg %p32
        $region14: #{inversion_forward.9} parent=11 // pred_check_branch
          %122 = sbr.rel (%p120) target = $region16
        $region15: #{inversion_forward.9} parent=11 // pred_region
          _
        $region16: #{inversion_forward.9} parent=11 // pred_fallthru
          _
        // Predicated region
        $region17: #{inversion_forward.9} parent=11 // pred_check
          %p123 = pneg %p79
        $region18: #{inversion_forward.9} parent=11 // pred_check_branch
          %125 = sbr.rel (%p123) target = $region20
        $region19: #{inversion_forward.9} parent=11 // pred_region
          _
        $region20: #{inversion_forward.9} parent=11 // pred_fallthru
          _
      $region12: #{inversion_forward.9} parent=5 // pred_fallthru
        _
      %p126 = scmp.lt.s32.totalorder %s11, 2
      // Predicated region
      $region21: #{inversion_forward.9} parent=5 // pred_check
        %p127 = pneg %p126
      $region22: #{inversion_forward.9} parent=5 // pred_check_branch
        %129 = sbr.rel (%p127) target = $region24
      $region23: #{inversion_forward.9} parent=5 // pred_region
        // Predicated region
        $region25: #{inversion_forward.9} parent=23 // pred_check
          %p130 = pneg %p52
        $region26: #{inversion_forward.9} parent=23 // pred_check_branch
          %132 = sbr.rel (%p130) target = $region28
        $region27: #{inversion_forward.9} parent=23 // pred_region
          %s133 = sand.u32 %s42, 1
          %s134 = sand.u32 %s42, 1
          %s135 = smul.addr %s134, 4096
          %s136 = scalar_lea.vmem [#allocation3], %s135
          %s137 = smul.u32 32, %s11
          %s138 = smul.addr %s137, 8
          %s139 = scalar_lea.vmem %s1, %s138
          // Predicated region
          $region29: #{inversion_forward.9} parent=27 // pred_check
            _
          $region30: #{inversion_forward.9} parent=27 // pred_check_branch
            %141 = sbr.rel (0) target = $region32
          $region31: #{inversion_forward.9} parent=27 // pred_region
            // Predicated region
            $region33: #{inversion_forward.9} parent=31 // pred_check
              _
            $region34: #{inversion_forward.9} parent=31 // pred_check_branch
              %143 = sbr.rel (0) target = $region36
            $region35: #{inversion_forward.9} parent=31 // pred_region
              loop: start=0, step=1, limit=1
              $region37: #{inversion_forward.9} parent=35 // loop_pre_header
                _
              $region38: #{inversion_forward.9} parent=35 // loop_header
                %s145 = sphi 0, %s149
                %p146 = scmp.ge.s32.totalorder %s145, 1
                %s150 = sphi %s139, %s139
                %s151 = sphi %s136, %s136
              $region39: #{inversion_forward.9} parent=35 // loop_header_branch
                %148 = sbr.rel (%p146) target = $region43
              $region40: #{inversion_forward.9} parent=35 // loop_body
                %v152 = vld [vmem:[%s150] sm:$0xff]
                %153 = vst [vmem:[%s151] sm:$0xff] %v152
                %v154 = vld [vmem:[%s150 + $0x8] sm:$0xff]
                %155 = vst [vmem:[%s151 + $0x8] sm:$0xff] %v154
                %v156 = vld [vmem:[%s150 + $0x10] sm:$0xff]
                %157 = vst [vmem:[%s151 + $0x10] sm:$0xff] %v156
                %v158 = vld [vmem:[%s150 + $0x18] sm:$0xff]
                %159 = vst [vmem:[%s151 + $0x18] sm:$0xff] %v158
                %v160 = vld [vmem:[%s150 + $0x20] sm:$0xff]
                %161 = vst [vmem:[%s151 + $0x20] sm:$0xff] %v160
                %v162 = vld [vmem:[%s150 + $0x28] sm:$0xff]
                %163 = vst [vmem:[%s151 + $0x28] sm:$0xff] %v162
                %v164 = vld [vmem:[%s150 + $0x30] sm:$0xff]
                %165 = vst [vmem:[%s151 + $0x30] sm:$0xff] %v164
                %v166 = vld [vmem:[%s150 + $0x38] sm:$0xff]
                %167 = vst [vmem:[%s151 + $0x38] sm:$0xff] %v166
                %v168 = vld [vmem:[%s150 + $0x40] sm:$0xff]
                %169 = vst [vmem:[%s151 + $0x40] sm:$0xff] %v168
                %v170 = vld [vmem:[%s150 + $0x48] sm:$0xff]
                %171 = vst [vmem:[%s151 + $0x48] sm:$0xff] %v170
                %v172 = vld [vmem:[%s150 + $0x50] sm:$0xff]
                %173 = vst [vmem:[%s151 + $0x50] sm:$0xff] %v172
                %v174 = vld [vmem:[%s150 + $0x58] sm:$0xff]
                %175 = vst [vmem:[%s151 + $0x58] sm:$0xff] %v174
                %v176 = vld [vmem:[%s150 + $0x60] sm:$0xff]
                %177 = vst [vmem:[%s151 + $0x60] sm:$0xff] %v176
                %v178 = vld [vmem:[%s150 + $0x68] sm:$0xff]
                %179 = vst [vmem:[%s151 + $0x68] sm:$0xff] %v178
                %v180 = vld [vmem:[%s150 + $0x70] sm:$0xff]
                %181 = vst [vmem:[%s151 + $0x70] sm:$0xff] %v180
                %v182 = vld [vmem:[%s150 + $0x78] sm:$0xff]
                %183 = vst [vmem:[%s151 + $0x78] sm:$0xff] %v182
                %v184 = vld [vmem:[%s150 + $0x80] sm:$0xff]
                %185 = vst [vmem:[%s151 + $0x80] sm:$0xff] %v184
                %v186 = vld [vmem:[%s150 + $0x88] sm:$0xff]
                %187 = vst [vmem:[%s151 + $0x88] sm:$0xff] %v186
                %v188 = vld [vmem:[%s150 + $0x90] sm:$0xff]
                %189 = vst [vmem:[%s151 + $0x90] sm:$0xff] %v188
                %v190 = vld [vmem:[%s150 + $0x98] sm:$0xff]
                %191 = vst [vmem:[%s151 + $0x98] sm:$0xff] %v190
                %v192 = vld [vmem:[%s150 + $0xa0] sm:$0xff]
                %193 = vst [vmem:[%s151 + $0xa0] sm:$0xff] %v192
                %v194 = vld [vmem:[%s150 + $0xa8] sm:$0xff]
                %195 = vst [vmem:[%s151 + $0xa8] sm:$0xff] %v194
                %v196 = vld [vmem:[%s150 + $0xb0] sm:$0xff]
                %197 = vst [vmem:[%s151 + $0xb0] sm:$0xff] %v196
                %v198 = vld [vmem:[%s150 + $0xb8] sm:$0xff]
                %199 = vst [vmem:[%s151 + $0xb8] sm:$0xff] %v198
                %v200 = vld [vmem:[%s150 + $0xc0] sm:$0xff]
                %201 = vst [vmem:[%s151 + $0xc0] sm:$0xff] %v200
                %v202 = vld [vmem:[%s150 + $0xc8] sm:$0xff]
                %203 = vst [vmem:[%s151 + $0xc8] sm:$0xff] %v202
                %v204 = vld [vmem:[%s150 + $0xd0] sm:$0xff]
                %205 = vst [vmem:[%s151 + $0xd0] sm:$0xff] %v204
                %v206 = vld [vmem:[%s150 + $0xd8] sm:$0xff]
                %207 = vst [vmem:[%s151 + $0xd8] sm:$0xff] %v206
                %v208 = vld [vmem:[%s150 + $0xe0] sm:$0xff]
                %209 = vst [vmem:[%s151 + $0xe0] sm:$0xff] %v208
                %v210 = vld [vmem:[%s150 + $0xe8] sm:$0xff]
                %211 = vst [vmem:[%s151 + $0xe8] sm:$0xff] %v210
                %v212 = vld [vmem:[%s150 + $0xf0] sm:$0xff]
                %213 = vst [vmem:[%s151 + $0xf0] sm:$0xff] %v212
                %v214 = vld [vmem:[%s150 + $0xf8] sm:$0xff]
                %215 = vst [vmem:[%s151 + $0xf8] sm:$0xff] %v214
                %v216 = vld [vmem:[%s150 + $0x200] sm:$0xff]
                %217 = vst [vmem:[%s151 + $0x100] sm:$0xff] %v216
                %v218 = vld [vmem:[%s150 + $0x208] sm:$0xff]
                %219 = vst [vmem:[%s151 + $0x108] sm:$0xff] %v218
                %v220 = vld [vmem:[%s150 + $0x210] sm:$0xff]
                %221 = vst [vmem:[%s151 + $0x110] sm:$0xff] %v220
                %v222 = vld [vmem:[%s150 + $0x218] sm:$0xff]
                %223 = vst [vmem:[%s151 + $0x118] sm:$0xff] %v222
                %v224 = vld [vmem:[%s150 + $0x220] sm:$0xff]
                %225 = vst [vmem:[%s151 + $0x120] sm:$0xff] %v224
                %v226 = vld [vmem:[%s150 + $0x228] sm:$0xff]
                %227 = vst [vmem:[%s151 + $0x128] sm:$0xff] %v226
                %v228 = vld [vmem:[%s150 + $0x230] sm:$0xff]
                %229 = vst [vmem:[%s151 + $0x130] sm:$0xff] %v228
                %v230 = vld [vmem:[%s150 + $0x238] sm:$0xff]
                %231 = vst [vmem:[%s151 + $0x138] sm:$0xff] %v230
                %v232 = vld [vmem:[%s150 + $0x240] sm:$0xff]
                %233 = vst [vmem:[%s151 + $0x140] sm:$0xff] %v232
                %v234 = vld [vmem:[%s150 + $0x248] sm:$0xff]
                %235 = vst [vmem:[%s151 + $0x148] sm:$0xff] %v234
                %v236 = vld [vmem:[%s150 + $0x250] sm:$0xff]
                %237 = vst [vmem:[%s151 + $0x150] sm:$0xff] %v236
                %v238 = vld [vmem:[%s150 + $0x258] sm:$0xff]
                %239 = vst [vmem:[%s151 + $0x158] sm:$0xff] %v238
                %v240 = vld [vmem:[%s150 + $0x260] sm:$0xff]
                %241 = vst [vmem:[%s151 + $0x160] sm:$0xff] %v240
                %v242 = vld [vmem:[%s150 + $0x268] sm:$0xff]
                %243 = vst [vmem:[%s151 + $0x168] sm:$0xff] %v242
                %v244 = vld [vmem:[%s150 + $0x270] sm:$0xff]
                %245 = vst [vmem:[%s151 + $0x170] sm:$0xff] %v244
                %v246 = vld [vmem:[%s150 + $0x278] sm:$0xff]
                %247 = vst [vmem:[%s151 + $0x178] sm:$0xff] %v246
                %v248 = vld [vmem:[%s150 + $0x280] sm:$0xff]
                %249 = vst [vmem:[%s151 + $0x180] sm:$0xff] %v248
                %v250 = vld [vmem:[%s150 + $0x288] sm:$0xff]
                %251 = vst [vmem:[%s151 + $0x188] sm:$0xff] %v250
                %v252 = vld [vmem:[%s150 + $0x290] sm:$0xff]
                %253 = vst [vmem:[%s151 + $0x190] sm:$0xff] %v252
                %v254 = vld [vmem:[%s150 + $0x298] sm:$0xff]
                %255 = vst [vmem:[%s151 + $0x198] sm:$0xff] %v254
                %v256 = vld [vmem:[%s150 + $0x2a0] sm:$0xff]
                %257 = vst [vmem:[%s151 + $0x1a0] sm:$0xff] %v256
                %v258 = vld [vmem:[%s150 + $0x2a8] sm:$0xff]
                %259 = vst [vmem:[%s151 + $0x1a8] sm:$0xff] %v258
                %v260 = vld [vmem:[%s150 + $0x2b0] sm:$0xff]
                %261 = vst [vmem:[%s151 + $0x1b0] sm:$0xff] %v260
                %v262 = vld [vmem:[%s150 + $0x2b8] sm:$0xff]
                %263 = vst [vmem:[%s151 + $0x1b8] sm:$0xff] %v262
                %v264 = vld [vmem:[%s150 + $0x2c0] sm:$0xff]
                %265 = vst [vmem:[%s151 + $0x1c0] sm:$0xff] %v264
                %v266 = vld [vmem:[%s150 + $0x2c8] sm:$0xff]
                %267 = vst [vmem:[%s151 + $0x1c8] sm:$0xff] %v266
                %v268 = vld [vmem:[%s150 + $0x2d0] sm:$0xff]
                %269 = vst [vmem:[%s151 + $0x1d0] sm:$0xff] %v268
                %v270 = vld [vmem:[%s150 + $0x2d8] sm:$0xff]
                %271 = vst [vmem:[%s151 + $0x1d8] sm:$0xff] %v270
                %v272 = vld [vmem:[%s150 + $0x2e0] sm:$0xff]
                %273 = vst [vmem:[%s151 + $0x1e0] sm:$0xff] %v272
                %v274 = vld [vmem:[%s150 + $0x2e8] sm:$0xff]
                %275 = vst [vmem:[%s151 + $0x1e8] sm:$0xff] %v274
                %v276 = vld [vmem:[%s150 + $0x2f0] sm:$0xff]
                %277 = vst [vmem:[%s151 + $0x1f0] sm:$0xff] %v276
                %v278 = vld [vmem:[%s150 + $0x2f8] sm:$0xff]
                %279 = vst [vmem:[%s151 + $0x1f8] sm:$0xff] %v278
                %v280 = vld [vmem:[%s150 + $0x400] sm:$0xff]
                %281 = vst [vmem:[%s151 + $0x200] sm:$0xff] %v280
                %v282 = vld [vmem:[%s150 + $0x408] sm:$0xff]
                %283 = vst [vmem:[%s151 + $0x208] sm:$0xff] %v282
                %v284 = vld [vmem:[%s150 + $0x410] sm:$0xff]
                %285 = vst [vmem:[%s151 + $0x210] sm:$0xff] %v284
                %v286 = vld [vmem:[%s150 + $0x418] sm:$0xff]
                %287 = vst [vmem:[%s151 + $0x218] sm:$0xff] %v286
                %v288 = vld [vmem:[%s150 + $0x420] sm:$0xff]
                %289 = vst [vmem:[%s151 + $0x220] sm:$0xff] %v288
                %v290 = vld [vmem:[%s150 + $0x428] sm:$0xff]
                %291 = vst [vmem:[%s151 + $0x228] sm:$0xff] %v290
                %v292 = vld [vmem:[%s150 + $0x430] sm:$0xff]
                %293 = vst [vmem:[%s151 + $0x230] sm:$0xff] %v292
                %v294 = vld [vmem:[%s150 + $0x438] sm:$0xff]
                %295 = vst [vmem:[%s151 + $0x238] sm:$0xff] %v294
                %v296 = vld [vmem:[%s150 + $0x440] sm:$0xff]
                %297 = vst [vmem:[%s151 + $0x240] sm:$0xff] %v296
                %v298 = vld [vmem:[%s150 + $0x448] sm:$0xff]
                %299 = vst [vmem:[%s151 + $0x248] sm:$0xff] %v298
                %v300 = vld [vmem:[%s150 + $0x450] sm:$0xff]
                %301 = vst [vmem:[%s151 + $0x250] sm:$0xff] %v300
                %v302 = vld [vmem:[%s150 + $0x458] sm:$0xff]
                %303 = vst [vmem:[%s151 + $0x258] sm:$0xff] %v302
                %v304 = vld [vmem:[%s150 + $0x460] sm:$0xff]
                %305 = vst [vmem:[%s151 + $0x260] sm:$0xff] %v304
                %v306 = vld [vmem:[%s150 + $0x468] sm:$0xff]
                %307 = vst [vmem:[%s151 + $0x268] sm:$0xff] %v306
                %v308 = vld [vmem:[%s150 + $0x470] sm:$0xff]
                %309 = vst [vmem:[%s151 + $0x270] sm:$0xff] %v308
                %v310 = vld [vmem:[%s150 + $0x478] sm:$0xff]
                %311 = vst [vmem:[%s151 + $0x278] sm:$0xff] %v310
                %v312 = vld [vmem:[%s150 + $0x480] sm:$0xff]
                %313 = vst [vmem:[%s151 + $0x280] sm:$0xff] %v312
                %v314 = vld [vmem:[%s150 + $0x488] sm:$0xff]
                %315 = vst [vmem:[%s151 + $0x288] sm:$0xff] %v314
                %v316 = vld [vmem:[%s150 + $0x490] sm:$0xff]
                %317 = vst [vmem:[%s151 + $0x290] sm:$0xff] %v316
                %v318 = vld [vmem:[%s150 + $0x498] sm:$0xff]
                %319 = vst [vmem:[%s151 + $0x298] sm:$0xff] %v318
                %v320 = vld [vmem:[%s150 + $0x4a0] sm:$0xff]
                %321 = vst [vmem:[%s151 + $0x2a0] sm:$0xff] %v320
                %v322 = vld [vmem:[%s150 + $0x4a8] sm:$0xff]
                %323 = vst [vmem:[%s151 + $0x2a8] sm:$0xff] %v322
                %v324 = vld [vmem:[%s150 + $0x4b0] sm:$0xff]
                %325 = vst [vmem:[%s151 + $0x2b0] sm:$0xff] %v324
                %v326 = vld [vmem:[%s150 + $0x4b8] sm:$0xff]
                %327 = vst [vmem:[%s151 + $0x2b8] sm:$0xff] %v326
                %v328 = vld [vmem:[%s150 + $0x4c0] sm:$0xff]
                %329 = vst [vmem:[%s151 + $0x2c0] sm:$0xff] %v328
                %v330 = vld [vmem:[%s150 + $0x4c8] sm:$0xff]
                %331 = vst [vmem:[%s151 + $0x2c8] sm:$0xff] %v330
                %v332 = vld [vmem:[%s150 + $0x4d0] sm:$0xff]
                %333 = vst [vmem:[%s151 + $0x2d0] sm:$0xff] %v332
                %v334 = vld [vmem:[%s150 + $0x4d8] sm:$0xff]
                %335 = vst [vmem:[%s151 + $0x2d8] sm:$0xff] %v334
                %v336 = vld [vmem:[%s150 + $0x4e0] sm:$0xff]
                %337 = vst [vmem:[%s151 + $0x2e0] sm:$0xff] %v336
                %v338 = vld [vmem:[%s150 + $0x4e8] sm:$0xff]
                %339 = vst [vmem:[%s151 + $0x2e8] sm:$0xff] %v338
                %v340 = vld [vmem:[%s150 + $0x4f0] sm:$0xff]
                %341 = vst [vmem:[%s151 + $0x2f0] sm:$0xff] %v340
                %v342 = vld [vmem:[%s150 + $0x4f8] sm:$0xff]
                %343 = vst [vmem:[%s151 + $0x2f8] sm:$0xff] %v342
                %v344 = vld [vmem:[%s150 + $0x600] sm:$0xff]
                %345 = vst [vmem:[%s151 + $0x300] sm:$0xff] %v344
                %v346 = vld [vmem:[%s150 + $0x608] sm:$0xff]
                %347 = vst [vmem:[%s151 + $0x308] sm:$0xff] %v346
                %v348 = vld [vmem:[%s150 + $0x610] sm:$0xff]
                %349 = vst [vmem:[%s151 + $0x310] sm:$0xff] %v348
                %v350 = vld [vmem:[%s150 + $0x618] sm:$0xff]
                %351 = vst [vmem:[%s151 + $0x318] sm:$0xff] %v350
                %v352 = vld [vmem:[%s150 + $0x620] sm:$0xff]
                %353 = vst [vmem:[%s151 + $0x320] sm:$0xff] %v352
                %v354 = vld [vmem:[%s150 + $0x628] sm:$0xff]
                %355 = vst [vmem:[%s151 + $0x328] sm:$0xff] %v354
                %v356 = vld [vmem:[%s150 + $0x630] sm:$0xff]
                %357 = vst [vmem:[%s151 + $0x330] sm:$0xff] %v356
                %v358 = vld [vmem:[%s150 + $0x638] sm:$0xff]
                %359 = vst [vmem:[%s151 + $0x338] sm:$0xff] %v358
                %v360 = vld [vmem:[%s150 + $0x640] sm:$0xff]
                %361 = vst [vmem:[%s151 + $0x340] sm:$0xff] %v360
                %v362 = vld [vmem:[%s150 + $0x648] sm:$0xff]
                %363 = vst [vmem:[%s151 + $0x348] sm:$0xff] %v362
                %v364 = vld [vmem:[%s150 + $0x650] sm:$0xff]
                %365 = vst [vmem:[%s151 + $0x350] sm:$0xff] %v364
                %v366 = vld [vmem:[%s150 + $0x658] sm:$0xff]
                %367 = vst [vmem:[%s151 + $0x358] sm:$0xff] %v366
                %v368 = vld [vmem:[%s150 + $0x660] sm:$0xff]
                %369 = vst [vmem:[%s151 + $0x360] sm:$0xff] %v368
                %v370 = vld [vmem:[%s150 + $0x668] sm:$0xff]
                %371 = vst [vmem:[%s151 + $0x368] sm:$0xff] %v370
                %v372 = vld [vmem:[%s150 + $0x670] sm:$0xff]
                %373 = vst [vmem:[%s151 + $0x370] sm:$0xff] %v372
                %v374 = vld [vmem:[%s150 + $0x678] sm:$0xff]
                %375 = vst [vmem:[%s151 + $0x378] sm:$0xff] %v374
                %v376 = vld [vmem:[%s150 + $0x680] sm:$0xff]
                %377 = vst [vmem:[%s151 + $0x380] sm:$0xff] %v376
                %v378 = vld [vmem:[%s150 + $0x688] sm:$0xff]
                %379 = vst [vmem:[%s151 + $0x388] sm:$0xff] %v378
                %v380 = vld [vmem:[%s150 + $0x690] sm:$0xff]
                %381 = vst [vmem:[%s151 + $0x390] sm:$0xff] %v380
                %v382 = vld [vmem:[%s150 + $0x698] sm:$0xff]
                %383 = vst [vmem:[%s151 + $0x398] sm:$0xff] %v382
                %v384 = vld [vmem:[%s150 + $0x6a0] sm:$0xff]
                %385 = vst [vmem:[%s151 + $0x3a0] sm:$0xff] %v384
                %v386 = vld [vmem:[%s150 + $0x6a8] sm:$0xff]
                %387 = vst [vmem:[%s151 + $0x3a8] sm:$0xff] %v386
                %v388 = vld [vmem:[%s150 + $0x6b0] sm:$0xff]
                %389 = vst [vmem:[%s151 + $0x3b0] sm:$0xff] %v388
                %v390 = vld [vmem:[%s150 + $0x6b8] sm:$0xff]
                %391 = vst [vmem:[%s151 + $0x3b8] sm:$0xff] %v390
                %v392 = vld [vmem:[%s150 + $0x6c0] sm:$0xff]
                %393 = vst [vmem:[%s151 + $0x3c0] sm:$0xff] %v392
                %v394 = vld [vmem:[%s150 + $0x6c8] sm:$0xff]
                %395 = vst [vmem:[%s151 + $0x3c8] sm:$0xff] %v394
                %v396 = vld [vmem:[%s150 + $0x6d0] sm:$0xff]
                %397 = vst [vmem:[%s151 + $0x3d0] sm:$0xff] %v396
                %v398 = vld [vmem:[%s150 + $0x6d8] sm:$0xff]
                %399 = vst [vmem:[%s151 + $0x3d8] sm:$0xff] %v398
                %v400 = vld [vmem:[%s150 + $0x6e0] sm:$0xff]
                %401 = vst [vmem:[%s151 + $0x3e0] sm:$0xff] %v400
                %v402 = vld [vmem:[%s150 + $0x6e8] sm:$0xff]
                %403 = vst [vmem:[%s151 + $0x3e8] sm:$0xff] %v402
                %v404 = vld [vmem:[%s150 + $0x6f0] sm:$0xff]
                %405 = vst [vmem:[%s151 + $0x3f0] sm:$0xff] %v404
                %v406 = vld [vmem:[%s150 + $0x6f8] sm:$0xff]
                %407 = vst [vmem:[%s151 + $0x3f8] sm:$0xff] %v406
                %v408 = vld [vmem:[%s150 + $0x800] sm:$0xff]
                %409 = vst [vmem:[%s151 + $0x400] sm:$0xff] %v408
                %v410 = vld [vmem:[%s150 + $0x808] sm:$0xff]
                %411 = vst [vmem:[%s151 + $0x408] sm:$0xff] %v410
                %v412 = vld [vmem:[%s150 + $0x810] sm:$0xff]
                %413 = vst [vmem:[%s151 + $0x410] sm:$0xff] %v412
                %v414 = vld [vmem:[%s150 + $0x818] sm:$0xff]
                %415 = vst [vmem:[%s151 + $0x418] sm:$0xff] %v414
                %v416 = vld [vmem:[%s150 + $0x820] sm:$0xff]
                %417 = vst [vmem:[%s151 + $0x420] sm:$0xff] %v416
                %v418 = vld [vmem:[%s150 + $0x828] sm:$0xff]
                %419 = vst [vmem:[%s151 + $0x428] sm:$0xff] %v418
                %v420 = vld [vmem:[%s150 + $0x830] sm:$0xff]
                %421 = vst [vmem:[%s151 + $0x430] sm:$0xff] %v420
                %v422 = vld [vmem:[%s150 + $0x838] sm:$0xff]
                %423 = vst [vmem:[%s151 + $0x438] sm:$0xff] %v422
                %v424 = vld [vmem:[%s150 + $0x840] sm:$0xff]
                %425 = vst [vmem:[%s151 + $0x440] sm:$0xff] %v424
                %v426 = vld [vmem:[%s150 + $0x848] sm:$0xff]
                %427 = vst [vmem:[%s151 + $0x448] sm:$0xff] %v426
                %v428 = vld [vmem:[%s150 + $0x850] sm:$0xff]
                %429 = vst [vmem:[%s151 + $0x450] sm:$0xff] %v428
                %v430 = vld [vmem:[%s150 + $0x858] sm:$0xff]
                %431 = vst [vmem:[%s151 + $0x458] sm:$0xff] %v430
                %v432 = vld [vmem:[%s150 + $0x860] sm:$0xff]
                %433 = vst [vmem:[%s151 + $0x460] sm:$0xff] %v432
                %v434 = vld [vmem:[%s150 + $0x868] sm:$0xff]
                %435 = vst [vmem:[%s151 + $0x468] sm:$0xff] %v434
                %v436 = vld [vmem:[%s150 + $0x870] sm:$0xff]
                %437 = vst [vmem:[%s151 + $0x470] sm:$0xff] %v436
                %v438 = vld [vmem:[%s150 + $0x878] sm:$0xff]
                %439 = vst [vmem:[%s151 + $0x478] sm:$0xff] %v438
                %v440 = vld [vmem:[%s150 + $0x880] sm:$0xff]
                %441 = vst [vmem:[%s151 + $0x480] sm:$0xff] %v440
                %v442 = vld [vmem:[%s150 + $0x888] sm:$0xff]
                %443 = vst [vmem:[%s151 + $0x488] sm:$0xff] %v442
                %v444 = vld [vmem:[%s150 + $0x890] sm:$0xff]
                %445 = vst [vmem:[%s151 + $0x490] sm:$0xff] %v444
                %v446 = vld [vmem:[%s150 + $0x898] sm:$0xff]
                %447 = vst [vmem:[%s151 + $0x498] sm:$0xff] %v446
                %v448 = vld [vmem:[%s150 + $0x8a0] sm:$0xff]
                %449 = vst [vmem:[%s151 + $0x4a0] sm:$0xff] %v448
                %v450 = vld [vmem:[%s150 + $0x8a8] sm:$0xff]
                %451 = vst [vmem:[%s151 + $0x4a8] sm:$0xff] %v450
                %v452 = vld [vmem:[%s150 + $0x8b0] sm:$0xff]
                %453 = vst [vmem:[%s151 + $0x4b0] sm:$0xff] %v452
                %v454 = vld [vmem:[%s150 + $0x8b8] sm:$0xff]
                %455 = vst [vmem:[%s151 + $0x4b8] sm:$0xff] %v454
                %v456 = vld [vmem:[%s150 + $0x8c0] sm:$0xff]
                %457 = vst [vmem:[%s151 + $0x4c0] sm:$0xff] %v456
                %v458 = vld [vmem:[%s150 + $0x8c8] sm:$0xff]
                %459 = vst [vmem:[%s151 + $0x4c8] sm:$0xff] %v458
                %v460 = vld [vmem:[%s150 + $0x8d0] sm:$0xff]
                %461 = vst [vmem:[%s151 + $0x4d0] sm:$0xff] %v460
                %v462 = vld [vmem:[%s150 + $0x8d8] sm:$0xff]
                %463 = vst [vmem:[%s151 + $0x4d8] sm:$0xff] %v462
                %v464 = vld [vmem:[%s150 + $0x8e0] sm:$0xff]
                %465 = vst [vmem:[%s151 + $0x4e0] sm:$0xff] %v464
                %v466 = vld [vmem:[%s150 + $0x8e8] sm:$0xff]
                %467 = vst [vmem:[%s151 + $0x4e8] sm:$0xff] %v466
                %v468 = vld [vmem:[%s150 + $0x8f0] sm:$0xff]
                %469 = vst [vmem:[%s151 + $0x4f0] sm:$0xff] %v468
                %v470 = vld [vmem:[%s150 + $0x8f8] sm:$0xff]
                %471 = vst [vmem:[%s151 + $0x4f8] sm:$0xff] %v470
                %v472 = vld [vmem:[%s150 + $0xa00] sm:$0xff]
                %473 = vst [vmem:[%s151 + $0x500] sm:$0xff] %v472
                %v474 = vld [vmem:[%s150 + $0xa08] sm:$0xff]
                %475 = vst [vmem:[%s151 + $0x508] sm:$0xff] %v474
                %v476 = vld [vmem:[%s150 + $0xa10] sm:$0xff]
                %477 = vst [vmem:[%s151 + $0x510] sm:$0xff] %v476
                %v478 = vld [vmem:[%s150 + $0xa18] sm:$0xff]
                %479 = vst [vmem:[%s151 + $0x518] sm:$0xff] %v478
                %v480 = vld [vmem:[%s150 + $0xa20] sm:$0xff]
                %481 = vst [vmem:[%s151 + $0x520] sm:$0xff] %v480
                %v482 = vld [vmem:[%s150 + $0xa28] sm:$0xff]
                %483 = vst [vmem:[%s151 + $0x528] sm:$0xff] %v482
                %v484 = vld [vmem:[%s150 + $0xa30] sm:$0xff]
                %485 = vst [vmem:[%s151 + $0x530] sm:$0xff] %v484
                %v486 = vld [vmem:[%s150 + $0xa38] sm:$0xff]
                %487 = vst [vmem:[%s151 + $0x538] sm:$0xff] %v486
                %v488 = vld [vmem:[%s150 + $0xa40] sm:$0xff]
                %489 = vst [vmem:[%s151 + $0x540] sm:$0xff] %v488
                %v490 = vld [vmem:[%s150 + $0xa48] sm:$0xff]
                %491 = vst [vmem:[%s151 + $0x548] sm:$0xff] %v490
                %v492 = vld [vmem:[%s150 + $0xa50] sm:$0xff]
                %493 = vst [vmem:[%s151 + $0x550] sm:$0xff] %v492
                %v494 = vld [vmem:[%s150 + $0xa58] sm:$0xff]
                %495 = vst [vmem:[%s151 + $0x558] sm:$0xff] %v494
                %v496 = vld [vmem:[%s150 + $0xa60] sm:$0xff]
                %497 = vst [vmem:[%s151 + $0x560] sm:$0xff] %v496
                %v498 = vld [vmem:[%s150 + $0xa68] sm:$0xff]
                %499 = vst [vmem:[%s151 + $0x568] sm:$0xff] %v498
                %v500 = vld [vmem:[%s150 + $0xa70] sm:$0xff]
                %501 = vst [vmem:[%s151 + $0x570] sm:$0xff] %v500
                %v502 = vld [vmem:[%s150 + $0xa78] sm:$0xff]
                %503 = vst [vmem:[%s151 + $0x578] sm:$0xff] %v502
                %v504 = vld [vmem:[%s150 + $0xa80] sm:$0xff]
                %505 = vst [vmem:[%s151 + $0x580] sm:$0xff] %v504
                %v506 = vld [vmem:[%s150 + $0xa88] sm:$0xff]
                %507 = vst [vmem:[%s151 + $0x588] sm:$0xff] %v506
                %v508 = vld [vmem:[%s150 + $0xa90] sm:$0xff]
                %509 = vst [vmem:[%s151 + $0x590] sm:$0xff] %v508
                %v510 = vld [vmem:[%s150 + $0xa98] sm:$0xff]
                %511 = vst [vmem:[%s151 + $0x598] sm:$0xff] %v510
                %v512 = vld [vmem:[%s150 + $0xaa0] sm:$0xff]
                %513 = vst [vmem:[%s151 + $0x5a0] sm:$0xff] %v512
                %v514 = vld [vmem:[%s150 + $0xaa8] sm:$0xff]
                %515 = vst [vmem:[%s151 + $0x5a8] sm:$0xff] %v514
                %v516 = vld [vmem:[%s150 + $0xab0] sm:$0xff]
                %517 = vst [vmem:[%s151 + $0x5b0] sm:$0xff] %v516
                %v518 = vld [vmem:[%s150 + $0xab8] sm:$0xff]
                %519 = vst [vmem:[%s151 + $0x5b8] sm:$0xff] %v518
                %v520 = vld [vmem:[%s150 + $0xac0] sm:$0xff]
                %521 = vst [vmem:[%s151 + $0x5c0] sm:$0xff] %v520
                %v522 = vld [vmem:[%s150 + $0xac8] sm:$0xff]
                %523 = vst [vmem:[%s151 + $0x5c8] sm:$0xff] %v522
                %v524 = vld [vmem:[%s150 + $0xad0] sm:$0xff]
                %525 = vst [vmem:[%s151 + $0x5d0] sm:$0xff] %v524
                %v526 = vld [vmem:[%s150 + $0xad8] sm:$0xff]
                %527 = vst [vmem:[%s151 + $0x5d8] sm:$0xff] %v526
                %v528 = vld [vmem:[%s150 + $0xae0] sm:$0xff]
                %529 = vst [vmem:[%s151 + $0x5e0] sm:$0xff] %v528
                %v530 = vld [vmem:[%s150 + $0xae8] sm:$0xff]
                %531 = vst [vmem:[%s151 + $0x5e8] sm:$0xff] %v530
                %v532 = vld [vmem:[%s150 + $0xaf0] sm:$0xff]
                %533 = vst [vmem:[%s151 + $0x5f0] sm:$0xff] %v532
                %v534 = vld [vmem:[%s150 + $0xaf8] sm:$0xff]
                %535 = vst [vmem:[%s151 + $0x5f8] sm:$0xff] %v534
                %v536 = vld [vmem:[%s150 + $0xc00] sm:$0xff]
                %537 = vst [vmem:[%s151 + $0x600] sm:$0xff] %v536
                %v538 = vld [vmem:[%s150 + $0xc08] sm:$0xff]
                %539 = vst [vmem:[%s151 + $0x608] sm:$0xff] %v538
                %v540 = vld [vmem:[%s150 + $0xc10] sm:$0xff]
                %541 = vst [vmem:[%s151 + $0x610] sm:$0xff] %v540
                %v542 = vld [vmem:[%s150 + $0xc18] sm:$0xff]
                %543 = vst [vmem:[%s151 + $0x618] sm:$0xff] %v542
                %v544 = vld [vmem:[%s150 + $0xc20] sm:$0xff]
                %545 = vst [vmem:[%s151 + $0x620] sm:$0xff] %v544
                %v546 = vld [vmem:[%s150 + $0xc28] sm:$0xff]
                %547 = vst [vmem:[%s151 + $0x628] sm:$0xff] %v546
                %v548 = vld [vmem:[%s150 + $0xc30] sm:$0xff]
                %549 = vst [vmem:[%s151 + $0x630] sm:$0xff] %v548
                %v550 = vld [vmem:[%s150 + $0xc38] sm:$0xff]
                %551 = vst [vmem:[%s151 + $0x638] sm:$0xff] %v550
                %v552 = vld [vmem:[%s150 + $0xc40] sm:$0xff]
                %553 = vst [vmem:[%s151 + $0x640] sm:$0xff] %v552
                %v554 = vld [vmem:[%s150 + $0xc48] sm:$0xff]
                %555 = vst [vmem:[%s151 + $0x648] sm:$0xff] %v554
                %v556 = vld [vmem:[%s150 + $0xc50] sm:$0xff]
                %557 = vst [vmem:[%s151 + $0x650] sm:$0xff] %v556
                %v558 = vld [vmem:[%s150 + $0xc58] sm:$0xff]
                %559 = vst [vmem:[%s151 + $0x658] sm:$0xff] %v558
                %v560 = vld [vmem:[%s150 + $0xc60] sm:$0xff]
                %561 = vst [vmem:[%s151 + $0x660] sm:$0xff] %v560
                %v562 = vld [vmem:[%s150 + $0xc68] sm:$0xff]
                %563 = vst [vmem:[%s151 + $0x668] sm:$0xff] %v562
                %v564 = vld [vmem:[%s150 + $0xc70] sm:$0xff]
                %565 = vst [vmem:[%s151 + $0x670] sm:$0xff] %v564
                %v566 = vld [vmem:[%s150 + $0xc78] sm:$0xff]
                %567 = vst [vmem:[%s151 + $0x678] sm:$0xff] %v566
                %v568 = vld [vmem:[%s150 + $0xc80] sm:$0xff]
                %569 = vst [vmem:[%s151 + $0x680] sm:$0xff] %v568
                %v570 = vld [vmem:[%s150 + $0xc88] sm:$0xff]
                %571 = vst [vmem:[%s151 + $0x688] sm:$0xff] %v570
                %v572 = vld [vmem:[%s150 + $0xc90] sm:$0xff]
                %573 = vst [vmem:[%s151 + $0x690] sm:$0xff] %v572
                %v574 = vld [vmem:[%s150 + $0xc98] sm:$0xff]
                %575 = vst [vmem:[%s151 + $0x698] sm:$0xff] %v574
                %v576 = vld [vmem:[%s150 + $0xca0] sm:$0xff]
                %577 = vst [vmem:[%s151 + $0x6a0] sm:$0xff] %v576
                %v578 = vld [vmem:[%s150 + $0xca8] sm:$0xff]
                %579 = vst [vmem:[%s151 + $0x6a8] sm:$0xff] %v578
                %v580 = vld [vmem:[%s150 + $0xcb0] sm:$0xff]
                %581 = vst [vmem:[%s151 + $0x6b0] sm:$0xff] %v580
                %v582 = vld [vmem:[%s150 + $0xcb8] sm:$0xff]
                %583 = vst [vmem:[%s151 + $0x6b8] sm:$0xff] %v582
                %v584 = vld [vmem:[%s150 + $0xcc0] sm:$0xff]
                %585 = vst [vmem:[%s151 + $0x6c0] sm:$0xff] %v584
                %v586 = vld [vmem:[%s150 + $0xcc8] sm:$0xff]
                %587 = vst [vmem:[%s151 + $0x6c8] sm:$0xff] %v586
                %v588 = vld [vmem:[%s150 + $0xcd0] sm:$0xff]
                %589 = vst [vmem:[%s151 + $0x6d0] sm:$0xff] %v588
                %v590 = vld [vmem:[%s150 + $0xcd8] sm:$0xff]
                %591 = vst [vmem:[%s151 + $0x6d8] sm:$0xff] %v590
                %v592 = vld [vmem:[%s150 + $0xce0] sm:$0xff]
                %593 = vst [vmem:[%s151 + $0x6e0] sm:$0xff] %v592
                %v594 = vld [vmem:[%s150 + $0xce8] sm:$0xff]
                %595 = vst [vmem:[%s151 + $0x6e8] sm:$0xff] %v594
                %v596 = vld [vmem:[%s150 + $0xcf0] sm:$0xff]
                %597 = vst [vmem:[%s151 + $0x6f0] sm:$0xff] %v596
                %v598 = vld [vmem:[%s150 + $0xcf8] sm:$0xff]
                %599 = vst [vmem:[%s151 + $0x6f8] sm:$0xff] %v598
                %v600 = vld [vmem:[%s150 + $0xe00] sm:$0xff]
                %601 = vst [vmem:[%s151 + $0x700] sm:$0xff] %v600
                %v602 = vld [vmem:[%s150 + $0xe08] sm:$0xff]
                %603 = vst [vmem:[%s151 + $0x708] sm:$0xff] %v602
                %v604 = vld [vmem:[%s150 + $0xe10] sm:$0xff]
                %605 = vst [vmem:[%s151 + $0x710] sm:$0xff] %v604
                %v606 = vld [vmem:[%s150 + $0xe18] sm:$0xff]
                %607 = vst [vmem:[%s151 + $0x718] sm:$0xff] %v606
                %v608 = vld [vmem:[%s150 + $0xe20] sm:$0xff]
                %609 = vst [vmem:[%s151 + $0x720] sm:$0xff] %v608
                %v610 = vld [vmem:[%s150 + $0xe28] sm:$0xff]
                %611 = vst [vmem:[%s151 + $0x728] sm:$0xff] %v610
                %v612 = vld [vmem:[%s150 + $0xe30] sm:$0xff]
                %613 = vst [vmem:[%s151 + $0x730] sm:$0xff] %v612
                %v614 = vld [vmem:[%s150 + $0xe38] sm:$0xff]
                %615 = vst [vmem:[%s151 + $0x738] sm:$0xff] %v614
                %v616 = vld [vmem:[%s150 + $0xe40] sm:$0xff]
                %617 = vst [vmem:[%s151 + $0x740] sm:$0xff] %v616
                %v618 = vld [vmem:[%s150 + $0xe48] sm:$0xff]
                %619 = vst [vmem:[%s151 + $0x748] sm:$0xff] %v618
                %v620 = vld [vmem:[%s150 + $0xe50] sm:$0xff]
                %621 = vst [vmem:[%s151 + $0x750] sm:$0xff] %v620
                %v622 = vld [vmem:[%s150 + $0xe58] sm:$0xff]
                %623 = vst [vmem:[%s151 + $0x758] sm:$0xff] %v622
                %v624 = vld [vmem:[%s150 + $0xe60] sm:$0xff]
                %625 = vst [vmem:[%s151 + $0x760] sm:$0xff] %v624
                %v626 = vld [vmem:[%s150 + $0xe68] sm:$0xff]
                %627 = vst [vmem:[%s151 + $0x768] sm:$0xff] %v626
                %v628 = vld [vmem:[%s150 + $0xe70] sm:$0xff]
                %629 = vst [vmem:[%s151 + $0x770] sm:$0xff] %v628
                %v630 = vld [vmem:[%s150 + $0xe78] sm:$0xff]
                %631 = vst [vmem:[%s151 + $0x778] sm:$0xff] %v630
                %v632 = vld [vmem:[%s150 + $0xe80] sm:$0xff]
                %633 = vst [vmem:[%s151 + $0x780] sm:$0xff] %v632
                %v634 = vld [vmem:[%s150 + $0xe88] sm:$0xff]
                %635 = vst [vmem:[%s151 + $0x788] sm:$0xff] %v634
                %v636 = vld [vmem:[%s150 + $0xe90] sm:$0xff]
                %637 = vst [vmem:[%s151 + $0x790] sm:$0xff] %v636
                %v638 = vld [vmem:[%s150 + $0xe98] sm:$0xff]
                %639 = vst [vmem:[%s151 + $0x798] sm:$0xff] %v638
                %v640 = vld [vmem:[%s150 + $0xea0] sm:$0xff]
                %641 = vst [vmem:[%s151 + $0x7a0] sm:$0xff] %v640
                %v642 = vld [vmem:[%s150 + $0xea8] sm:$0xff]
                %643 = vst [vmem:[%s151 + $0x7a8] sm:$0xff] %v642
                %v644 = vld [vmem:[%s150 + $0xeb0] sm:$0xff]
                %645 = vst [vmem:[%s151 + $0x7b0] sm:$0xff] %v644
                %v646 = vld [vmem:[%s150 + $0xeb8] sm:$0xff]
                %647 = vst [vmem:[%s151 + $0x7b8] sm:$0xff] %v646
                %v648 = vld [vmem:[%s150 + $0xec0] sm:$0xff]
                %649 = vst [vmem:[%s151 + $0x7c0] sm:$0xff] %v648
                %v650 = vld [vmem:[%s150 + $0xec8] sm:$0xff]
                %651 = vst [vmem:[%s151 + $0x7c8] sm:$0xff] %v650
                %v652 = vld [vmem:[%s150 + $0xed0] sm:$0xff]
                %653 = vst [vmem:[%s151 + $0x7d0] sm:$0xff] %v652
                %v654 = vld [vmem:[%s150 + $0xed8] sm:$0xff]
                %655 = vst [vmem:[%s151 + $0x7d8] sm:$0xff] %v654
                %v656 = vld [vmem:[%s150 + $0xee0] sm:$0xff]
                %657 = vst [vmem:[%s151 + $0x7e0] sm:$0xff] %v656
                %v658 = vld [vmem:[%s150 + $0xee8] sm:$0xff]
                %659 = vst [vmem:[%s151 + $0x7e8] sm:$0xff] %v658
                %v660 = vld [vmem:[%s150 + $0xef0] sm:$0xff]
                %661 = vst [vmem:[%s151 + $0x7f0] sm:$0xff] %v660
                %v662 = vld [vmem:[%s150 + $0xef8] sm:$0xff]
                %663 = vst [vmem:[%s151 + $0x7f8] sm:$0xff] %v662
                %v664 = vld [vmem:[%s150 + $0x1000] sm:$0xff]
                %665 = vst [vmem:[%s151 + $0x800] sm:$0xff] %v664
                %v666 = vld [vmem:[%s150 + $0x1008] sm:$0xff]
                %667 = vst [vmem:[%s151 + $0x808] sm:$0xff] %v666
                %v668 = vld [vmem:[%s150 + $0x1010] sm:$0xff]
                %669 = vst [vmem:[%s151 + $0x810] sm:$0xff] %v668
                %v670 = vld [vmem:[%s150 + $0x1018] sm:$0xff]
                %671 = vst [vmem:[%s151 + $0x818] sm:$0xff] %v670
                %v672 = vld [vmem:[%s150 + $0x1020] sm:$0xff]
                %673 = vst [vmem:[%s151 + $0x820] sm:$0xff] %v672
                %v674 = vld [vmem:[%s150 + $0x1028] sm:$0xff]
                %675 = vst [vmem:[%s151 + $0x828] sm:$0xff] %v674
                %v676 = vld [vmem:[%s150 + $0x1030] sm:$0xff]
                %677 = vst [vmem:[%s151 + $0x830] sm:$0xff] %v676
                %v678 = vld [vmem:[%s150 + $0x1038] sm:$0xff]
                %679 = vst [vmem:[%s151 + $0x838] sm:$0xff] %v678
                %v680 = vld [vmem:[%s150 + $0x1040] sm:$0xff]
                %681 = vst [vmem:[%s151 + $0x840] sm:$0xff] %v680
                %v682 = vld [vmem:[%s150 + $0x1048] sm:$0xff]
                %683 = vst [vmem:[%s151 + $0x848] sm:$0xff] %v682
                %v684 = vld [vmem:[%s150 + $0x1050] sm:$0xff]
                %685 = vst [vmem:[%s151 + $0x850] sm:$0xff] %v684
                %v686 = vld [vmem:[%s150 + $0x1058] sm:$0xff]
                %687 = vst [vmem:[%s151 + $0x858] sm:$0xff] %v686
                %v688 = vld [vmem:[%s150 + $0x1060] sm:$0xff]
                %689 = vst [vmem:[%s151 + $0x860] sm:$0xff] %v688
                %v690 = vld [vmem:[%s150 + $0x1068] sm:$0xff]
                %691 = vst [vmem:[%s151 + $0x868] sm:$0xff] %v690
                %v692 = vld [vmem:[%s150 + $0x1070] sm:$0xff]
                %693 = vst [vmem:[%s151 + $0x870] sm:$0xff] %v692
                %v694 = vld [vmem:[%s150 + $0x1078] sm:$0xff]
                %695 = vst [vmem:[%s151 + $0x878] sm:$0xff] %v694
                %v696 = vld [vmem:[%s150 + $0x1080] sm:$0xff]
                %697 = vst [vmem:[%s151 + $0x880] sm:$0xff] %v696
                %v698 = vld [vmem:[%s150 + $0x1088] sm:$0xff]
                %699 = vst [vmem:[%s151 + $0x888] sm:$0xff] %v698
                %v700 = vld [vmem:[%s150 + $0x1090] sm:$0xff]
                %701 = vst [vmem:[%s151 + $0x890] sm:$0xff] %v700
                %v702 = vld [vmem:[%s150 + $0x1098] sm:$0xff]
                %703 = vst [vmem:[%s151 + $0x898] sm:$0xff] %v702
                %v704 = vld [vmem:[%s150 + $0x10a0] sm:$0xff]
                %705 = vst [vmem:[%s151 + $0x8a0] sm:$0xff] %v704
                %v706 = vld [vmem:[%s150 + $0x10a8] sm:$0xff]
                %707 = vst [vmem:[%s151 + $0x8a8] sm:$0xff] %v706
                %v708 = vld [vmem:[%s150 + $0x10b0] sm:$0xff]
                %709 = vst [vmem:[%s151 + $0x8b0] sm:$0xff] %v708
                %v710 = vld [vmem:[%s150 + $0x10b8] sm:$0xff]
                %711 = vst [vmem:[%s151 + $0x8b8] sm:$0xff] %v710
                %v712 = vld [vmem:[%s150 + $0x10c0] sm:$0xff]
                %713 = vst [vmem:[%s151 + $0x8c0] sm:$0xff] %v712
                %v714 = vld [vmem:[%s150 + $0x10c8] sm:$0xff]
                %715 = vst [vmem:[%s151 + $0x8c8] sm:$0xff] %v714
                %v716 = vld [vmem:[%s150 + $0x10d0] sm:$0xff]
                %717 = vst [vmem:[%s151 + $0x8d0] sm:$0xff] %v716
                %v718 = vld [vmem:[%s150 + $0x10d8] sm:$0xff]
                %719 = vst [vmem:[%s151 + $0x8d8] sm:$0xff] %v718
                %v720 = vld [vmem:[%s150 + $0x10e0] sm:$0xff]
                %721 = vst [vmem:[%s151 + $0x8e0] sm:$0xff] %v720
                %v722 = vld [vmem:[%s150 + $0x10e8] sm:$0xff]
                %723 = vst [vmem:[%s151 + $0x8e8] sm:$0xff] %v722
                %v724 = vld [vmem:[%s150 + $0x10f0] sm:$0xff]
                %725 = vst [vmem:[%s151 + $0x8f0] sm:$0xff] %v724
                %v726 = vld [vmem:[%s150 + $0x10f8] sm:$0xff]
                %727 = vst [vmem:[%s151 + $0x8f8] sm:$0xff] %v726
                %v728 = vld [vmem:[%s150 + $0x1200] sm:$0xff]
                %729 = vst [vmem:[%s151 + $0x900] sm:$0xff] %v728
                %v730 = vld [vmem:[%s150 + $0x1208] sm:$0xff]
                %731 = vst [vmem:[%s151 + $0x908] sm:$0xff] %v730
                %v732 = vld [vmem:[%s150 + $0x1210] sm:$0xff]
                %733 = vst [vmem:[%s151 + $0x910] sm:$0xff] %v732
                %v734 = vld [vmem:[%s150 + $0x1218] sm:$0xff]
                %735 = vst [vmem:[%s151 + $0x918] sm:$0xff] %v734
                %v736 = vld [vmem:[%s150 + $0x1220] sm:$0xff]
                %737 = vst [vmem:[%s151 + $0x920] sm:$0xff] %v736
                %v738 = vld [vmem:[%s150 + $0x1228] sm:$0xff]
                %739 = vst [vmem:[%s151 + $0x928] sm:$0xff] %v738
                %v740 = vld [vmem:[%s150 + $0x1230] sm:$0xff]
                %741 = vst [vmem:[%s151 + $0x930] sm:$0xff] %v740
                %v742 = vld [vmem:[%s150 + $0x1238] sm:$0xff]
                %743 = vst [vmem:[%s151 + $0x938] sm:$0xff] %v742
                %v744 = vld [vmem:[%s150 + $0x1240] sm:$0xff]
                %745 = vst [vmem:[%s151 + $0x940] sm:$0xff] %v744
                %v746 = vld [vmem:[%s150 + $0x1248] sm:$0xff]
                %747 = vst [vmem:[%s151 + $0x948] sm:$0xff] %v746
                %v748 = vld [vmem:[%s150 + $0x1250] sm:$0xff]
                %749 = vst [vmem:[%s151 + $0x950] sm:$0xff] %v748
                %v750 = vld [vmem:[%s150 + $0x1258] sm:$0xff]
                %751 = vst [vmem:[%s151 + $0x958] sm:$0xff] %v750
                %v752 = vld [vmem:[%s150 + $0x1260] sm:$0xff]
                %753 = vst [vmem:[%s151 + $0x960] sm:$0xff] %v752
                %v754 = vld [vmem:[%s150 + $0x1268] sm:$0xff]
                %755 = vst [vmem:[%s151 + $0x968] sm:$0xff] %v754
                %v756 = vld [vmem:[%s150 + $0x1270] sm:$0xff]
                %757 = vst [vmem:[%s151 + $0x970] sm:$0xff] %v756
                %v758 = vld [vmem:[%s150 + $0x1278] sm:$0xff]
                %759 = vst [vmem:[%s151 + $0x978] sm:$0xff] %v758
                %v760 = vld [vmem:[%s150 + $0x1280] sm:$0xff]
                %761 = vst [vmem:[%s151 + $0x980] sm:$0xff] %v760
                %v762 = vld [vmem:[%s150 + $0x1288] sm:$0xff]
                %763 = vst [vmem:[%s151 + $0x988] sm:$0xff] %v762
                %v764 = vld [vmem:[%s150 + $0x1290] sm:$0xff]
                %765 = vst [vmem:[%s151 + $0x990] sm:$0xff] %v764
                %v766 = vld [vmem:[%s150 + $0x1298] sm:$0xff]
                %767 = vst [vmem:[%s151 + $0x998] sm:$0xff] %v766
                %v768 = vld [vmem:[%s150 + $0x12a0] sm:$0xff]
                %769 = vst [vmem:[%s151 + $0x9a0] sm:$0xff] %v768
                %v770 = vld [vmem:[%s150 + $0x12a8] sm:$0xff]
                %771 = vst [vmem:[%s151 + $0x9a8] sm:$0xff] %v770
                %v772 = vld [vmem:[%s150 + $0x12b0] sm:$0xff]
                %773 = vst [vmem:[%s151 + $0x9b0] sm:$0xff] %v772
                %v774 = vld [vmem:[%s150 + $0x12b8] sm:$0xff]
                %775 = vst [vmem:[%s151 + $0x9b8] sm:$0xff] %v774
                %v776 = vld [vmem:[%s150 + $0x12c0] sm:$0xff]
                %777 = vst [vmem:[%s151 + $0x9c0] sm:$0xff] %v776
                %v778 = vld [vmem:[%s150 + $0x12c8] sm:$0xff]
                %779 = vst [vmem:[%s151 + $0x9c8] sm:$0xff] %v778
                %v780 = vld [vmem:[%s150 + $0x12d0] sm:$0xff]
                %781 = vst [vmem:[%s151 + $0x9d0] sm:$0xff] %v780
                %v782 = vld [vmem:[%s150 + $0x12d8] sm:$0xff]
                %783 = vst [vmem:[%s151 + $0x9d8] sm:$0xff] %v782
                %v784 = vld [vmem:[%s150 + $0x12e0] sm:$0xff]
                %785 = vst [vmem:[%s151 + $0x9e0] sm:$0xff] %v784
                %v786 = vld [vmem:[%s150 + $0x12e8] sm:$0xff]
                %787 = vst [vmem:[%s151 + $0x9e8] sm:$0xff] %v786
                %v788 = vld [vmem:[%s150 + $0x12f0] sm:$0xff]
                %789 = vst [vmem:[%s151 + $0x9f0] sm:$0xff] %v788
                %v790 = vld [vmem:[%s150 + $0x12f8] sm:$0xff]
                %791 = vst [vmem:[%s151 + $0x9f8] sm:$0xff] %v790
                %v792 = vld [vmem:[%s150 + $0x1400] sm:$0xff]
                %793 = vst [vmem:[%s151 + $0xa00] sm:$0xff] %v792
                %v794 = vld [vmem:[%s150 + $0x1408] sm:$0xff]
                %795 = vst [vmem:[%s151 + $0xa08] sm:$0xff] %v794
                %v796 = vld [vmem:[%s150 + $0x1410] sm:$0xff]
                %797 = vst [vmem:[%s151 + $0xa10] sm:$0xff] %v796
                %v798 = vld [vmem:[%s150 + $0x1418] sm:$0xff]
                %799 = vst [vmem:[%s151 + $0xa18] sm:$0xff] %v798
                %v800 = vld [vmem:[%s150 + $0x1420] sm:$0xff]
                %801 = vst [vmem:[%s151 + $0xa20] sm:$0xff] %v800
                %v802 = vld [vmem:[%s150 + $0x1428] sm:$0xff]
                %803 = vst [vmem:[%s151 + $0xa28] sm:$0xff] %v802
                %v804 = vld [vmem:[%s150 + $0x1430] sm:$0xff]
                %805 = vst [vmem:[%s151 + $0xa30] sm:$0xff] %v804
                %v806 = vld [vmem:[%s150 + $0x1438] sm:$0xff]
                %807 = vst [vmem:[%s151 + $0xa38] sm:$0xff] %v806
                %v808 = vld [vmem:[%s150 + $0x1440] sm:$0xff]
                %809 = vst [vmem:[%s151 + $0xa40] sm:$0xff] %v808
                %v810 = vld [vmem:[%s150 + $0x1448] sm:$0xff]
                %811 = vst [vmem:[%s151 + $0xa48] sm:$0xff] %v810
                %v812 = vld [vmem:[%s150 + $0x1450] sm:$0xff]
                %813 = vst [vmem:[%s151 + $0xa50] sm:$0xff] %v812
                %v814 = vld [vmem:[%s150 + $0x1458] sm:$0xff]
                %815 = vst [vmem:[%s151 + $0xa58] sm:$0xff] %v814
                %v816 = vld [vmem:[%s150 + $0x1460] sm:$0xff]
                %817 = vst [vmem:[%s151 + $0xa60] sm:$0xff] %v816
                %v818 = vld [vmem:[%s150 + $0x1468] sm:$0xff]
                %819 = vst [vmem:[%s151 + $0xa68] sm:$0xff] %v818
                %v820 = vld [vmem:[%s150 + $0x1470] sm:$0xff]
                %821 = vst [vmem:[%s151 + $0xa70] sm:$0xff] %v820
                %v822 = vld [vmem:[%s150 + $0x1478] sm:$0xff]
                %823 = vst [vmem:[%s151 + $0xa78] sm:$0xff] %v822
                %v824 = vld [vmem:[%s150 + $0x1480] sm:$0xff]
                %825 = vst [vmem:[%s151 + $0xa80] sm:$0xff] %v824
                %v826 = vld [vmem:[%s150 + $0x1488] sm:$0xff]
                %827 = vst [vmem:[%s151 + $0xa88] sm:$0xff] %v826
                %v828 = vld [vmem:[%s150 + $0x1490] sm:$0xff]
                %829 = vst [vmem:[%s151 + $0xa90] sm:$0xff] %v828
                %v830 = vld [vmem:[%s150 + $0x1498] sm:$0xff]
                %831 = vst [vmem:[%s151 + $0xa98] sm:$0xff] %v830
                %v832 = vld [vmem:[%s150 + $0x14a0] sm:$0xff]
                %833 = vst [vmem:[%s151 + $0xaa0] sm:$0xff] %v832
                %v834 = vld [vmem:[%s150 + $0x14a8] sm:$0xff]
                %835 = vst [vmem:[%s151 + $0xaa8] sm:$0xff] %v834
                %v836 = vld [vmem:[%s150 + $0x14b0] sm:$0xff]
                %837 = vst [vmem:[%s151 + $0xab0] sm:$0xff] %v836
                %v838 = vld [vmem:[%s150 + $0x14b8] sm:$0xff]
                %839 = vst [vmem:[%s151 + $0xab8] sm:$0xff] %v838
                %v840 = vld [vmem:[%s150 + $0x14c0] sm:$0xff]
                %841 = vst [vmem:[%s151 + $0xac0] sm:$0xff] %v840
                %v842 = vld [vmem:[%s150 + $0x14c8] sm:$0xff]
                %843 = vst [vmem:[%s151 + $0xac8] sm:$0xff] %v842
                %v844 = vld [vmem:[%s150 + $0x14d0] sm:$0xff]
                %845 = vst [vmem:[%s151 + $0xad0] sm:$0xff] %v844
                %v846 = vld [vmem:[%s150 + $0x14d8] sm:$0xff]
                %847 = vst [vmem:[%s151 + $0xad8] sm:$0xff] %v846
                %v848 = vld [vmem:[%s150 + $0x14e0] sm:$0xff]
                %849 = vst [vmem:[%s151 + $0xae0] sm:$0xff] %v848
                %v850 = vld [vmem:[%s150 + $0x14e8] sm:$0xff]
                %851 = vst [vmem:[%s151 + $0xae8] sm:$0xff] %v850
                %v852 = vld [vmem:[%s150 + $0x14f0] sm:$0xff]
                %853 = vst [vmem:[%s151 + $0xaf0] sm:$0xff] %v852
                %v854 = vld [vmem:[%s150 + $0x14f8] sm:$0xff]
                %855 = vst [vmem:[%s151 + $0xaf8] sm:$0xff] %v854
                %v856 = vld [vmem:[%s150 + $0x1600] sm:$0xff]
                %857 = vst [vmem:[%s151 + $0xb00] sm:$0xff] %v856
                %v858 = vld [vmem:[%s150 + $0x1608] sm:$0xff]
                %859 = vst [vmem:[%s151 + $0xb08] sm:$0xff] %v858
                %v860 = vld [vmem:[%s150 + $0x1610] sm:$0xff]
                %861 = vst [vmem:[%s151 + $0xb10] sm:$0xff] %v860
                %v862 = vld [vmem:[%s150 + $0x1618] sm:$0xff]
                %863 = vst [vmem:[%s151 + $0xb18] sm:$0xff] %v862
                %v864 = vld [vmem:[%s150 + $0x1620] sm:$0xff]
                %865 = vst [vmem:[%s151 + $0xb20] sm:$0xff] %v864
                %v866 = vld [vmem:[%s150 + $0x1628] sm:$0xff]
                %867 = vst [vmem:[%s151 + $0xb28] sm:$0xff] %v866
                %v868 = vld [vmem:[%s150 + $0x1630] sm:$0xff]
                %869 = vst [vmem:[%s151 + $0xb30] sm:$0xff] %v868
                %v870 = vld [vmem:[%s150 + $0x1638] sm:$0xff]
                %871 = vst [vmem:[%s151 + $0xb38] sm:$0xff] %v870
                %v872 = vld [vmem:[%s150 + $0x1640] sm:$0xff]
                %873 = vst [vmem:[%s151 + $0xb40] sm:$0xff] %v872
                %v874 = vld [vmem:[%s150 + $0x1648] sm:$0xff]
                %875 = vst [vmem:[%s151 + $0xb48] sm:$0xff] %v874
                %v876 = vld [vmem:[%s150 + $0x1650] sm:$0xff]
                %877 = vst [vmem:[%s151 + $0xb50] sm:$0xff] %v876
                %v878 = vld [vmem:[%s150 + $0x1658] sm:$0xff]
                %879 = vst [vmem:[%s151 + $0xb58] sm:$0xff] %v878
                %v880 = vld [vmem:[%s150 + $0x1660] sm:$0xff]
                %881 = vst [vmem:[%s151 + $0xb60] sm:$0xff] %v880
                %v882 = vld [vmem:[%s150 + $0x1668] sm:$0xff]
                %883 = vst [vmem:[%s151 + $0xb68] sm:$0xff] %v882
                %v884 = vld [vmem:[%s150 + $0x1670] sm:$0xff]
                %885 = vst [vmem:[%s151 + $0xb70] sm:$0xff] %v884
                %v886 = vld [vmem:[%s150 + $0x1678] sm:$0xff]
                %887 = vst [vmem:[%s151 + $0xb78] sm:$0xff] %v886
                %v888 = vld [vmem:[%s150 + $0x1680] sm:$0xff]
                %889 = vst [vmem:[%s151 + $0xb80] sm:$0xff] %v888
                %v890 = vld [vmem:[%s150 + $0x1688] sm:$0xff]
                %891 = vst [vmem:[%s151 + $0xb88] sm:$0xff] %v890
                %v892 = vld [vmem:[%s150 + $0x1690] sm:$0xff]
                %893 = vst [vmem:[%s151 + $0xb90] sm:$0xff] %v892
                %v894 = vld [vmem:[%s150 + $0x1698] sm:$0xff]
                %895 = vst [vmem:[%s151 + $0xb98] sm:$0xff] %v894
                %v896 = vld [vmem:[%s150 + $0x16a0] sm:$0xff]
                %897 = vst [vmem:[%s151 + $0xba0] sm:$0xff] %v896
                %v898 = vld [vmem:[%s150 + $0x16a8] sm:$0xff]
                %899 = vst [vmem:[%s151 + $0xba8] sm:$0xff] %v898
                %v900 = vld [vmem:[%s150 + $0x16b0] sm:$0xff]
                %901 = vst [vmem:[%s151 + $0xbb0] sm:$0xff] %v900
                %v902 = vld [vmem:[%s150 + $0x16b8] sm:$0xff]
                %903 = vst [vmem:[%s151 + $0xbb8] sm:$0xff] %v902
                %v904 = vld [vmem:[%s150 + $0x16c0] sm:$0xff]
                %905 = vst [vmem:[%s151 + $0xbc0] sm:$0xff] %v904
                %v906 = vld [vmem:[%s150 + $0x16c8] sm:$0xff]
                %907 = vst [vmem:[%s151 + $0xbc8] sm:$0xff] %v906
                %v908 = vld [vmem:[%s150 + $0x16d0] sm:$0xff]
                %909 = vst [vmem:[%s151 + $0xbd0] sm:$0xff] %v908
                %v910 = vld [vmem:[%s150 + $0x16d8] sm:$0xff]
                %911 = vst [vmem:[%s151 + $0xbd8] sm:$0xff] %v910
                %v912 = vld [vmem:[%s150 + $0x16e0] sm:$0xff]
                %913 = vst [vmem:[%s151 + $0xbe0] sm:$0xff] %v912
                %v914 = vld [vmem:[%s150 + $0x16e8] sm:$0xff]
                %915 = vst [vmem:[%s151 + $0xbe8] sm:$0xff] %v914
                %v916 = vld [vmem:[%s150 + $0x16f0] sm:$0xff]
                %917 = vst [vmem:[%s151 + $0xbf0] sm:$0xff] %v916
                %v918 = vld [vmem:[%s150 + $0x16f8] sm:$0xff]
                %919 = vst [vmem:[%s151 + $0xbf8] sm:$0xff] %v918
                %v920 = vld [vmem:[%s150 + $0x1800] sm:$0xff]
                %921 = vst [vmem:[%s151 + $0xc00] sm:$0xff] %v920
                %v922 = vld [vmem:[%s150 + $0x1808] sm:$0xff]
                %923 = vst [vmem:[%s151 + $0xc08] sm:$0xff] %v922
                %v924 = vld [vmem:[%s150 + $0x1810] sm:$0xff]
                %925 = vst [vmem:[%s151 + $0xc10] sm:$0xff] %v924
                %v926 = vld [vmem:[%s150 + $0x1818] sm:$0xff]
                %927 = vst [vmem:[%s151 + $0xc18] sm:$0xff] %v926
                %v928 = vld [vmem:[%s150 + $0x1820] sm:$0xff]
                %929 = vst [vmem:[%s151 + $0xc20] sm:$0xff] %v928
                %v930 = vld [vmem:[%s150 + $0x1828] sm:$0xff]
                %931 = vst [vmem:[%s151 + $0xc28] sm:$0xff] %v930
                %v932 = vld [vmem:[%s150 + $0x1830] sm:$0xff]
                %933 = vst [vmem:[%s151 + $0xc30] sm:$0xff] %v932
                %v934 = vld [vmem:[%s150 + $0x1838] sm:$0xff]
                %935 = vst [vmem:[%s151 + $0xc38] sm:$0xff] %v934
                %v936 = vld [vmem:[%s150 + $0x1840] sm:$0xff]
                %937 = vst [vmem:[%s151 + $0xc40] sm:$0xff] %v936
                %v938 = vld [vmem:[%s150 + $0x1848] sm:$0xff]
                %939 = vst [vmem:[%s151 + $0xc48] sm:$0xff] %v938
                %v940 = vld [vmem:[%s150 + $0x1850] sm:$0xff]
                %941 = vst [vmem:[%s151 + $0xc50] sm:$0xff] %v940
                %v942 = vld [vmem:[%s150 + $0x1858] sm:$0xff]
                %943 = vst [vmem:[%s151 + $0xc58] sm:$0xff] %v942
                %v944 = vld [vmem:[%s150 + $0x1860] sm:$0xff]
                %945 = vst [vmem:[%s151 + $0xc60] sm:$0xff] %v944
                %v946 = vld [vmem:[%s150 + $0x1868] sm:$0xff]
                %947 = vst [vmem:[%s151 + $0xc68] sm:$0xff] %v946
                %v948 = vld [vmem:[%s150 + $0x1870] sm:$0xff]
                %949 = vst [vmem:[%s151 + $0xc70] sm:$0xff] %v948
                %v950 = vld [vmem:[%s150 + $0x1878] sm:$0xff]
                %951 = vst [vmem:[%s151 + $0xc78] sm:$0xff] %v950
                %v952 = vld [vmem:[%s150 + $0x1880] sm:$0xff]
                %953 = vst [vmem:[%s151 + $0xc80] sm:$0xff] %v952
                %v954 = vld [vmem:[%s150 + $0x1888] sm:$0xff]
                %955 = vst [vmem:[%s151 + $0xc88] sm:$0xff] %v954
                %v956 = vld [vmem:[%s150 + $0x1890] sm:$0xff]
                %957 = vst [vmem:[%s151 + $0xc90] sm:$0xff] %v956
                %v958 = vld [vmem:[%s150 + $0x1898] sm:$0xff]
                %959 = vst [vmem:[%s151 + $0xc98] sm:$0xff] %v958
                %v960 = vld [vmem:[%s150 + $0x18a0] sm:$0xff]
                %961 = vst [vmem:[%s151 + $0xca0] sm:$0xff] %v960
                %v962 = vld [vmem:[%s150 + $0x18a8] sm:$0xff]
                %963 = vst [vmem:[%s151 + $0xca8] sm:$0xff] %v962
                %v964 = vld [vmem:[%s150 + $0x18b0] sm:$0xff]
                %965 = vst [vmem:[%s151 + $0xcb0] sm:$0xff] %v964
                %v966 = vld [vmem:[%s150 + $0x18b8] sm:$0xff]
                %967 = vst [vmem:[%s151 + $0xcb8] sm:$0xff] %v966
                %v968 = vld [vmem:[%s150 + $0x18c0] sm:$0xff]
                %969 = vst [vmem:[%s151 + $0xcc0] sm:$0xff] %v968
                %v970 = vld [vmem:[%s150 + $0x18c8] sm:$0xff]
                %971 = vst [vmem:[%s151 + $0xcc8] sm:$0xff] %v970
                %v972 = vld [vmem:[%s150 + $0x18d0] sm:$0xff]
                %973 = vst [vmem:[%s151 + $0xcd0] sm:$0xff] %v972
                %v974 = vld [vmem:[%s150 + $0x18d8] sm:$0xff]
                %975 = vst [vmem:[%s151 + $0xcd8] sm:$0xff] %v974
                %v976 = vld [vmem:[%s150 + $0x18e0] sm:$0xff]
                %977 = vst [vmem:[%s151 + $0xce0] sm:$0xff] %v976
                %v978 = vld [vmem:[%s150 + $0x18e8] sm:$0xff]
                %979 = vst [vmem:[%s151 + $0xce8] sm:$0xff] %v978
                %v980 = vld [vmem:[%s150 + $0x18f0] sm:$0xff]
                %981 = vst [vmem:[%s151 + $0xcf0] sm:$0xff] %v980
                %v982 = vld [vmem:[%s150 + $0x18f8] sm:$0xff]
                %983 = vst [vmem:[%s151 + $0xcf8] sm:$0xff] %v982
                %v984 = vld [vmem:[%s150 + $0x1a00] sm:$0xff]
                %985 = vst [vmem:[%s151 + $0xd00] sm:$0xff] %v984
                %v986 = vld [vmem:[%s150 + $0x1a08] sm:$0xff]
                %987 = vst [vmem:[%s151 + $0xd08] sm:$0xff] %v986
                %v988 = vld [vmem:[%s150 + $0x1a10] sm:$0xff]
                %989 = vst [vmem:[%s151 + $0xd10] sm:$0xff] %v988
                %v990 = vld [vmem:[%s150 + $0x1a18] sm:$0xff]
                %991 = vst [vmem:[%s151 + $0xd18] sm:$0xff] %v990
                %v992 = vld [vmem:[%s150 + $0x1a20] sm:$0xff]
                %993 = vst [vmem:[%s151 + $0xd20] sm:$0xff] %v992
                %v994 = vld [vmem:[%s150 + $0x1a28] sm:$0xff]
                %995 = vst [vmem:[%s151 + $0xd28] sm:$0xff] %v994
                %v996 = vld [vmem:[%s150 + $0x1a30] sm:$0xff]
                %997 = vst [vmem:[%s151 + $0xd30] sm:$0xff] %v996
                %v998 = vld [vmem:[%s150 + $0x1a38] sm:$0xff]
                %999 = vst [vmem:[%s151 + $0xd38] sm:$0xff] %v998
                %v1000 = vld [vmem:[%s150 + $0x1a40] sm:$0xff]
                %1001 = vst [vmem:[%s151 + $0xd40] sm:$0xff] %v1000
                %v1002 = vld [vmem:[%s150 + $0x1a48] sm:$0xff]
                %1003 = vst [vmem:[%s151 + $0xd48] sm:$0xff] %v1002
                %v1004 = vld [vmem:[%s150 + $0x1a50] sm:$0xff]
                %1005 = vst [vmem:[%s151 + $0xd50] sm:$0xff] %v1004
                %v1006 = vld [vmem:[%s150 + $0x1a58] sm:$0xff]
                %1007 = vst [vmem:[%s151 + $0xd58] sm:$0xff] %v1006
                %v1008 = vld [vmem:[%s150 + $0x1a60] sm:$0xff]
                %1009 = vst [vmem:[%s151 + $0xd60] sm:$0xff] %v1008
                %v1010 = vld [vmem:[%s150 + $0x1a68] sm:$0xff]
                %1011 = vst [vmem:[%s151 + $0xd68] sm:$0xff] %v1010
                %v1012 = vld [vmem:[%s150 + $0x1a70] sm:$0xff]
                %1013 = vst [vmem:[%s151 + $0xd70] sm:$0xff] %v1012
                %v1014 = vld [vmem:[%s150 + $0x1a78] sm:$0xff]
                %1015 = vst [vmem:[%s151 + $0xd78] sm:$0xff] %v1014
                %v1016 = vld [vmem:[%s150 + $0x1a80] sm:$0xff]
                %1017 = vst [vmem:[%s151 + $0xd80] sm:$0xff] %v1016
                %v1018 = vld [vmem:[%s150 + $0x1a88] sm:$0xff]
                %1019 = vst [vmem:[%s151 + $0xd88] sm:$0xff] %v1018
                %v1020 = vld [vmem:[%s150 + $0x1a90] sm:$0xff]
                %1021 = vst [vmem:[%s151 + $0xd90] sm:$0xff] %v1020
                %v1022 = vld [vmem:[%s150 + $0x1a98] sm:$0xff]
                %1023 = vst [vmem:[%s151 + $0xd98] sm:$0xff] %v1022
                %v1024 = vld [vmem:[%s150 + $0x1aa0] sm:$0xff]
                %1025 = vst [vmem:[%s151 + $0xda0] sm:$0xff] %v1024
                %v1026 = vld [vmem:[%s150 + $0x1aa8] sm:$0xff]
                %1027 = vst [vmem:[%s151 + $0xda8] sm:$0xff] %v1026
                %v1028 = vld [vmem:[%s150 + $0x1ab0] sm:$0xff]
                %1029 = vst [vmem:[%s151 + $0xdb0] sm:$0xff] %v1028
                %v1030 = vld [vmem:[%s150 + $0x1ab8] sm:$0xff]
                %1031 = vst [vmem:[%s151 + $0xdb8] sm:$0xff] %v1030
                %v1032 = vld [vmem:[%s150 + $0x1ac0] sm:$0xff]
                %1033 = vst [vmem:[%s151 + $0xdc0] sm:$0xff] %v1032
                %v1034 = vld [vmem:[%s150 + $0x1ac8] sm:$0xff]
                %1035 = vst [vmem:[%s151 + $0xdc8] sm:$0xff] %v1034
                %v1036 = vld [vmem:[%s150 + $0x1ad0] sm:$0xff]
                %1037 = vst [vmem:[%s151 + $0xdd0] sm:$0xff] %v1036
                %v1038 = vld [vmem:[%s150 + $0x1ad8] sm:$0xff]
                %1039 = vst [vmem:[%s151 + $0xdd8] sm:$0xff] %v1038
                %v1040 = vld [vmem:[%s150 + $0x1ae0] sm:$0xff]
                %1041 = vst [vmem:[%s151 + $0xde0] sm:$0xff] %v1040
                %v1042 = vld [vmem:[%s150 + $0x1ae8] sm:$0xff]
                %1043 = vst [vmem:[%s151 + $0xde8] sm:$0xff] %v1042
                %v1044 = vld [vmem:[%s150 + $0x1af0] sm:$0xff]
                %1045 = vst [vmem:[%s151 + $0xdf0] sm:$0xff] %v1044
                %v1046 = vld [vmem:[%s150 + $0x1af8] sm:$0xff]
                %1047 = vst [vmem:[%s151 + $0xdf8] sm:$0xff] %v1046
                %v1048 = vld [vmem:[%s150 + $0x1c00] sm:$0xff]
                %1049 = vst [vmem:[%s151 + $0xe00] sm:$0xff] %v1048
                %v1050 = vld [vmem:[%s150 + $0x1c08] sm:$0xff]
                %1051 = vst [vmem:[%s151 + $0xe08] sm:$0xff] %v1050
                %v1052 = vld [vmem:[%s150 + $0x1c10] sm:$0xff]
                %1053 = vst [vmem:[%s151 + $0xe10] sm:$0xff] %v1052
                %v1054 = vld [vmem:[%s150 + $0x1c18] sm:$0xff]
                %1055 = vst [vmem:[%s151 + $0xe18] sm:$0xff] %v1054
                %v1056 = vld [vmem:[%s150 + $0x1c20] sm:$0xff]
                %1057 = vst [vmem:[%s151 + $0xe20] sm:$0xff] %v1056
                %v1058 = vld [vmem:[%s150 + $0x1c28] sm:$0xff]
                %1059 = vst [vmem:[%s151 + $0xe28] sm:$0xff] %v1058
                %v1060 = vld [vmem:[%s150 + $0x1c30] sm:$0xff]
                %1061 = vst [vmem:[%s151 + $0xe30] sm:$0xff] %v1060
                %v1062 = vld [vmem:[%s150 + $0x1c38] sm:$0xff]
                %1063 = vst [vmem:[%s151 + $0xe38] sm:$0xff] %v1062
                %v1064 = vld [vmem:[%s150 + $0x1c40] sm:$0xff]
                %1065 = vst [vmem:[%s151 + $0xe40] sm:$0xff] %v1064
                %v1066 = vld [vmem:[%s150 + $0x1c48] sm:$0xff]
                %1067 = vst [vmem:[%s151 + $0xe48] sm:$0xff] %v1066
                %v1068 = vld [vmem:[%s150 + $0x1c50] sm:$0xff]
                %1069 = vst [vmem:[%s151 + $0xe50] sm:$0xff] %v1068
                %v1070 = vld [vmem:[%s150 + $0x1c58] sm:$0xff]
                %1071 = vst [vmem:[%s151 + $0xe58] sm:$0xff] %v1070
                %v1072 = vld [vmem:[%s150 + $0x1c60] sm:$0xff]
                %1073 = vst [vmem:[%s151 + $0xe60] sm:$0xff] %v1072
                %v1074 = vld [vmem:[%s150 + $0x1c68] sm:$0xff]
                %1075 = vst [vmem:[%s151 + $0xe68] sm:$0xff] %v1074
                %v1076 = vld [vmem:[%s150 + $0x1c70] sm:$0xff]
                %1077 = vst [vmem:[%s151 + $0xe70] sm:$0xff] %v1076
                %v1078 = vld [vmem:[%s150 + $0x1c78] sm:$0xff]
                %1079 = vst [vmem:[%s151 + $0xe78] sm:$0xff] %v1078
                %v1080 = vld [vmem:[%s150 + $0x1c80] sm:$0xff]
                %1081 = vst [vmem:[%s151 + $0xe80] sm:$0xff] %v1080
                %v1082 = vld [vmem:[%s150 + $0x1c88] sm:$0xff]
                %1083 = vst [vmem:[%s151 + $0xe88] sm:$0xff] %v1082
                %v1084 = vld [vmem:[%s150 + $0x1c90] sm:$0xff]
                %1085 = vst [vmem:[%s151 + $0xe90] sm:$0xff] %v1084
                %v1086 = vld [vmem:[%s150 + $0x1c98] sm:$0xff]
                %1087 = vst [vmem:[%s151 + $0xe98] sm:$0xff] %v1086
                %v1088 = vld [vmem:[%s150 + $0x1ca0] sm:$0xff]
                %1089 = vst [vmem:[%s151 + $0xea0] sm:$0xff] %v1088
                %v1090 = vld [vmem:[%s150 + $0x1ca8] sm:$0xff]
                %1091 = vst [vmem:[%s151 + $0xea8] sm:$0xff] %v1090
                %v1092 = vld [vmem:[%s150 + $0x1cb0] sm:$0xff]
                %1093 = vst [vmem:[%s151 + $0xeb0] sm:$0xff] %v1092
                %v1094 = vld [vmem:[%s150 + $0x1cb8] sm:$0xff]
                %1095 = vst [vmem:[%s151 + $0xeb8] sm:$0xff] %v1094
                %v1096 = vld [vmem:[%s150 + $0x1cc0] sm:$0xff]
                %1097 = vst [vmem:[%s151 + $0xec0] sm:$0xff] %v1096
                %v1098 = vld [vmem:[%s150 + $0x1cc8] sm:$0xff]
                %1099 = vst [vmem:[%s151 + $0xec8] sm:$0xff] %v1098
                %v1100 = vld [vmem:[%s150 + $0x1cd0] sm:$0xff]
                %1101 = vst [vmem:[%s151 + $0xed0] sm:$0xff] %v1100
                %v1102 = vld [vmem:[%s150 + $0x1cd8] sm:$0xff]
                %1103 = vst [vmem:[%s151 + $0xed8] sm:$0xff] %v1102
                %v1104 = vld [vmem:[%s150 + $0x1ce0] sm:$0xff]
                %1105 = vst [vmem:[%s151 + $0xee0] sm:$0xff] %v1104
                %v1106 = vld [vmem:[%s150 + $0x1ce8] sm:$0xff]
                %1107 = vst [vmem:[%s151 + $0xee8] sm:$0xff] %v1106
                %v1108 = vld [vmem:[%s150 + $0x1cf0] sm:$0xff]
                %1109 = vst [vmem:[%s151 + $0xef0] sm:$0xff] %v1108
                %v1110 = vld [vmem:[%s150 + $0x1cf8] sm:$0xff]
                %1111 = vst [vmem:[%s151 + $0xef8] sm:$0xff] %v1110
                %v1112 = vld [vmem:[%s150 + $0x1e00] sm:$0xff]
                %1113 = vst [vmem:[%s151 + $0xf00] sm:$0xff] %v1112
                %v1114 = vld [vmem:[%s150 + $0x1e08] sm:$0xff]
                %1115 = vst [vmem:[%s151 + $0xf08] sm:$0xff] %v1114
                %v1116 = vld [vmem:[%s150 + $0x1e10] sm:$0xff]
                %1117 = vst [vmem:[%s151 + $0xf10] sm:$0xff] %v1116
                %v1118 = vld [vmem:[%s150 + $0x1e18] sm:$0xff]
                %1119 = vst [vmem:[%s151 + $0xf18] sm:$0xff] %v1118
                %v1120 = vld [vmem:[%s150 + $0x1e20] sm:$0xff]
                %1121 = vst [vmem:[%s151 + $0xf20] sm:$0xff] %v1120
                %v1122 = vld [vmem:[%s150 + $0x1e28] sm:$0xff]
                %1123 = vst [vmem:[%s151 + $0xf28] sm:$0xff] %v1122
                %v1124 = vld [vmem:[%s150 + $0x1e30] sm:$0xff]
                %1125 = vst [vmem:[%s151 + $0xf30] sm:$0xff] %v1124
                %v1126 = vld [vmem:[%s150 + $0x1e38] sm:$0xff]
                %1127 = vst [vmem:[%s151 + $0xf38] sm:$0xff] %v1126
                %v1128 = vld [vmem:[%s150 + $0x1e40] sm:$0xff]
                %1129 = vst [vmem:[%s151 + $0xf40] sm:$0xff] %v1128
                %v1130 = vld [vmem:[%s150 + $0x1e48] sm:$0xff]
                %1131 = vst [vmem:[%s151 + $0xf48] sm:$0xff] %v1130
                %v1132 = vld [vmem:[%s150 + $0x1e50] sm:$0xff]
                %1133 = vst [vmem:[%s151 + $0xf50] sm:$0xff] %v1132
                %v1134 = vld [vmem:[%s150 + $0x1e58] sm:$0xff]
                %1135 = vst [vmem:[%s151 + $0xf58] sm:$0xff] %v1134
                %v1136 = vld [vmem:[%s150 + $0x1e60] sm:$0xff]
                %1137 = vst [vmem:[%s151 + $0xf60] sm:$0xff] %v1136
                %v1138 = vld [vmem:[%s150 + $0x1e68] sm:$0xff]
                %1139 = vst [vmem:[%s151 + $0xf68] sm:$0xff] %v1138
                %v1140 = vld [vmem:[%s150 + $0x1e70] sm:$0xff]
                %1141 = vst [vmem:[%s151 + $0xf70] sm:$0xff] %v1140
                %v1142 = vld [vmem:[%s150 + $0x1e78] sm:$0xff]
                %1143 = vst [vmem:[%s151 + $0xf78] sm:$0xff] %v1142
                %v1144 = vld [vmem:[%s150 + $0x1e80] sm:$0xff]
                %1145 = vst [vmem:[%s151 + $0xf80] sm:$0xff] %v1144
                %v1146 = vld [vmem:[%s150 + $0x1e88] sm:$0xff]
                %1147 = vst [vmem:[%s151 + $0xf88] sm:$0xff] %v1146
                %v1148 = vld [vmem:[%s150 + $0x1e90] sm:$0xff]
                %1149 = vst [vmem:[%s151 + $0xf90] sm:$0xff] %v1148
                %v1150 = vld [vmem:[%s150 + $0x1e98] sm:$0xff]
                %1151 = vst [vmem:[%s151 + $0xf98] sm:$0xff] %v1150
                %v1152 = vld [vmem:[%s150 + $0x1ea0] sm:$0xff]
                %1153 = vst [vmem:[%s151 + $0xfa0] sm:$0xff] %v1152
                %v1154 = vld [vmem:[%s150 + $0x1ea8] sm:$0xff]
                %1155 = vst [vmem:[%s151 + $0xfa8] sm:$0xff] %v1154
                %v1156 = vld [vmem:[%s150 + $0x1eb0] sm:$0xff]
                %1157 = vst [vmem:[%s151 + $0xfb0] sm:$0xff] %v1156
                %v1158 = vld [vmem:[%s150 + $0x1eb8] sm:$0xff]
                %1159 = vst [vmem:[%s151 + $0xfb8] sm:$0xff] %v1158
                %v1160 = vld [vmem:[%s150 + $0x1ec0] sm:$0xff]
                %1161 = vst [vmem:[%s151 + $0xfc0] sm:$0xff] %v1160
                %v1162 = vld [vmem:[%s150 + $0x1ec8] sm:$0xff]
                %1163 = vst [vmem:[%s151 + $0xfc8] sm:$0xff] %v1162
                %v1164 = vld [vmem:[%s150 + $0x1ed0] sm:$0xff]
                %1165 = vst [vmem:[%s151 + $0xfd0] sm:$0xff] %v1164
                %v1166 = vld [vmem:[%s150 + $0x1ed8] sm:$0xff]
                %1167 = vst [vmem:[%s151 + $0xfd8] sm:$0xff] %v1166
                %v1168 = vld [vmem:[%s150 + $0x1ee0] sm:$0xff]
                %1169 = vst [vmem:[%s151 + $0xfe0] sm:$0xff] %v1168
                %v1170 = vld [vmem:[%s150 + $0x1ee8] sm:$0xff]
                %1171 = vst [vmem:[%s151 + $0xfe8] sm:$0xff] %v1170
                %v1172 = vld [vmem:[%s150 + $0x1ef0] sm:$0xff]
                %1173 = vst [vmem:[%s151 + $0xff0] sm:$0xff] %v1172
                %v1174 = vld [vmem:[%s150 + $0x1ef8] sm:$0xff]
                %1175 = vst [vmem:[%s151 + $0xff8] sm:$0xff] %v1174
              $region41: #{inversion_forward.9} parent=35 // loop_footer
                %s149 = sadd.s32 1, %s145
              $region42: #{inversion_forward.9} parent=35 // loop_footer_branch
                %144 = sbr.rel target = $region38
              $region43: #{inversion_forward.9} parent=35 // loop_exit
                _
            $region36: #{inversion_forward.9} parent=31 // pred_fallthru
              _
            // Predicated region
            $region44: #{inversion_forward.9} parent=31 // pred_check
              _
            $region45: #{inversion_forward.9} parent=31 // pred_check_branch
              %1177 = sbr.rel target = $region47
            $region46: #{inversion_forward.9} parent=31 // pred_region
              _
            $region47: #{inversion_forward.9} parent=31 // pred_fallthru
              _
          $region32: #{inversion_forward.9} parent=27 // pred_fallthru
            _
          %1178 = vnop
        $region28: #{inversion_forward.9} parent=23 // pred_fallthru
          _
      $region24: #{inversion_forward.9} parent=5 // pred_fallthru
        _
      %p1179 = scmp.le.s32.totalorder 1, %s11
      %p1180 = scmp.lt.s32.totalorder %s11, 3
      %p1181 = pnand %p1179, %p1180
      %p1182 = pneg %p1181
      // Predicated region
      $region48: #{inversion_forward.9} parent=5 // pred_check
        _
      $region49: #{inversion_forward.9} parent=5 // pred_check_branch
        %1184 = sbr.rel (%p1181) target = $region51
      $region50: #{inversion_forward.9} parent=5 // pred_region
        %s1185 = ssub.s32 %s11, 1
        %s1186 = sand.u32 %s45, 1
        %s1187 = sand.u32 %s45, 1
        %s1188 = smul.addr %s1187, 4096
        %s1189 = scalar_lea.vmem [#allocation3], %s1188
        // Predicated region
        $region52: #{inversion_forward.9} parent=50 // pred_check
          %p1190 = pneg %p58
        $region53: #{inversion_forward.9} parent=50 // pred_check_branch
          %1192 = sbr.rel (%p1190) target = $region55
        $region54: #{inversion_forward.9} parent=50 // pred_region
          _
        $region55: #{inversion_forward.9} parent=50 // pred_fallthru
          _
        %p1193 = pneg %p32
        %p1194 = pneg %p29
        %s1195 = sand.u32 %s45, 1
        %s1196 = sand.u32 %s45, 1
        %s1197 = smul.addr %s1196, 4096
        %s1198 = scalar_lea.vmem [#allocation3], %s1197
        %p1199 = pneg %p58
        %p1200 = pneg %p55
        %p1201 = pneg %p79
        %p1202 = pneg %p76
        %p1203 = pneg %p105
        %p1204 = pneg %p102
        %s1205 = smul.u32 32, %s16
        %p1206 = scmp.lt.s32.totalorder %s1205, 63
        %s1207 = scalar_select %p1206, %s1205, 63
        %s1208 = scalar_lea.vmem %s3, %s1207
        %s1209 = smul.u32 32, %s16
        %s1210 = smul.u32 32, %s16
        %p1211 = scmp.lt.s32.totalorder %s1210, 63
        %s1212 = scalar_select %p1211, %s1210, 63
        %s1213 = scalar_lea.vmem %s3, %s1212
        %s1214 = smul.u32 32, %s16
        %v1215 = vld [vmem:[%s1189] sm:$0xff]
        %v1216 = vld [vmem:[%s1189 + $0x8] sm:$0xff]
        %v1217 = vld [vmem:[%s1189 + $0x10] sm:$0xff]
        %v1218 = vld [vmem:[%s1189 + $0x18] sm:$0xff]
        %v1219 = vld [vmem:[%s1189 + $0x20] sm:$0xff]
        %v1220 = vld [vmem:[%s1189 + $0x28] sm:$0xff]
        %v1221 = vld [vmem:[%s1189 + $0x30] sm:$0xff]
        %v1222 = vld [vmem:[%s1189 + $0x38] sm:$0xff]
        %v1223 = vld [vmem:[%s1189 + $0x40] sm:$0xff]
        %v1224 = vld [vmem:[%s1189 + $0x48] sm:$0xff]
        %v1225 = vld [vmem:[%s1189 + $0x50] sm:$0xff]
        %v1226 = vld [vmem:[%s1189 + $0x58] sm:$0xff]
        %v1227 = vld [vmem:[%s1189 + $0x60] sm:$0xff]
        %v1228 = vld [vmem:[%s1189 + $0x68] sm:$0xff]
        %v1229 = vld [vmem:[%s1189 + $0x70] sm:$0xff]
        %v1230 = vld [vmem:[%s1189 + $0x78] sm:$0xff]
        %v1231 = vld [vmem:[%s1189 + $0x80] sm:$0xff]
        %v1232 = vld [vmem:[%s1189 + $0x88] sm:$0xff]
        %v1233 = vld [vmem:[%s1189 + $0x90] sm:$0xff]
        %v1234 = vld [vmem:[%s1189 + $0x98] sm:$0xff]
        %v1235 = vld [vmem:[%s1189 + $0xa0] sm:$0xff]
        %v1236 = vld [vmem:[%s1189 + $0xa8] sm:$0xff]
        %v1237 = vld [vmem:[%s1189 + $0xb0] sm:$0xff]
        %v1238 = vld [vmem:[%s1189 + $0xb8] sm:$0xff]
        %v1239 = vld [vmem:[%s1189 + $0xc0] sm:$0xff]
        %v1240 = vld [vmem:[%s1189 + $0xc8] sm:$0xff]
        %v1241 = vld [vmem:[%s1189 + $0xd0] sm:$0xff]
        %v1242 = vld [vmem:[%s1189 + $0xd8] sm:$0xff]
        %v1243 = vld [vmem:[%s1189 + $0xe0] sm:$0xff]
        %v1244 = vld [vmem:[%s1189 + $0xe8] sm:$0xff]
        %v1245 = vld [vmem:[%s1189 + $0xf0] sm:$0xff]
        %v1246 = vld [vmem:[%s1189 + $0xf8] sm:$0xff]
        %v1247 = vld [vmem:[%s1189 + $0x100] sm:$0xff]
        %v1248 = vld [vmem:[%s1189 + $0x108] sm:$0xff]
        %v1249 = vld [vmem:[%s1189 + $0x110] sm:$0xff]
        %v1250 = vld [vmem:[%s1189 + $0x118] sm:$0xff]
        %v1251 = vld [vmem:[%s1189 + $0x120] sm:$0xff]
        %v1252 = vld [vmem:[%s1189 + $0x128] sm:$0xff]
        %v1253 = vld [vmem:[%s1189 + $0x130] sm:$0xff]
        %v1254 = vld [vmem:[%s1189 + $0x138] sm:$0xff]
        %v1255 = vld [vmem:[%s1189 + $0x140] sm:$0xff]
        %v1256 = vld [vmem:[%s1189 + $0x148] sm:$0xff]
        %v1257 = vld [vmem:[%s1189 + $0x150] sm:$0xff]
        %v1258 = vld [vmem:[%s1189 + $0x158] sm:$0xff]
        %v1259 = vld [vmem:[%s1189 + $0x160] sm:$0xff]
        %v1260 = vld [vmem:[%s1189 + $0x168] sm:$0xff]
        %v1261 = vld [vmem:[%s1189 + $0x170] sm:$0xff]
        %v1262 = vld [vmem:[%s1189 + $0x178] sm:$0xff]
        %v1263 = vld [vmem:[%s1189 + $0x180] sm:$0xff]
        %v1264 = vld [vmem:[%s1189 + $0x188] sm:$0xff]
        %v1265 = vld [vmem:[%s1189 + $0x190] sm:$0xff]
        %v1266 = vld [vmem:[%s1189 + $0x198] sm:$0xff]
        %v1267 = vld [vmem:[%s1189 + $0x1a0] sm:$0xff]
        %v1268 = vld [vmem:[%s1189 + $0x1a8] sm:$0xff]
        %v1269 = vld [vmem:[%s1189 + $0x1b0] sm:$0xff]
        %v1270 = vld [vmem:[%s1189 + $0x1b8] sm:$0xff]
        %v1271 = vld [vmem:[%s1189 + $0x1c0] sm:$0xff]
        %v1272 = vld [vmem:[%s1189 + $0x1c8] sm:$0xff]
        %v1273 = vld [vmem:[%s1189 + $0x1d0] sm:$0xff]
        %v1274 = vld [vmem:[%s1189 + $0x1d8] sm:$0xff]
        %v1275 = vld [vmem:[%s1189 + $0x1e0] sm:$0xff]
        %v1276 = vld [vmem:[%s1189 + $0x1e8] sm:$0xff]
        %v1277 = vld [vmem:[%s1189 + $0x1f0] sm:$0xff]
        %v1278 = vld [vmem:[%s1189 + $0x1f8] sm:$0xff]
        %v1279 = vld [vmem:[%s1189 + $0x200] sm:$0xff]
        %v1280 = vld [vmem:[%s1189 + $0x208] sm:$0xff]
        %v1281 = vld [vmem:[%s1189 + $0x210] sm:$0xff]
        %v1282 = vld [vmem:[%s1189 + $0x218] sm:$0xff]
        %v1283 = vld [vmem:[%s1189 + $0x220] sm:$0xff]
        %v1284 = vld [vmem:[%s1189 + $0x228] sm:$0xff]
        %v1285 = vld [vmem:[%s1189 + $0x230] sm:$0xff]
        %v1286 = vld [vmem:[%s1189 + $0x238] sm:$0xff]
        %v1287 = vld [vmem:[%s1189 + $0x240] sm:$0xff]
        %v1288 = vld [vmem:[%s1189 + $0x248] sm:$0xff]
        %v1289 = vld [vmem:[%s1189 + $0x250] sm:$0xff]
        %v1290 = vld [vmem:[%s1189 + $0x258] sm:$0xff]
        %v1291 = vld [vmem:[%s1189 + $0x260] sm:$0xff]
        %v1292 = vld [vmem:[%s1189 + $0x268] sm:$0xff]
        %v1293 = vld [vmem:[%s1189 + $0x270] sm:$0xff]
        %v1294 = vld [vmem:[%s1189 + $0x278] sm:$0xff]
        %v1295 = vld [vmem:[%s1189 + $0x280] sm:$0xff]
        %v1296 = vld [vmem:[%s1189 + $0x288] sm:$0xff]
        %v1297 = vld [vmem:[%s1189 + $0x290] sm:$0xff]
        %v1298 = vld [vmem:[%s1189 + $0x298] sm:$0xff]
        %v1299 = vld [vmem:[%s1189 + $0x2a0] sm:$0xff]
        %v1300 = vld [vmem:[%s1189 + $0x2a8] sm:$0xff]
        %v1301 = vld [vmem:[%s1189 + $0x2b0] sm:$0xff]
        %v1302 = vld [vmem:[%s1189 + $0x2b8] sm:$0xff]
        %v1303 = vld [vmem:[%s1189 + $0x2c0] sm:$0xff]
        %v1304 = vld [vmem:[%s1189 + $0x2c8] sm:$0xff]
        %v1305 = vld [vmem:[%s1189 + $0x2d0] sm:$0xff]
        %v1306 = vld [vmem:[%s1189 + $0x2d8] sm:$0xff]
        %v1307 = vld [vmem:[%s1189 + $0x2e0] sm:$0xff]
        %v1308 = vld [vmem:[%s1189 + $0x2e8] sm:$0xff]
        %v1309 = vld [vmem:[%s1189 + $0x2f0] sm:$0xff]
        %v1310 = vld [vmem:[%s1189 + $0x2f8] sm:$0xff]
        %v1311 = vld [vmem:[%s1189 + $0x300] sm:$0xff]
        %v1312 = vld [vmem:[%s1189 + $0x308] sm:$0xff]
        %v1313 = vld [vmem:[%s1189 + $0x310] sm:$0xff]
        %v1314 = vld [vmem:[%s1189 + $0x318] sm:$0xff]
        %v1315 = vld [vmem:[%s1189 + $0x320] sm:$0xff]
        %v1316 = vld [vmem:[%s1189 + $0x328] sm:$0xff]
        %v1317 = vld [vmem:[%s1189 + $0x330] sm:$0xff]
        %v1318 = vld [vmem:[%s1189 + $0x338] sm:$0xff]
        %v1319 = vld [vmem:[%s1189 + $0x340] sm:$0xff]
        %v1320 = vld [vmem:[%s1189 + $0x348] sm:$0xff]
        %v1321 = vld [vmem:[%s1189 + $0x350] sm:$0xff]
        %v1322 = vld [vmem:[%s1189 + $0x358] sm:$0xff]
        %v1323 = vld [vmem:[%s1189 + $0x360] sm:$0xff]
        %v1324 = vld [vmem:[%s1189 + $0x368] sm:$0xff]
        %v1325 = vld [vmem:[%s1189 + $0x370] sm:$0xff]
        %v1326 = vld [vmem:[%s1189 + $0x378] sm:$0xff]
        %v1327 = vld [vmem:[%s1189 + $0x380] sm:$0xff]
        %v1328 = vld [vmem:[%s1189 + $0x388] sm:$0xff]
        %v1329 = vld [vmem:[%s1189 + $0x390] sm:$0xff]
        %v1330 = vld [vmem:[%s1189 + $0x398] sm:$0xff]
        %v1331 = vld [vmem:[%s1189 + $0x3a0] sm:$0xff]
        %v1332 = vld [vmem:[%s1189 + $0x3a8] sm:$0xff]
        %v1333 = vld [vmem:[%s1189 + $0x3b0] sm:$0xff]
        %v1334 = vld [vmem:[%s1189 + $0x3b8] sm:$0xff]
        %v1335 = vld [vmem:[%s1189 + $0x3c0] sm:$0xff]
        %v1336 = vld [vmem:[%s1189 + $0x3c8] sm:$0xff]
        %v1337 = vld [vmem:[%s1189 + $0x3d0] sm:$0xff]
        %v1338 = vld [vmem:[%s1189 + $0x3d8] sm:$0xff]
        %v1339 = vld [vmem:[%s1189 + $0x3e0] sm:$0xff]
        %v1340 = vld [vmem:[%s1189 + $0x3e8] sm:$0xff]
        %v1341 = vld [vmem:[%s1189 + $0x3f0] sm:$0xff]
        %v1342 = vld [vmem:[%s1189 + $0x3f8] sm:$0xff]
        %v1343 = vld [vmem:[%s1189 + $0x400] sm:$0xff]
        %v1344 = vld [vmem:[%s1189 + $0x408] sm:$0xff]
        %v1345 = vld [vmem:[%s1189 + $0x410] sm:$0xff]
        %v1346 = vld [vmem:[%s1189 + $0x418] sm:$0xff]
        %v1347 = vld [vmem:[%s1189 + $0x420] sm:$0xff]
        %v1348 = vld [vmem:[%s1189 + $0x428] sm:$0xff]
        %v1349 = vld [vmem:[%s1189 + $0x430] sm:$0xff]
        %v1350 = vld [vmem:[%s1189 + $0x438] sm:$0xff]
        %v1351 = vld [vmem:[%s1189 + $0x440] sm:$0xff]
        %v1352 = vld [vmem:[%s1189 + $0x448] sm:$0xff]
        %v1353 = vld [vmem:[%s1189 + $0x450] sm:$0xff]
        %v1354 = vld [vmem:[%s1189 + $0x458] sm:$0xff]
        %v1355 = vld [vmem:[%s1189 + $0x460] sm:$0xff]
        %v1356 = vld [vmem:[%s1189 + $0x468] sm:$0xff]
        %v1357 = vld [vmem:[%s1189 + $0x470] sm:$0xff]
        %v1358 = vld [vmem:[%s1189 + $0x478] sm:$0xff]
        %v1359 = vld [vmem:[%s1189 + $0x480] sm:$0xff]
        %v1360 = vld [vmem:[%s1189 + $0x488] sm:$0xff]
        %v1361 = vld [vmem:[%s1189 + $0x490] sm:$0xff]
        %v1362 = vld [vmem:[%s1189 + $0x498] sm:$0xff]
        %v1363 = vld [vmem:[%s1189 + $0x4a0] sm:$0xff]
        %v1364 = vld [vmem:[%s1189 + $0x4a8] sm:$0xff]
        %v1365 = vld [vmem:[%s1189 + $0x4b0] sm:$0xff]
        %v1366 = vld [vmem:[%s1189 + $0x4b8] sm:$0xff]
        %v1367 = vld [vmem:[%s1189 + $0x4c0] sm:$0xff]
        %v1368 = vld [vmem:[%s1189 + $0x4c8] sm:$0xff]
        %v1369 = vld [vmem:[%s1189 + $0x4d0] sm:$0xff]
        %v1370 = vld [vmem:[%s1189 + $0x4d8] sm:$0xff]
        %v1371 = vld [vmem:[%s1189 + $0x4e0] sm:$0xff]
        %v1372 = vld [vmem:[%s1189 + $0x4e8] sm:$0xff]
        %v1373 = vld [vmem:[%s1189 + $0x4f0] sm:$0xff]
        %v1374 = vld [vmem:[%s1189 + $0x4f8] sm:$0xff]
        %v1375 = vld [vmem:[%s1189 + $0x500] sm:$0xff]
        %v1376 = vld [vmem:[%s1189 + $0x508] sm:$0xff]
        %v1377 = vld [vmem:[%s1189 + $0x510] sm:$0xff]
        %v1378 = vld [vmem:[%s1189 + $0x518] sm:$0xff]
        %v1379 = vld [vmem:[%s1189 + $0x520] sm:$0xff]
        %v1380 = vld [vmem:[%s1189 + $0x528] sm:$0xff]
        %v1381 = vld [vmem:[%s1189 + $0x530] sm:$0xff]
        %v1382 = vld [vmem:[%s1189 + $0x538] sm:$0xff]
        %v1383 = vld [vmem:[%s1189 + $0x540] sm:$0xff]
        %v1384 = vld [vmem:[%s1189 + $0x548] sm:$0xff]
        %v1385 = vld [vmem:[%s1189 + $0x550] sm:$0xff]
        %v1386 = vld [vmem:[%s1189 + $0x558] sm:$0xff]
        %v1387 = vld [vmem:[%s1189 + $0x560] sm:$0xff]
        %v1388 = vld [vmem:[%s1189 + $0x568] sm:$0xff]
        %v1389 = vld [vmem:[%s1189 + $0x570] sm:$0xff]
        %v1390 = vld [vmem:[%s1189 + $0x578] sm:$0xff]
        %v1391 = vld [vmem:[%s1189 + $0x580] sm:$0xff]
        %v1392 = vld [vmem:[%s1189 + $0x588] sm:$0xff]
        %v1393 = vld [vmem:[%s1189 + $0x590] sm:$0xff]
        %v1394 = vld [vmem:[%s1189 + $0x598] sm:$0xff]
        %v1395 = vld [vmem:[%s1189 + $0x5a0] sm:$0xff]
        %v1396 = vld [vmem:[%s1189 + $0x5a8] sm:$0xff]
        %v1397 = vld [vmem:[%s1189 + $0x5b0] sm:$0xff]
        %v1398 = vld [vmem:[%s1189 + $0x5b8] sm:$0xff]
        %v1399 = vld [vmem:[%s1189 + $0x5c0] sm:$0xff]
        %v1400 = vld [vmem:[%s1189 + $0x5c8] sm:$0xff]
        %v1401 = vld [vmem:[%s1189 + $0x5d0] sm:$0xff]
        %v1402 = vld [vmem:[%s1189 + $0x5d8] sm:$0xff]
        %v1403 = vld [vmem:[%s1189 + $0x5e0] sm:$0xff]
        %v1404 = vld [vmem:[%s1189 + $0x5e8] sm:$0xff]
        %v1405 = vld [vmem:[%s1189 + $0x5f0] sm:$0xff]
        %v1406 = vld [vmem:[%s1189 + $0x5f8] sm:$0xff]
        %v1407 = vld [vmem:[%s1189 + $0x600] sm:$0xff]
        %v1408 = vld [vmem:[%s1189 + $0x608] sm:$0xff]
        %v1409 = vld [vmem:[%s1189 + $0x610] sm:$0xff]
        %v1410 = vld [vmem:[%s1189 + $0x618] sm:$0xff]
        %v1411 = vld [vmem:[%s1189 + $0x620] sm:$0xff]
        %v1412 = vld [vmem:[%s1189 + $0x628] sm:$0xff]
        %v1413 = vld [vmem:[%s1189 + $0x630] sm:$0xff]
        %v1414 = vld [vmem:[%s1189 + $0x638] sm:$0xff]
        %v1415 = vld [vmem:[%s1189 + $0x640] sm:$0xff]
        %v1416 = vld [vmem:[%s1189 + $0x648] sm:$0xff]
        %v1417 = vld [vmem:[%s1189 + $0x650] sm:$0xff]
        %v1418 = vld [vmem:[%s1189 + $0x658] sm:$0xff]
        %v1419 = vld [vmem:[%s1189 + $0x660] sm:$0xff]
        %v1420 = vld [vmem:[%s1189 + $0x668] sm:$0xff]
        %v1421 = vld [vmem:[%s1189 + $0x670] sm:$0xff]
        %v1422 = vld [vmem:[%s1189 + $0x678] sm:$0xff]
        %v1423 = vld [vmem:[%s1189 + $0x680] sm:$0xff]
        %v1424 = vld [vmem:[%s1189 + $0x688] sm:$0xff]
        %v1425 = vld [vmem:[%s1189 + $0x690] sm:$0xff]
        %v1426 = vld [vmem:[%s1189 + $0x698] sm:$0xff]
        %v1427 = vld [vmem:[%s1189 + $0x6a0] sm:$0xff]
        %v1428 = vld [vmem:[%s1189 + $0x6a8] sm:$0xff]
        %v1429 = vld [vmem:[%s1189 + $0x6b0] sm:$0xff]
        %v1430 = vld [vmem:[%s1189 + $0x6b8] sm:$0xff]
        %v1431 = vld [vmem:[%s1189 + $0x6c0] sm:$0xff]
        %v1432 = vld [vmem:[%s1189 + $0x6c8] sm:$0xff]
        %v1433 = vld [vmem:[%s1189 + $0x6d0] sm:$0xff]
        %v1434 = vld [vmem:[%s1189 + $0x6d8] sm:$0xff]
        %v1435 = vld [vmem:[%s1189 + $0x6e0] sm:$0xff]
        %v1436 = vld [vmem:[%s1189 + $0x6e8] sm:$0xff]
        %v1437 = vld [vmem:[%s1189 + $0x6f0] sm:$0xff]
        %v1438 = vld [vmem:[%s1189 + $0x6f8] sm:$0xff]
        %v1439 = vld [vmem:[%s1189 + $0x700] sm:$0xff]
        %v1440 = vld [vmem:[%s1189 + $0x708] sm:$0xff]
        %v1441 = vld [vmem:[%s1189 + $0x710] sm:$0xff]
        %v1442 = vld [vmem:[%s1189 + $0x718] sm:$0xff]
        %v1443 = vld [vmem:[%s1189 + $0x720] sm:$0xff]
        %v1444 = vld [vmem:[%s1189 + $0x728] sm:$0xff]
        %v1445 = vld [vmem:[%s1189 + $0x730] sm:$0xff]
        %v1446 = vld [vmem:[%s1189 + $0x738] sm:$0xff]
        %v1447 = vld [vmem:[%s1189 + $0x740] sm:$0xff]
        %v1448 = vld [vmem:[%s1189 + $0x748] sm:$0xff]
        %v1449 = vld [vmem:[%s1189 + $0x750] sm:$0xff]
        %v1450 = vld [vmem:[%s1189 + $0x758] sm:$0xff]
        %v1451 = vld [vmem:[%s1189 + $0x760] sm:$0xff]
        %v1452 = vld [vmem:[%s1189 + $0x768] sm:$0xff]
        %v1453 = vld [vmem:[%s1189 + $0x770] sm:$0xff]
        %v1454 = vld [vmem:[%s1189 + $0x778] sm:$0xff]
        %v1455 = vld [vmem:[%s1189 + $0x780] sm:$0xff]
        %v1456 = vld [vmem:[%s1189 + $0x788] sm:$0xff]
        %v1457 = vld [vmem:[%s1189 + $0x790] sm:$0xff]
        %v1458 = vld [vmem:[%s1189 + $0x798] sm:$0xff]
        %v1459 = vld [vmem:[%s1189 + $0x7a0] sm:$0xff]
        %v1460 = vld [vmem:[%s1189 + $0x7a8] sm:$0xff]
        %v1461 = vld [vmem:[%s1189 + $0x7b0] sm:$0xff]
        %v1462 = vld [vmem:[%s1189 + $0x7b8] sm:$0xff]
        %v1463 = vld [vmem:[%s1189 + $0x7c0] sm:$0xff]
        %v1464 = vld [vmem:[%s1189 + $0x7c8] sm:$0xff]
        %v1465 = vld [vmem:[%s1189 + $0x7d0] sm:$0xff]
        %v1466 = vld [vmem:[%s1189 + $0x7d8] sm:$0xff]
        %v1467 = vld [vmem:[%s1189 + $0x7e0] sm:$0xff]
        %v1468 = vld [vmem:[%s1189 + $0x7e8] sm:$0xff]
        %v1469 = vld [vmem:[%s1189 + $0x7f0] sm:$0xff]
        %v1470 = vld [vmem:[%s1189 + $0x7f8] sm:$0xff]
        %v1471 = vld [vmem:[%s1189 + $0x800] sm:$0xff]
        %v1472 = vld [vmem:[%s1189 + $0x808] sm:$0xff]
        %v1473 = vld [vmem:[%s1189 + $0x810] sm:$0xff]
        %v1474 = vld [vmem:[%s1189 + $0x818] sm:$0xff]
        %v1475 = vld [vmem:[%s1189 + $0x820] sm:$0xff]
        %v1476 = vld [vmem:[%s1189 + $0x828] sm:$0xff]
        %v1477 = vld [vmem:[%s1189 + $0x830] sm:$0xff]
        %v1478 = vld [vmem:[%s1189 + $0x838] sm:$0xff]
        %v1479 = vld [vmem:[%s1189 + $0x840] sm:$0xff]
        %v1480 = vld [vmem:[%s1189 + $0x848] sm:$0xff]
        %v1481 = vld [vmem:[%s1189 + $0x850] sm:$0xff]
        %v1482 = vld [vmem:[%s1189 + $0x858] sm:$0xff]
        %v1483 = vld [vmem:[%s1189 + $0x860] sm:$0xff]
        %v1484 = vld [vmem:[%s1189 + $0x868] sm:$0xff]
        %v1485 = vld [vmem:[%s1189 + $0x870] sm:$0xff]
        %v1486 = vld [vmem:[%s1189 + $0x878] sm:$0xff]
        %v1487 = vld [vmem:[%s1189 + $0x880] sm:$0xff]
        %v1488 = vld [vmem:[%s1189 + $0x888] sm:$0xff]
        %v1489 = vld [vmem:[%s1189 + $0x890] sm:$0xff]
        %v1490 = vld [vmem:[%s1189 + $0x898] sm:$0xff]
        %v1491 = vld [vmem:[%s1189 + $0x8a0] sm:$0xff]
        %v1492 = vld [vmem:[%s1189 + $0x8a8] sm:$0xff]
        %v1493 = vld [vmem:[%s1189 + $0x8b0] sm:$0xff]
        %v1494 = vld [vmem:[%s1189 + $0x8b8] sm:$0xff]
        %v1495 = vld [vmem:[%s1189 + $0x8c0] sm:$0xff]
        %v1496 = vld [vmem:[%s1189 + $0x8c8] sm:$0xff]
        %v1497 = vld [vmem:[%s1189 + $0x8d0] sm:$0xff]
        %v1498 = vld [vmem:[%s1189 + $0x8d8] sm:$0xff]
        %v1499 = vld [vmem:[%s1189 + $0x8e0] sm:$0xff]
        %v1500 = vld [vmem:[%s1189 + $0x8e8] sm:$0xff]
        %v1501 = vld [vmem:[%s1189 + $0x8f0] sm:$0xff]
        %v1502 = vld [vmem:[%s1189 + $0x8f8] sm:$0xff]
        %v1503 = vld [vmem:[%s1189 + $0x900] sm:$0xff]
        %v1504 = vld [vmem:[%s1189 + $0x908] sm:$0xff]
        %v1505 = vld [vmem:[%s1189 + $0x910] sm:$0xff]
        %v1506 = vld [vmem:[%s1189 + $0x918] sm:$0xff]
        %v1507 = vld [vmem:[%s1189 + $0x920] sm:$0xff]
        %v1508 = vld [vmem:[%s1189 + $0x928] sm:$0xff]
        %v1509 = vld [vmem:[%s1189 + $0x930] sm:$0xff]
        %v1510 = vld [vmem:[%s1189 + $0x938] sm:$0xff]
        %v1511 = vld [vmem:[%s1189 + $0x940] sm:$0xff]
        %v1512 = vld [vmem:[%s1189 + $0x948] sm:$0xff]
        %v1513 = vld [vmem:[%s1189 + $0x950] sm:$0xff]
        %v1514 = vld [vmem:[%s1189 + $0x958] sm:$0xff]
        %v1515 = vld [vmem:[%s1189 + $0x960] sm:$0xff]
        %v1516 = vld [vmem:[%s1189 + $0x968] sm:$0xff]
        %v1517 = vld [vmem:[%s1189 + $0x970] sm:$0xff]
        %v1518 = vld [vmem:[%s1189 + $0x978] sm:$0xff]
        %v1519 = vld [vmem:[%s1189 + $0x980] sm:$0xff]
        %v1520 = vld [vmem:[%s1189 + $0x988] sm:$0xff]
        %v1521 = vld [vmem:[%s1189 + $0x990] sm:$0xff]
        %v1522 = vld [vmem:[%s1189 + $0x998] sm:$0xff]
        %v1523 = vld [vmem:[%s1189 + $0x9a0] sm:$0xff]
        %v1524 = vld [vmem:[%s1189 + $0x9a8] sm:$0xff]
        %v1525 = vld [vmem:[%s1189 + $0x9b0] sm:$0xff]
        %v1526 = vld [vmem:[%s1189 + $0x9b8] sm:$0xff]
        %v1527 = vld [vmem:[%s1189 + $0x9c0] sm:$0xff]
        %v1528 = vld [vmem:[%s1189 + $0x9c8] sm:$0xff]
        %v1529 = vld [vmem:[%s1189 + $0x9d0] sm:$0xff]
        %v1530 = vld [vmem:[%s1189 + $0x9d8] sm:$0xff]
        %v1531 = vld [vmem:[%s1189 + $0x9e0] sm:$0xff]
        %v1532 = vld [vmem:[%s1189 + $0x9e8] sm:$0xff]
        %v1533 = vld [vmem:[%s1189 + $0x9f0] sm:$0xff]
        %v1534 = vld [vmem:[%s1189 + $0x9f8] sm:$0xff]
        %v1535 = vld [vmem:[%s1189 + $0xa00] sm:$0xff]
        %v1536 = vld [vmem:[%s1189 + $0xa08] sm:$0xff]
        %v1537 = vld [vmem:[%s1189 + $0xa10] sm:$0xff]
        %v1538 = vld [vmem:[%s1189 + $0xa18] sm:$0xff]
        %v1539 = vld [vmem:[%s1189 + $0xa20] sm:$0xff]
        %v1540 = vld [vmem:[%s1189 + $0xa28] sm:$0xff]
        %v1541 = vld [vmem:[%s1189 + $0xa30] sm:$0xff]
        %v1542 = vld [vmem:[%s1189 + $0xa38] sm:$0xff]
        %v1543 = vld [vmem:[%s1189 + $0xa40] sm:$0xff]
        %v1544 = vld [vmem:[%s1189 + $0xa48] sm:$0xff]
        %v1545 = vld [vmem:[%s1189 + $0xa50] sm:$0xff]
        %v1546 = vld [vmem:[%s1189 + $0xa58] sm:$0xff]
        %v1547 = vld [vmem:[%s1189 + $0xa60] sm:$0xff]
        %v1548 = vld [vmem:[%s1189 + $0xa68] sm:$0xff]
        %v1549 = vld [vmem:[%s1189 + $0xa70] sm:$0xff]
        %v1550 = vld [vmem:[%s1189 + $0xa78] sm:$0xff]
        %v1551 = vld [vmem:[%s1189 + $0xa80] sm:$0xff]
        %v1552 = vld [vmem:[%s1189 + $0xa88] sm:$0xff]
        %v1553 = vld [vmem:[%s1189 + $0xa90] sm:$0xff]
        %v1554 = vld [vmem:[%s1189 + $0xa98] sm:$0xff]
        %v1555 = vld [vmem:[%s1189 + $0xaa0] sm:$0xff]
        %v1556 = vld [vmem:[%s1189 + $0xaa8] sm:$0xff]
        %v1557 = vld [vmem:[%s1189 + $0xab0] sm:$0xff]
        %v1558 = vld [vmem:[%s1189 + $0xab8] sm:$0xff]
        %v1559 = vld [vmem:[%s1189 + $0xac0] sm:$0xff]
        %v1560 = vld [vmem:[%s1189 + $0xac8] sm:$0xff]
        %v1561 = vld [vmem:[%s1189 + $0xad0] sm:$0xff]
        %v1562 = vld [vmem:[%s1189 + $0xad8] sm:$0xff]
        %v1563 = vld [vmem:[%s1189 + $0xae0] sm:$0xff]
        %v1564 = vld [vmem:[%s1189 + $0xae8] sm:$0xff]
        %v1565 = vld [vmem:[%s1189 + $0xaf0] sm:$0xff]
        %v1566 = vld [vmem:[%s1189 + $0xaf8] sm:$0xff]
        %v1567 = vld [vmem:[%s1189 + $0xb00] sm:$0xff]
        %v1568 = vld [vmem:[%s1189 + $0xb08] sm:$0xff]
        %v1569 = vld [vmem:[%s1189 + $0xb10] sm:$0xff]
        %v1570 = vld [vmem:[%s1189 + $0xb18] sm:$0xff]
        %v1571 = vld [vmem:[%s1189 + $0xb20] sm:$0xff]
        %v1572 = vld [vmem:[%s1189 + $0xb28] sm:$0xff]
        %v1573 = vld [vmem:[%s1189 + $0xb30] sm:$0xff]
        %v1574 = vld [vmem:[%s1189 + $0xb38] sm:$0xff]
        %v1575 = vld [vmem:[%s1189 + $0xb40] sm:$0xff]
        %v1576 = vld [vmem:[%s1189 + $0xb48] sm:$0xff]
        %v1577 = vld [vmem:[%s1189 + $0xb50] sm:$0xff]
        %v1578 = vld [vmem:[%s1189 + $0xb58] sm:$0xff]
        %v1579 = vld [vmem:[%s1189 + $0xb60] sm:$0xff]
        %v1580 = vld [vmem:[%s1189 + $0xb68] sm:$0xff]
        %v1581 = vld [vmem:[%s1189 + $0xb70] sm:$0xff]
        %v1582 = vld [vmem:[%s1189 + $0xb78] sm:$0xff]
        %v1583 = vld [vmem:[%s1189 + $0xb80] sm:$0xff]
        %v1584 = vld [vmem:[%s1189 + $0xb88] sm:$0xff]
        %v1585 = vld [vmem:[%s1189 + $0xb90] sm:$0xff]
        %v1586 = vld [vmem:[%s1189 + $0xb98] sm:$0xff]
        %v1587 = vld [vmem:[%s1189 + $0xba0] sm:$0xff]
        %v1588 = vld [vmem:[%s1189 + $0xba8] sm:$0xff]
        %v1589 = vld [vmem:[%s1189 + $0xbb0] sm:$0xff]
        %v1590 = vld [vmem:[%s1189 + $0xbb8] sm:$0xff]
        %v1591 = vld [vmem:[%s1189 + $0xbc0] sm:$0xff]
        %v1592 = vld [vmem:[%s1189 + $0xbc8] sm:$0xff]
        %v1593 = vld [vmem:[%s1189 + $0xbd0] sm:$0xff]
        %v1594 = vld [vmem:[%s1189 + $0xbd8] sm:$0xff]
        %v1595 = vld [vmem:[%s1189 + $0xbe0] sm:$0xff]
        %v1596 = vld [vmem:[%s1189 + $0xbe8] sm:$0xff]
        %v1597 = vld [vmem:[%s1189 + $0xbf0] sm:$0xff]
        %v1598 = vld [vmem:[%s1189 + $0xbf8] sm:$0xff]
        %v1599 = vld [vmem:[%s1189 + $0xc00] sm:$0xff]
        %v1600 = vld [vmem:[%s1189 + $0xc08] sm:$0xff]
        %v1601 = vld [vmem:[%s1189 + $0xc10] sm:$0xff]
        %v1602 = vld [vmem:[%s1189 + $0xc18] sm:$0xff]
        %v1603 = vld [vmem:[%s1189 + $0xc20] sm:$0xff]
        %v1604 = vld [vmem:[%s1189 + $0xc28] sm:$0xff]
        %v1605 = vld [vmem:[%s1189 + $0xc30] sm:$0xff]
        %v1606 = vld [vmem:[%s1189 + $0xc38] sm:$0xff]
        %v1607 = vld [vmem:[%s1189 + $0xc40] sm:$0xff]
        %v1608 = vld [vmem:[%s1189 + $0xc48] sm:$0xff]
        %v1609 = vld [vmem:[%s1189 + $0xc50] sm:$0xff]
        %v1610 = vld [vmem:[%s1189 + $0xc58] sm:$0xff]
        %v1611 = vld [vmem:[%s1189 + $0xc60] sm:$0xff]
        %v1612 = vld [vmem:[%s1189 + $0xc68] sm:$0xff]
        %v1613 = vld [vmem:[%s1189 + $0xc70] sm:$0xff]
        %v1614 = vld [vmem:[%s1189 + $0xc78] sm:$0xff]
        %v1615 = vld [vmem:[%s1189 + $0xc80] sm:$0xff]
        %v1616 = vld [vmem:[%s1189 + $0xc88] sm:$0xff]
        %v1617 = vld [vmem:[%s1189 + $0xc90] sm:$0xff]
        %v1618 = vld [vmem:[%s1189 + $0xc98] sm:$0xff]
        %v1619 = vld [vmem:[%s1189 + $0xca0] sm:$0xff]
        %v1620 = vld [vmem:[%s1189 + $0xca8] sm:$0xff]
        %v1621 = vld [vmem:[%s1189 + $0xcb0] sm:$0xff]
        %v1622 = vld [vmem:[%s1189 + $0xcb8] sm:$0xff]
        %v1623 = vld [vmem:[%s1189 + $0xcc0] sm:$0xff]
        %v1624 = vld [vmem:[%s1189 + $0xcc8] sm:$0xff]
        %v1625 = vld [vmem:[%s1189 + $0xcd0] sm:$0xff]
        %v1626 = vld [vmem:[%s1189 + $0xcd8] sm:$0xff]
        %v1627 = vld [vmem:[%s1189 + $0xce0] sm:$0xff]
        %v1628 = vld [vmem:[%s1189 + $0xce8] sm:$0xff]
        %v1629 = vld [vmem:[%s1189 + $0xcf0] sm:$0xff]
        %v1630 = vld [vmem:[%s1189 + $0xcf8] sm:$0xff]
        %v1631 = vld [vmem:[%s1189 + $0xd00] sm:$0xff]
        %v1632 = vld [vmem:[%s1189 + $0xd08] sm:$0xff]
        %v1633 = vld [vmem:[%s1189 + $0xd10] sm:$0xff]
        %v1634 = vld [vmem:[%s1189 + $0xd18] sm:$0xff]
        %v1635 = vld [vmem:[%s1189 + $0xd20] sm:$0xff]
        %v1636 = vld [vmem:[%s1189 + $0xd28] sm:$0xff]
        %v1637 = vld [vmem:[%s1189 + $0xd30] sm:$0xff]
        %v1638 = vld [vmem:[%s1189 + $0xd38] sm:$0xff]
        %v1639 = vld [vmem:[%s1189 + $0xd40] sm:$0xff]
        %v1640 = vld [vmem:[%s1189 + $0xd48] sm:$0xff]
        %v1641 = vld [vmem:[%s1189 + $0xd50] sm:$0xff]
        %v1642 = vld [vmem:[%s1189 + $0xd58] sm:$0xff]
        %v1643 = vld [vmem:[%s1189 + $0xd60] sm:$0xff]
        %v1644 = vld [vmem:[%s1189 + $0xd68] sm:$0xff]
        %v1645 = vld [vmem:[%s1189 + $0xd70] sm:$0xff]
        %v1646 = vld [vmem:[%s1189 + $0xd78] sm:$0xff]
        %v1647 = vld [vmem:[%s1189 + $0xd80] sm:$0xff]
        %v1648 = vld [vmem:[%s1189 + $0xd88] sm:$0xff]
        %v1649 = vld [vmem:[%s1189 + $0xd90] sm:$0xff]
        %v1650 = vld [vmem:[%s1189 + $0xd98] sm:$0xff]
        %v1651 = vld [vmem:[%s1189 + $0xda0] sm:$0xff]
        %v1652 = vld [vmem:[%s1189 + $0xda8] sm:$0xff]
        %v1653 = vld [vmem:[%s1189 + $0xdb0] sm:$0xff]
        %v1654 = vld [vmem:[%s1189 + $0xdb8] sm:$0xff]
        %v1655 = vld [vmem:[%s1189 + $0xdc0] sm:$0xff]
        %v1656 = vld [vmem:[%s1189 + $0xdc8] sm:$0xff]
        %v1657 = vld [vmem:[%s1189 + $0xdd0] sm:$0xff]
        %v1658 = vld [vmem:[%s1189 + $0xdd8] sm:$0xff]
        %v1659 = vld [vmem:[%s1189 + $0xde0] sm:$0xff]
        %v1660 = vld [vmem:[%s1189 + $0xde8] sm:$0xff]
        %v1661 = vld [vmem:[%s1189 + $0xdf0] sm:$0xff]
        %v1662 = vld [vmem:[%s1189 + $0xdf8] sm:$0xff]
        %v1663 = vld [vmem:[%s1189 + $0xe00] sm:$0xff]
        %v1664 = vld [vmem:[%s1189 + $0xe08] sm:$0xff]
        %v1665 = vld [vmem:[%s1189 + $0xe10] sm:$0xff]
        %v1666 = vld [vmem:[%s1189 + $0xe18] sm:$0xff]
        %v1667 = vld [vmem:[%s1189 + $0xe20] sm:$0xff]
        %v1668 = vld [vmem:[%s1189 + $0xe28] sm:$0xff]
        %v1669 = vld [vmem:[%s1189 + $0xe30] sm:$0xff]
        %v1670 = vld [vmem:[%s1189 + $0xe38] sm:$0xff]
        %v1671 = vld [vmem:[%s1189 + $0xe40] sm:$0xff]
        %v1672 = vld [vmem:[%s1189 + $0xe48] sm:$0xff]
        %v1673 = vld [vmem:[%s1189 + $0xe50] sm:$0xff]
        %v1674 = vld [vmem:[%s1189 + $0xe58] sm:$0xff]
        %v1675 = vld [vmem:[%s1189 + $0xe60] sm:$0xff]
        %v1676 = vld [vmem:[%s1189 + $0xe68] sm:$0xff]
        %v1677 = vld [vmem:[%s1189 + $0xe70] sm:$0xff]
        %v1678 = vld [vmem:[%s1189 + $0xe78] sm:$0xff]
        %v1679 = vld [vmem:[%s1189 + $0xe80] sm:$0xff]
        %v1680 = vld [vmem:[%s1189 + $0xe88] sm:$0xff]
        %v1681 = vld [vmem:[%s1189 + $0xe90] sm:$0xff]
        %v1682 = vld [vmem:[%s1189 + $0xe98] sm:$0xff]
        %v1683 = vld [vmem:[%s1189 + $0xea0] sm:$0xff]
        %v1684 = vld [vmem:[%s1189 + $0xea8] sm:$0xff]
        %v1685 = vld [vmem:[%s1189 + $0xeb0] sm:$0xff]
        %v1686 = vld [vmem:[%s1189 + $0xeb8] sm:$0xff]
        %v1687 = vld [vmem:[%s1189 + $0xec0] sm:$0xff]
        %v1688 = vld [vmem:[%s1189 + $0xec8] sm:$0xff]
        %v1689 = vld [vmem:[%s1189 + $0xed0] sm:$0xff]
        %v1690 = vld [vmem:[%s1189 + $0xed8] sm:$0xff]
        %v1691 = vld [vmem:[%s1189 + $0xee0] sm:$0xff]
        %v1692 = vld [vmem:[%s1189 + $0xee8] sm:$0xff]
        %v1693 = vld [vmem:[%s1189 + $0xef0] sm:$0xff]
        %v1694 = vld [vmem:[%s1189 + $0xef8] sm:$0xff]
        %v1695 = vld [vmem:[%s1189 + $0xf00] sm:$0xff]
        %v1696 = vld [vmem:[%s1189 + $0xf08] sm:$0xff]
        %v1697 = vld [vmem:[%s1189 + $0xf10] sm:$0xff]
        %v1698 = vld [vmem:[%s1189 + $0xf18] sm:$0xff]
        %v1699 = vld [vmem:[%s1189 + $0xf20] sm:$0xff]
        %v1700 = vld [vmem:[%s1189 + $0xf28] sm:$0xff]
        %v1701 = vld [vmem:[%s1189 + $0xf30] sm:$0xff]
        %v1702 = vld [vmem:[%s1189 + $0xf38] sm:$0xff]
        %v1703 = vld [vmem:[%s1189 + $0xf40] sm:$0xff]
        %v1704 = vld [vmem:[%s1189 + $0xf48] sm:$0xff]
        %v1705 = vld [vmem:[%s1189 + $0xf50] sm:$0xff]
        %v1706 = vld [vmem:[%s1189 + $0xf58] sm:$0xff]
        %v1707 = vld [vmem:[%s1189 + $0xf60] sm:$0xff]
        %v1708 = vld [vmem:[%s1189 + $0xf68] sm:$0xff]
        %v1709 = vld [vmem:[%s1189 + $0xf70] sm:$0xff]
        %v1710 = vld [vmem:[%s1189 + $0xf78] sm:$0xff]
        %v1711 = vld [vmem:[%s1189 + $0xf80] sm:$0xff]
        %v1712 = vld [vmem:[%s1189 + $0xf88] sm:$0xff]
        %v1713 = vld [vmem:[%s1189 + $0xf90] sm:$0xff]
        %v1714 = vld [vmem:[%s1189 + $0xf98] sm:$0xff]
        %v1715 = vld [vmem:[%s1189 + $0xfa0] sm:$0xff]
        %v1716 = vld [vmem:[%s1189 + $0xfa8] sm:$0xff]
        %v1717 = vld [vmem:[%s1189 + $0xfb0] sm:$0xff]
        %v1718 = vld [vmem:[%s1189 + $0xfb8] sm:$0xff]
        %v1719 = vld [vmem:[%s1189 + $0xfc0] sm:$0xff]
        %v1720 = vld [vmem:[%s1189 + $0xfc8] sm:$0xff]
        %v1721 = vld [vmem:[%s1189 + $0xfd0] sm:$0xff]
        %v1722 = vld [vmem:[%s1189 + $0xfd8] sm:$0xff]
        %v1723 = vld [vmem:[%s1189 + $0xfe0] sm:$0xff]
        %v1724 = vld [vmem:[%s1189 + $0xfe8] sm:$0xff]
        %v1725 = vld [vmem:[%s1189 + $0xff0] sm:$0xff]
        %v1726 = vld [vmem:[%s1189 + $0xff8] sm:$0xff]
        %v1727 = vld [vmem:[%s0] sm:$0xff]
        %v1728 = vld [vmem:[%s0 + $0x8] sm:$0xff]
        %v1729 = vld [vmem:[%s0 + $0x10] sm:$0xff]
        %v1730 = vld [vmem:[%s0 + $0x18] sm:$0xff]
        %v1731 = vld [vmem:[%s0 + $0x20] sm:$0xff]
        %v1732 = vld [vmem:[%s0 + $0x28] sm:$0xff]
        %v1733 = vld [vmem:[%s0 + $0x30] sm:$0xff]
        %v1734 = vld [vmem:[%s0 + $0x38] sm:$0xff]
        %v1735 = vld [vmem:[%s0 + $0x40] sm:$0xff]
        %v1736 = vld [vmem:[%s0 + $0x48] sm:$0xff]
        %v1737 = vld [vmem:[%s0 + $0x50] sm:$0xff]
        %v1738 = vld [vmem:[%s0 + $0x58] sm:$0xff]
        %v1739 = vld [vmem:[%s0 + $0x60] sm:$0xff]
        %v1740 = vld [vmem:[%s0 + $0x68] sm:$0xff]
        %v1741 = vld [vmem:[%s0 + $0x70] sm:$0xff]
        %v1742 = vld [vmem:[%s0 + $0x78] sm:$0xff]
        %1744 = vset.pattern.permute.xlu0 0
        %1745 = vperm.xlu0 %1744, %v1727
        %v1746 = vpop.permute.xlu0 %1745
        %1749 = vset.pattern.permute.xlu0 0
        %1750 = vperm.xlu0 %1749, %v1728
        %v1751 = vpop.permute.xlu0 %1750
        %1754 = vset.pattern.permute.xlu0 0
        %1755 = vperm.xlu0 %1754, %v1729
        %v1756 = vpop.permute.xlu0 %1755
        %1759 = vset.pattern.permute.xlu0 0
        %1760 = vperm.xlu0 %1759, %v1730
        %v1761 = vpop.permute.xlu0 %1760
        %1764 = vset.pattern.permute.xlu0 0
        %1765 = vperm.xlu0 %1764, %v1731
        %v1766 = vpop.permute.xlu0 %1765
        %1769 = vset.pattern.permute.xlu0 0
        %1770 = vperm.xlu0 %1769, %v1732
        %v1771 = vpop.permute.xlu0 %1770
        %1774 = vset.pattern.permute.xlu0 0
        %1775 = vperm.xlu0 %1774, %v1733
        %v1776 = vpop.permute.xlu0 %1775
        %1779 = vset.pattern.permute.xlu0 0
        %1780 = vperm.xlu0 %1779, %v1734
        %v1781 = vpop.permute.xlu0 %1780
        %1784 = vset.pattern.permute.xlu0 0
        %1785 = vperm.xlu0 %1784, %v1735
        %v1786 = vpop.permute.xlu0 %1785
        %1789 = vset.pattern.permute.xlu0 0
        %1790 = vperm.xlu0 %1789, %v1736
        %v1791 = vpop.permute.xlu0 %1790
        %1794 = vset.pattern.permute.xlu0 0
        %1795 = vperm.xlu0 %1794, %v1737
        %v1796 = vpop.permute.xlu0 %1795
        %1799 = vset.pattern.permute.xlu0 0
        %1800 = vperm.xlu0 %1799, %v1738
        %v1801 = vpop.permute.xlu0 %1800
        %1804 = vset.pattern.permute.xlu0 0
        %1805 = vperm.xlu0 %1804, %v1739
        %v1806 = vpop.permute.xlu0 %1805
        %1809 = vset.pattern.permute.xlu0 0
        %1810 = vperm.xlu0 %1809, %v1740
        %v1811 = vpop.permute.xlu0 %1810
        %1814 = vset.pattern.permute.xlu0 0
        %1815 = vperm.xlu0 %1814, %v1741
        %v1816 = vpop.permute.xlu0 %1815
        %1819 = vset.pattern.permute.xlu0 0
        %1820 = vperm.xlu0 %1819, %v1742
        %v1821 = vpop.permute.xlu0 %1820
        %v1823 = vmul.f32 %v1215, %v1746
        %v1824 = vmul.f32 %v1216, %v1746
        %v1825 = vmul.f32 %v1217, %v1746
        %v1826 = vmul.f32 %v1218, %v1746
        %v1827 = vmul.f32 %v1219, %v1746
        %v1828 = vmul.f32 %v1220, %v1746
        %v1829 = vmul.f32 %v1221, %v1746
        %v1830 = vmul.f32 %v1222, %v1746
        %v1831 = vmul.f32 %v1223, %v1746
        %v1832 = vmul.f32 %v1224, %v1746
        %v1833 = vmul.f32 %v1225, %v1746
        %v1834 = vmul.f32 %v1226, %v1746
        %v1835 = vmul.f32 %v1227, %v1746
        %v1836 = vmul.f32 %v1228, %v1746
        %v1837 = vmul.f32 %v1229, %v1746
        %v1838 = vmul.f32 %v1230, %v1746
        %v1839 = vmul.f32 %v1231, %v1746
        %v1840 = vmul.f32 %v1232, %v1746
        %v1841 = vmul.f32 %v1233, %v1746
        %v1842 = vmul.f32 %v1234, %v1746
        %v1843 = vmul.f32 %v1235, %v1746
        %v1844 = vmul.f32 %v1236, %v1746
        %v1845 = vmul.f32 %v1237, %v1746
        %v1846 = vmul.f32 %v1238, %v1746
        %v1847 = vmul.f32 %v1239, %v1746
        %v1848 = vmul.f32 %v1240, %v1746
        %v1849 = vmul.f32 %v1241, %v1746
        %v1850 = vmul.f32 %v1242, %v1746
        %v1851 = vmul.f32 %v1243, %v1746
        %v1852 = vmul.f32 %v1244, %v1746
        %v1853 = vmul.f32 %v1245, %v1746
        %v1854 = vmul.f32 %v1246, %v1746
        %v1855 = vmul.f32 %v1247, %v1751
        %v1856 = vmul.f32 %v1248, %v1751
        %v1857 = vmul.f32 %v1249, %v1751
        %v1858 = vmul.f32 %v1250, %v1751
        %v1859 = vmul.f32 %v1251, %v1751
        %v1860 = vmul.f32 %v1252, %v1751
        %v1861 = vmul.f32 %v1253, %v1751
        %v1862 = vmul.f32 %v1254, %v1751
        %v1863 = vmul.f32 %v1255, %v1751
        %v1864 = vmul.f32 %v1256, %v1751
        %v1865 = vmul.f32 %v1257, %v1751
        %v1866 = vmul.f32 %v1258, %v1751
        %v1867 = vmul.f32 %v1259, %v1751
        %v1868 = vmul.f32 %v1260, %v1751
        %v1869 = vmul.f32 %v1261, %v1751
        %v1870 = vmul.f32 %v1262, %v1751
        %v1871 = vmul.f32 %v1263, %v1751
        %v1872 = vmul.f32 %v1264, %v1751
        %v1873 = vmul.f32 %v1265, %v1751
        %v1874 = vmul.f32 %v1266, %v1751
        %v1875 = vmul.f32 %v1267, %v1751
        %v1876 = vmul.f32 %v1268, %v1751
        %v1877 = vmul.f32 %v1269, %v1751
        %v1878 = vmul.f32 %v1270, %v1751
        %v1879 = vmul.f32 %v1271, %v1751
        %v1880 = vmul.f32 %v1272, %v1751
        %v1881 = vmul.f32 %v1273, %v1751
        %v1882 = vmul.f32 %v1274, %v1751
        %v1883 = vmul.f32 %v1275, %v1751
        %v1884 = vmul.f32 %v1276, %v1751
        %v1885 = vmul.f32 %v1277, %v1751
        %v1886 = vmul.f32 %v1278, %v1751
        %v1887 = vmul.f32 %v1279, %v1756
        %v1888 = vmul.f32 %v1280, %v1756
        %v1889 = vmul.f32 %v1281, %v1756
        %v1890 = vmul.f32 %v1282, %v1756
        %v1891 = vmul.f32 %v1283, %v1756
        %v1892 = vmul.f32 %v1284, %v1756
        %v1893 = vmul.f32 %v1285, %v1756
        %v1894 = vmul.f32 %v1286, %v1756
        %v1895 = vmul.f32 %v1287, %v1756
        %v1896 = vmul.f32 %v1288, %v1756
        %v1897 = vmul.f32 %v1289, %v1756
        %v1898 = vmul.f32 %v1290, %v1756
        %v1899 = vmul.f32 %v1291, %v1756
        %v1900 = vmul.f32 %v1292, %v1756
        %v1901 = vmul.f32 %v1293, %v1756
        %v1902 = vmul.f32 %v1294, %v1756
        %v1903 = vmul.f32 %v1295, %v1756
        %v1904 = vmul.f32 %v1296, %v1756
        %v1905 = vmul.f32 %v1297, %v1756
        %v1906 = vmul.f32 %v1298, %v1756
        %v1907 = vmul.f32 %v1299, %v1756
        %v1908 = vmul.f32 %v1300, %v1756
        %v1909 = vmul.f32 %v1301, %v1756
        %v1910 = vmul.f32 %v1302, %v1756
        %v1911 = vmul.f32 %v1303, %v1756
        %v1912 = vmul.f32 %v1304, %v1756
        %v1913 = vmul.f32 %v1305, %v1756
        %v1914 = vmul.f32 %v1306, %v1756
        %v1915 = vmul.f32 %v1307, %v1756
        %v1916 = vmul.f32 %v1308, %v1756
        %v1917 = vmul.f32 %v1309, %v1756
        %v1918 = vmul.f32 %v1310, %v1756
        %v1919 = vmul.f32 %v1311, %v1761
        %v1920 = vmul.f32 %v1312, %v1761
        %v1921 = vmul.f32 %v1313, %v1761
        %v1922 = vmul.f32 %v1314, %v1761
        %v1923 = vmul.f32 %v1315, %v1761
        %v1924 = vmul.f32 %v1316, %v1761
        %v1925 = vmul.f32 %v1317, %v1761
        %v1926 = vmul.f32 %v1318, %v1761
        %v1927 = vmul.f32 %v1319, %v1761
        %v1928 = vmul.f32 %v1320, %v1761
        %v1929 = vmul.f32 %v1321, %v1761
        %v1930 = vmul.f32 %v1322, %v1761
        %v1931 = vmul.f32 %v1323, %v1761
        %v1932 = vmul.f32 %v1324, %v1761
        %v1933 = vmul.f32 %v1325, %v1761
        %v1934 = vmul.f32 %v1326, %v1761
        %v1935 = vmul.f32 %v1327, %v1761
        %v1936 = vmul.f32 %v1328, %v1761
        %v1937 = vmul.f32 %v1329, %v1761
        %v1938 = vmul.f32 %v1330, %v1761
        %v1939 = vmul.f32 %v1331, %v1761
        %v1940 = vmul.f32 %v1332, %v1761
        %v1941 = vmul.f32 %v1333, %v1761
        %v1942 = vmul.f32 %v1334, %v1761
        %v1943 = vmul.f32 %v1335, %v1761
        %v1944 = vmul.f32 %v1336, %v1761
        %v1945 = vmul.f32 %v1337, %v1761
        %v1946 = vmul.f32 %v1338, %v1761
        %v1947 = vmul.f32 %v1339, %v1761
        %v1948 = vmul.f32 %v1340, %v1761
        %v1949 = vmul.f32 %v1341, %v1761
        %v1950 = vmul.f32 %v1342, %v1761
        %v1951 = vmul.f32 %v1343, %v1766
        %v1952 = vmul.f32 %v1344, %v1766
        %v1953 = vmul.f32 %v1345, %v1766
        %v1954 = vmul.f32 %v1346, %v1766
        %v1955 = vmul.f32 %v1347, %v1766
        %v1956 = vmul.f32 %v1348, %v1766
        %v1957 = vmul.f32 %v1349, %v1766
        %v1958 = vmul.f32 %v1350, %v1766
        %v1959 = vmul.f32 %v1351, %v1766
        %v1960 = vmul.f32 %v1352, %v1766
        %v1961 = vmul.f32 %v1353, %v1766
        %v1962 = vmul.f32 %v1354, %v1766
        %v1963 = vmul.f32 %v1355, %v1766
        %v1964 = vmul.f32 %v1356, %v1766
        %v1965 = vmul.f32 %v1357, %v1766
        %v1966 = vmul.f32 %v1358, %v1766
        %v1967 = vmul.f32 %v1359, %v1766
        %v1968 = vmul.f32 %v1360, %v1766
        %v1969 = vmul.f32 %v1361, %v1766
        %v1970 = vmul.f32 %v1362, %v1766
        %v1971 = vmul.f32 %v1363, %v1766
        %v1972 = vmul.f32 %v1364, %v1766
        %v1973 = vmul.f32 %v1365, %v1766
        %v1974 = vmul.f32 %v1366, %v1766
        %v1975 = vmul.f32 %v1367, %v1766
        %v1976 = vmul.f32 %v1368, %v1766
        %v1977 = vmul.f32 %v1369, %v1766
        %v1978 = vmul.f32 %v1370, %v1766
        %v1979 = vmul.f32 %v1371, %v1766
        %v1980 = vmul.f32 %v1372, %v1766
        %v1981 = vmul.f32 %v1373, %v1766
        %v1982 = vmul.f32 %v1374, %v1766
        %v1983 = vmul.f32 %v1375, %v1771
        %v1984 = vmul.f32 %v1376, %v1771
        %v1985 = vmul.f32 %v1377, %v1771
        %v1986 = vmul.f32 %v1378, %v1771
        %v1987 = vmul.f32 %v1379, %v1771
        %v1988 = vmul.f32 %v1380, %v1771
        %v1989 = vmul.f32 %v1381, %v1771
        %v1990 = vmul.f32 %v1382, %v1771
        %v1991 = vmul.f32 %v1383, %v1771
        %v1992 = vmul.f32 %v1384, %v1771
        %v1993 = vmul.f32 %v1385, %v1771
        %v1994 = vmul.f32 %v1386, %v1771
        %v1995 = vmul.f32 %v1387, %v1771
        %v1996 = vmul.f32 %v1388, %v1771
        %v1997 = vmul.f32 %v1389, %v1771
        %v1998 = vmul.f32 %v1390, %v1771
        %v1999 = vmul.f32 %v1391, %v1771
        %v2000 = vmul.f32 %v1392, %v1771
        %v2001 = vmul.f32 %v1393, %v1771
        %v2002 = vmul.f32 %v1394, %v1771
        %v2003 = vmul.f32 %v1395, %v1771
        %v2004 = vmul.f32 %v1396, %v1771
        %v2005 = vmul.f32 %v1397, %v1771
        %v2006 = vmul.f32 %v1398, %v1771
        %v2007 = vmul.f32 %v1399, %v1771
        %v2008 = vmul.f32 %v1400, %v1771
        %v2009 = vmul.f32 %v1401, %v1771
        %v2010 = vmul.f32 %v1402, %v1771
        %v2011 = vmul.f32 %v1403, %v1771
        %v2012 = vmul.f32 %v1404, %v1771
        %v2013 = vmul.f32 %v1405, %v1771
        %v2014 = vmul.f32 %v1406, %v1771
        %v2015 = vmul.f32 %v1407, %v1776
        %v2016 = vmul.f32 %v1408, %v1776
        %v2017 = vmul.f32 %v1409, %v1776
        %v2018 = vmul.f32 %v1410, %v1776
        %v2019 = vmul.f32 %v1411, %v1776
        %v2020 = vmul.f32 %v1412, %v1776
        %v2021 = vmul.f32 %v1413, %v1776
        %v2022 = vmul.f32 %v1414, %v1776
        %v2023 = vmul.f32 %v1415, %v1776
        %v2024 = vmul.f32 %v1416, %v1776
        %v2025 = vmul.f32 %v1417, %v1776
        %v2026 = vmul.f32 %v1418, %v1776
        %v2027 = vmul.f32 %v1419, %v1776
        %v2028 = vmul.f32 %v1420, %v1776
        %v2029 = vmul.f32 %v1421, %v1776
        %v2030 = vmul.f32 %v1422, %v1776
        %v2031 = vmul.f32 %v1423, %v1776
        %v2032 = vmul.f32 %v1424, %v1776
        %v2033 = vmul.f32 %v1425, %v1776
        %v2034 = vmul.f32 %v1426, %v1776
        %v2035 = vmul.f32 %v1427, %v1776
        %v2036 = vmul.f32 %v1428, %v1776
        %v2037 = vmul.f32 %v1429, %v1776
        %v2038 = vmul.f32 %v1430, %v1776
        %v2039 = vmul.f32 %v1431, %v1776
        %v2040 = vmul.f32 %v1432, %v1776
        %v2041 = vmul.f32 %v1433, %v1776
        %v2042 = vmul.f32 %v1434, %v1776
        %v2043 = vmul.f32 %v1435, %v1776
        %v2044 = vmul.f32 %v1436, %v1776
        %v2045 = vmul.f32 %v1437, %v1776
        %v2046 = vmul.f32 %v1438, %v1776
        %v2047 = vmul.f32 %v1439, %v1781
        %v2048 = vmul.f32 %v1440, %v1781
        %v2049 = vmul.f32 %v1441, %v1781
        %v2050 = vmul.f32 %v1442, %v1781
        %v2051 = vmul.f32 %v1443, %v1781
        %v2052 = vmul.f32 %v1444, %v1781
        %v2053 = vmul.f32 %v1445, %v1781
        %v2054 = vmul.f32 %v1446, %v1781
        %v2055 = vmul.f32 %v1447, %v1781
        %v2056 = vmul.f32 %v1448, %v1781
        %v2057 = vmul.f32 %v1449, %v1781
        %v2058 = vmul.f32 %v1450, %v1781
        %v2059 = vmul.f32 %v1451, %v1781
        %v2060 = vmul.f32 %v1452, %v1781
        %v2061 = vmul.f32 %v1453, %v1781
        %v2062 = vmul.f32 %v1454, %v1781
        %v2063 = vmul.f32 %v1455, %v1781
        %v2064 = vmul.f32 %v1456, %v1781
        %v2065 = vmul.f32 %v1457, %v1781
        %v2066 = vmul.f32 %v1458, %v1781
        %v2067 = vmul.f32 %v1459, %v1781
        %v2068 = vmul.f32 %v1460, %v1781
        %v2069 = vmul.f32 %v1461, %v1781
        %v2070 = vmul.f32 %v1462, %v1781
        %v2071 = vmul.f32 %v1463, %v1781
        %v2072 = vmul.f32 %v1464, %v1781
        %v2073 = vmul.f32 %v1465, %v1781
        %v2074 = vmul.f32 %v1466, %v1781
        %v2075 = vmul.f32 %v1467, %v1781
        %v2076 = vmul.f32 %v1468, %v1781
        %v2077 = vmul.f32 %v1469, %v1781
        %v2078 = vmul.f32 %v1470, %v1781
        %v2079 = vmul.f32 %v1471, %v1786
        %v2080 = vmul.f32 %v1472, %v1786
        %v2081 = vmul.f32 %v1473, %v1786
        %v2082 = vmul.f32 %v1474, %v1786
        %v2083 = vmul.f32 %v1475, %v1786
        %v2084 = vmul.f32 %v1476, %v1786
        %v2085 = vmul.f32 %v1477, %v1786
        %v2086 = vmul.f32 %v1478, %v1786
        %v2087 = vmul.f32 %v1479, %v1786
        %v2088 = vmul.f32 %v1480, %v1786
        %v2089 = vmul.f32 %v1481, %v1786
        %v2090 = vmul.f32 %v1482, %v1786
        %v2091 = vmul.f32 %v1483, %v1786
        %v2092 = vmul.f32 %v1484, %v1786
        %v2093 = vmul.f32 %v1485, %v1786
        %v2094 = vmul.f32 %v1486, %v1786
        %v2095 = vmul.f32 %v1487, %v1786
        %v2096 = vmul.f32 %v1488, %v1786
        %v2097 = vmul.f32 %v1489, %v1786
        %v2098 = vmul.f32 %v1490, %v1786
        %v2099 = vmul.f32 %v1491, %v1786
        %v2100 = vmul.f32 %v1492, %v1786
        %v2101 = vmul.f32 %v1493, %v1786
        %v2102 = vmul.f32 %v1494, %v1786
        %v2103 = vmul.f32 %v1495, %v1786
        %v2104 = vmul.f32 %v1496, %v1786
        %v2105 = vmul.f32 %v1497, %v1786
        %v2106 = vmul.f32 %v1498, %v1786
        %v2107 = vmul.f32 %v1499, %v1786
        %v2108 = vmul.f32 %v1500, %v1786
        %v2109 = vmul.f32 %v1501, %v1786
        %v2110 = vmul.f32 %v1502, %v1786
        %v2111 = vmul.f32 %v1503, %v1791
        %v2112 = vmul.f32 %v1504, %v1791
        %v2113 = vmul.f32 %v1505, %v1791
        %v2114 = vmul.f32 %v1506, %v1791
        %v2115 = vmul.f32 %v1507, %v1791
        %v2116 = vmul.f32 %v1508, %v1791
        %v2117 = vmul.f32 %v1509, %v1791
        %v2118 = vmul.f32 %v1510, %v1791
        %v2119 = vmul.f32 %v1511, %v1791
        %v2120 = vmul.f32 %v1512, %v1791
        %v2121 = vmul.f32 %v1513, %v1791
        %v2122 = vmul.f32 %v1514, %v1791
        %v2123 = vmul.f32 %v1515, %v1791
        %v2124 = vmul.f32 %v1516, %v1791
        %v2125 = vmul.f32 %v1517, %v1791
        %v2126 = vmul.f32 %v1518, %v1791
        %v2127 = vmul.f32 %v1519, %v1791
        %v2128 = vmul.f32 %v1520, %v1791
        %v2129 = vmul.f32 %v1521, %v1791
        %v2130 = vmul.f32 %v1522, %v1791
        %v2131 = vmul.f32 %v1523, %v1791
        %v2132 = vmul.f32 %v1524, %v1791
        %v2133 = vmul.f32 %v1525, %v1791
        %v2134 = vmul.f32 %v1526, %v1791
        %v2135 = vmul.f32 %v1527, %v1791
        %v2136 = vmul.f32 %v1528, %v1791
        %v2137 = vmul.f32 %v1529, %v1791
        %v2138 = vmul.f32 %v1530, %v1791
        %v2139 = vmul.f32 %v1531, %v1791
        %v2140 = vmul.f32 %v1532, %v1791
        %v2141 = vmul.f32 %v1533, %v1791
        %v2142 = vmul.f32 %v1534, %v1791
        %v2143 = vmul.f32 %v1535, %v1796
        %v2144 = vmul.f32 %v1536, %v1796
        %v2145 = vmul.f32 %v1537, %v1796
        %v2146 = vmul.f32 %v1538, %v1796
        %v2147 = vmul.f32 %v1539, %v1796
        %v2148 = vmul.f32 %v1540, %v1796
        %v2149 = vmul.f32 %v1541, %v1796
        %v2150 = vmul.f32 %v1542, %v1796
        %v2151 = vmul.f32 %v1543, %v1796
        %v2152 = vmul.f32 %v1544, %v1796
        %v2153 = vmul.f32 %v1545, %v1796
        %v2154 = vmul.f32 %v1546, %v1796
        %v2155 = vmul.f32 %v1547, %v1796
        %v2156 = vmul.f32 %v1548, %v1796
        %v2157 = vmul.f32 %v1549, %v1796
        %v2158 = vmul.f32 %v1550, %v1796
        %v2159 = vmul.f32 %v1551, %v1796
        %v2160 = vmul.f32 %v1552, %v1796
        %v2161 = vmul.f32 %v1553, %v1796
        %v2162 = vmul.f32 %v1554, %v1796
        %v2163 = vmul.f32 %v1555, %v1796
        %v2164 = vmul.f32 %v1556, %v1796
        %v2165 = vmul.f32 %v1557, %v1796
        %v2166 = vmul.f32 %v1558, %v1796
        %v2167 = vmul.f32 %v1559, %v1796
        %v2168 = vmul.f32 %v1560, %v1796
        %v2169 = vmul.f32 %v1561, %v1796
        %v2170 = vmul.f32 %v1562, %v1796
        %v2171 = vmul.f32 %v1563, %v1796
        %v2172 = vmul.f32 %v1564, %v1796
        %v2173 = vmul.f32 %v1565, %v1796
        %v2174 = vmul.f32 %v1566, %v1796
        %v2175 = vmul.f32 %v1567, %v1801
        %v2176 = vmul.f32 %v1568, %v1801
        %v2177 = vmul.f32 %v1569, %v1801
        %v2178 = vmul.f32 %v1570, %v1801
        %v2179 = vmul.f32 %v1571, %v1801
        %v2180 = vmul.f32 %v1572, %v1801
        %v2181 = vmul.f32 %v1573, %v1801
        %v2182 = vmul.f32 %v1574, %v1801
        %v2183 = vmul.f32 %v1575, %v1801
        %v2184 = vmul.f32 %v1576, %v1801
        %v2185 = vmul.f32 %v1577, %v1801
        %v2186 = vmul.f32 %v1578, %v1801
        %v2187 = vmul.f32 %v1579, %v1801
        %v2188 = vmul.f32 %v1580, %v1801
        %v2189 = vmul.f32 %v1581, %v1801
        %v2190 = vmul.f32 %v1582, %v1801
        %v2191 = vmul.f32 %v1583, %v1801
        %v2192 = vmul.f32 %v1584, %v1801
        %v2193 = vmul.f32 %v1585, %v1801
        %v2194 = vmul.f32 %v1586, %v1801
        %v2195 = vmul.f32 %v1587, %v1801
        %v2196 = vmul.f32 %v1588, %v1801
        %v2197 = vmul.f32 %v1589, %v1801
        %v2198 = vmul.f32 %v1590, %v1801
        %v2199 = vmul.f32 %v1591, %v1801
        %v2200 = vmul.f32 %v1592, %v1801
        %v2201 = vmul.f32 %v1593, %v1801
        %v2202 = vmul.f32 %v1594, %v1801
        %v2203 = vmul.f32 %v1595, %v1801
        %v2204 = vmul.f32 %v1596, %v1801
        %v2205 = vmul.f32 %v1597, %v1801
        %v2206 = vmul.f32 %v1598, %v1801
        %v2207 = vmul.f32 %v1599, %v1806
        %v2208 = vmul.f32 %v1600, %v1806
        %v2209 = vmul.f32 %v1601, %v1806
        %v2210 = vmul.f32 %v1602, %v1806
        %v2211 = vmul.f32 %v1603, %v1806
        %v2212 = vmul.f32 %v1604, %v1806
        %v2213 = vmul.f32 %v1605, %v1806
        %v2214 = vmul.f32 %v1606, %v1806
        %v2215 = vmul.f32 %v1607, %v1806
        %v2216 = vmul.f32 %v1608, %v1806
        %v2217 = vmul.f32 %v1609, %v1806
        %v2218 = vmul.f32 %v1610, %v1806
        %v2219 = vmul.f32 %v1611, %v1806
        %v2220 = vmul.f32 %v1612, %v1806
        %v2221 = vmul.f32 %v1613, %v1806
        %v2222 = vmul.f32 %v1614, %v1806
        %v2223 = vmul.f32 %v1615, %v1806
        %v2224 = vmul.f32 %v1616, %v1806
        %v2225 = vmul.f32 %v1617, %v1806
        %v2226 = vmul.f32 %v1618, %v1806
        %v2227 = vmul.f32 %v1619, %v1806
        %v2228 = vmul.f32 %v1620, %v1806
        %v2229 = vmul.f32 %v1621, %v1806
        %v2230 = vmul.f32 %v1622, %v1806
        %v2231 = vmul.f32 %v1623, %v1806
        %v2232 = vmul.f32 %v1624, %v1806
        %v2233 = vmul.f32 %v1625, %v1806
        %v2234 = vmul.f32 %v1626, %v1806
        %v2235 = vmul.f32 %v1627, %v1806
        %v2236 = vmul.f32 %v1628, %v1806
        %v2237 = vmul.f32 %v1629, %v1806
        %v2238 = vmul.f32 %v1630, %v1806
        %v2239 = vmul.f32 %v1631, %v1811
        %v2240 = vmul.f32 %v1632, %v1811
        %v2241 = vmul.f32 %v1633, %v1811
        %v2242 = vmul.f32 %v1634, %v1811
        %v2243 = vmul.f32 %v1635, %v1811
        %v2244 = vmul.f32 %v1636, %v1811
        %v2245 = vmul.f32 %v1637, %v1811
        %v2246 = vmul.f32 %v1638, %v1811
        %v2247 = vmul.f32 %v1639, %v1811
        %v2248 = vmul.f32 %v1640, %v1811
        %v2249 = vmul.f32 %v1641, %v1811
        %v2250 = vmul.f32 %v1642, %v1811
        %v2251 = vmul.f32 %v1643, %v1811
        %v2252 = vmul.f32 %v1644, %v1811
        %v2253 = vmul.f32 %v1645, %v1811
        %v2254 = vmul.f32 %v1646, %v1811
        %v2255 = vmul.f32 %v1647, %v1811
        %v2256 = vmul.f32 %v1648, %v1811
        %v2257 = vmul.f32 %v1649, %v1811
        %v2258 = vmul.f32 %v1650, %v1811
        %v2259 = vmul.f32 %v1651, %v1811
        %v2260 = vmul.f32 %v1652, %v1811
        %v2261 = vmul.f32 %v1653, %v1811
        %v2262 = vmul.f32 %v1654, %v1811
        %v2263 = vmul.f32 %v1655, %v1811
        %v2264 = vmul.f32 %v1656, %v1811
        %v2265 = vmul.f32 %v1657, %v1811
        %v2266 = vmul.f32 %v1658, %v1811
        %v2267 = vmul.f32 %v1659, %v1811
        %v2268 = vmul.f32 %v1660, %v1811
        %v2269 = vmul.f32 %v1661, %v1811
        %v2270 = vmul.f32 %v1662, %v1811
        %v2271 = vmul.f32 %v1663, %v1816
        %v2272 = vmul.f32 %v1664, %v1816
        %v2273 = vmul.f32 %v1665, %v1816
        %v2274 = vmul.f32 %v1666, %v1816
        %v2275 = vmul.f32 %v1667, %v1816
        %v2276 = vmul.f32 %v1668, %v1816
        %v2277 = vmul.f32 %v1669, %v1816
        %v2278 = vmul.f32 %v1670, %v1816
        %v2279 = vmul.f32 %v1671, %v1816
        %v2280 = vmul.f32 %v1672, %v1816
        %v2281 = vmul.f32 %v1673, %v1816
        %v2282 = vmul.f32 %v1674, %v1816
        %v2283 = vmul.f32 %v1675, %v1816
        %v2284 = vmul.f32 %v1676, %v1816
        %v2285 = vmul.f32 %v1677, %v1816
        %v2286 = vmul.f32 %v1678, %v1816
        %v2287 = vmul.f32 %v1679, %v1816
        %v2288 = vmul.f32 %v1680, %v1816
        %v2289 = vmul.f32 %v1681, %v1816
        %v2290 = vmul.f32 %v1682, %v1816
        %v2291 = vmul.f32 %v1683, %v1816
        %v2292 = vmul.f32 %v1684, %v1816
        %v2293 = vmul.f32 %v1685, %v1816
        %v2294 = vmul.f32 %v1686, %v1816
        %v2295 = vmul.f32 %v1687, %v1816
        %v2296 = vmul.f32 %v1688, %v1816
        %v2297 = vmul.f32 %v1689, %v1816
        %v2298 = vmul.f32 %v1690, %v1816
        %v2299 = vmul.f32 %v1691, %v1816
        %v2300 = vmul.f32 %v1692, %v1816
        %v2301 = vmul.f32 %v1693, %v1816
        %v2302 = vmul.f32 %v1694, %v1816
        %v2303 = vmul.f32 %v1695, %v1821
        %v2304 = vmul.f32 %v1696, %v1821
        %v2305 = vmul.f32 %v1697, %v1821
        %v2306 = vmul.f32 %v1698, %v1821
        %v2307 = vmul.f32 %v1699, %v1821
        %v2308 = vmul.f32 %v1700, %v1821
        %v2309 = vmul.f32 %v1701, %v1821
        %v2310 = vmul.f32 %v1702, %v1821
        %v2311 = vmul.f32 %v1703, %v1821
        %v2312 = vmul.f32 %v1704, %v1821
        %v2313 = vmul.f32 %v1705, %v1821
        %v2314 = vmul.f32 %v1706, %v1821
        %v2315 = vmul.f32 %v1707, %v1821
        %v2316 = vmul.f32 %v1708, %v1821
        %v2317 = vmul.f32 %v1709, %v1821
        %v2318 = vmul.f32 %v1710, %v1821
        %v2319 = vmul.f32 %v1711, %v1821
        %v2320 = vmul.f32 %v1712, %v1821
        %v2321 = vmul.f32 %v1713, %v1821
        %v2322 = vmul.f32 %v1714, %v1821
        %v2323 = vmul.f32 %v1715, %v1821
        %v2324 = vmul.f32 %v1716, %v1821
        %v2325 = vmul.f32 %v1717, %v1821
        %v2326 = vmul.f32 %v1718, %v1821
        %v2327 = vmul.f32 %v1719, %v1821
        %v2328 = vmul.f32 %v1720, %v1821
        %v2329 = vmul.f32 %v1721, %v1821
        %v2330 = vmul.f32 %v1722, %v1821
        %v2331 = vmul.f32 %v1723, %v1821
        %v2332 = vmul.f32 %v1724, %v1821
        %v2333 = vmul.f32 %v1725, %v1821
        %v2334 = vmul.f32 %v1726, %v1821
        %v2335 = vadd.f32 %v1823, %v1855
        %v2336 = vadd.f32 %v2335, %v1887
        %v2337 = vadd.f32 %v2336, %v1919
        %v2338 = vadd.f32 %v2337, %v1951
        %v2339 = vadd.f32 %v2338, %v1983
        %v2340 = vadd.f32 %v2339, %v2015
        %v2341 = vadd.f32 %v2340, %v2047
        %v2342 = vadd.f32 %v2341, %v2079
        %v2343 = vadd.f32 %v2342, %v2111
        %v2344 = vadd.f32 %v2343, %v2143
        %v2345 = vadd.f32 %v2344, %v2175
        %v2346 = vadd.f32 %v2345, %v2207
        %v2347 = vadd.f32 %v2346, %v2239
        %v2348 = vadd.f32 %v2347, %v2271
        %v2349 = vadd.f32 %v2348, %v2303
        %v2350 = vrot.slane %v2349, 4
        %v2351 = vadd.f32 %v2349, %v2350
        %v2352 = vrot.slane %v2351, 2
        %v2353 = vadd.f32 %v2351, %v2352
        %v2354 = vrot.slane %v2353, 1
        %v2355 = vadd.f32 %v2353, %v2354
        %v2356 = vadd.f32 %v1824, %v1856
        %v2357 = vadd.f32 %v2356, %v1888
        %v2358 = vadd.f32 %v2357, %v1920
        %v2359 = vadd.f32 %v2358, %v1952
        %v2360 = vadd.f32 %v2359, %v1984
        %v2361 = vadd.f32 %v2360, %v2016
        %v2362 = vadd.f32 %v2361, %v2048
        %v2363 = vadd.f32 %v2362, %v2080
        %v2364 = vadd.f32 %v2363, %v2112
        %v2365 = vadd.f32 %v2364, %v2144
        %v2366 = vadd.f32 %v2365, %v2176
        %v2367 = vadd.f32 %v2366, %v2208
        %v2368 = vadd.f32 %v2367, %v2240
        %v2369 = vadd.f32 %v2368, %v2272
        %v2370 = vadd.f32 %v2369, %v2304
        %v2371 = vrot.slane %v2370, 4
        %v2372 = vadd.f32 %v2370, %v2371
        %v2373 = vrot.slane %v2372, 2
        %v2374 = vadd.f32 %v2372, %v2373
        %v2375 = vrot.slane %v2374, 1
        %v2376 = vadd.f32 %v2374, %v2375
        %v2377 = vadd.f32 %v1825, %v1857
        %v2378 = vadd.f32 %v2377, %v1889
        %v2379 = vadd.f32 %v2378, %v1921
        %v2380 = vadd.f32 %v2379, %v1953
        %v2381 = vadd.f32 %v2380, %v1985
        %v2382 = vadd.f32 %v2381, %v2017
        %v2383 = vadd.f32 %v2382, %v2049
        %v2384 = vadd.f32 %v2383, %v2081
        %v2385 = vadd.f32 %v2384, %v2113
        %v2386 = vadd.f32 %v2385, %v2145
        %v2387 = vadd.f32 %v2386, %v2177
        %v2388 = vadd.f32 %v2387, %v2209
        %v2389 = vadd.f32 %v2388, %v2241
        %v2390 = vadd.f32 %v2389, %v2273
        %v2391 = vadd.f32 %v2390, %v2305
        %v2392 = vrot.slane %v2391, 4
        %v2393 = vadd.f32 %v2391, %v2392
        %v2394 = vrot.slane %v2393, 2
        %v2395 = vadd.f32 %v2393, %v2394
        %v2396 = vrot.slane %v2395, 1
        %v2397 = vadd.f32 %v2395, %v2396
        %v2398 = vadd.f32 %v1826, %v1858
        %v2399 = vadd.f32 %v2398, %v1890
        %v2400 = vadd.f32 %v2399, %v1922
        %v2401 = vadd.f32 %v2400, %v1954
        %v2402 = vadd.f32 %v2401, %v1986
        %v2403 = vadd.f32 %v2402, %v2018
        %v2404 = vadd.f32 %v2403, %v2050
        %v2405 = vadd.f32 %v2404, %v2082
        %v2406 = vadd.f32 %v2405, %v2114
        %v2407 = vadd.f32 %v2406, %v2146
        %v2408 = vadd.f32 %v2407, %v2178
        %v2409 = vadd.f32 %v2408, %v2210
        %v2410 = vadd.f32 %v2409, %v2242
        %v2411 = vadd.f32 %v2410, %v2274
        %v2412 = vadd.f32 %v2411, %v2306
        %v2413 = vrot.slane %v2412, 4
        %v2414 = vadd.f32 %v2412, %v2413
        %v2415 = vrot.slane %v2414, 2
        %v2416 = vadd.f32 %v2414, %v2415
        %v2417 = vrot.slane %v2416, 1
        %v2418 = vadd.f32 %v2416, %v2417
        %v2419 = vadd.f32 %v1827, %v1859
        %v2420 = vadd.f32 %v2419, %v1891
        %v2421 = vadd.f32 %v2420, %v1923
        %v2422 = vadd.f32 %v2421, %v1955
        %v2423 = vadd.f32 %v2422, %v1987
        %v2424 = vadd.f32 %v2423, %v2019
        %v2425 = vadd.f32 %v2424, %v2051
        %v2426 = vadd.f32 %v2425, %v2083
        %v2427 = vadd.f32 %v2426, %v2115
        %v2428 = vadd.f32 %v2427, %v2147
        %v2429 = vadd.f32 %v2428, %v2179
        %v2430 = vadd.f32 %v2429, %v2211
        %v2431 = vadd.f32 %v2430, %v2243
        %v2432 = vadd.f32 %v2431, %v2275
        %v2433 = vadd.f32 %v2432, %v2307
        %v2434 = vrot.slane %v2433, 4
        %v2435 = vadd.f32 %v2433, %v2434
        %v2436 = vrot.slane %v2435, 2
        %v2437 = vadd.f32 %v2435, %v2436
        %v2438 = vrot.slane %v2437, 1
        %v2439 = vadd.f32 %v2437, %v2438
        %v2440 = vadd.f32 %v1828, %v1860
        %v2441 = vadd.f32 %v2440, %v1892
        %v2442 = vadd.f32 %v2441, %v1924
        %v2443 = vadd.f32 %v2442, %v1956
        %v2444 = vadd.f32 %v2443, %v1988
        %v2445 = vadd.f32 %v2444, %v2020
        %v2446 = vadd.f32 %v2445, %v2052
        %v2447 = vadd.f32 %v2446, %v2084
        %v2448 = vadd.f32 %v2447, %v2116
        %v2449 = vadd.f32 %v2448, %v2148
        %v2450 = vadd.f32 %v2449, %v2180
        %v2451 = vadd.f32 %v2450, %v2212
        %v2452 = vadd.f32 %v2451, %v2244
        %v2453 = vadd.f32 %v2452, %v2276
        %v2454 = vadd.f32 %v2453, %v2308
        %v2455 = vrot.slane %v2454, 4
        %v2456 = vadd.f32 %v2454, %v2455
        %v2457 = vrot.slane %v2456, 2
        %v2458 = vadd.f32 %v2456, %v2457
        %v2459 = vrot.slane %v2458, 1
        %v2460 = vadd.f32 %v2458, %v2459
        %v2461 = vadd.f32 %v1829, %v1861
        %v2462 = vadd.f32 %v2461, %v1893
        %v2463 = vadd.f32 %v2462, %v1925
        %v2464 = vadd.f32 %v2463, %v1957
        %v2465 = vadd.f32 %v2464, %v1989
        %v2466 = vadd.f32 %v2465, %v2021
        %v2467 = vadd.f32 %v2466, %v2053
        %v2468 = vadd.f32 %v2467, %v2085
        %v2469 = vadd.f32 %v2468, %v2117
        %v2470 = vadd.f32 %v2469, %v2149
        %v2471 = vadd.f32 %v2470, %v2181
        %v2472 = vadd.f32 %v2471, %v2213
        %v2473 = vadd.f32 %v2472, %v2245
        %v2474 = vadd.f32 %v2473, %v2277
        %v2475 = vadd.f32 %v2474, %v2309
        %v2476 = vrot.slane %v2475, 4
        %v2477 = vadd.f32 %v2475, %v2476
        %v2478 = vrot.slane %v2477, 2
        %v2479 = vadd.f32 %v2477, %v2478
        %v2480 = vrot.slane %v2479, 1
        %v2481 = vadd.f32 %v2479, %v2480
        %v2482 = vadd.f32 %v1830, %v1862
        %v2483 = vadd.f32 %v2482, %v1894
        %v2484 = vadd.f32 %v2483, %v1926
        %v2485 = vadd.f32 %v2484, %v1958
        %v2486 = vadd.f32 %v2485, %v1990
        %v2487 = vadd.f32 %v2486, %v2022
        %v2488 = vadd.f32 %v2487, %v2054
        %v2489 = vadd.f32 %v2488, %v2086
        %v2490 = vadd.f32 %v2489, %v2118
        %v2491 = vadd.f32 %v2490, %v2150
        %v2492 = vadd.f32 %v2491, %v2182
        %v2493 = vadd.f32 %v2492, %v2214
        %v2494 = vadd.f32 %v2493, %v2246
        %v2495 = vadd.f32 %v2494, %v2278
        %v2496 = vadd.f32 %v2495, %v2310
        %v2497 = vrot.slane %v2496, 4
        %v2498 = vadd.f32 %v2496, %v2497
        %v2499 = vrot.slane %v2498, 2
        %v2500 = vadd.f32 %v2498, %v2499
        %v2501 = vrot.slane %v2500, 1
        %v2502 = vadd.f32 %v2500, %v2501
        %v2503 = vadd.f32 %v1831, %v1863
        %v2504 = vadd.f32 %v2503, %v1895
        %v2505 = vadd.f32 %v2504, %v1927
        %v2506 = vadd.f32 %v2505, %v1959
        %v2507 = vadd.f32 %v2506, %v1991
        %v2508 = vadd.f32 %v2507, %v2023
        %v2509 = vadd.f32 %v2508, %v2055
        %v2510 = vadd.f32 %v2509, %v2087
        %v2511 = vadd.f32 %v2510, %v2119
        %v2512 = vadd.f32 %v2511, %v2151
        %v2513 = vadd.f32 %v2512, %v2183
        %v2514 = vadd.f32 %v2513, %v2215
        %v2515 = vadd.f32 %v2514, %v2247
        %v2516 = vadd.f32 %v2515, %v2279
        %v2517 = vadd.f32 %v2516, %v2311
        %v2518 = vrot.slane %v2517, 4
        %v2519 = vadd.f32 %v2517, %v2518
        %v2520 = vrot.slane %v2519, 2
        %v2521 = vadd.f32 %v2519, %v2520
        %v2522 = vrot.slane %v2521, 1
        %v2523 = vadd.f32 %v2521, %v2522
        %v2524 = vadd.f32 %v1832, %v1864
        %v2525 = vadd.f32 %v2524, %v1896
        %v2526 = vadd.f32 %v2525, %v1928
        %v2527 = vadd.f32 %v2526, %v1960
        %v2528 = vadd.f32 %v2527, %v1992
        %v2529 = vadd.f32 %v2528, %v2024
        %v2530 = vadd.f32 %v2529, %v2056
        %v2531 = vadd.f32 %v2530, %v2088
        %v2532 = vadd.f32 %v2531, %v2120
        %v2533 = vadd.f32 %v2532, %v2152
        %v2534 = vadd.f32 %v2533, %v2184
        %v2535 = vadd.f32 %v2534, %v2216
        %v2536 = vadd.f32 %v2535, %v2248
        %v2537 = vadd.f32 %v2536, %v2280
        %v2538 = vadd.f32 %v2537, %v2312
        %v2539 = vrot.slane %v2538, 4
        %v2540 = vadd.f32 %v2538, %v2539
        %v2541 = vrot.slane %v2540, 2
        %v2542 = vadd.f32 %v2540, %v2541
        %v2543 = vrot.slane %v2542, 1
        %v2544 = vadd.f32 %v2542, %v2543
        %v2545 = vadd.f32 %v1833, %v1865
        %v2546 = vadd.f32 %v2545, %v1897
        %v2547 = vadd.f32 %v2546, %v1929
        %v2548 = vadd.f32 %v2547, %v1961
        %v2549 = vadd.f32 %v2548, %v1993
        %v2550 = vadd.f32 %v2549, %v2025
        %v2551 = vadd.f32 %v2550, %v2057
        %v2552 = vadd.f32 %v2551, %v2089
        %v2553 = vadd.f32 %v2552, %v2121
        %v2554 = vadd.f32 %v2553, %v2153
        %v2555 = vadd.f32 %v2554, %v2185
        %v2556 = vadd.f32 %v2555, %v2217
        %v2557 = vadd.f32 %v2556, %v2249
        %v2558 = vadd.f32 %v2557, %v2281
        %v2559 = vadd.f32 %v2558, %v2313
        %v2560 = vrot.slane %v2559, 4
        %v2561 = vadd.f32 %v2559, %v2560
        %v2562 = vrot.slane %v2561, 2
        %v2563 = vadd.f32 %v2561, %v2562
        %v2564 = vrot.slane %v2563, 1
        %v2565 = vadd.f32 %v2563, %v2564
        %v2566 = vadd.f32 %v1834, %v1866
        %v2567 = vadd.f32 %v2566, %v1898
        %v2568 = vadd.f32 %v2567, %v1930
        %v2569 = vadd.f32 %v2568, %v1962
        %v2570 = vadd.f32 %v2569, %v1994
        %v2571 = vadd.f32 %v2570, %v2026
        %v2572 = vadd.f32 %v2571, %v2058
        %v2573 = vadd.f32 %v2572, %v2090
        %v2574 = vadd.f32 %v2573, %v2122
        %v2575 = vadd.f32 %v2574, %v2154
        %v2576 = vadd.f32 %v2575, %v2186
        %v2577 = vadd.f32 %v2576, %v2218
        %v2578 = vadd.f32 %v2577, %v2250
        %v2579 = vadd.f32 %v2578, %v2282
        %v2580 = vadd.f32 %v2579, %v2314
        %v2581 = vrot.slane %v2580, 4
        %v2582 = vadd.f32 %v2580, %v2581
        %v2583 = vrot.slane %v2582, 2
        %v2584 = vadd.f32 %v2582, %v2583
        %v2585 = vrot.slane %v2584, 1
        %v2586 = vadd.f32 %v2584, %v2585
        %v2587 = vadd.f32 %v1835, %v1867
        %v2588 = vadd.f32 %v2587, %v1899
        %v2589 = vadd.f32 %v2588, %v1931
        %v2590 = vadd.f32 %v2589, %v1963
        %v2591 = vadd.f32 %v2590, %v1995
        %v2592 = vadd.f32 %v2591, %v2027
        %v2593 = vadd.f32 %v2592, %v2059
        %v2594 = vadd.f32 %v2593, %v2091
        %v2595 = vadd.f32 %v2594, %v2123
        %v2596 = vadd.f32 %v2595, %v2155
        %v2597 = vadd.f32 %v2596, %v2187
        %v2598 = vadd.f32 %v2597, %v2219
        %v2599 = vadd.f32 %v2598, %v2251
        %v2600 = vadd.f32 %v2599, %v2283
        %v2601 = vadd.f32 %v2600, %v2315
        %v2602 = vrot.slane %v2601, 4
        %v2603 = vadd.f32 %v2601, %v2602
        %v2604 = vrot.slane %v2603, 2
        %v2605 = vadd.f32 %v2603, %v2604
        %v2606 = vrot.slane %v2605, 1
        %v2607 = vadd.f32 %v2605, %v2606
        %v2608 = vadd.f32 %v1836, %v1868
        %v2609 = vadd.f32 %v2608, %v1900
        %v2610 = vadd.f32 %v2609, %v1932
        %v2611 = vadd.f32 %v2610, %v1964
        %v2612 = vadd.f32 %v2611, %v1996
        %v2613 = vadd.f32 %v2612, %v2028
        %v2614 = vadd.f32 %v2613, %v2060
        %v2615 = vadd.f32 %v2614, %v2092
        %v2616 = vadd.f32 %v2615, %v2124
        %v2617 = vadd.f32 %v2616, %v2156
        %v2618 = vadd.f32 %v2617, %v2188
        %v2619 = vadd.f32 %v2618, %v2220
        %v2620 = vadd.f32 %v2619, %v2252
        %v2621 = vadd.f32 %v2620, %v2284
        %v2622 = vadd.f32 %v2621, %v2316
        %v2623 = vrot.slane %v2622, 4
        %v2624 = vadd.f32 %v2622, %v2623
        %v2625 = vrot.slane %v2624, 2
        %v2626 = vadd.f32 %v2624, %v2625
        %v2627 = vrot.slane %v2626, 1
        %v2628 = vadd.f32 %v2626, %v2627
        %v2629 = vadd.f32 %v1837, %v1869
        %v2630 = vadd.f32 %v2629, %v1901
        %v2631 = vadd.f32 %v2630, %v1933
        %v2632 = vadd.f32 %v2631, %v1965
        %v2633 = vadd.f32 %v2632, %v1997
        %v2634 = vadd.f32 %v2633, %v2029
        %v2635 = vadd.f32 %v2634, %v2061
        %v2636 = vadd.f32 %v2635, %v2093
        %v2637 = vadd.f32 %v2636, %v2125
        %v2638 = vadd.f32 %v2637, %v2157
        %v2639 = vadd.f32 %v2638, %v2189
        %v2640 = vadd.f32 %v2639, %v2221
        %v2641 = vadd.f32 %v2640, %v2253
        %v2642 = vadd.f32 %v2641, %v2285
        %v2643 = vadd.f32 %v2642, %v2317
        %v2644 = vrot.slane %v2643, 4
        %v2645 = vadd.f32 %v2643, %v2644
        %v2646 = vrot.slane %v2645, 2
        %v2647 = vadd.f32 %v2645, %v2646
        %v2648 = vrot.slane %v2647, 1
        %v2649 = vadd.f32 %v2647, %v2648
        %v2650 = vadd.f32 %v1838, %v1870
        %v2651 = vadd.f32 %v2650, %v1902
        %v2652 = vadd.f32 %v2651, %v1934
        %v2653 = vadd.f32 %v2652, %v1966
        %v2654 = vadd.f32 %v2653, %v1998
        %v2655 = vadd.f32 %v2654, %v2030
        %v2656 = vadd.f32 %v2655, %v2062
        %v2657 = vadd.f32 %v2656, %v2094
        %v2658 = vadd.f32 %v2657, %v2126
        %v2659 = vadd.f32 %v2658, %v2158
        %v2660 = vadd.f32 %v2659, %v2190
        %v2661 = vadd.f32 %v2660, %v2222
        %v2662 = vadd.f32 %v2661, %v2254
        %v2663 = vadd.f32 %v2662, %v2286
        %v2664 = vadd.f32 %v2663, %v2318
        %v2665 = vrot.slane %v2664, 4
        %v2666 = vadd.f32 %v2664, %v2665
        %v2667 = vrot.slane %v2666, 2
        %v2668 = vadd.f32 %v2666, %v2667
        %v2669 = vrot.slane %v2668, 1
        %v2670 = vadd.f32 %v2668, %v2669
        %v2671 = vadd.f32 %v1839, %v1871
        %v2672 = vadd.f32 %v2671, %v1903
        %v2673 = vadd.f32 %v2672, %v1935
        %v2674 = vadd.f32 %v2673, %v1967
        %v2675 = vadd.f32 %v2674, %v1999
        %v2676 = vadd.f32 %v2675, %v2031
        %v2677 = vadd.f32 %v2676, %v2063
        %v2678 = vadd.f32 %v2677, %v2095
        %v2679 = vadd.f32 %v2678, %v2127
        %v2680 = vadd.f32 %v2679, %v2159
        %v2681 = vadd.f32 %v2680, %v2191
        %v2682 = vadd.f32 %v2681, %v2223
        %v2683 = vadd.f32 %v2682, %v2255
        %v2684 = vadd.f32 %v2683, %v2287
        %v2685 = vadd.f32 %v2684, %v2319
        %v2686 = vrot.slane %v2685, 4
        %v2687 = vadd.f32 %v2685, %v2686
        %v2688 = vrot.slane %v2687, 2
        %v2689 = vadd.f32 %v2687, %v2688
        %v2690 = vrot.slane %v2689, 1
        %v2691 = vadd.f32 %v2689, %v2690
        %v2692 = vadd.f32 %v1840, %v1872
        %v2693 = vadd.f32 %v2692, %v1904
        %v2694 = vadd.f32 %v2693, %v1936
        %v2695 = vadd.f32 %v2694, %v1968
        %v2696 = vadd.f32 %v2695, %v2000
        %v2697 = vadd.f32 %v2696, %v2032
        %v2698 = vadd.f32 %v2697, %v2064
        %v2699 = vadd.f32 %v2698, %v2096
        %v2700 = vadd.f32 %v2699, %v2128
        %v2701 = vadd.f32 %v2700, %v2160
        %v2702 = vadd.f32 %v2701, %v2192
        %v2703 = vadd.f32 %v2702, %v2224
        %v2704 = vadd.f32 %v2703, %v2256
        %v2705 = vadd.f32 %v2704, %v2288
        %v2706 = vadd.f32 %v2705, %v2320
        %v2707 = vrot.slane %v2706, 4
        %v2708 = vadd.f32 %v2706, %v2707
        %v2709 = vrot.slane %v2708, 2
        %v2710 = vadd.f32 %v2708, %v2709
        %v2711 = vrot.slane %v2710, 1
        %v2712 = vadd.f32 %v2710, %v2711
        %v2713 = vadd.f32 %v1841, %v1873
        %v2714 = vadd.f32 %v2713, %v1905
        %v2715 = vadd.f32 %v2714, %v1937
        %v2716 = vadd.f32 %v2715, %v1969
        %v2717 = vadd.f32 %v2716, %v2001
        %v2718 = vadd.f32 %v2717, %v2033
        %v2719 = vadd.f32 %v2718, %v2065
        %v2720 = vadd.f32 %v2719, %v2097
        %v2721 = vadd.f32 %v2720, %v2129
        %v2722 = vadd.f32 %v2721, %v2161
        %v2723 = vadd.f32 %v2722, %v2193
        %v2724 = vadd.f32 %v2723, %v2225
        %v2725 = vadd.f32 %v2724, %v2257
        %v2726 = vadd.f32 %v2725, %v2289
        %v2727 = vadd.f32 %v2726, %v2321
        %v2728 = vrot.slane %v2727, 4
        %v2729 = vadd.f32 %v2727, %v2728
        %v2730 = vrot.slane %v2729, 2
        %v2731 = vadd.f32 %v2729, %v2730
        %v2732 = vrot.slane %v2731, 1
        %v2733 = vadd.f32 %v2731, %v2732
        %v2734 = vadd.f32 %v1842, %v1874
        %v2735 = vadd.f32 %v2734, %v1906
        %v2736 = vadd.f32 %v2735, %v1938
        %v2737 = vadd.f32 %v2736, %v1970
        %v2738 = vadd.f32 %v2737, %v2002
        %v2739 = vadd.f32 %v2738, %v2034
        %v2740 = vadd.f32 %v2739, %v2066
        %v2741 = vadd.f32 %v2740, %v2098
        %v2742 = vadd.f32 %v2741, %v2130
        %v2743 = vadd.f32 %v2742, %v2162
        %v2744 = vadd.f32 %v2743, %v2194
        %v2745 = vadd.f32 %v2744, %v2226
        %v2746 = vadd.f32 %v2745, %v2258
        %v2747 = vadd.f32 %v2746, %v2290
        %v2748 = vadd.f32 %v2747, %v2322
        %v2749 = vrot.slane %v2748, 4
        %v2750 = vadd.f32 %v2748, %v2749
        %v2751 = vrot.slane %v2750, 2
        %v2752 = vadd.f32 %v2750, %v2751
        %v2753 = vrot.slane %v2752, 1
        %v2754 = vadd.f32 %v2752, %v2753
        %v2755 = vadd.f32 %v1843, %v1875
        %v2756 = vadd.f32 %v2755, %v1907
        %v2757 = vadd.f32 %v2756, %v1939
        %v2758 = vadd.f32 %v2757, %v1971
        %v2759 = vadd.f32 %v2758, %v2003
        %v2760 = vadd.f32 %v2759, %v2035
        %v2761 = vadd.f32 %v2760, %v2067
        %v2762 = vadd.f32 %v2761, %v2099
        %v2763 = vadd.f32 %v2762, %v2131
        %v2764 = vadd.f32 %v2763, %v2163
        %v2765 = vadd.f32 %v2764, %v2195
        %v2766 = vadd.f32 %v2765, %v2227
        %v2767 = vadd.f32 %v2766, %v2259
        %v2768 = vadd.f32 %v2767, %v2291
        %v2769 = vadd.f32 %v2768, %v2323
        %v2770 = vrot.slane %v2769, 4
        %v2771 = vadd.f32 %v2769, %v2770
        %v2772 = vrot.slane %v2771, 2
        %v2773 = vadd.f32 %v2771, %v2772
        %v2774 = vrot.slane %v2773, 1
        %v2775 = vadd.f32 %v2773, %v2774
        %v2776 = vadd.f32 %v1844, %v1876
        %v2777 = vadd.f32 %v2776, %v1908
        %v2778 = vadd.f32 %v2777, %v1940
        %v2779 = vadd.f32 %v2778, %v1972
        %v2780 = vadd.f32 %v2779, %v2004
        %v2781 = vadd.f32 %v2780, %v2036
        %v2782 = vadd.f32 %v2781, %v2068
        %v2783 = vadd.f32 %v2782, %v2100
        %v2784 = vadd.f32 %v2783, %v2132
        %v2785 = vadd.f32 %v2784, %v2164
        %v2786 = vadd.f32 %v2785, %v2196
        %v2787 = vadd.f32 %v2786, %v2228
        %v2788 = vadd.f32 %v2787, %v2260
        %v2789 = vadd.f32 %v2788, %v2292
        %v2790 = vadd.f32 %v2789, %v2324
        %v2791 = vrot.slane %v2790, 4
        %v2792 = vadd.f32 %v2790, %v2791
        %v2793 = vrot.slane %v2792, 2
        %v2794 = vadd.f32 %v2792, %v2793
        %v2795 = vrot.slane %v2794, 1
        %v2796 = vadd.f32 %v2794, %v2795
        %v2797 = vadd.f32 %v1845, %v1877
        %v2798 = vadd.f32 %v2797, %v1909
        %v2799 = vadd.f32 %v2798, %v1941
        %v2800 = vadd.f32 %v2799, %v1973
        %v2801 = vadd.f32 %v2800, %v2005
        %v2802 = vadd.f32 %v2801, %v2037
        %v2803 = vadd.f32 %v2802, %v2069
        %v2804 = vadd.f32 %v2803, %v2101
        %v2805 = vadd.f32 %v2804, %v2133
        %v2806 = vadd.f32 %v2805, %v2165
        %v2807 = vadd.f32 %v2806, %v2197
        %v2808 = vadd.f32 %v2807, %v2229
        %v2809 = vadd.f32 %v2808, %v2261
        %v2810 = vadd.f32 %v2809, %v2293
        %v2811 = vadd.f32 %v2810, %v2325
        %v2812 = vrot.slane %v2811, 4
        %v2813 = vadd.f32 %v2811, %v2812
        %v2814 = vrot.slane %v2813, 2
        %v2815 = vadd.f32 %v2813, %v2814
        %v2816 = vrot.slane %v2815, 1
        %v2817 = vadd.f32 %v2815, %v2816
        %v2818 = vadd.f32 %v1846, %v1878
        %v2819 = vadd.f32 %v2818, %v1910
        %v2820 = vadd.f32 %v2819, %v1942
        %v2821 = vadd.f32 %v2820, %v1974
        %v2822 = vadd.f32 %v2821, %v2006
        %v2823 = vadd.f32 %v2822, %v2038
        %v2824 = vadd.f32 %v2823, %v2070
        %v2825 = vadd.f32 %v2824, %v2102
        %v2826 = vadd.f32 %v2825, %v2134
        %v2827 = vadd.f32 %v2826, %v2166
        %v2828 = vadd.f32 %v2827, %v2198
        %v2829 = vadd.f32 %v2828, %v2230
        %v2830 = vadd.f32 %v2829, %v2262
        %v2831 = vadd.f32 %v2830, %v2294
        %v2832 = vadd.f32 %v2831, %v2326
        %v2833 = vrot.slane %v2832, 4
        %v2834 = vadd.f32 %v2832, %v2833
        %v2835 = vrot.slane %v2834, 2
        %v2836 = vadd.f32 %v2834, %v2835
        %v2837 = vrot.slane %v2836, 1
        %v2838 = vadd.f32 %v2836, %v2837
        %v2839 = vadd.f32 %v1847, %v1879
        %v2840 = vadd.f32 %v2839, %v1911
        %v2841 = vadd.f32 %v2840, %v1943
        %v2842 = vadd.f32 %v2841, %v1975
        %v2843 = vadd.f32 %v2842, %v2007
        %v2844 = vadd.f32 %v2843, %v2039
        %v2845 = vadd.f32 %v2844, %v2071
        %v2846 = vadd.f32 %v2845, %v2103
        %v2847 = vadd.f32 %v2846, %v2135
        %v2848 = vadd.f32 %v2847, %v2167
        %v2849 = vadd.f32 %v2848, %v2199
        %v2850 = vadd.f32 %v2849, %v2231
        %v2851 = vadd.f32 %v2850, %v2263
        %v2852 = vadd.f32 %v2851, %v2295
        %v2853 = vadd.f32 %v2852, %v2327
        %v2854 = vrot.slane %v2853, 4
        %v2855 = vadd.f32 %v2853, %v2854
        %v2856 = vrot.slane %v2855, 2
        %v2857 = vadd.f32 %v2855, %v2856
        %v2858 = vrot.slane %v2857, 1
        %v2859 = vadd.f32 %v2857, %v2858
        %v2860 = vadd.f32 %v1848, %v1880
        %v2861 = vadd.f32 %v2860, %v1912
        %v2862 = vadd.f32 %v2861, %v1944
        %v2863 = vadd.f32 %v2862, %v1976
        %v2864 = vadd.f32 %v2863, %v2008
        %v2865 = vadd.f32 %v2864, %v2040
        %v2866 = vadd.f32 %v2865, %v2072
        %v2867 = vadd.f32 %v2866, %v2104
        %v2868 = vadd.f32 %v2867, %v2136
        %v2869 = vadd.f32 %v2868, %v2168
        %v2870 = vadd.f32 %v2869, %v2200
        %v2871 = vadd.f32 %v2870, %v2232
        %v2872 = vadd.f32 %v2871, %v2264
        %v2873 = vadd.f32 %v2872, %v2296
        %v2874 = vadd.f32 %v2873, %v2328
        %v2875 = vrot.slane %v2874, 4
        %v2876 = vadd.f32 %v2874, %v2875
        %v2877 = vrot.slane %v2876, 2
        %v2878 = vadd.f32 %v2876, %v2877
        %v2879 = vrot.slane %v2878, 1
        %v2880 = vadd.f32 %v2878, %v2879
        %v2881 = vadd.f32 %v1849, %v1881
        %v2882 = vadd.f32 %v2881, %v1913
        %v2883 = vadd.f32 %v2882, %v1945
        %v2884 = vadd.f32 %v2883, %v1977
        %v2885 = vadd.f32 %v2884, %v2009
        %v2886 = vadd.f32 %v2885, %v2041
        %v2887 = vadd.f32 %v2886, %v2073
        %v2888 = vadd.f32 %v2887, %v2105
        %v2889 = vadd.f32 %v2888, %v2137
        %v2890 = vadd.f32 %v2889, %v2169
        %v2891 = vadd.f32 %v2890, %v2201
        %v2892 = vadd.f32 %v2891, %v2233
        %v2893 = vadd.f32 %v2892, %v2265
        %v2894 = vadd.f32 %v2893, %v2297
        %v2895 = vadd.f32 %v2894, %v2329
        %v2896 = vrot.slane %v2895, 4
        %v2897 = vadd.f32 %v2895, %v2896
        %v2898 = vrot.slane %v2897, 2
        %v2899 = vadd.f32 %v2897, %v2898
        %v2900 = vrot.slane %v2899, 1
        %v2901 = vadd.f32 %v2899, %v2900
        %v2902 = vadd.f32 %v1850, %v1882
        %v2903 = vadd.f32 %v2902, %v1914
        %v2904 = vadd.f32 %v2903, %v1946
        %v2905 = vadd.f32 %v2904, %v1978
        %v2906 = vadd.f32 %v2905, %v2010
        %v2907 = vadd.f32 %v2906, %v2042
        %v2908 = vadd.f32 %v2907, %v2074
        %v2909 = vadd.f32 %v2908, %v2106
        %v2910 = vadd.f32 %v2909, %v2138
        %v2911 = vadd.f32 %v2910, %v2170
        %v2912 = vadd.f32 %v2911, %v2202
        %v2913 = vadd.f32 %v2912, %v2234
        %v2914 = vadd.f32 %v2913, %v2266
        %v2915 = vadd.f32 %v2914, %v2298
        %v2916 = vadd.f32 %v2915, %v2330
        %v2917 = vrot.slane %v2916, 4
        %v2918 = vadd.f32 %v2916, %v2917
        %v2919 = vrot.slane %v2918, 2
        %v2920 = vadd.f32 %v2918, %v2919
        %v2921 = vrot.slane %v2920, 1
        %v2922 = vadd.f32 %v2920, %v2921
        %v2923 = vadd.f32 %v1851, %v1883
        %v2924 = vadd.f32 %v2923, %v1915
        %v2925 = vadd.f32 %v2924, %v1947
        %v2926 = vadd.f32 %v2925, %v1979
        %v2927 = vadd.f32 %v2926, %v2011
        %v2928 = vadd.f32 %v2927, %v2043
        %v2929 = vadd.f32 %v2928, %v2075
        %v2930 = vadd.f32 %v2929, %v2107
        %v2931 = vadd.f32 %v2930, %v2139
        %v2932 = vadd.f32 %v2931, %v2171
        %v2933 = vadd.f32 %v2932, %v2203
        %v2934 = vadd.f32 %v2933, %v2235
        %v2935 = vadd.f32 %v2934, %v2267
        %v2936 = vadd.f32 %v2935, %v2299
        %v2937 = vadd.f32 %v2936, %v2331
        %v2938 = vrot.slane %v2937, 4
        %v2939 = vadd.f32 %v2937, %v2938
        %v2940 = vrot.slane %v2939, 2
        %v2941 = vadd.f32 %v2939, %v2940
        %v2942 = vrot.slane %v2941, 1
        %v2943 = vadd.f32 %v2941, %v2942
        %v2944 = vadd.f32 %v1852, %v1884
        %v2945 = vadd.f32 %v2944, %v1916
        %v2946 = vadd.f32 %v2945, %v1948
        %v2947 = vadd.f32 %v2946, %v1980
        %v2948 = vadd.f32 %v2947, %v2012
        %v2949 = vadd.f32 %v2948, %v2044
        %v2950 = vadd.f32 %v2949, %v2076
        %v2951 = vadd.f32 %v2950, %v2108
        %v2952 = vadd.f32 %v2951, %v2140
        %v2953 = vadd.f32 %v2952, %v2172
        %v2954 = vadd.f32 %v2953, %v2204
        %v2955 = vadd.f32 %v2954, %v2236
        %v2956 = vadd.f32 %v2955, %v2268
        %v2957 = vadd.f32 %v2956, %v2300
        %v2958 = vadd.f32 %v2957, %v2332
        %v2959 = vrot.slane %v2958, 4
        %v2960 = vadd.f32 %v2958, %v2959
        %v2961 = vrot.slane %v2960, 2
        %v2962 = vadd.f32 %v2960, %v2961
        %v2963 = vrot.slane %v2962, 1
        %v2964 = vadd.f32 %v2962, %v2963
        %v2965 = vadd.f32 %v1853, %v1885
        %v2966 = vadd.f32 %v2965, %v1917
        %v2967 = vadd.f32 %v2966, %v1949
        %v2968 = vadd.f32 %v2967, %v1981
        %v2969 = vadd.f32 %v2968, %v2013
        %v2970 = vadd.f32 %v2969, %v2045
        %v2971 = vadd.f32 %v2970, %v2077
        %v2972 = vadd.f32 %v2971, %v2109
        %v2973 = vadd.f32 %v2972, %v2141
        %v2974 = vadd.f32 %v2973, %v2173
        %v2975 = vadd.f32 %v2974, %v2205
        %v2976 = vadd.f32 %v2975, %v2237
        %v2977 = vadd.f32 %v2976, %v2269
        %v2978 = vadd.f32 %v2977, %v2301
        %v2979 = vadd.f32 %v2978, %v2333
        %v2980 = vrot.slane %v2979, 4
        %v2981 = vadd.f32 %v2979, %v2980
        %v2982 = vrot.slane %v2981, 2
        %v2983 = vadd.f32 %v2981, %v2982
        %v2984 = vrot.slane %v2983, 1
        %v2985 = vadd.f32 %v2983, %v2984
        %v2986 = vadd.f32 %v1854, %v1886
        %v2987 = vadd.f32 %v2986, %v1918
        %v2988 = vadd.f32 %v2987, %v1950
        %v2989 = vadd.f32 %v2988, %v1982
        %v2990 = vadd.f32 %v2989, %v2014
        %v2991 = vadd.f32 %v2990, %v2046
        %v2992 = vadd.f32 %v2991, %v2078
        %v2993 = vadd.f32 %v2992, %v2110
        %v2994 = vadd.f32 %v2993, %v2142
        %v2995 = vadd.f32 %v2994, %v2174
        %v2996 = vadd.f32 %v2995, %v2206
        %v2997 = vadd.f32 %v2996, %v2238
        %v2998 = vadd.f32 %v2997, %v2270
        %v2999 = vadd.f32 %v2998, %v2302
        %v3000 = vadd.f32 %v2999, %v2334
        %v3001 = vrot.slane %v3000, 4
        %v3002 = vadd.f32 %v3000, %v3001
        %v3003 = vrot.slane %v3002, 2
        %v3004 = vadd.f32 %v3002, %v3003
        %v3005 = vrot.slane %v3004, 1
        %v3006 = vadd.f32 %v3004, %v3005
        %v3007 = vld [vmem:[#allocation2] sm:$0x1]
        %3009 = vset.pattern.permute.xlu0 0
        %3010 = vperm.xlu0 %3009, %v3007
        %v3011 = vpop.permute.xlu0 %3010
        %v3013 = vlaneseq
        %v3014 = vshrl.u32 %v3013, 7
        %v3015 = vsub.s32 0, %v3014
        %v3016 = vrot.slane %v3011, %v3015
        %v3017 = vadd.f32 %v2355, %v3016
        %v3018 = vadd.f32 %v2376, %v3016
        %v3019 = vadd.f32 %v2397, %v3016
        %v3020 = vadd.f32 %v2418, %v3016
        %v3021 = vadd.f32 %v2439, %v3016
        %v3022 = vadd.f32 %v2460, %v3016
        %v3023 = vadd.f32 %v2481, %v3016
        %v3024 = vadd.f32 %v2502, %v3016
        %v3025 = vadd.f32 %v2523, %v3016
        %v3026 = vadd.f32 %v2544, %v3016
        %v3027 = vadd.f32 %v2565, %v3016
        %v3028 = vadd.f32 %v2586, %v3016
        %v3029 = vadd.f32 %v2607, %v3016
        %v3030 = vadd.f32 %v2628, %v3016
        %v3031 = vadd.f32 %v2649, %v3016
        %v3032 = vadd.f32 %v2670, %v3016
        %v3033 = vadd.f32 %v2691, %v3016
        %v3034 = vadd.f32 %v2712, %v3016
        %v3035 = vadd.f32 %v2733, %v3016
        %v3036 = vadd.f32 %v2754, %v3016
        %v3037 = vadd.f32 %v2775, %v3016
        %v3038 = vadd.f32 %v2796, %v3016
        %v3039 = vadd.f32 %v2817, %v3016
        %v3040 = vadd.f32 %v2838, %v3016
        %v3041 = vadd.f32 %v2859, %v3016
        %v3042 = vadd.f32 %v2880, %v3016
        %v3043 = vadd.f32 %v2901, %v3016
        %v3044 = vadd.f32 %v2922, %v3016
        %v3045 = vadd.f32 %v2943, %v3016
        %v3046 = vadd.f32 %v2964, %v3016
        %v3047 = vadd.f32 %v2985, %v3016
        %v3048 = vadd.f32 %v3006, %v3016
        %v3049 = vxor.u32 %v3017, 2147483648
        %v3050 = vxor.u32 %v3018, 2147483648
        %v3051 = vxor.u32 %v3019, 2147483648
        %v3052 = vxor.u32 %v3020, 2147483648
        %v3053 = vxor.u32 %v3021, 2147483648
        %v3054 = vxor.u32 %v3022, 2147483648
        %v3055 = vxor.u32 %v3023, 2147483648
        %v3056 = vxor.u32 %v3024, 2147483648
        %v3057 = vxor.u32 %v3025, 2147483648
        %v3058 = vxor.u32 %v3026, 2147483648
        %v3059 = vxor.u32 %v3027, 2147483648
        %v3060 = vxor.u32 %v3028, 2147483648
        %v3061 = vxor.u32 %v3029, 2147483648
        %v3062 = vxor.u32 %v3030, 2147483648
        %v3063 = vxor.u32 %v3031, 2147483648
        %v3064 = vxor.u32 %v3032, 2147483648
        %v3065 = vxor.u32 %v3033, 2147483648
        %v3066 = vxor.u32 %v3034, 2147483648
        %v3067 = vxor.u32 %v3035, 2147483648
        %v3068 = vxor.u32 %v3036, 2147483648
        %v3069 = vxor.u32 %v3037, 2147483648
        %v3070 = vxor.u32 %v3038, 2147483648
        %v3071 = vxor.u32 %v3039, 2147483648
        %v3072 = vxor.u32 %v3040, 2147483648
        %v3073 = vxor.u32 %v3041, 2147483648
        %v3074 = vxor.u32 %v3042, 2147483648
        %v3075 = vxor.u32 %v3043, 2147483648
        %v3076 = vxor.u32 %v3044, 2147483648
        %v3077 = vxor.u32 %v3045, 2147483648
        %v3078 = vxor.u32 %v3046, 2147483648
        %v3079 = vxor.u32 %v3047, 2147483648
        %v3080 = vxor.u32 %v3048, 2147483648
        %v3081 = vmul.f32 %v3049, 1.442695
        %v3082 = vpow.pop %v3081
        %v3083 = vmul.f32 %v3050, 1.442695
        %v3084 = vpow.pop %v3083
        %v3085 = vmul.f32 %v3051, 1.442695
        %v3086 = vpow.pop %v3085
        %v3087 = vmul.f32 %v3052, 1.442695
        %v3088 = vpow.pop %v3087
        %v3089 = vmul.f32 %v3053, 1.442695
        %v3090 = vpow.pop %v3089
        %v3091 = vmul.f32 %v3054, 1.442695
        %v3092 = vpow.pop %v3091
        %v3093 = vmul.f32 %v3055, 1.442695
        %v3094 = vpow.pop %v3093
        %v3095 = vmul.f32 %v3056, 1.442695
        %v3096 = vpow.pop %v3095
        %v3097 = vmul.f32 %v3057, 1.442695
        %v3098 = vpow.pop %v3097
        %v3099 = vmul.f32 %v3058, 1.442695
        %v3100 = vpow.pop %v3099
        %v3101 = vmul.f32 %v3059, 1.442695
        %v3102 = vpow.pop %v3101
        %v3103 = vmul.f32 %v3060, 1.442695
        %v3104 = vpow.pop %v3103
        %v3105 = vmul.f32 %v3061, 1.442695
        %v3106 = vpow.pop %v3105
        %v3107 = vmul.f32 %v3062, 1.442695
        %v3108 = vpow.pop %v3107
        %v3109 = vmul.f32 %v3063, 1.442695
        %v3110 = vpow.pop %v3109
        %v3111 = vmul.f32 %v3064, 1.442695
        %v3112 = vpow.pop %v3111
        %v3113 = vmul.f32 %v3065, 1.442695
        %v3114 = vpow.pop %v3113
        %v3115 = vmul.f32 %v3066, 1.442695
        %v3116 = vpow.pop %v3115
        %v3117 = vmul.f32 %v3067, 1.442695
        %v3118 = vpow.pop %v3117
        %v3119 = vmul.f32 %v3068, 1.442695
        %v3120 = vpow.pop %v3119
        %v3121 = vmul.f32 %v3069, 1.442695
        %v3122 = vpow.pop %v3121
        %v3123 = vmul.f32 %v3070, 1.442695
        %v3124 = vpow.pop %v3123
        %v3125 = vmul.f32 %v3071, 1.442695
        %v3126 = vpow.pop %v3125
        %v3127 = vmul.f32 %v3072, 1.442695
        %v3128 = vpow.pop %v3127
        %v3129 = vmul.f32 %v3073, 1.442695
        %v3130 = vpow.pop %v3129
        %v3131 = vmul.f32 %v3074, 1.442695
        %v3132 = vpow.pop %v3131
        %v3133 = vmul.f32 %v3075, 1.442695
        %v3134 = vpow.pop %v3133
        %v3135 = vmul.f32 %v3076, 1.442695
        %v3136 = vpow.pop %v3135
        %v3137 = vmul.f32 %v3077, 1.442695
        %v3138 = vpow.pop %v3137
        %v3139 = vmul.f32 %v3078, 1.442695
        %v3140 = vpow.pop %v3139
        %v3141 = vmul.f32 %v3079, 1.442695
        %v3142 = vpow.pop %v3141
        %v3143 = vmul.f32 %v3080, 1.442695
        %v3144 = vpow.pop %v3143
        %v3145 = vadd.f32 %v3082, 1.0
        %v3146 = vadd.f32 %v3084, 1.0
        %v3147 = vadd.f32 %v3086, 1.0
        %v3148 = vadd.f32 %v3088, 1.0
        %v3149 = vadd.f32 %v3090, 1.0
        %v3150 = vadd.f32 %v3092, 1.0
        %v3151 = vadd.f32 %v3094, 1.0
        %v3152 = vadd.f32 %v3096, 1.0
        %v3153 = vadd.f32 %v3098, 1.0
        %v3154 = vadd.f32 %v3100, 1.0
        %v3155 = vadd.f32 %v3102, 1.0
        %v3156 = vadd.f32 %v3104, 1.0
        %v3157 = vadd.f32 %v3106, 1.0
        %v3158 = vadd.f32 %v3108, 1.0
        %v3159 = vadd.f32 %v3110, 1.0
        %v3160 = vadd.f32 %v3112, 1.0
        %v3161 = vadd.f32 %v3114, 1.0
        %v3162 = vadd.f32 %v3116, 1.0
        %v3163 = vadd.f32 %v3118, 1.0
        %v3164 = vadd.f32 %v3120, 1.0
        %v3165 = vadd.f32 %v3122, 1.0
        %v3166 = vadd.f32 %v3124, 1.0
        %v3167 = vadd.f32 %v3126, 1.0
        %v3168 = vadd.f32 %v3128, 1.0
        %v3169 = vadd.f32 %v3130, 1.0
        %v3170 = vadd.f32 %v3132, 1.0
        %v3171 = vadd.f32 %v3134, 1.0
        %v3172 = vadd.f32 %v3136, 1.0
        %v3173 = vadd.f32 %v3138, 1.0
        %v3174 = vadd.f32 %v3140, 1.0
        %v3175 = vadd.f32 %v3142, 1.0
        %v3176 = vadd.f32 %v3144, 1.0
        %v3177 = vrcp.pop %v3145
        %v3178 = vmul.f32 1.0, %v3177
        %v3179 = vrcp.pop %v3146
        %v3180 = vmul.f32 1.0, %v3179
        %v3181 = vrcp.pop %v3147
        %v3182 = vmul.f32 1.0, %v3181
        %v3183 = vrcp.pop %v3148
        %v3184 = vmul.f32 1.0, %v3183
        %v3185 = vrcp.pop %v3149
        %v3186 = vmul.f32 1.0, %v3185
        %v3187 = vrcp.pop %v3150
        %v3188 = vmul.f32 1.0, %v3187
        %v3189 = vrcp.pop %v3151
        %v3190 = vmul.f32 1.0, %v3189
        %v3191 = vrcp.pop %v3152
        %v3192 = vmul.f32 1.0, %v3191
        %v3193 = vrcp.pop %v3153
        %v3194 = vmul.f32 1.0, %v3193
        %v3195 = vrcp.pop %v3154
        %v3196 = vmul.f32 1.0, %v3195
        %v3197 = vrcp.pop %v3155
        %v3198 = vmul.f32 1.0, %v3197
        %v3199 = vrcp.pop %v3156
        %v3200 = vmul.f32 1.0, %v3199
        %v3201 = vrcp.pop %v3157
        %v3202 = vmul.f32 1.0, %v3201
        %v3203 = vrcp.pop %v3158
        %v3204 = vmul.f32 1.0, %v3203
        %v3205 = vrcp.pop %v3159
        %v3206 = vmul.f32 1.0, %v3205
        %v3207 = vrcp.pop %v3160
        %v3208 = vmul.f32 1.0, %v3207
        %v3209 = vrcp.pop %v3161
        %v3210 = vmul.f32 1.0, %v3209
        %v3211 = vrcp.pop %v3162
        %v3212 = vmul.f32 1.0, %v3211
        %v3213 = vrcp.pop %v3163
        %v3214 = vmul.f32 1.0, %v3213
        %v3215 = vrcp.pop %v3164
        %v3216 = vmul.f32 1.0, %v3215
        %v3217 = vrcp.pop %v3165
        %v3218 = vmul.f32 1.0, %v3217
        %v3219 = vrcp.pop %v3166
        %v3220 = vmul.f32 1.0, %v3219
        %v3221 = vrcp.pop %v3167
        %v3222 = vmul.f32 1.0, %v3221
        %v3223 = vrcp.pop %v3168
        %v3224 = vmul.f32 1.0, %v3223
        %v3225 = vrcp.pop %v3169
        %v3226 = vmul.f32 1.0, %v3225
        %v3227 = vrcp.pop %v3170
        %v3228 = vmul.f32 1.0, %v3227
        %v3229 = vrcp.pop %v3171
        %v3230 = vmul.f32 1.0, %v3229
        %v3231 = vrcp.pop %v3172
        %v3232 = vmul.f32 1.0, %v3231
        %v3233 = vrcp.pop %v3173
        %v3234 = vmul.f32 1.0, %v3233
        %v3235 = vrcp.pop %v3174
        %v3236 = vmul.f32 1.0, %v3235
        %v3237 = vrcp.pop %v3175
        %v3238 = vmul.f32 1.0, %v3237
        %v3239 = vrcp.pop %v3176
        %v3240 = vmul.f32 1.0, %v3239
        %v3273 = vcombine.low %v3178, %v3180
        %v3274 = vcombine.low %v3182, %v3184
        %v3275 = vcombine.low %v3186, %v3188
        %v3276 = vcombine.low %v3190, %v3192
        %v3278 = vunpack.c.l.s4 1966171168
        %v3279 = vunpack.c.0.s8 %v3278
        %v3280 = vlaneseq
        %v3281 = vshrl.u32 %v3280, 7
        %v3282 = vsub.s32 %v3279, %v3281
        %v3283 = vrot.slane %v3273, %v3282
        %v3285 = vunpack.c.l.s4 1966171168
        %v3286 = vunpack.c.0.s8 %v3285
        %v3287 = vlaneseq
        %v3288 = vshrl.u32 %v3287, 7
        %v3289 = vsub.s32 %v3286, %v3288
        %v3290 = vrot.slane %v3274, %v3289
        %v3292 = vunpack.c.l.s4 1966171168
        %v3293 = vunpack.c.0.s8 %v3292
        %v3294 = vlaneseq
        %v3295 = vshrl.u32 %v3294, 7
        %v3296 = vsub.s32 %v3293, %v3295
        %v3297 = vrot.slane %v3275, %v3296
        %v3299 = vunpack.c.l.s4 1966171168
        %v3300 = vunpack.c.0.s8 %v3299
        %v3301 = vlaneseq
        %v3302 = vshrl.u32 %v3301, 7
        %v3303 = vsub.s32 %v3300, %v3302
        %v3304 = vrot.slane %v3276, %v3303
        %v3305 = vcombine.low %v3283, %v3290
        %v3306 = vcombine.low %v3297, %v3304
        %v3308 = vunpack.c.l.s4 1966171168
        %v3309 = vunpack.c.0.s8 %v3308
        %v3310 = vlaneseq
        %v3311 = vshrl.u32 %v3310, 7
        %v3312 = vsub.s32 %v3309, %v3311
        %v3313 = vrot.slane %v3305, %v3312
        %v3315 = vunpack.c.l.s4 1966171168
        %v3316 = vunpack.c.0.s8 %v3315
        %v3317 = vlaneseq
        %v3318 = vshrl.u32 %v3317, 7
        %v3319 = vsub.s32 %v3316, %v3318
        %v3320 = vrot.slane %v3306, %v3319
        %v3321 = vcombine.low %v3313, %v3320
        %v3322 = vcombine.low %v3194, %v3196
        %v3323 = vcombine.low %v3198, %v3200
        %v3324 = vcombine.low %v3202, %v3204
        %v3325 = vcombine.low %v3206, %v3208
        %v3327 = vunpack.c.l.s4 1966171168
        %v3328 = vunpack.c.0.s8 %v3327
        %v3329 = vlaneseq
        %v3330 = vshrl.u32 %v3329, 7
        %v3331 = vsub.s32 %v3328, %v3330
        %v3332 = vrot.slane %v3322, %v3331
        %v3334 = vunpack.c.l.s4 1966171168
        %v3335 = vunpack.c.0.s8 %v3334
        %v3336 = vlaneseq
        %v3337 = vshrl.u32 %v3336, 7
        %v3338 = vsub.s32 %v3335, %v3337
        %v3339 = vrot.slane %v3323, %v3338
        %v3341 = vunpack.c.l.s4 1966171168
        %v3342 = vunpack.c.0.s8 %v3341
        %v3343 = vlaneseq
        %v3344 = vshrl.u32 %v3343, 7
        %v3345 = vsub.s32 %v3342, %v3344
        %v3346 = vrot.slane %v3324, %v3345
        %v3348 = vunpack.c.l.s4 1966171168
        %v3349 = vunpack.c.0.s8 %v3348
        %v3350 = vlaneseq
        %v3351 = vshrl.u32 %v3350, 7
        %v3352 = vsub.s32 %v3349, %v3351
        %v3353 = vrot.slane %v3325, %v3352
        %v3354 = vcombine.low %v3332, %v3339
        %v3355 = vcombine.low %v3346, %v3353
        %v3357 = vunpack.c.l.s4 1966171168
        %v3358 = vunpack.c.0.s8 %v3357
        %v3359 = vlaneseq
        %v3360 = vshrl.u32 %v3359, 7
        %v3361 = vsub.s32 %v3358, %v3360
        %v3362 = vrot.slane %v3354, %v3361
        %v3364 = vunpack.c.l.s4 1966171168
        %v3365 = vunpack.c.0.s8 %v3364
        %v3366 = vlaneseq
        %v3367 = vshrl.u32 %v3366, 7
        %v3368 = vsub.s32 %v3365, %v3367
        %v3369 = vrot.slane %v3355, %v3368
        %v3370 = vcombine.low %v3362, %v3369
        %v3371 = vcombine.low %v3210, %v3212
        %v3372 = vcombine.low %v3214, %v3216
        %v3373 = vcombine.low %v3218, %v3220
        %v3374 = vcombine.low %v3222, %v3224
        %v3376 = vunpack.c.l.s4 1966171168
        %v3377 = vunpack.c.0.s8 %v3376
        %v3378 = vlaneseq
        %v3379 = vshrl.u32 %v3378, 7
        %v3380 = vsub.s32 %v3377, %v3379
        %v3381 = vrot.slane %v3371, %v3380
        %v3383 = vunpack.c.l.s4 1966171168
        %v3384 = vunpack.c.0.s8 %v3383
        %v3385 = vlaneseq
        %v3386 = vshrl.u32 %v3385, 7
        %v3387 = vsub.s32 %v3384, %v3386
        %v3388 = vrot.slane %v3372, %v3387
        %v3390 = vunpack.c.l.s4 1966171168
        %v3391 = vunpack.c.0.s8 %v3390
        %v3392 = vlaneseq
        %v3393 = vshrl.u32 %v3392, 7
        %v3394 = vsub.s32 %v3391, %v3393
        %v3395 = vrot.slane %v3373, %v3394
        %v3397 = vunpack.c.l.s4 1966171168
        %v3398 = vunpack.c.0.s8 %v3397
        %v3399 = vlaneseq
        %v3400 = vshrl.u32 %v3399, 7
        %v3401 = vsub.s32 %v3398, %v3400
        %v3402 = vrot.slane %v3374, %v3401
        %v3403 = vcombine.low %v3381, %v3388
        %v3404 = vcombine.low %v3395, %v3402
        %v3406 = vunpack.c.l.s4 1966171168
        %v3407 = vunpack.c.0.s8 %v3406
        %v3408 = vlaneseq
        %v3409 = vshrl.u32 %v3408, 7
        %v3410 = vsub.s32 %v3407, %v3409
        %v3411 = vrot.slane %v3403, %v3410
        %v3413 = vunpack.c.l.s4 1966171168
        %v3414 = vunpack.c.0.s8 %v3413
        %v3415 = vlaneseq
        %v3416 = vshrl.u32 %v3415, 7
        %v3417 = vsub.s32 %v3414, %v3416
        %v3418 = vrot.slane %v3404, %v3417
        %v3419 = vcombine.low %v3411, %v3418
        %v3420 = vcombine.low %v3226, %v3228
        %v3421 = vcombine.low %v3230, %v3232
        %v3422 = vcombine.low %v3234, %v3236
        %v3423 = vcombine.low %v3238, %v3240
        %v3425 = vunpack.c.l.s4 1966171168
        %v3426 = vunpack.c.0.s8 %v3425
        %v3427 = vlaneseq
        %v3428 = vshrl.u32 %v3427, 7
        %v3429 = vsub.s32 %v3426, %v3428
        %v3430 = vrot.slane %v3420, %v3429
        %v3432 = vunpack.c.l.s4 1966171168
        %v3433 = vunpack.c.0.s8 %v3432
        %v3434 = vlaneseq
        %v3435 = vshrl.u32 %v3434, 7
        %v3436 = vsub.s32 %v3433, %v3435
        %v3437 = vrot.slane %v3421, %v3436
        %v3439 = vunpack.c.l.s4 1966171168
        %v3440 = vunpack.c.0.s8 %v3439
        %v3441 = vlaneseq
        %v3442 = vshrl.u32 %v3441, 7
        %v3443 = vsub.s32 %v3440, %v3442
        %v3444 = vrot.slane %v3422, %v3443
        %v3446 = vunpack.c.l.s4 1966171168
        %v3447 = vunpack.c.0.s8 %v3446
        %v3448 = vlaneseq
        %v3449 = vshrl.u32 %v3448, 7
        %v3450 = vsub.s32 %v3447, %v3449
        %v3451 = vrot.slane %v3423, %v3450
        %v3452 = vcombine.low %v3430, %v3437
        %v3453 = vcombine.low %v3444, %v3451
        %v3455 = vunpack.c.l.s4 1966171168
        %v3456 = vunpack.c.0.s8 %v3455
        %v3457 = vlaneseq
        %v3458 = vshrl.u32 %v3457, 7
        %v3459 = vsub.s32 %v3456, %v3458
        %v3460 = vrot.slane %v3452, %v3459
        %v3462 = vunpack.c.l.s4 1966171168
        %v3463 = vunpack.c.0.s8 %v3462
        %v3464 = vlaneseq
        %v3465 = vshrl.u32 %v3464, 7
        %v3466 = vsub.s32 %v3463, %v3465
        %v3467 = vrot.slane %v3453, %v3466
        %v3468 = vcombine.low %v3460, %v3467
        %3473 = vst [vmem:[%s1213] sm:$0xff] %v3321
        %3474 = vst [vmem:[%s1213 + $0x8] sm:$0xff] %v3370
        %3475 = vst [vmem:[%s1213 + $0x10] sm:$0xff] %v3419
        %3476 = vst [vmem:[%s1213 + $0x18] sm:$0xff] %v3468
        %s3477 = smul.u32 32, %s16
        %p3478 = scmp.lt.s32.totalorder %s3477, 63
        %s3479 = scalar_select %p3478, %s3477, 63
        %s3480 = scalar_lea.vmem %s3, %s3479
        // Predicated region
        $region56: #{inversion_forward.9} parent=50 // pred_check
          %p3481 = pneg %p102
        $region57: #{inversion_forward.9} parent=50 // pred_check_branch
          %3483 = sbr.rel (%p3481) target = $region59
        $region58: #{inversion_forward.9} parent=50 // pred_region
          %s3484 = smul.u32 32, %s16
        $region59: #{inversion_forward.9} parent=50 // pred_fallthru
          _
      $region51: #{inversion_forward.9} parent=5 // pred_fallthru
        _
      %p3485 = scmp.le.s32.totalorder 2, %s11
      // Predicated region
      $region60: #{inversion_forward.9} parent=5 // pred_check
        %p3486 = pneg %p3485
      $region61: #{inversion_forward.9} parent=5 // pred_check_branch
        %3488 = sbr.rel (%p3486) target = $region63
      $region62: #{inversion_forward.9} parent=5 // pred_region
        %s3489 = ssub.s32 %s11, 2
        // Predicated region
        $region64: #{inversion_forward.9} parent=62 // pred_check
          %p3490 = pneg %p108
        $region65: #{inversion_forward.9} parent=62 // pred_check_branch
          %3492 = sbr.rel (%p3490) target = $region67
        $region66: #{inversion_forward.9} parent=62 // pred_region
          %s3493 = smul.u32 32, %s17
          %p3494 = scmp.lt.s32.totalorder %s3493, 63
          %s3495 = scalar_select %p3494, %s3493, 63
          %s3496 = scalar_lea.vmem %s3, %s3495
        $region67: #{inversion_forward.9} parent=62 // pred_fallthru
          _
      $region63: #{inversion_forward.9} parent=5 // pred_fallthru
        _
    $region6: #{inversion_forward.9} parent=1 // loop_footer
      %s15 = sadd.s32 1, %s11
    $region7: #{inversion_forward.9} parent=1 // loop_footer_branch
      %10 = sbr.rel target = $region3
    $region8: #{inversion_forward.9} parent=1 // loop_exit
      _

</llo_original>
